<compile_context>
chip_gen: v6e
topology: v6e:2x2x1
jax: 0.10.0
libtpu: 0.0.40
codegen_flags: <defaults>
</compile_context>

<pallas_src>
import functools
import math

import jax
import jax.numpy as jnp
from jax.experimental import pallas as pl
from jax.experimental.pallas import tpu as pltpu


# ----------------------------------------------------------------------------
# Pallas kernels
# ----------------------------------------------------------------------------
def matmul_bias_relu6_kernel(x_ref, w_ref, b_ref, o_ref):
    # x: (tm, K) bf16, w: (K, N) bf16, b: (1, N) f32 -> o: (tm, N) bf16
    y = jnp.dot(x_ref[...], w_ref[...], preferred_element_type=jnp.float32)
    y = y + b_ref[...]
    o_ref[...] = jnp.clip(y, 0.0, 6.0).astype(o_ref.dtype)


def dwsep_fused_kernel(p_ref, dw_ref, db_ref, pw_ref, pb_ref, o_ref):
    # Fused depthwise(3x3) + BN + ReLU6 + pointwise(1x1) + BN + ReLU6.
    #   p:  (9, tm, Kp)  bf16 im2col taps (lane-packed: Kp = f*Cin)
    #   dw: (9, 1, Kp)   f32 per-channel depthwise weights (BN scale folded, lane-tiled)
    #   db: (1, Kp)      f32 depthwise bias
    #   pw: (Kp, Np)     bf16 block-diagonal pointwise weights (Np = f*Cout)
    #   pb: (1, Np)      f32 pointwise bias
    acc = jnp.zeros(p_ref.shape[1:], jnp.float32)
    for k in range(9):  # static unroll over the 3x3 taps (VPU, f32 accumulation)
        acc = acc + p_ref[k].astype(jnp.float32) * dw_ref[k]
    y = jnp.clip(acc + db_ref[...], 0.0, 6.0).astype(pw_ref.dtype)
    z = jnp.dot(y, pw_ref[...], preferred_element_type=jnp.float32) + pb_ref[...]
    o_ref[...] = jnp.clip(z, 0.0, 6.0).astype(o_ref.dtype)


def pool_fc_kernel(x_ref, w_ref, b_ref, o_ref):
    # Global average pool + SlimmableLinear classifier.
    #   x: (N, HW, C) bf16, w: (C, ncls) f32, b: (1, ncls) f32 -> o: (N, ncls) f32
    x = x_ref[...].astype(jnp.float32)
    pooled = jnp.mean(x, axis=1)
    y = jnp.dot(pooled, w_ref[...], preferred_element_type=jnp.float32) + b_ref[...]
    o_ref[...] = y.astype(o_ref.dtype)


# ----------------------------------------------------------------------------
# Pallas wrappers
# ----------------------------------------------------------------------------
def _round_up(x, m):
    return (x + m - 1) // m * m


def _pick_tm(m_rows, k_lanes):
    # Keep the double-buffered (9, tm, K) tap block comfortably inside scoped VMEM
    # (v7x has only 32 MiB scoped / 64 MiB physical).
    if k_lanes <= 256:
        cap = 512
    elif k_lanes <= 512:
        cap = 256
    else:
        cap = 128
    return min(cap, _round_up(m_rows, 8))


def matmul_bias_relu6(x, w, b):
    M, K = x.shape
    N = w.shape[1]
    tm = _pick_tm(M, K)
    Mp = _round_up(M, tm)
    if Mp != M:
        x = jnp.pad(x, ((0, Mp - M), (0, 0)))
    out = pl.pallas_call(
        matmul_bias_relu6_kernel,
        out_shape=jax.ShapeDtypeStruct((Mp, N), jnp.bfloat16),
        grid=(Mp // tm,),
        in_specs=[
            pl.BlockSpec((tm, K), lambda i: (i, 0)),
            pl.BlockSpec((K, N), lambda i: (0, 0)),
            pl.BlockSpec((1, N), lambda i: (0, 0)),
        ],
        out_specs=pl.BlockSpec((tm, N), lambda i: (i, 0)),
        compiler_params=pltpu.CompilerParams(dimension_semantics=("parallel",)),
    )(x, w, b)
    return out[:M] if Mp != M else out


def dwsep_fused(p, dw_w, dw_b, pw_w, pw_b):
    # p: (9, M, Kp) bf16 packed taps -> (M, Np) bf16
    _, M, Kp = p.shape
    Np = pw_w.shape[1]
    tm = _pick_tm(M, Kp)
    Mp = _round_up(M, tm)
    if Mp != M:
        p = jnp.pad(p, ((0, 0), (0, Mp - M), (0, 0)))
    out = pl.pallas_call(
        dwsep_fused_kernel,
        out_shape=jax.ShapeDtypeStruct((Mp, Np), jnp.bfloat16),
        grid=(Mp // tm,),
        in_specs=[
            pl.BlockSpec((9, tm, Kp), lambda i: (0, i, 0)),
            pl.BlockSpec((9, 1, Kp), lambda i: (0, 0, 0)),
            pl.BlockSpec((1, Kp), lambda i: (0, 0)),
            pl.BlockSpec((Kp, Np), lambda i: (0, 0)),
            pl.BlockSpec((1, Np), lambda i: (0, 0)),
        ],
        out_specs=pl.BlockSpec((tm, Np), lambda i: (i, 0)),
        compiler_params=pltpu.CompilerParams(dimension_semantics=("parallel",)),
    )(p, dw_w, dw_b, pw_w, pw_b)
    return out[:M] if Mp != M else out


def pool_fc(x, w, b):
    # x: (N, HW, C) bf16 -> (N, ncls) f32
    N, HW, C = x.shape
    ncls = w.shape[1]
    return pl.pallas_call(
        pool_fc_kernel,
        out_shape=jax.ShapeDtypeStruct((N, ncls), jnp.float32),
        grid=(1,),
        in_specs=[
            pl.BlockSpec((N, HW, C), lambda i: (0, 0, 0)),
            pl.BlockSpec((C, ncls), lambda i: (0, 0)),
            pl.BlockSpec((1, ncls), lambda i: (0, 0)),
        ],
        out_specs=pl.BlockSpec((N, ncls), lambda i: (0, 0)),
    )(x, w, b)


# ----------------------------------------------------------------------------
# JAX glue: im2col patch extraction (3x3, pad=1, stride in {1,2}) and lane packing
# ----------------------------------------------------------------------------
def extract_patches_3x3(x, stride):
    # x: (N, H, W, C) NHWC -> (9, N*Ho*Wo, C), Ho, Wo   (tap order kh*3 + kw)
    N, H, W, C = x.shape
    xp = jnp.pad(x, ((0, 0), (1, 1), (1, 1), (0, 0)))
    Ho = (H + 2 - 3) // stride + 1
    Wo = (W + 2 - 3) // stride + 1
    taps = []
    for kh in range(3):
        for kw in range(3):
            taps.append(
                xp[:, kh:kh + stride * (Ho - 1) + 1:stride,
                      kw:kw + stride * (Wo - 1) + 1:stride, :]
            )
    p = jnp.stack(taps, axis=0)  # (9, N, Ho, Wo, C)
    return p.reshape(9, N * Ho * Wo, C), Ho, Wo


def _pack_factor(channels, rows):
    # Group f consecutive spatial positions per row so f*channels >= 128 lanes.
    f = max(1, 128 // channels)
    while f > 1 and rows % f != 0:
        f //= 2
    return f


def _block_diag(w, f):
    # (K, N) -> (f*K, f*N) block-diagonal (row-major consistent with lane packing).
    if f == 1:
        return w
    return jnp.kron(jnp.eye(f, dtype=w.dtype), w)


# ----------------------------------------------------------------------------
# Model forward (mirrors Model.forward / DepthwiseSeparableConv.forward)
# ----------------------------------------------------------------------------
def model_forward(x_nchw, params, arch):
    x = jnp.transpose(x_nchw, (0, 2, 3, 1)).astype(jnp.bfloat16)  # NCHW -> NHWC bf16
    N = x.shape[0]

    # --- first layer: SlimmableConv2d(3, c0, 3, stride=2, pad=1) + BN + ReLU6 ---
    p, Ho, Wo = extract_patches_3x3(x, 2)                 # (9, M, 3)
    M = p.shape[1]
    pm = jnp.transpose(p, (1, 0, 2)).reshape(M, 27)       # tap-major then cin
    pm = jnp.pad(pm, ((0, 0), (0, 5)))                    # K: 27 -> 32 (aligned sublanes)
    c0 = params["first_w"].shape[1]
    f = _pack_factor(c0, M)
    lhs = pm.reshape(M // f, f * 32)                      # free row-major repack
    w = _block_diag(params["first_w"], f)                 # (f*32, f*c0) bf16
    b = jnp.tile(params["first_b"], (1, f))               # (1, f*c0)
    y = matmul_bias_relu6(lhs, w, b)                      # (M//f, f*c0) bf16
    x = y.reshape(N, Ho, Wo, c0)

    # --- DepthwiseSeparableConv blocks: fully fused dw(3x3)+BN+ReLU6+pw(1x1)+BN+ReLU6 ---
    for blk, (cin, cout, stride) in zip(params["blocks"], arch):
        p, Ho, Wo = extract_patches_3x3(x, stride)        # (9, M, cin) bf16
        M = p.shape[1]
        f = _pack_factor(cin, M)
        kp = f * cin
        taps = p.reshape(9, M // f, kp)                   # free row-major repack
        dw_w = jnp.tile(blk["dw_w"], (1, f)).reshape(9, 1, kp)
        dw_b = jnp.tile(blk["dw_b"], (1, f))
        pw_w = _block_diag(blk["pw_w"], f)                # (f*cin, f*cout) bf16
        pw_b = jnp.tile(blk["pw_b"], (1, f))
        y = dwsep_fused(taps, dw_w, dw_b, pw_w, pw_b)     # (M//f, f*cout) bf16
        x = y.reshape(N, Ho, Wo, cout)

    # --- AvgPool2d(input_size // 32) + SlimmableLinear classifier (fused kernel) ---
    Nb, Hf, Wf, C = x.shape
    out = pool_fc(x.reshape(Nb, Hf * Wf, C), params["cls_w"], params["cls_b"])
    return out


# ----------------------------------------------------------------------------
# Architecture + deterministic parameter init (mirrors reset_parameters, BN folded)
# ----------------------------------------------------------------------------
def build_arch(channel_list):
    block_setting = [[64, 1, 1], [128, 2, 2], [256, 2, 2], [512, 6, 2], [1024, 2, 2]]
    arch = []
    channels = channel_list[0]
    idx = 1
    for _, n, s in block_setting:
        for i in range(n):
            outp = channel_list[idx]
            idx += 1
            arch.append((channels, outp, s if i == 0 else 1))
            channels = outp
    return tuple(arch)


def init_params(key, channel_list, num_classes):
    arch = build_arch(channel_list)
    eps = 1e-5
    bn_scale = 1.0 / math.sqrt(1.0 + eps)  # gamma=1, beta=0, mean=0, var=1 folded
    keys = iter(jax.random.split(key, 4 * len(arch) + 8))
    params = {}

    c0 = channel_list[0]
    std = math.sqrt(2.0 / (3 * 3 * c0))
    w = std * jax.random.normal(next(keys), (3, 3, 3, c0), jnp.float32)   # HWIO
    w = (w * bn_scale).reshape(27, c0)                                    # BN scale folded
    params["first_w"] = jnp.pad(w, ((0, 5), (0, 0))).astype(jnp.bfloat16)  # K 27 -> 32
    params["first_b"] = jnp.zeros((1, c0), jnp.float32)

    blocks = []
    for (cin, cout, _) in arch:
        dw_std = math.sqrt(2.0 / (3 * 3 * cin))   # depthwise: out_channels == cin
        dw_w = dw_std * jax.random.normal(next(keys), (3, 3, cin), jnp.float32)
        pw_std = math.sqrt(2.0 / (1 * 1 * cout))
        pw_w = pw_std * jax.random.normal(next(keys), (cin, cout), jnp.float32)
        blocks.append(dict(
            dw_w=(dw_w.reshape(9, cin) * bn_scale).astype(jnp.float32),
            dw_b=jnp.zeros((1, cin), jnp.float32),
            pw_w=(pw_w * bn_scale).astype(jnp.bfloat16),
            pw_b=jnp.zeros((1, cout), jnp.float32),
        ))
    params["blocks"] = blocks

    params["cls_w"] = 0.01 * jax.random.normal(next(keys), (arch[-1][1], num_classes),
                                               jnp.float32)
    params["cls_b"] = jnp.zeros((1, num_classes), jnp.float32)
    return params, arch


if __name__ == "__main__":
    key = jax.random.PRNGKey(0)
    k_param, k_x = jax.random.split(key)

    # Small slimmed channel_num_list (14 entries: first conv + 13 DW-sep blocks)
    channel_list = [8, 16, 32, 32, 64, 64, 128, 128, 128, 128, 128, 128, 256, 256]
    num_classes = 16
    input_size = 64  # must be % 32 == 0
    batch = 2

    params, arch = init_params(k_param, channel_list, num_classes)
    x = jax.random.normal(k_x, (batch, 3, input_size, input_size), jnp.float32)  # NCHW

    fwd = jax.jit(functools.partial(model_forward, arch=arch))
    out = jax.block_until_ready(fwd(x, params))
    assert out.shape == (batch, num_classes)
    assert bool(jnp.all(jnp.isfinite(out)))
    print("KERNEL_OK")
</pallas_src>

<mosaic_0001>
module attributes {stable_mosaic.version = 11 : i64} {
  func.func @matmul_bias_relu6_kernel(%arg0: i32, %arg1: memref<128x512xbf16, #tpu.memory_space<vmem>>, %arg2: memref<512x128xbf16, #tpu.memory_space<vmem>>, %arg3: memref<1x128xf32, #tpu.memory_space<vmem>>, %arg4: memref<128x128xbf16, #tpu.memory_space<vmem>>) attributes {dimension_semantics = [#tpu.dimension_semantics<parallel>], iteration_bounds = array<i64: 1>, scalar_prefetch = 0 : i64, scratch_operands = 0 : i64, tpu.core_type = #tpu.core_type<tc>, window_params = [{transform_indices = @transform_0, window_bounds = array<i64: 128, 512>}, {pipeline_mode = #tpu.pipeline_mode<synchronous>, transform_indices = @transform_1, window_bounds = array<i64: 512, 128>}, {pipeline_mode = #tpu.pipeline_mode<synchronous>, transform_indices = @transform_2, window_bounds = array<i64: 1, 128>}, {transform_indices = @transform_3, window_bounds = array<i64: 128, 128>}]} {
    %c0 = arith.constant 0 : index
    %c0_0 = arith.constant 0 : index
    %0 = vector.load %arg1[%c0, %c0_0] : memref<128x512xbf16, #tpu.memory_space<vmem>>, vector<128x512xbf16>
    %c0_1 = arith.constant 0 : index
    %c0_2 = arith.constant 0 : index
    %1 = vector.load %arg2[%c0_1, %c0_2] : memref<512x128xbf16, #tpu.memory_space<vmem>>, vector<512x128xbf16>
    %cst = arith.constant dense<0.000000e+00> : vector<128x128xf32>
    %2 = tpu.matmul %0, %1, %cst {dimension_numbers = #tpu.dot_dimension_numbers<[1], [0], [0], [1], [0, 0, 1, 1], [], []>} : vector<128x512xbf16>, vector<512x128xbf16>, vector<128x128xf32> -> vector<128x128xf32>
    %c0_3 = arith.constant 0 : index
    %c0_4 = arith.constant 0 : index
    %3 = vector.load %arg3[%c0_3, %c0_4] : memref<1x128xf32, #tpu.memory_space<vmem>>, vector<1x128xf32>
    %4 = vector.broadcast %3 : vector<1x128xf32> to vector<128x128xf32>
    %5 = arith.addf %2, %4 : vector<128x128xf32>
    %cst_5 = arith.constant 0.000000e+00 : f32
    %cst_6 = arith.constant 6.000000e+00 : f32
    %6 = vector.broadcast %cst_5 : f32 to vector<128x128xf32>
    %7 = arith.maximumf %6, %5 : vector<128x128xf32>
    %8 = vector.broadcast %cst_6 : f32 to vector<128x128xf32>
    %9 = arith.minimumf %8, %7 : vector<128x128xf32>
    %10 = arith.truncf %9 : vector<128x128xf32> to vector<128x128xbf16>
    %c0_7 = arith.constant 0 : index
    %c0_8 = arith.constant 0 : index
    %11 = vector.load %arg4[%c0_7, %c0_8] : memref<128x128xbf16, #tpu.memory_space<vmem>>, vector<128x128xbf16>
    tpu.vector_store %arg4[%c0_7, %c0_8], %10 {strides = array<i32>} : memref<128x128xbf16, #tpu.memory_space<vmem>>, vector<128x128xbf16>,
    return
  }
  func.func @transform_0(%arg0: i32) -> (i32, i32) {
    %c0_i32 = arith.constant 0 : i32
    %c0_i32_0 = arith.constant 0 : i32
    return %arg0, %c0_i32 : i32, i32
  }
  func.func @transform_1(%arg0: i32) -> (i32, i32) {
    %c0_i32 = arith.constant 0 : i32
    %c0_i32_0 = arith.constant 0 : i32
    %c0_i32_1 = arith.constant 0 : i32
    return %c0_i32, %c0_i32_0 : i32, i32
  }
  func.func @transform_2(%arg0: i32) -> (i32, i32) {
    %c0_i32 = arith.constant 0 : i32
    %c0_i32_0 = arith.constant 0 : i32
    %c0_i32_1 = arith.constant 0 : i32
    return %c0_i32, %c0_i32_0 : i32, i32
  }
  func.func @transform_3(%arg0: i32) -> (i32, i32) {
    %c0_i32 = arith.constant 0 : i32
    %c0_i32_0 = arith.constant 0 : i32
    return %arg0, %c0_i32 : i32, i32
  }
}

module attributes {stable_mosaic.version = 11 : i64} {
  func.func @dwsep_fused_kernel(%arg0: i32, %arg1: memref<9x128x128xbf16, #tpu.memory_space<vmem>>, %arg2: memref<9x1x128xf32, #tpu.memory_space<vmem>>, %arg3: memref<1x128xf32, #tpu.memory_space<vmem>>, %arg4: memref<128x256xbf16, #tpu.memory_space<vmem>>, %arg5: memref<1x256xf32, #tpu.memory_space<vmem>>, %arg6: memref<128x256xbf16, #tpu.memory_space<vmem>>) attributes {dimension_semantics = [#tpu.dimension_semantics<parallel>], iteration_bounds = array<i64: 1>, scalar_prefetch = 0 : i64, scratch_operands = 0 : i64, tpu.core_type = #tpu.core_type<tc>, window_params = [{transform_indices = @transform_0, window_bounds = array<i64: 9, 128, 128>}, {pipeline_mode = #tpu.pipeline_mode<synchronous>, transform_indices = @transform_1, window_bounds = array<i64: 9, 1, 128>}, {pipeline_mode = #tpu.pipeline_mode<synchronous>, transform_indices = @transform_2, window_bounds = array<i64: 1, 128>}, {pipeline_mode = #tpu.pipeline_mode<synchronous>, transform_indices = @transform_3, window_bounds = array<i64: 128, 256>}, {pipeline_mode = #tpu.pipeline_mode<synchronous>, transform_indices = @transform_4, window_bounds = array<i64: 1, 256>}, {transform_indices = @transform_5, window_bounds = array<i64: 128, 256>}]} {
    %cst = arith.constant 0.000000e+00 : f32
    %0 = vector.broadcast %cst : f32 to vector<128x128xf32>
    %c0 = arith.constant 0 : index
    %c0_0 = arith.constant 0 : index
    %c0_1 = arith.constant 0 : index
    %1 = vector.load %arg1[%c0, %c0_0, %c0_1] : memref<9x128x128xbf16, #tpu.memory_space<vmem>>, vector<1x128x128xbf16>
    %2 = vector.shape_cast %1 : vector<1x128x128xbf16> to vector<128x128xbf16>
    %3 = arith.extf %2 : vector<128x128xbf16> to vector<128x128xf32>
    %c0_2 = arith.constant 0 : index
    %c0_3 = arith.constant 0 : index
    %c0_4 = arith.constant 0 : index
    %4 = vector.load %arg2[%c0_2, %c0_3, %c0_4] : memref<9x1x128xf32, #tpu.memory_space<vmem>>, vector<1x1x128xf32>
    %5 = vector.shape_cast %4 : vector<1x1x128xf32> to vector<1x128xf32>
    %6 = vector.broadcast %5 : vector<1x128xf32> to vector<128x128xf32>
    %7 = arith.mulf %3, %6 : vector<128x128xf32>
    %8 = arith.addf %0, %7 : vector<128x128xf32>
    %c1 = arith.constant 1 : index
    %c0_5 = arith.constant 0 : index
    %c0_6 = arith.constant 0 : index
    %9 = vector.load %arg1[%c1, %c0_5, %c0_6] : memref<9x128x128xbf16, #tpu.memory_space<vmem>>, vector<1x128x128xbf16>
    %10 = vector.shape_cast %9 : vector<1x128x128xbf16> to vector<128x128xbf16>
    %11 = arith.extf %10 : vector<128x128xbf16> to vector<128x128xf32>
    %c1_7 = arith.constant 1 : index
    %c0_8 = arith.constant 0 : index
    %c0_9 = arith.constant 0 : index
    %12 = vector.load %arg2[%c1_7, %c0_8, %c0_9] : memref<9x1x128xf32, #tpu.memory_space<vmem>>, vector<1x1x128xf32>
    %13 = vector.shape_cast %12 : vector<1x1x128xf32> to vector<1x128xf32>
    %14 = vector.broadcast %13 : vector<1x128xf32> to vector<128x128xf32>
    %15 = arith.mulf %11, %14 : vector<128x128xf32>
    %16 = arith.addf %8, %15 : vector<128x128xf32>
    %c2 = arith.constant 2 : index
    %c0_10 = arith.constant 0 : index
    %c0_11 = arith.constant 0 : index
    %17 = vector.load %arg1[%c2, %c0_10, %c0_11] : memref<9x128x128xbf16, #tpu.memory_space<vmem>>, vector<1x128x128xbf16>
    %18 = vector.shape_cast %17 : vector<1x128x128xbf16> to vector<128x128xbf16>
    %19 = arith.extf %18 : vector<128x128xbf16> to vector<128x128xf32>
    %c2_12 = arith.constant 2 : index
    %c0_13 = arith.constant 0 : index
    %c0_14 = arith.constant 0 : index
    %20 = vector.load %arg2[%c2_12, %c0_13, %c0_14] : memref<9x1x128xf32, #tpu.memory_space<vmem>>, vector<1x1x128xf32>
    %21 = vector.shape_cast %20 : vector<1x1x128xf32> to vector<1x128xf32>
    %22 = vector.broadcast %21 : vector<1x128xf32> to vector<128x128xf32>
    %23 = arith.mulf %19, %22 : vector<128x128xf32>
    %24 = arith.addf %16, %23 : vector<128x128xf32>
    %c3 = arith.constant 3 : index
    %c0_15 = arith.constant 0 : index
    %c0_16 = arith.constant 0 : index
    %25 = vector.load %arg1[%c3, %c0_15, %c0_16] : memref<9x128x128xbf16, #tpu.memory_space<vmem>>, vector<1x128x128xbf16>
    %26 = vector.shape_cast %25 : vector<1x128x128xbf16> to vector<128x128xbf16>
    %27 = arith.extf %26 : vector<128x128xbf16> to vector<128x128xf32>
    %c3_17 = arith.constant 3 : index
    %c0_18 = arith.constant 0 : index
    %c0_19 = arith.constant 0 : index
    %28 = vector.load %arg2[%c3_17, %c0_18, %c0_19] : memref<9x1x128xf32, #tpu.memory_space<vmem>>, vector<1x1x128xf32>
    %29 = vector.shape_cast %28 : vector<1x1x128xf32> to vector<1x128xf32>
    %30 = vector.broadcast %29 : vector<1x128xf32> to vector<128x128xf32>
    %31 = arith.mulf %27, %30 : vector<128x128xf32>
    %32 = arith.addf %24, %31 : vector<128x128xf32>
    %c4 = arith.constant 4 : index
    %c0_20 = arith.constant 0 : index
    %c0_21 = arith.constant 0 : index
    %33 = vector.load %arg1[%c4, %c0_20, %c0_21] : memref<9x128x128xbf16, #tpu.memory_space<vmem>>, vector<1x128x128xbf16>
    %34 = vector.shape_cast %33 : vector<1x128x128xbf16> to vector<128x128xbf16>
    %35 = arith.extf %34 : vector<128x128xbf16> to vector<128x128xf32>
    %c4_22 = arith.constant 4 : index
    %c0_23 = arith.constant 0 : index
    %c0_24 = arith.constant 0 : index
    %36 = vector.load %arg2[%c4_22, %c0_23, %c0_24] : memref<9x1x128xf32, #tpu.memory_space<vmem>>, vector<1x1x128xf32>
    %37 = vector.shape_cast %36 : vector<1x1x128xf32> to vector<1x128xf32>
    %38 = vector.broadcast %37 : vector<1x128xf32> to vector<128x128xf32>
    %39 = arith.mulf %35, %38 : vector<128x128xf32>
    %40 = arith.addf %32, %39 : vector<128x128xf32>
    %c5 = arith.constant 5 : index
    %c0_25 = arith.constant 0 : index
    %c0_26 = arith.constant 0 : index
    %41 = vector.load %arg1[%c5, %c0_25, %c0_26] : memref<9x128x128xbf16, #tpu.memory_space<vmem>>, vector<1x128x128xbf16>
    %42 = vector.shape_cast %41 : vector<1x128x128xbf16> to vector<128x128xbf16>
    %43 = arith.extf %42 : vector<128x128xbf16> to vector<128x128xf32>
    %c5_27 = arith.constant 5 : index
    %c0_28 = arith.constant 0 : index
    %c0_29 = arith.constant 0 : index
    %44 = vector.load %arg2[%c5_27, %c0_28, %c0_29] : memref<9x1x128xf32, #tpu.memory_space<vmem>>, vector<1x1x128xf32>
    %45 = vector.shape_cast %44 : vector<1x1x128xf32> to vector<1x128xf32>
    %46 = vector.broadcast %45 : vector<1x128xf32> to vector<128x128xf32>
    %47 = arith.mulf %43, %46 : vector<128x128xf32>
    %48 = arith.addf %40, %47 : vector<128x128xf32>
    %c6 = arith.constant 6 : index
    %c0_30 = arith.constant 0 : index
    %c0_31 = arith.constant 0 : index
    %49 = vector.load %arg1[%c6, %c0_30, %c0_31] : memref<9x128x128xbf16, #tpu.memory_space<vmem>>, vector<1x128x128xbf16>
    %50 = vector.shape_cast %49 : vector<1x128x128xbf16> to vector<128x128xbf16>
    %51 = arith.extf %50 : vector<128x128xbf16> to vector<128x128xf32>
    %c6_32 = arith.constant 6 : index
    %c0_33 = arith.constant 0 : index
    %c0_34 = arith.constant 0 : index
    %52 = vector.load %arg2[%c6_32, %c0_33, %c0_34] : memref<9x1x128xf32, #tpu.memory_space<vmem>>, vector<1x1x128xf32>
    %53 = vector.shape_cast %52 : vector<1x1x128xf32> to vector<1x128xf32>
    %54 = vector.broadcast %53 : vector<1x128xf32> to vector<128x128xf32>
    %55 = arith.mulf %51, %54 : vector<128x128xf32>
    %56 = arith.addf %48, %55 : vector<128x128xf32>
    %c7 = arith.constant 7 : index
    %c0_35 = arith.constant 0 : index
    %c0_36 = arith.constant 0 : index
    %57 = vector.load %arg1[%c7, %c0_35, %c0_36] : memref<9x128x128xbf16, #tpu.memory_space<vmem>>, vector<1x128x128xbf16>
    %58 = vector.shape_cast %57 : vector<1x128x128xbf16> to vector<128x128xbf16>
    %59 = arith.extf %58 : vector<128x128xbf16> to vector<128x128xf32>
    %c7_37 = arith.constant 7 : index
    %c0_38 = arith.constant 0 : index
    %c0_39 = arith.constant 0 : index
    %60 = vector.load %arg2[%c7_37, %c0_38, %c0_39] : memref<9x1x128xf32, #tpu.memory_space<vmem>>, vector<1x1x128xf32>
    %61 = vector.shape_cast %60 : vector<1x1x128xf32> to vector<1x128xf32>
    %62 = vector.broadcast %61 : vector<1x128xf32> to vector<128x128xf32>
    %63 = arith.mulf %59, %62 : vector<128x128xf32>
    %64 = arith.addf %56, %63 : vector<128x128xf32>
    %c8 = arith.constant 8 : index
    %c0_40 = arith.constant 0 : index
    %c0_41 = arith.constant 0 : index
    %65 = vector.load %arg1[%c8, %c0_40, %c0_41] : memref<9x128x128xbf16, #tpu.memory_space<vmem>>, vector<1x128x128xbf16>
    %66 = vector.shape_cast %65 : vector<1x128x128xbf16> to vector<128x128xbf16>
    %67 = arith.extf %66 : vector<128x128xbf16> to vector<128x128xf32>
    %c8_42 = arith.constant 8 : index
    %c0_43 = arith.constant 0 : index
    %c0_44 = arith.constant 0 : index
    %68 = vector.load %arg2[%c8_42, %c0_43, %c0_44] : memref<9x1x128xf32, #tpu.memory_space<vmem>>, vector<1x1x128xf32>
    %69 = vector.shape_cast %68 : vector<1x1x128xf32> to vector<1x128xf32>
    %70 = vector.broadcast %69 : vector<1x128xf32> to vector<128x128xf32>
    %71 = arith.mulf %67, %70 : vector<128x128xf32>
    %72 = arith.addf %64, %71 : vector<128x128xf32>
    %c0_45 = arith.constant 0 : index
    %c0_46 = arith.constant 0 : index
    %73 = vector.load %arg3[%c0_45, %c0_46] : memref<1x128xf32, #tpu.memory_space<vmem>>, vector<1x128xf32>
    %74 = vector.broadcast %73 : vector<1x128xf32> to vector<128x128xf32>
    %75 = arith.addf %72, %74 : vector<128x128xf32>
    %cst_47 = arith.constant 0.000000e+00 : f32
    %cst_48 = arith.constant 6.000000e+00 : f32
    %76 = vector.broadcast %cst_47 : f32 to vector<128x128xf32>
    %77 = arith.maximumf %76, %75 : vector<128x128xf32>
    %78 = vector.broadcast %cst_48 : f32 to vector<128x128xf32>
    %79 = arith.minimumf %78, %77 : vector<128x128xf32>
    %80 = arith.truncf %79 : vector<128x128xf32> to vector<128x128xbf16>
    %c0_49 = arith.constant 0 : index
    %c0_50 = arith.constant 0 : index
    %81 = vector.load %arg4[%c0_49, %c0_50] : memref<128x256xbf16, #tpu.memory_space<vmem>>, vector<128x256xbf16>
    %cst_51 = arith.constant dense<0.000000e+00> : vector<128x256xf32>
    %82 = tpu.matmul %80, %81, %cst_51 {dimension_numbers = #tpu.dot_dimension_numbers<[1], [0], [0], [1], [0, 0, 1, 1], [], []>} : vector<128x128xbf16>, vector<128x256xbf16>, vector<128x256xf32> -> vector<128x256xf32>
    %c0_52 = arith.constant 0 : index
    %c0_53 = arith.constant 0 : index
    %83 = vector.load %arg5[%c0_52, %c0_53] : memref<1x256xf32, #tpu.memory_space<vmem>>, vector<1x256xf32>
    %84 = vector.broadcast %83 : vector<1x256xf32> to vector<128x256xf32>
    %85 = arith.addf %82, %84 : vector<128x256xf32>
    %cst_54 = arith.constant 0.000000e+00 : f32
    %cst_55 = arith.constant 6.000000e+00 : f32
    %86 = vector.broadcast %cst_54 : f32 to vector<128x256xf32>
    %87 = arith.maximumf %86, %85 : vector<128x256xf32>
    %88 = vector.broadcast %cst_55 : f32 to vector<128x256xf32>
    %89 = arith.minimumf %88, %87 : vector<128x256xf32>
    %90 = arith.truncf %89 : vector<128x256xf32> to vector<128x256xbf16>
    %c0_56 = arith.constant 0 : index
    %c0_57 = arith.constant 0 : index
    %91 = vector.load %arg6[%c0_56, %c0_57] : memref<128x256xbf16, #tpu.memory_space<vmem>>, vector<128x256xbf16>
    tpu.vector_store %arg6[%c0_56, %c0_57], %90 {strides = array<i32>} : memref<128x256xbf16, #tpu.memory_space<vmem>>, vector<128x256xbf16>,
    return
  }
  func.func @transform_0(%arg0: i32) -> (i32, i32, i32) {
    %c0_i32 = arith.constant 0 : i32
    %c0_i32_0 = arith.constant 0 : i32
    %c0_i32_1 = arith.constant 0 : i32
    return %c0_i32, %arg0, %c0_i32_0 : i32, i32, i32
  }
  func.func @transform_1(%arg0: i32) -> (i32, i32, i32) {
    %c0_i32 = arith.constant 0 : i32
    %c0_i32_0 = arith.constant 0 : i32
    %c0_i32_1 = arith.constant 0 : i32
    %c0_i32_2 = arith.constant 0 : i32
    return %c0_i32, %c0_i32_0, %c0_i32_1 : i32, i32, i32
  }
  func.func @transform_2(%arg0: i32) -> (i32, i32) {
    %c0_i32 = arith.constant 0 : i32
    %c0_i32_0 = arith.constant 0 : i32
    %c0_i32_1 = arith.constant 0 : i32
    return %c0_i32, %c0_i32_0 : i32, i32
  }
  func.func @transform_3(%arg0: i32) -> (i32, i32) {
    %c0_i32 = arith.constant 0 : i32
    %c0_i32_0 = arith.constant 0 : i32
    %c0_i32_1 = arith.constant 0 : i32
    return %c0_i32, %c0_i32_0 : i32, i32
  }
  func.func @transform_4(%arg0: i32) -> (i32, i32) {
    %c0_i32 = arith.constant 0 : i32
    %c0_i32_0 = arith.constant 0 : i32
    %c0_i32_1 = arith.constant 0 : i32
    return %c0_i32, %c0_i32_0 : i32, i32
  }
  func.func @transform_5(%arg0: i32) -> (i32, i32) {
    %c0_i32 = arith.constant 0 : i32
    %c0_i32_0 = arith.constant 0 : i32
    return %arg0, %c0_i32 : i32, i32
  }
}

module attributes {stable_mosaic.version = 11 : i64} {
  func.func @dwsep_fused_kernel(%arg0: i32, %arg1: memref<9x64x128xbf16, #tpu.memory_space<vmem>>, %arg2: memref<9x1x128xf32, #tpu.memory_space<vmem>>, %arg3: memref<1x128xf32, #tpu.memory_space<vmem>>, %arg4: memref<128x256xbf16, #tpu.memory_space<vmem>>, %arg5: memref<1x256xf32, #tpu.memory_space<vmem>>, %arg6: memref<64x256xbf16, #tpu.memory_space<vmem>>) attributes {dimension_semantics = [#tpu.dimension_semantics<parallel>], iteration_bounds = array<i64: 1>, scalar_prefetch = 0 : i64, scratch_operands = 0 : i64, tpu.core_type = #tpu.core_type<tc>, window_params = [{transform_indices = @transform_0, window_bounds = array<i64: 9, 64, 128>}, {pipeline_mode = #tpu.pipeline_mode<synchronous>, transform_indices = @transform_1, window_bounds = array<i64: 9, 1, 128>}, {pipeline_mode = #tpu.pipeline_mode<synchronous>, transform_indices = @transform_2, window_bounds = array<i64: 1, 128>}, {pipeline_mode = #tpu.pipeline_mode<synchronous>, transform_indices = @transform_3, window_bounds = array<i64: 128, 256>}, {pipeline_mode = #tpu.pipeline_mode<synchronous>, transform_indices = @transform_4, window_bounds = array<i64: 1, 256>}, {transform_indices = @transform_5, window_bounds = array<i64: 64, 256>}]} {
    %cst = arith.constant 0.000000e+00 : f32
    %0 = vector.broadcast %cst : f32 to vector<64x128xf32>
    %c0 = arith.constant 0 : index
    %c0_0 = arith.constant 0 : index
    %c0_1 = arith.constant 0 : index
    %1 = vector.load %arg1[%c0, %c0_0, %c0_1] : memref<9x64x128xbf16, #tpu.memory_space<vmem>>, vector<1x64x128xbf16>
    %2 = vector.shape_cast %1 : vector<1x64x128xbf16> to vector<64x128xbf16>
    %3 = arith.extf %2 : vector<64x128xbf16> to vector<64x128xf32>
    %c0_2 = arith.constant 0 : index
    %c0_3 = arith.constant 0 : index
    %c0_4 = arith.constant 0 : index
    %4 = vector.load %arg2[%c0_2, %c0_3, %c0_4] : memref<9x1x128xf32, #tpu.memory_space<vmem>>, vector<1x1x128xf32>
    %5 = vector.shape_cast %4 : vector<1x1x128xf32> to vector<1x128xf32>
    %6 = vector.broadcast %5 : vector<1x128xf32> to vector<64x128xf32>
    %7 = arith.mulf %3, %6 : vector<64x128xf32>
    %8 = arith.addf %0, %7 : vector<64x128xf32>
    %c1 = arith.constant 1 : index
    %c0_5 = arith.constant 0 : index
    %c0_6 = arith.constant 0 : index
    %9 = vector.load %arg1[%c1, %c0_5, %c0_6] : memref<9x64x128xbf16, #tpu.memory_space<vmem>>, vector<1x64x128xbf16>
    %10 = vector.shape_cast %9 : vector<1x64x128xbf16> to vector<64x128xbf16>
    %11 = arith.extf %10 : vector<64x128xbf16> to vector<64x128xf32>
    %c1_7 = arith.constant 1 : index
    %c0_8 = arith.constant 0 : index
    %c0_9 = arith.constant 0 : index
    %12 = vector.load %arg2[%c1_7, %c0_8, %c0_9] : memref<9x1x128xf32, #tpu.memory_space<vmem>>, vector<1x1x128xf32>
    %13 = vector.shape_cast %12 : vector<1x1x128xf32> to vector<1x128xf32>
    %14 = vector.broadcast %13 : vector<1x128xf32> to vector<64x128xf32>
    %15 = arith.mulf %11, %14 : vector<64x128xf32>
    %16 = arith.addf %8, %15 : vector<64x128xf32>
    %c2 = arith.constant 2 : index
    %c0_10 = arith.constant 0 : index
    %c0_11 = arith.constant 0 : index
    %17 = vector.load %arg1[%c2, %c0_10, %c0_11] : memref<9x64x128xbf16, #tpu.memory_space<vmem>>, vector<1x64x128xbf16>
    %18 = vector.shape_cast %17 : vector<1x64x128xbf16> to vector<64x128xbf16>
    %19 = arith.extf %18 : vector<64x128xbf16> to vector<64x128xf32>
    %c2_12 = arith.constant 2 : index
    %c0_13 = arith.constant 0 : index
    %c0_14 = arith.constant 0 : index
    %20 = vector.load %arg2[%c2_12, %c0_13, %c0_14] : memref<9x1x128xf32, #tpu.memory_space<vmem>>, vector<1x1x128xf32>
    %21 = vector.shape_cast %20 : vector<1x1x128xf32> to vector<1x128xf32>
    %22 = vector.broadcast %21 : vector<1x128xf32> to vector<64x128xf32>
    %23 = arith.mulf %19, %22 : vector<64x128xf32>
    %24 = arith.addf %16, %23 : vector<64x128xf32>
    %c3 = arith.constant 3 : index
    %c0_15 = arith.constant 0 : index
    %c0_16 = arith.constant 0 : index
    %25 = vector.load %arg1[%c3, %c0_15, %c0_16] : memref<9x64x128xbf16, #tpu.memory_space<vmem>>, vector<1x64x128xbf16>
    %26 = vector.shape_cast %25 : vector<1x64x128xbf16> to vector<64x128xbf16>
    %27 = arith.extf %26 : vector<64x128xbf16> to vector<64x128xf32>
    %c3_17 = arith.constant 3 : index
    %c0_18 = arith.constant 0 : index
    %c0_19 = arith.constant 0 : index
    %28 = vector.load %arg2[%c3_17, %c0_18, %c0_19] : memref<9x1x128xf32, #tpu.memory_space<vmem>>, vector<1x1x128xf32>
    %29 = vector.shape_cast %28 : vector<1x1x128xf32> to vector<1x128xf32>
    %30 = vector.broadcast %29 : vector<1x128xf32> to vector<64x128xf32>
    %31 = arith.mulf %27, %30 : vector<64x128xf32>
    %32 = arith.addf %24, %31 : vector<64x128xf32>
    %c4 = arith.constant 4 : index
    %c0_20 = arith.constant 0 : index
    %c0_21 = arith.constant 0 : index
    %33 = vector.load %arg1[%c4, %c0_20, %c0_21] : memref<9x64x128xbf16, #tpu.memory_space<vmem>>, vector<1x64x128xbf16>
    %34 = vector.shape_cast %33 : vector<1x64x128xbf16> to vector<64x128xbf16>
    %35 = arith.extf %34 : vector<64x128xbf16> to vector<64x128xf32>
    %c4_22 = arith.constant 4 : index
    %c0_23 = arith.constant 0 : index
    %c0_24 = arith.constant 0 : index
    %36 = vector.load %arg2[%c4_22, %c0_23, %c0_24] : memref<9x1x128xf32, #tpu.memory_space<vmem>>, vector<1x1x128xf32>
    %37 = vector.shape_cast %36 : vector<1x1x128xf32> to vector<1x128xf32>
    %38 = vector.broadcast %37 : vector<1x128xf32> to vector<64x128xf32>
    %39 = arith.mulf %35, %38 : vector<64x128xf32>
    %40 = arith.addf %32, %39 : vector<64x128xf32>
    %c5 = arith.constant 5 : index
    %c0_25 = arith.constant 0 : index
    %c0_26 = arith.constant 0 : index
    %41 = vector.load %arg1[%c5, %c0_25, %c0_26] : memref<9x64x128xbf16, #tpu.memory_space<vmem>>, vector<1x64x128xbf16>
    %42 = vector.shape_cast %41 : vector<1x64x128xbf16> to vector<64x128xbf16>
    %43 = arith.extf %42 : vector<64x128xbf16> to vector<64x128xf32>
    %c5_27 = arith.constant 5 : index
    %c0_28 = arith.constant 0 : index
    %c0_29 = arith.constant 0 : index
    %44 = vector.load %arg2[%c5_27, %c0_28, %c0_29] : memref<9x1x128xf32, #tpu.memory_space<vmem>>, vector<1x1x128xf32>
    %45 = vector.shape_cast %44 : vector<1x1x128xf32> to vector<1x128xf32>
    %46 = vector.broadcast %45 : vector<1x128xf32> to vector<64x128xf32>
    %47 = arith.mulf %43, %46 : vector<64x128xf32>
    %48 = arith.addf %40, %47 : vector<64x128xf32>
    %c6 = arith.constant 6 : index
    %c0_30 = arith.constant 0 : index
    %c0_31 = arith.constant 0 : index
    %49 = vector.load %arg1[%c6, %c0_30, %c0_31] : memref<9x64x128xbf16, #tpu.memory_space<vmem>>, vector<1x64x128xbf16>
    %50 = vector.shape_cast %49 : vector<1x64x128xbf16> to vector<64x128xbf16>
    %51 = arith.extf %50 : vector<64x128xbf16> to vector<64x128xf32>
    %c6_32 = arith.constant 6 : index
    %c0_33 = arith.constant 0 : index
    %c0_34 = arith.constant 0 : index
    %52 = vector.load %arg2[%c6_32, %c0_33, %c0_34] : memref<9x1x128xf32, #tpu.memory_space<vmem>>, vector<1x1x128xf32>
    %53 = vector.shape_cast %52 : vector<1x1x128xf32> to vector<1x128xf32>
    %54 = vector.broadcast %53 : vector<1x128xf32> to vector<64x128xf32>
    %55 = arith.mulf %51, %54 : vector<64x128xf32>
    %56 = arith.addf %48, %55 : vector<64x128xf32>
    %c7 = arith.constant 7 : index
    %c0_35 = arith.constant 0 : index
    %c0_36 = arith.constant 0 : index
    %57 = vector.load %arg1[%c7, %c0_35, %c0_36] : memref<9x64x128xbf16, #tpu.memory_space<vmem>>, vector<1x64x128xbf16>
    %58 = vector.shape_cast %57 : vector<1x64x128xbf16> to vector<64x128xbf16>
    %59 = arith.extf %58 : vector<64x128xbf16> to vector<64x128xf32>
    %c7_37 = arith.constant 7 : index
    %c0_38 = arith.constant 0 : index
    %c0_39 = arith.constant 0 : index
    %60 = vector.load %arg2[%c7_37, %c0_38, %c0_39] : memref<9x1x128xf32, #tpu.memory_space<vmem>>, vector<1x1x128xf32>
    %61 = vector.shape_cast %60 : vector<1x1x128xf32> to vector<1x128xf32>
    %62 = vector.broadcast %61 : vector<1x128xf32> to vector<64x128xf32>
    %63 = arith.mulf %59, %62 : vector<64x128xf32>
    %64 = arith.addf %56, %63 : vector<64x128xf32>
    %c8 = arith.constant 8 : index
    %c0_40 = arith.constant 0 : index
    %c0_41 = arith.constant 0 : index
    %65 = vector.load %arg1[%c8, %c0_40, %c0_41] : memref<9x64x128xbf16, #tpu.memory_space<vmem>>, vector<1x64x128xbf16>
    %66 = vector.shape_cast %65 : vector<1x64x128xbf16> to vector<64x128xbf16>
    %67 = arith.extf %66 : vector<64x128xbf16> to vector<64x128xf32>
    %c8_42 = arith.constant 8 : index
    %c0_43 = arith.constant 0 : index
    %c0_44 = arith.constant 0 : index
    %68 = vector.load %arg2[%c8_42, %c0_43, %c0_44] : memref<9x1x128xf32, #tpu.memory_space<vmem>>, vector<1x1x128xf32>
    %69 = vector.shape_cast %68 : vector<1x1x128xf32> to vector<1x128xf32>
    %70 = vector.broadcast %69 : vector<1x128xf32> to vector<64x128xf32>
    %71 = arith.mulf %67, %70 : vector<64x128xf32>
    %72 = arith.addf %64, %71 : vector<64x128xf32>
    %c0_45 = arith.constant 0 : index
    %c0_46 = arith.constant 0 : index
    %73 = vector.load %arg3[%c0_45, %c0_46] : memref<1x128xf32, #tpu.memory_space<vmem>>, vector<1x128xf32>
    %74 = vector.broadcast %73 : vector<1x128xf32> to vector<64x128xf32>
    %75 = arith.addf %72, %74 : vector<64x128xf32>
    %cst_47 = arith.constant 0.000000e+00 : f32
    %cst_48 = arith.constant 6.000000e+00 : f32
    %76 = vector.broadcast %cst_47 : f32 to vector<64x128xf32>
    %77 = arith.maximumf %76, %75 : vector<64x128xf32>
    %78 = vector.broadcast %cst_48 : f32 to vector<64x128xf32>
    %79 = arith.minimumf %78, %77 : vector<64x128xf32>
    %80 = arith.truncf %79 : vector<64x128xf32> to vector<64x128xbf16>
    %c0_49 = arith.constant 0 : index
    %c0_50 = arith.constant 0 : index
    %81 = vector.load %arg4[%c0_49, %c0_50] : memref<128x256xbf16, #tpu.memory_space<vmem>>, vector<128x256xbf16>
    %cst_51 = arith.constant dense<0.000000e+00> : vector<64x256xf32>
    %82 = tpu.matmul %80, %81, %cst_51 {dimension_numbers = #tpu.dot_dimension_numbers<[1], [0], [0], [1], [0, 0, 1, 1], [], []>} : vector<64x128xbf16>, vector<128x256xbf16>, vector<64x256xf32> -> vector<64x256xf32>
    %c0_52 = arith.constant 0 : index
    %c0_53 = arith.constant 0 : index
    %83 = vector.load %arg5[%c0_52, %c0_53] : memref<1x256xf32, #tpu.memory_space<vmem>>, vector<1x256xf32>
    %84 = vector.broadcast %83 : vector<1x256xf32> to vector<64x256xf32>
    %85 = arith.addf %82, %84 : vector<64x256xf32>
    %cst_54 = arith.constant 0.000000e+00 : f32
    %cst_55 = arith.constant 6.000000e+00 : f32
    %86 = vector.broadcast %cst_54 : f32 to vector<64x256xf32>
    %87 = arith.maximumf %86, %85 : vector<64x256xf32>
    %88 = vector.broadcast %cst_55 : f32 to vector<64x256xf32>
    %89 = arith.minimumf %88, %87 : vector<64x256xf32>
    %90 = arith.truncf %89 : vector<64x256xf32> to vector<64x256xbf16>
    %c0_56 = arith.constant 0 : index
    %c0_57 = arith.constant 0 : index
    %91 = vector.load %arg6[%c0_56, %c0_57] : memref<64x256xbf16, #tpu.memory_space<vmem>>, vector<64x256xbf16>
    tpu.vector_store %arg6[%c0_56, %c0_57], %90 {strides = array<i32>} : memref<64x256xbf16, #tpu.memory_space<vmem>>, vector<64x256xbf16>,
    return
  }
  func.func @transform_0(%arg0: i32) -> (i32, i32, i32) {
    %c0_i32 = arith.constant 0 : i32
    %c0_i32_0 = arith.constant 0 : i32
    %c0_i32_1 = arith.constant 0 : i32
    return %c0_i32, %arg0, %c0_i32_0 : i32, i32, i32
  }
  func.func @transform_1(%arg0: i32) -> (i32, i32, i32) {
    %c0_i32 = arith.constant 0 : i32
    %c0_i32_0 = arith.constant 0 : i32
    %c0_i32_1 = arith.constant 0 : i32
    %c0_i32_2 = arith.constant 0 : i32
    return %c0_i32, %c0_i32_0, %c0_i32_1 : i32, i32, i32
  }
  func.func @transform_2(%arg0: i32) -> (i32, i32) {
    %c0_i32 = arith.constant 0 : i32
    %c0_i32_0 = arith.constant 0 : i32
    %c0_i32_1 = arith.constant 0 : i32
    return %c0_i32, %c0_i32_0 : i32, i32
  }
  func.func @transform_3(%arg0: i32) -> (i32, i32) {
    %c0_i32 = arith.constant 0 : i32
    %c0_i32_0 = arith.constant 0 : i32
    %c0_i32_1 = arith.constant 0 : i32
    return %c0_i32, %c0_i32_0 : i32, i32
  }
  func.func @transform_4(%arg0: i32) -> (i32, i32) {
    %c0_i32 = arith.constant 0 : i32
    %c0_i32_0 = arith.constant 0 : i32
    %c0_i32_1 = arith.constant 0 : i32
    return %c0_i32, %c0_i32_0 : i32, i32
  }
  func.func @transform_5(%arg0: i32) -> (i32, i32) {
    %c0_i32 = arith.constant 0 : i32
    %c0_i32_0 = arith.constant 0 : i32
    return %arg0, %c0_i32 : i32, i32
  }
}

module attributes {stable_mosaic.version = 11 : i64} {
  func.func @dwsep_fused_kernel(%arg0: i32, %arg1: memref<9x128x128xbf16, #tpu.memory_space<vmem>>, %arg2: memref<9x1x128xf32, #tpu.memory_space<vmem>>, %arg3: memref<1x128xf32, #tpu.memory_space<vmem>>, %arg4: memref<128x128xbf16, #tpu.memory_space<vmem>>, %arg5: memref<1x128xf32, #tpu.memory_space<vmem>>, %arg6: memref<128x128xbf16, #tpu.memory_space<vmem>>) attributes {dimension_semantics = [#tpu.dimension_semantics<parallel>], iteration_bounds = array<i64: 1>, scalar_prefetch = 0 : i64, scratch_operands = 0 : i64, tpu.core_type = #tpu.core_type<tc>, window_params = [{transform_indices = @transform_0, window_bounds = array<i64: 9, 128, 128>}, {pipeline_mode = #tpu.pipeline_mode<synchronous>, transform_indices = @transform_1, window_bounds = array<i64: 9, 1, 128>}, {pipeline_mode = #tpu.pipeline_mode<synchronous>, transform_indices = @transform_2, window_bounds = array<i64: 1, 128>}, {pipeline_mode = #tpu.pipeline_mode<synchronous>, transform_indices = @transform_3, window_bounds = array<i64: 128, 128>}, {pipeline_mode = #tpu.pipeline_mode<synchronous>, transform_indices = @transform_4, window_bounds = array<i64: 1, 128>}, {transform_indices = @transform_5, window_bounds = array<i64: 128, 128>}]} {
    %cst = arith.constant 0.000000e+00 : f32
    %0 = vector.broadcast %cst : f32 to vector<128x128xf32>
    %c0 = arith.constant 0 : index
    %c0_0 = arith.constant 0 : index
    %c0_1 = arith.constant 0 : index
    %1 = vector.load %arg1[%c0, %c0_0, %c0_1] : memref<9x128x128xbf16, #tpu.memory_space<vmem>>, vector<1x128x128xbf16>
    %2 = vector.shape_cast %1 : vector<1x128x128xbf16> to vector<128x128xbf16>
    %3 = arith.extf %2 : vector<128x128xbf16> to vector<128x128xf32>
    %c0_2 = arith.constant 0 : index
    %c0_3 = arith.constant 0 : index
    %c0_4 = arith.constant 0 : index
    %4 = vector.load %arg2[%c0_2, %c0_3, %c0_4] : memref<9x1x128xf32, #tpu.memory_space<vmem>>, vector<1x1x128xf32>
    %5 = vector.shape_cast %4 : vector<1x1x128xf32> to vector<1x128xf32>
    %6 = vector.broadcast %5 : vector<1x128xf32> to vector<128x128xf32>
    %7 = arith.mulf %3, %6 : vector<128x128xf32>
    %8 = arith.addf %0, %7 : vector<128x128xf32>
    %c1 = arith.constant 1 : index
    %c0_5 = arith.constant 0 : index
    %c0_6 = arith.constant 0 : index
    %9 = vector.load %arg1[%c1, %c0_5, %c0_6] : memref<9x128x128xbf16, #tpu.memory_space<vmem>>, vector<1x128x128xbf16>
    %10 = vector.shape_cast %9 : vector<1x128x128xbf16> to vector<128x128xbf16>
    %11 = arith.extf %10 : vector<128x128xbf16> to vector<128x128xf32>
    %c1_7 = arith.constant 1 : index
    %c0_8 = arith.constant 0 : index
    %c0_9 = arith.constant 0 : index
    %12 = vector.load %arg2[%c1_7, %c0_8, %c0_9] : memref<9x1x128xf32, #tpu.memory_space<vmem>>, vector<1x1x128xf32>
    %13 = vector.shape_cast %12 : vector<1x1x128xf32> to vector<1x128xf32>
    %14 = vector.broadcast %13 : vector<1x128xf32> to vector<128x128xf32>
    %15 = arith.mulf %11, %14 : vector<128x128xf32>
    %16 = arith.addf %8, %15 : vector<128x128xf32>
    %c2 = arith.constant 2 : index
    %c0_10 = arith.constant 0 : index
    %c0_11 = arith.constant 0 : index
    %17 = vector.load %arg1[%c2, %c0_10, %c0_11] : memref<9x128x128xbf16, #tpu.memory_space<vmem>>, vector<1x128x128xbf16>
    %18 = vector.shape_cast %17 : vector<1x128x128xbf16> to vector<128x128xbf16>
    %19 = arith.extf %18 : vector<128x128xbf16> to vector<128x128xf32>
    %c2_12 = arith.constant 2 : index
    %c0_13 = arith.constant 0 : index
    %c0_14 = arith.constant 0 : index
    %20 = vector.load %arg2[%c2_12, %c0_13, %c0_14] : memref<9x1x128xf32, #tpu.memory_space<vmem>>, vector<1x1x128xf32>
    %21 = vector.shape_cast %20 : vector<1x1x128xf32> to vector<1x128xf32>
    %22 = vector.broadcast %21 : vector<1x128xf32> to vector<128x128xf32>
    %23 = arith.mulf %19, %22 : vector<128x128xf32>
    %24 = arith.addf %16, %23 : vector<128x128xf32>
    %c3 = arith.constant 3 : index
    %c0_15 = arith.constant 0 : index
    %c0_16 = arith.constant 0 : index
    %25 = vector.load %arg1[%c3, %c0_15, %c0_16] : memref<9x128x128xbf16, #tpu.memory_space<vmem>>, vector<1x128x128xbf16>
    %26 = vector.shape_cast %25 : vector<1x128x128xbf16> to vector<128x128xbf16>
    %27 = arith.extf %26 : vector<128x128xbf16> to vector<128x128xf32>
    %c3_17 = arith.constant 3 : index
    %c0_18 = arith.constant 0 : index
    %c0_19 = arith.constant 0 : index
    %28 = vector.load %arg2[%c3_17, %c0_18, %c0_19] : memref<9x1x128xf32, #tpu.memory_space<vmem>>, vector<1x1x128xf32>
    %29 = vector.shape_cast %28 : vector<1x1x128xf32> to vector<1x128xf32>
    %30 = vector.broadcast %29 : vector<1x128xf32> to vector<128x128xf32>
    %31 = arith.mulf %27, %30 : vector<128x128xf32>
    %32 = arith.addf %24, %31 : vector<128x128xf32>
    %c4 = arith.constant 4 : index
    %c0_20 = arith.constant 0 : index
    %c0_21 = arith.constant 0 : index
    %33 = vector.load %arg1[%c4, %c0_20, %c0_21] : memref<9x128x128xbf16, #tpu.memory_space<vmem>>, vector<1x128x128xbf16>
    %34 = vector.shape_cast %33 : vector<1x128x128xbf16> to vector<128x128xbf16>
    %35 = arith.extf %34 : vector<128x128xbf16> to vector<128x128xf32>
    %c4_22 = arith.constant 4 : index
    %c0_23 = arith.constant 0 : index
    %c0_24 = arith.constant 0 : index
    %36 = vector.load %arg2[%c4_22, %c0_23, %c0_24] : memref<9x1x128xf32, #tpu.memory_space<vmem>>, vector<1x1x128xf32>
    %37 = vector.shape_cast %36 : vector<1x1x128xf32> to vector<1x128xf32>
    %38 = vector.broadcast %37 : vector<1x128xf32> to vector<128x128xf32>
    %39 = arith.mulf %35, %38 : vector<128x128xf32>
    %40 = arith.addf %32, %39 : vector<128x128xf32>
    %c5 = arith.constant 5 : index
    %c0_25 = arith.constant 0 : index
    %c0_26 = arith.constant 0 : index
    %41 = vector.load %arg1[%c5, %c0_25, %c0_26] : memref<9x128x128xbf16, #tpu.memory_space<vmem>>, vector<1x128x128xbf16>
    %42 = vector.shape_cast %41 : vector<1x128x128xbf16> to vector<128x128xbf16>
    %43 = arith.extf %42 : vector<128x128xbf16> to vector<128x128xf32>
    %c5_27 = arith.constant 5 : index
    %c0_28 = arith.constant 0 : index
    %c0_29 = arith.constant 0 : index
    %44 = vector.load %arg2[%c5_27, %c0_28, %c0_29] : memref<9x1x128xf32, #tpu.memory_space<vmem>>, vector<1x1x128xf32>
    %45 = vector.shape_cast %44 : vector<1x1x128xf32> to vector<1x128xf32>
    %46 = vector.broadcast %45 : vector<1x128xf32> to vector<128x128xf32>
    %47 = arith.mulf %43, %46 : vector<128x128xf32>
    %48 = arith.addf %40, %47 : vector<128x128xf32>
    %c6 = arith.constant 6 : index
    %c0_30 = arith.constant 0 : index
    %c0_31 = arith.constant 0 : index
    %49 = vector.load %arg1[%c6, %c0_30, %c0_31] : memref<9x128x128xbf16, #tpu.memory_space<vmem>>, vector<1x128x128xbf16>
    %50 = vector.shape_cast %49 : vector<1x128x128xbf16> to vector<128x128xbf16>
    %51 = arith.extf %50 : vector<128x128xbf16> to vector<128x128xf32>
    %c6_32 = arith.constant 6 : index
    %c0_33 = arith.constant 0 : index
    %c0_34 = arith.constant 0 : index
    %52 = vector.load %arg2[%c6_32, %c0_33, %c0_34] : memref<9x1x128xf32, #tpu.memory_space<vmem>>, vector<1x1x128xf32>
    %53 = vector.shape_cast %52 : vector<1x1x128xf32> to vector<1x128xf32>
    %54 = vector.broadcast %53 : vector<1x128xf32> to vector<128x128xf32>
    %55 = arith.mulf %51, %54 : vector<128x128xf32>
    %56 = arith.addf %48, %55 : vector<128x128xf32>
    %c7 = arith.constant 7 : index
    %c0_35 = arith.constant 0 : index
    %c0_36 = arith.constant 0 : index
    %57 = vector.load %arg1[%c7, %c0_35, %c0_36] : memref<9x128x128xbf16, #tpu.memory_space<vmem>>, vector<1x128x128xbf16>
    %58 = vector.shape_cast %57 : vector<1x128x128xbf16> to vector<128x128xbf16>
    %59 = arith.extf %58 : vector<128x128xbf16> to vector<128x128xf32>
    %c7_37 = arith.constant 7 : index
    %c0_38 = arith.constant 0 : index
    %c0_39 = arith.constant 0 : index
    %60 = vector.load %arg2[%c7_37, %c0_38, %c0_39] : memref<9x1x128xf32, #tpu.memory_space<vmem>>, vector<1x1x128xf32>
    %61 = vector.shape_cast %60 : vector<1x1x128xf32> to vector<1x128xf32>
    %62 = vector.broadcast %61 : vector<1x128xf32> to vector<128x128xf32>
    %63 = arith.mulf %59, %62 : vector<128x128xf32>
    %64 = arith.addf %56, %63 : vector<128x128xf32>
    %c8 = arith.constant 8 : index
    %c0_40 = arith.constant 0 : index
    %c0_41 = arith.constant 0 : index
    %65 = vector.load %arg1[%c8, %c0_40, %c0_41] : memref<9x128x128xbf16, #tpu.memory_space<vmem>>, vector<1x128x128xbf16>
    %66 = vector.shape_cast %65 : vector<1x128x128xbf16> to vector<128x128xbf16>
    %67 = arith.extf %66 : vector<128x128xbf16> to vector<128x128xf32>
    %c8_42 = arith.constant 8 : index
    %c0_43 = arith.constant 0 : index
    %c0_44 = arith.constant 0 : index
    %68 = vector.load %arg2[%c8_42, %c0_43, %c0_44] : memref<9x1x128xf32, #tpu.memory_space<vmem>>, vector<1x1x128xf32>
    %69 = vector.shape_cast %68 : vector<1x1x128xf32> to vector<1x128xf32>
    %70 = vector.broadcast %69 : vector<1x128xf32> to vector<128x128xf32>
    %71 = arith.mulf %67, %70 : vector<128x128xf32>
    %72 = arith.addf %64, %71 : vector<128x128xf32>
    %c0_45 = arith.constant 0 : index
    %c0_46 = arith.constant 0 : index
    %73 = vector.load %arg3[%c0_45, %c0_46] : memref<1x128xf32, #tpu.memory_space<vmem>>, vector<1x128xf32>
    %74 = vector.broadcast %73 : vector<1x128xf32> to vector<128x128xf32>
    %75 = arith.addf %72, %74 : vector<128x128xf32>
    %cst_47 = arith.constant 0.000000e+00 : f32
    %cst_48 = arith.constant 6.000000e+00 : f32
    %76 = vector.broadcast %cst_47 : f32 to vector<128x128xf32>
    %77 = arith.maximumf %76, %75 : vector<128x128xf32>
    %78 = vector.broadcast %cst_48 : f32 to vector<128x128xf32>
    %79 = arith.minimumf %78, %77 : vector<128x128xf32>
    %80 = arith.truncf %79 : vector<128x128xf32> to vector<128x128xbf16>
    %c0_49 = arith.constant 0 : index
    %c0_50 = arith.constant 0 : index
    %81 = vector.load %arg4[%c0_49, %c0_50] : memref<128x128xbf16, #tpu.memory_space<vmem>>, vector<128x128xbf16>
    %cst_51 = arith.constant dense<0.000000e+00> : vector<128x128xf32>
    %82 = tpu.matmul %80, %81, %cst_51 {dimension_numbers = #tpu.dot_dimension_numbers<[1], [0], [0], [1], [0, 0, 1, 1], [], []>} : vector<128x128xbf16>, vector<128x128xbf16>, vector<128x128xf32> -> vector<128x128xf32>
    %c0_52 = arith.constant 0 : index
    %c0_53 = arith.constant 0 : index
    %83 = vector.load %arg5[%c0_52, %c0_53] : memref<1x128xf32, #tpu.memory_space<vmem>>, vector<1x128xf32>
    %84 = vector.broadcast %83 : vector<1x128xf32> to vector<128x128xf32>
    %85 = arith.addf %82, %84 : vector<128x128xf32>
    %cst_54 = arith.constant 0.000000e+00 : f32
    %cst_55 = arith.constant 6.000000e+00 : f32
    %86 = vector.broadcast %cst_54 : f32 to vector<128x128xf32>
    %87 = arith.maximumf %86, %85 : vector<128x128xf32>
    %88 = vector.broadcast %cst_55 : f32 to vector<128x128xf32>
    %89 = arith.minimumf %88, %87 : vector<128x128xf32>
    %90 = arith.truncf %89 : vector<128x128xf32> to vector<128x128xbf16>
    %c0_56 = arith.constant 0 : index
    %c0_57 = arith.constant 0 : index
    %91 = vector.load %arg6[%c0_56, %c0_57] : memref<128x128xbf16, #tpu.memory_space<vmem>>, vector<128x128xbf16>
    tpu.vector_store %arg6[%c0_56, %c0_57], %90 {strides = array<i32>} : memref<128x128xbf16, #tpu.memory_space<vmem>>, vector<128x128xbf16>,
    return
  }
  func.func @transform_0(%arg0: i32) -> (i32, i32, i32) {
    %c0_i32 = arith.constant 0 : i32
    %c0_i32_0 = arith.constant 0 : i32
    %c0_i32_1 = arith.constant 0 : i32
    return %c0_i32, %arg0, %c0_i32_0 : i32, i32, i32
  }
  func.func @transform_1(%arg0: i32) -> (i32, i32, i32) {
    %c0_i32 = arith.constant 0 : i32
    %c0_i32_0 = arith.constant 0 : i32
    %c0_i32_1 = arith.constant 0 : i32
    %c0_i32_2 = arith.constant 0 : i32
    return %c0_i32, %c0_i32_0, %c0_i32_1 : i32, i32, i32
  }
  func.func @transform_2(%arg0: i32) -> (i32, i32) {
    %c0_i32 = arith.constant 0 : i32
    %c0_i32_0 = arith.constant 0 : i32
    %c0_i32_1 = arith.constant 0 : i32
    return %c0_i32, %c0_i32_0 : i32, i32
  }
  func.func @transform_3(%arg0: i32) -> (i32, i32) {
    %c0_i32 = arith.constant 0 : i32
    %c0_i32_0 = arith.constant 0 : i32
    %c0_i32_1 = arith.constant 0 : i32
    return %c0_i32, %c0_i32_0 : i32, i32
  }
  func.func @transform_4(%arg0: i32) -> (i32, i32) {
    %c0_i32 = arith.constant 0 : i32
    %c0_i32_0 = arith.constant 0 : i32
    %c0_i32_1 = arith.constant 0 : i32
    return %c0_i32, %c0_i32_0 : i32, i32
  }
  func.func @transform_5(%arg0: i32) -> (i32, i32) {
    %c0_i32 = arith.constant 0 : i32
    %c0_i32_0 = arith.constant 0 : i32
    return %arg0, %c0_i32 : i32, i32
  }
}

module attributes {stable_mosaic.version = 11 : i64} {
  func.func @dwsep_fused_kernel(%arg0: i32, %arg1: memref<9x32x128xbf16, #tpu.memory_space<vmem>>, %arg2: memref<9x1x128xf32, #tpu.memory_space<vmem>>, %arg3: memref<1x128xf32, #tpu.memory_space<vmem>>, %arg4: memref<128x256xbf16, #tpu.memory_space<vmem>>, %arg5: memref<1x256xf32, #tpu.memory_space<vmem>>, %arg6: memref<32x256xbf16, #tpu.memory_space<vmem>>) attributes {dimension_semantics = [#tpu.dimension_semantics<parallel>], iteration_bounds = array<i64: 1>, scalar_prefetch = 0 : i64, scratch_operands = 0 : i64, tpu.core_type = #tpu.core_type<tc>, window_params = [{transform_indices = @transform_0, window_bounds = array<i64: 9, 32, 128>}, {pipeline_mode = #tpu.pipeline_mode<synchronous>, transform_indices = @transform_1, window_bounds = array<i64: 9, 1, 128>}, {pipeline_mode = #tpu.pipeline_mode<synchronous>, transform_indices = @transform_2, window_bounds = array<i64: 1, 128>}, {pipeline_mode = #tpu.pipeline_mode<synchronous>, transform_indices = @transform_3, window_bounds = array<i64: 128, 256>}, {pipeline_mode = #tpu.pipeline_mode<synchronous>, transform_indices = @transform_4, window_bounds = array<i64: 1, 256>}, {transform_indices = @transform_5, window_bounds = array<i64: 32, 256>}]} {
    %cst = arith.constant 0.000000e+00 : f32
    %0 = vector.broadcast %cst : f32 to vector<32x128xf32>
    %c0 = arith.constant 0 : index
    %c0_0 = arith.constant 0 : index
    %c0_1 = arith.constant 0 : index
    %1 = vector.load %arg1[%c0, %c0_0, %c0_1] : memref<9x32x128xbf16, #tpu.memory_space<vmem>>, vector<1x32x128xbf16>
    %2 = vector.shape_cast %1 : vector<1x32x128xbf16> to vector<32x128xbf16>
    %3 = arith.extf %2 : vector<32x128xbf16> to vector<32x128xf32>
    %c0_2 = arith.constant 0 : index
    %c0_3 = arith.constant 0 : index
    %c0_4 = arith.constant 0 : index
    %4 = vector.load %arg2[%c0_2, %c0_3, %c0_4] : memref<9x1x128xf32, #tpu.memory_space<vmem>>, vector<1x1x128xf32>
    %5 = vector.shape_cast %4 : vector<1x1x128xf32> to vector<1x128xf32>
    %6 = vector.broadcast %5 : vector<1x128xf32> to vector<32x128xf32>
    %7 = arith.mulf %3, %6 : vector<32x128xf32>
    %8 = arith.addf %0, %7 : vector<32x128xf32>
    %c1 = arith.constant 1 : index
    %c0_5 = arith.constant 0 : index
    %c0_6 = arith.constant 0 : index
    %9 = vector.load %arg1[%c1, %c0_5, %c0_6] : memref<9x32x128xbf16, #tpu.memory_space<vmem>>, vector<1x32x128xbf16>
    %10 = vector.shape_cast %9 : vector<1x32x128xbf16> to vector<32x128xbf16>
    %11 = arith.extf %10 : vector<32x128xbf16> to vector<32x128xf32>
    %c1_7 = arith.constant 1 : index
    %c0_8 = arith.constant 0 : index
    %c0_9 = arith.constant 0 : index
    %12 = vector.load %arg2[%c1_7, %c0_8, %c0_9] : memref<9x1x128xf32, #tpu.memory_space<vmem>>, vector<1x1x128xf32>
    %13 = vector.shape_cast %12 : vector<1x1x128xf32> to vector<1x128xf32>
    %14 = vector.broadcast %13 : vector<1x128xf32> to vector<32x128xf32>
    %15 = arith.mulf %11, %14 : vector<32x128xf32>
    %16 = arith.addf %8, %15 : vector<32x128xf32>
    %c2 = arith.constant 2 : index
    %c0_10 = arith.constant 0 : index
    %c0_11 = arith.constant 0 : index
    %17 = vector.load %arg1[%c2, %c0_10, %c0_11] : memref<9x32x128xbf16, #tpu.memory_space<vmem>>, vector<1x32x128xbf16>
    %18 = vector.shape_cast %17 : vector<1x32x128xbf16> to vector<32x128xbf16>
    %19 = arith.extf %18 : vector<32x128xbf16> to vector<32x128xf32>
    %c2_12 = arith.constant 2 : index
    %c0_13 = arith.constant 0 : index
    %c0_14 = arith.constant 0 : index
    %20 = vector.load %arg2[%c2_12, %c0_13, %c0_14] : memref<9x1x128xf32, #tpu.memory_space<vmem>>, vector<1x1x128xf32>
    %21 = vector.shape_cast %20 : vector<1x1x128xf32> to vector<1x128xf32>
    %22 = vector.broadcast %21 : vector<1x128xf32> to vector<32x128xf32>
    %23 = arith.mulf %19, %22 : vector<32x128xf32>
    %24 = arith.addf %16, %23 : vector<32x128xf32>
    %c3 = arith.constant 3 : index
    %c0_15 = arith.constant 0 : index
    %c0_16 = arith.constant 0 : index
    %25 = vector.load %arg1[%c3, %c0_15, %c0_16] : memref<9x32x128xbf16, #tpu.memory_space<vmem>>, vector<1x32x128xbf16>
    %26 = vector.shape_cast %25 : vector<1x32x128xbf16> to vector<32x128xbf16>
    %27 = arith.extf %26 : vector<32x128xbf16> to vector<32x128xf32>
    %c3_17 = arith.constant 3 : index
    %c0_18 = arith.constant 0 : index
    %c0_19 = arith.constant 0 : index
    %28 = vector.load %arg2[%c3_17, %c0_18, %c0_19] : memref<9x1x128xf32, #tpu.memory_space<vmem>>, vector<1x1x128xf32>
    %29 = vector.shape_cast %28 : vector<1x1x128xf32> to vector<1x128xf32>
    %30 = vector.broadcast %29 : vector<1x128xf32> to vector<32x128xf32>
    %31 = arith.mulf %27, %30 : vector<32x128xf32>
    %32 = arith.addf %24, %31 : vector<32x128xf32>
    %c4 = arith.constant 4 : index
    %c0_20 = arith.constant 0 : index
    %c0_21 = arith.constant 0 : index
    %33 = vector.load %arg1[%c4, %c0_20, %c0_21] : memref<9x32x128xbf16, #tpu.memory_space<vmem>>, vector<1x32x128xbf16>
    %34 = vector.shape_cast %33 : vector<1x32x128xbf16> to vector<32x128xbf16>
    %35 = arith.extf %34 : vector<32x128xbf16> to vector<32x128xf32>
    %c4_22 = arith.constant 4 : index
    %c0_23 = arith.constant 0 : index
    %c0_24 = arith.constant 0 : index
    %36 = vector.load %arg2[%c4_22, %c0_23, %c0_24] : memref<9x1x128xf32, #tpu.memory_space<vmem>>, vector<1x1x128xf32>
    %37 = vector.shape_cast %36 : vector<1x1x128xf32> to vector<1x128xf32>
    %38 = vector.broadcast %37 : vector<1x128xf32> to vector<32x128xf32>
    %39 = arith.mulf %35, %38 : vector<32x128xf32>
    %40 = arith.addf %32, %39 : vector<32x128xf32>
    %c5 = arith.constant 5 : index
    %c0_25 = arith.constant 0 : index
    %c0_26 = arith.constant 0 : index
    %41 = vector.load %arg1[%c5, %c0_25, %c0_26] : memref<9x32x128xbf16, #tpu.memory_space<vmem>>, vector<1x32x128xbf16>
    %42 = vector.shape_cast %41 : vector<1x32x128xbf16> to vector<32x128xbf16>
    %43 = arith.extf %42 : vector<32x128xbf16> to vector<32x128xf32>
    %c5_27 = arith.constant 5 : index
    %c0_28 = arith.constant 0 : index
    %c0_29 = arith.constant 0 : index
    %44 = vector.load %arg2[%c5_27, %c0_28, %c0_29] : memref<9x1x128xf32, #tpu.memory_space<vmem>>, vector<1x1x128xf32>
    %45 = vector.shape_cast %44 : vector<1x1x128xf32> to vector<1x128xf32>
    %46 = vector.broadcast %45 : vector<1x128xf32> to vector<32x128xf32>
    %47 = arith.mulf %43, %46 : vector<32x128xf32>
    %48 = arith.addf %40, %47 : vector<32x128xf32>
    %c6 = arith.constant 6 : index
    %c0_30 = arith.constant 0 : index
    %c0_31 = arith.constant 0 : index
    %49 = vector.load %arg1[%c6, %c0_30, %c0_31] : memref<9x32x128xbf16, #tpu.memory_space<vmem>>, vector<1x32x128xbf16>
    %50 = vector.shape_cast %49 : vector<1x32x128xbf16> to vector<32x128xbf16>
    %51 = arith.extf %50 : vector<32x128xbf16> to vector<32x128xf32>
    %c6_32 = arith.constant 6 : index
    %c0_33 = arith.constant 0 : index
    %c0_34 = arith.constant 0 : index
    %52 = vector.load %arg2[%c6_32, %c0_33, %c0_34] : memref<9x1x128xf32, #tpu.memory_space<vmem>>, vector<1x1x128xf32>
    %53 = vector.shape_cast %52 : vector<1x1x128xf32> to vector<1x128xf32>
    %54 = vector.broadcast %53 : vector<1x128xf32> to vector<32x128xf32>
    %55 = arith.mulf %51, %54 : vector<32x128xf32>
    %56 = arith.addf %48, %55 : vector<32x128xf32>
    %c7 = arith.constant 7 : index
    %c0_35 = arith.constant 0 : index
    %c0_36 = arith.constant 0 : index
    %57 = vector.load %arg1[%c7, %c0_35, %c0_36] : memref<9x32x128xbf16, #tpu.memory_space<vmem>>, vector<1x32x128xbf16>
    %58 = vector.shape_cast %57 : vector<1x32x128xbf16> to vector<32x128xbf16>
    %59 = arith.extf %58 : vector<32x128xbf16> to vector<32x128xf32>
    %c7_37 = arith.constant 7 : index
    %c0_38 = arith.constant 0 : index
    %c0_39 = arith.constant 0 : index
    %60 = vector.load %arg2[%c7_37, %c0_38, %c0_39] : memref<9x1x128xf32, #tpu.memory_space<vmem>>, vector<1x1x128xf32>
    %61 = vector.shape_cast %60 : vector<1x1x128xf32> to vector<1x128xf32>
    %62 = vector.broadcast %61 : vector<1x128xf32> to vector<32x128xf32>
    %63 = arith.mulf %59, %62 : vector<32x128xf32>
    %64 = arith.addf %56, %63 : vector<32x128xf32>
    %c8 = arith.constant 8 : index
    %c0_40 = arith.constant 0 : index
    %c0_41 = arith.constant 0 : index
    %65 = vector.load %arg1[%c8, %c0_40, %c0_41] : memref<9x32x128xbf16, #tpu.memory_space<vmem>>, vector<1x32x128xbf16>
    %66 = vector.shape_cast %65 : vector<1x32x128xbf16> to vector<32x128xbf16>
    %67 = arith.extf %66 : vector<32x128xbf16> to vector<32x128xf32>
    %c8_42 = arith.constant 8 : index
    %c0_43 = arith.constant 0 : index
    %c0_44 = arith.constant 0 : index
    %68 = vector.load %arg2[%c8_42, %c0_43, %c0_44] : memref<9x1x128xf32, #tpu.memory_space<vmem>>, vector<1x1x128xf32>
    %69 = vector.shape_cast %68 : vector<1x1x128xf32> to vector<1x128xf32>
    %70 = vector.broadcast %69 : vector<1x128xf32> to vector<32x128xf32>
    %71 = arith.mulf %67, %70 : vector<32x128xf32>
    %72 = arith.addf %64, %71 : vector<32x128xf32>
    %c0_45 = arith.constant 0 : index
    %c0_46 = arith.constant 0 : index
    %73 = vector.load %arg3[%c0_45, %c0_46] : memref<1x128xf32, #tpu.memory_space<vmem>>, vector<1x128xf32>
    %74 = vector.broadcast %73 : vector<1x128xf32> to vector<32x128xf32>
    %75 = arith.addf %72, %74 : vector<32x128xf32>
    %cst_47 = arith.constant 0.000000e+00 : f32
    %cst_48 = arith.constant 6.000000e+00 : f32
    %76 = vector.broadcast %cst_47 : f32 to vector<32x128xf32>
    %77 = arith.maximumf %76, %75 : vector<32x128xf32>
    %78 = vector.broadcast %cst_48 : f32 to vector<32x128xf32>
    %79 = arith.minimumf %78, %77 : vector<32x128xf32>
    %80 = arith.truncf %79 : vector<32x128xf32> to vector<32x128xbf16>
    %c0_49 = arith.constant 0 : index
    %c0_50 = arith.constant 0 : index
    %81 = vector.load %arg4[%c0_49, %c0_50] : memref<128x256xbf16, #tpu.memory_space<vmem>>, vector<128x256xbf16>
    %cst_51 = arith.constant dense<0.000000e+00> : vector<32x256xf32>
    %82 = tpu.matmul %80, %81, %cst_51 {dimension_numbers = #tpu.dot_dimension_numbers<[1], [0], [0], [1], [0, 0, 1, 1], [], []>} : vector<32x128xbf16>, vector<128x256xbf16>, vector<32x256xf32> -> vector<32x256xf32>
    %c0_52 = arith.constant 0 : index
    %c0_53 = arith.constant 0 : index
    %83 = vector.load %arg5[%c0_52, %c0_53] : memref<1x256xf32, #tpu.memory_space<vmem>>, vector<1x256xf32>
    %84 = vector.broadcast %83 : vector<1x256xf32> to vector<32x256xf32>
    %85 = arith.addf %82, %84 : vector<32x256xf32>
    %cst_54 = arith.constant 0.000000e+00 : f32
    %cst_55 = arith.constant 6.000000e+00 : f32
    %86 = vector.broadcast %cst_54 : f32 to vector<32x256xf32>
    %87 = arith.maximumf %86, %85 : vector<32x256xf32>
    %88 = vector.broadcast %cst_55 : f32 to vector<32x256xf32>
    %89 = arith.minimumf %88, %87 : vector<32x256xf32>
    %90 = arith.truncf %89 : vector<32x256xf32> to vector<32x256xbf16>
    %c0_56 = arith.constant 0 : index
    %c0_57 = arith.constant 0 : index
    %91 = vector.load %arg6[%c0_56, %c0_57] : memref<32x256xbf16, #tpu.memory_space<vmem>>, vector<32x256xbf16>
    tpu.vector_store %arg6[%c0_56, %c0_57], %90 {strides = array<i32>} : memref<32x256xbf16, #tpu.memory_space<vmem>>, vector<32x256xbf16>,
    return
  }
  func.func @transform_0(%arg0: i32) -> (i32, i32, i32) {
    %c0_i32 = arith.constant 0 : i32
    %c0_i32_0 = arith.constant 0 : i32
    %c0_i32_1 = arith.constant 0 : i32
    return %c0_i32, %arg0, %c0_i32_0 : i32, i32, i32
  }
  func.func @transform_1(%arg0: i32) -> (i32, i32, i32) {
    %c0_i32 = arith.constant 0 : i32
    %c0_i32_0 = arith.constant 0 : i32
    %c0_i32_1 = arith.constant 0 : i32
    %c0_i32_2 = arith.constant 0 : i32
    return %c0_i32, %c0_i32_0, %c0_i32_1 : i32, i32, i32
  }
  func.func @transform_2(%arg0: i32) -> (i32, i32) {
    %c0_i32 = arith.constant 0 : i32
    %c0_i32_0 = arith.constant 0 : i32
    %c0_i32_1 = arith.constant 0 : i32
    return %c0_i32, %c0_i32_0 : i32, i32
  }
  func.func @transform_3(%arg0: i32) -> (i32, i32) {
    %c0_i32 = arith.constant 0 : i32
    %c0_i32_0 = arith.constant 0 : i32
    %c0_i32_1 = arith.constant 0 : i32
    return %c0_i32, %c0_i32_0 : i32, i32
  }
  func.func @transform_4(%arg0: i32) -> (i32, i32) {
    %c0_i32 = arith.constant 0 : i32
    %c0_i32_0 = arith.constant 0 : i32
    %c0_i32_1 = arith.constant 0 : i32
    return %c0_i32, %c0_i32_0 : i32, i32
  }
  func.func @transform_5(%arg0: i32) -> (i32, i32) {
    %c0_i32 = arith.constant 0 : i32
    %c0_i32_0 = arith.constant 0 : i32
    return %arg0, %c0_i32 : i32, i32
  }
}

module attributes {stable_mosaic.version = 11 : i64} {
  func.func @dwsep_fused_kernel(%arg0: i32, %arg1: memref<9x64x128xbf16, #tpu.memory_space<vmem>>, %arg2: memref<9x1x128xf32, #tpu.memory_space<vmem>>, %arg3: memref<1x128xf32, #tpu.memory_space<vmem>>, %arg4: memref<128x128xbf16, #tpu.memory_space<vmem>>, %arg5: memref<1x128xf32, #tpu.memory_space<vmem>>, %arg6: memref<64x128xbf16, #tpu.memory_space<vmem>>) attributes {dimension_semantics = [#tpu.dimension_semantics<parallel>], iteration_bounds = array<i64: 1>, scalar_prefetch = 0 : i64, scratch_operands = 0 : i64, tpu.core_type = #tpu.core_type<tc>, window_params = [{transform_indices = @transform_0, window_bounds = array<i64: 9, 64, 128>}, {pipeline_mode = #tpu.pipeline_mode<synchronous>, transform_indices = @transform_1, window_bounds = array<i64: 9, 1, 128>}, {pipeline_mode = #tpu.pipeline_mode<synchronous>, transform_indices = @transform_2, window_bounds = array<i64: 1, 128>}, {pipeline_mode = #tpu.pipeline_mode<synchronous>, transform_indices = @transform_3, window_bounds = array<i64: 128, 128>}, {pipeline_mode = #tpu.pipeline_mode<synchronous>, transform_indices = @transform_4, window_bounds = array<i64: 1, 128>}, {transform_indices = @transform_5, window_bounds = array<i64: 64, 128>}]} {
    %cst = arith.constant 0.000000e+00 : f32
    %0 = vector.broadcast %cst : f32 to vector<64x128xf32>
    %c0 = arith.constant 0 : index
    %c0_0 = arith.constant 0 : index
    %c0_1 = arith.constant 0 : index
    %1 = vector.load %arg1[%c0, %c0_0, %c0_1] : memref<9x64x128xbf16, #tpu.memory_space<vmem>>, vector<1x64x128xbf16>
    %2 = vector.shape_cast %1 : vector<1x64x128xbf16> to vector<64x128xbf16>
    %3 = arith.extf %2 : vector<64x128xbf16> to vector<64x128xf32>
    %c0_2 = arith.constant 0 : index
    %c0_3 = arith.constant 0 : index
    %c0_4 = arith.constant 0 : index
    %4 = vector.load %arg2[%c0_2, %c0_3, %c0_4] : memref<9x1x128xf32, #tpu.memory_space<vmem>>, vector<1x1x128xf32>
    %5 = vector.shape_cast %4 : vector<1x1x128xf32> to vector<1x128xf32>
    %6 = vector.broadcast %5 : vector<1x128xf32> to vector<64x128xf32>
    %7 = arith.mulf %3, %6 : vector<64x128xf32>
    %8 = arith.addf %0, %7 : vector<64x128xf32>
    %c1 = arith.constant 1 : index
    %c0_5 = arith.constant 0 : index
    %c0_6 = arith.constant 0 : index
    %9 = vector.load %arg1[%c1, %c0_5, %c0_6] : memref<9x64x128xbf16, #tpu.memory_space<vmem>>, vector<1x64x128xbf16>
    %10 = vector.shape_cast %9 : vector<1x64x128xbf16> to vector<64x128xbf16>
    %11 = arith.extf %10 : vector<64x128xbf16> to vector<64x128xf32>
    %c1_7 = arith.constant 1 : index
    %c0_8 = arith.constant 0 : index
    %c0_9 = arith.constant 0 : index
    %12 = vector.load %arg2[%c1_7, %c0_8, %c0_9] : memref<9x1x128xf32, #tpu.memory_space<vmem>>, vector<1x1x128xf32>
    %13 = vector.shape_cast %12 : vector<1x1x128xf32> to vector<1x128xf32>
    %14 = vector.broadcast %13 : vector<1x128xf32> to vector<64x128xf32>
    %15 = arith.mulf %11, %14 : vector<64x128xf32>
    %16 = arith.addf %8, %15 : vector<64x128xf32>
    %c2 = arith.constant 2 : index
    %c0_10 = arith.constant 0 : index
    %c0_11 = arith.constant 0 : index
    %17 = vector.load %arg1[%c2, %c0_10, %c0_11] : memref<9x64x128xbf16, #tpu.memory_space<vmem>>, vector<1x64x128xbf16>
    %18 = vector.shape_cast %17 : vector<1x64x128xbf16> to vector<64x128xbf16>
    %19 = arith.extf %18 : vector<64x128xbf16> to vector<64x128xf32>
    %c2_12 = arith.constant 2 : index
    %c0_13 = arith.constant 0 : index
    %c0_14 = arith.constant 0 : index
    %20 = vector.load %arg2[%c2_12, %c0_13, %c0_14] : memref<9x1x128xf32, #tpu.memory_space<vmem>>, vector<1x1x128xf32>
    %21 = vector.shape_cast %20 : vector<1x1x128xf32> to vector<1x128xf32>
    %22 = vector.broadcast %21 : vector<1x128xf32> to vector<64x128xf32>
    %23 = arith.mulf %19, %22 : vector<64x128xf32>
    %24 = arith.addf %16, %23 : vector<64x128xf32>
    %c3 = arith.constant 3 : index
    %c0_15 = arith.constant 0 : index
    %c0_16 = arith.constant 0 : index
    %25 = vector.load %arg1[%c3, %c0_15, %c0_16] : memref<9x64x128xbf16, #tpu.memory_space<vmem>>, vector<1x64x128xbf16>
    %26 = vector.shape_cast %25 : vector<1x64x128xbf16> to vector<64x128xbf16>
    %27 = arith.extf %26 : vector<64x128xbf16> to vector<64x128xf32>
    %c3_17 = arith.constant 3 : index
    %c0_18 = arith.constant 0 : index
    %c0_19 = arith.constant 0 : index
    %28 = vector.load %arg2[%c3_17, %c0_18, %c0_19] : memref<9x1x128xf32, #tpu.memory_space<vmem>>, vector<1x1x128xf32>
    %29 = vector.shape_cast %28 : vector<1x1x128xf32> to vector<1x128xf32>
    %30 = vector.broadcast %29 : vector<1x128xf32> to vector<64x128xf32>
    %31 = arith.mulf %27, %30 : vector<64x128xf32>
    %32 = arith.addf %24, %31 : vector<64x128xf32>
    %c4 = arith.constant 4 : index
    %c0_20 = arith.constant 0 : index
    %c0_21 = arith.constant 0 : index
    %33 = vector.load %arg1[%c4, %c0_20, %c0_21] : memref<9x64x128xbf16, #tpu.memory_space<vmem>>, vector<1x64x128xbf16>
    %34 = vector.shape_cast %33 : vector<1x64x128xbf16> to vector<64x128xbf16>
    %35 = arith.extf %34 : vector<64x128xbf16> to vector<64x128xf32>
    %c4_22 = arith.constant 4 : index
    %c0_23 = arith.constant 0 : index
    %c0_24 = arith.constant 0 : index
    %36 = vector.load %arg2[%c4_22, %c0_23, %c0_24] : memref<9x1x128xf32, #tpu.memory_space<vmem>>, vector<1x1x128xf32>
    %37 = vector.shape_cast %36 : vector<1x1x128xf32> to vector<1x128xf32>
    %38 = vector.broadcast %37 : vector<1x128xf32> to vector<64x128xf32>
    %39 = arith.mulf %35, %38 : vector<64x128xf32>
    %40 = arith.addf %32, %39 : vector<64x128xf32>
    %c5 = arith.constant 5 : index
    %c0_25 = arith.constant 0 : index
    %c0_26 = arith.constant 0 : index
    %41 = vector.load %arg1[%c5, %c0_25, %c0_26] : memref<9x64x128xbf16, #tpu.memory_space<vmem>>, vector<1x64x128xbf16>
    %42 = vector.shape_cast %41 : vector<1x64x128xbf16> to vector<64x128xbf16>
    %43 = arith.extf %42 : vector<64x128xbf16> to vector<64x128xf32>
    %c5_27 = arith.constant 5 : index
    %c0_28 = arith.constant 0 : index
    %c0_29 = arith.constant 0 : index
    %44 = vector.load %arg2[%c5_27, %c0_28, %c0_29] : memref<9x1x128xf32, #tpu.memory_space<vmem>>, vector<1x1x128xf32>
    %45 = vector.shape_cast %44 : vector<1x1x128xf32> to vector<1x128xf32>
    %46 = vector.broadcast %45 : vector<1x128xf32> to vector<64x128xf32>
    %47 = arith.mulf %43, %46 : vector<64x128xf32>
    %48 = arith.addf %40, %47 : vector<64x128xf32>
    %c6 = arith.constant 6 : index
    %c0_30 = arith.constant 0 : index
    %c0_31 = arith.constant 0 : index
    %49 = vector.load %arg1[%c6, %c0_30, %c0_31] : memref<9x64x128xbf16, #tpu.memory_space<vmem>>, vector<1x64x128xbf16>
    %50 = vector.shape_cast %49 : vector<1x64x128xbf16> to vector<64x128xbf16>
    %51 = arith.extf %50 : vector<64x128xbf16> to vector<64x128xf32>
    %c6_32 = arith.constant 6 : index
    %c0_33 = arith.constant 0 : index
    %c0_34 = arith.constant 0 : index
    %52 = vector.load %arg2[%c6_32, %c0_33, %c0_34] : memref<9x1x128xf32, #tpu.memory_space<vmem>>, vector<1x1x128xf32>
    %53 = vector.shape_cast %52 : vector<1x1x128xf32> to vector<1x128xf32>
    %54 = vector.broadcast %53 : vector<1x128xf32> to vector<64x128xf32>
    %55 = arith.mulf %51, %54 : vector<64x128xf32>
    %56 = arith.addf %48, %55 : vector<64x128xf32>
    %c7 = arith.constant 7 : index
    %c0_35 = arith.constant 0 : index
    %c0_36 = arith.constant 0 : index
    %57 = vector.load %arg1[%c7, %c0_35, %c0_36] : memref<9x64x128xbf16, #tpu.memory_space<vmem>>, vector<1x64x128xbf16>
    %58 = vector.shape_cast %57 : vector<1x64x128xbf16> to vector<64x128xbf16>
    %59 = arith.extf %58 : vector<64x128xbf16> to vector<64x128xf32>
    %c7_37 = arith.constant 7 : index
    %c0_38 = arith.constant 0 : index
    %c0_39 = arith.constant 0 : index
    %60 = vector.load %arg2[%c7_37, %c0_38, %c0_39] : memref<9x1x128xf32, #tpu.memory_space<vmem>>, vector<1x1x128xf32>
    %61 = vector.shape_cast %60 : vector<1x1x128xf32> to vector<1x128xf32>
    %62 = vector.broadcast %61 : vector<1x128xf32> to vector<64x128xf32>
    %63 = arith.mulf %59, %62 : vector<64x128xf32>
    %64 = arith.addf %56, %63 : vector<64x128xf32>
    %c8 = arith.constant 8 : index
    %c0_40 = arith.constant 0 : index
    %c0_41 = arith.constant 0 : index
    %65 = vector.load %arg1[%c8, %c0_40, %c0_41] : memref<9x64x128xbf16, #tpu.memory_space<vmem>>, vector<1x64x128xbf16>
    %66 = vector.shape_cast %65 : vector<1x64x128xbf16> to vector<64x128xbf16>
    %67 = arith.extf %66 : vector<64x128xbf16> to vector<64x128xf32>
    %c8_42 = arith.constant 8 : index
    %c0_43 = arith.constant 0 : index
    %c0_44 = arith.constant 0 : index
    %68 = vector.load %arg2[%c8_42, %c0_43, %c0_44] : memref<9x1x128xf32, #tpu.memory_space<vmem>>, vector<1x1x128xf32>
    %69 = vector.shape_cast %68 : vector<1x1x128xf32> to vector<1x128xf32>
    %70 = vector.broadcast %69 : vector<1x128xf32> to vector<64x128xf32>
    %71 = arith.mulf %67, %70 : vector<64x128xf32>
    %72 = arith.addf %64, %71 : vector<64x128xf32>
    %c0_45 = arith.constant 0 : index
    %c0_46 = arith.constant 0 : index
    %73 = vector.load %arg3[%c0_45, %c0_46] : memref<1x128xf32, #tpu.memory_space<vmem>>, vector<1x128xf32>
    %74 = vector.broadcast %73 : vector<1x128xf32> to vector<64x128xf32>
    %75 = arith.addf %72, %74 : vector<64x128xf32>
    %cst_47 = arith.constant 0.000000e+00 : f32
    %cst_48 = arith.constant 6.000000e+00 : f32
    %76 = vector.broadcast %cst_47 : f32 to vector<64x128xf32>
    %77 = arith.maximumf %76, %75 : vector<64x128xf32>
    %78 = vector.broadcast %cst_48 : f32 to vector<64x128xf32>
    %79 = arith.minimumf %78, %77 : vector<64x128xf32>
    %80 = arith.truncf %79 : vector<64x128xf32> to vector<64x128xbf16>
    %c0_49 = arith.constant 0 : index
    %c0_50 = arith.constant 0 : index
    %81 = vector.load %arg4[%c0_49, %c0_50] : memref<128x128xbf16, #tpu.memory_space<vmem>>, vector<128x128xbf16>
    %cst_51 = arith.constant dense<0.000000e+00> : vector<64x128xf32>
    %82 = tpu.matmul %80, %81, %cst_51 {dimension_numbers = #tpu.dot_dimension_numbers<[1], [0], [0], [1], [0, 0, 1, 1], [], []>} : vector<64x128xbf16>, vector<128x128xbf16>, vector<64x128xf32> -> vector<64x128xf32>
    %c0_52 = arith.constant 0 : index
    %c0_53 = arith.constant 0 : index
    %83 = vector.load %arg5[%c0_52, %c0_53] : memref<1x128xf32, #tpu.memory_space<vmem>>, vector<1x128xf32>
    %84 = vector.broadcast %83 : vector<1x128xf32> to vector<64x128xf32>
    %85 = arith.addf %82, %84 : vector<64x128xf32>
    %cst_54 = arith.constant 0.000000e+00 : f32
    %cst_55 = arith.constant 6.000000e+00 : f32
    %86 = vector.broadcast %cst_54 : f32 to vector<64x128xf32>
    %87 = arith.maximumf %86, %85 : vector<64x128xf32>
    %88 = vector.broadcast %cst_55 : f32 to vector<64x128xf32>
    %89 = arith.minimumf %88, %87 : vector<64x128xf32>
    %90 = arith.truncf %89 : vector<64x128xf32> to vector<64x128xbf16>
    %c0_56 = arith.constant 0 : index
    %c0_57 = arith.constant 0 : index
    %91 = vector.load %arg6[%c0_56, %c0_57] : memref<64x128xbf16, #tpu.memory_space<vmem>>, vector<64x128xbf16>
    tpu.vector_store %arg6[%c0_56, %c0_57], %90 {strides = array<i32>} : memref<64x128xbf16, #tpu.memory_space<vmem>>, vector<64x128xbf16>,
    return
  }
  func.func @transform_0(%arg0: i32) -> (i32, i32, i32) {
    %c0_i32 = arith.constant 0 : i32
    %c0_i32_0 = arith.constant 0 : i32
    %c0_i32_1 = arith.constant 0 : i32
    return %c0_i32, %arg0, %c0_i32_0 : i32, i32, i32
  }
  func.func @transform_1(%arg0: i32) -> (i32, i32, i32) {
    %c0_i32 = arith.constant 0 : i32
    %c0_i32_0 = arith.constant 0 : i32
    %c0_i32_1 = arith.constant 0 : i32
    %c0_i32_2 = arith.constant 0 : i32
    return %c0_i32, %c0_i32_0, %c0_i32_1 : i32, i32, i32
  }
  func.func @transform_2(%arg0: i32) -> (i32, i32) {
    %c0_i32 = arith.constant 0 : i32
    %c0_i32_0 = arith.constant 0 : i32
    %c0_i32_1 = arith.constant 0 : i32
    return %c0_i32, %c0_i32_0 : i32, i32
  }
  func.func @transform_3(%arg0: i32) -> (i32, i32) {
    %c0_i32 = arith.constant 0 : i32
    %c0_i32_0 = arith.constant 0 : i32
    %c0_i32_1 = arith.constant 0 : i32
    return %c0_i32, %c0_i32_0 : i32, i32
  }
  func.func @transform_4(%arg0: i32) -> (i32, i32) {
    %c0_i32 = arith.constant 0 : i32
    %c0_i32_0 = arith.constant 0 : i32
    %c0_i32_1 = arith.constant 0 : i32
    return %c0_i32, %c0_i32_0 : i32, i32
  }
  func.func @transform_5(%arg0: i32) -> (i32, i32) {
    %c0_i32 = arith.constant 0 : i32
    %c0_i32_0 = arith.constant 0 : i32
    return %arg0, %c0_i32 : i32, i32
  }
}

module attributes {stable_mosaic.version = 11 : i64} {
  func.func @dwsep_fused_kernel(%arg0: i32, %arg1: memref<9x16x128xbf16, #tpu.memory_space<vmem>>, %arg2: memref<9x1x128xf32, #tpu.memory_space<vmem>>, %arg3: memref<1x128xf32, #tpu.memory_space<vmem>>, %arg4: memref<128x256xbf16, #tpu.memory_space<vmem>>, %arg5: memref<1x256xf32, #tpu.memory_space<vmem>>, %arg6: memref<16x256xbf16, #tpu.memory_space<vmem>>) attributes {dimension_semantics = [#tpu.dimension_semantics<parallel>], iteration_bounds = array<i64: 1>, scalar_prefetch = 0 : i64, scratch_operands = 0 : i64, tpu.core_type = #tpu.core_type<tc>, window_params = [{transform_indices = @transform_0, window_bounds = array<i64: 9, 16, 128>}, {pipeline_mode = #tpu.pipeline_mode<synchronous>, transform_indices = @transform_1, window_bounds = array<i64: 9, 1, 128>}, {pipeline_mode = #tpu.pipeline_mode<synchronous>, transform_indices = @transform_2, window_bounds = array<i64: 1, 128>}, {pipeline_mode = #tpu.pipeline_mode<synchronous>, transform_indices = @transform_3, window_bounds = array<i64: 128, 256>}, {pipeline_mode = #tpu.pipeline_mode<synchronous>, transform_indices = @transform_4, window_bounds = array<i64: 1, 256>}, {transform_indices = @transform_5, window_bounds = array<i64: 16, 256>}]} {
    %cst = arith.constant 0.000000e+00 : f32
    %0 = vector.broadcast %cst : f32 to vector<16x128xf32>
    %c0 = arith.constant 0 : index
    %c0_0 = arith.constant 0 : index
    %c0_1 = arith.constant 0 : index
    %1 = vector.load %arg1[%c0, %c0_0, %c0_1] : memref<9x16x128xbf16, #tpu.memory_space<vmem>>, vector<1x16x128xbf16>
    %2 = vector.shape_cast %1 : vector<1x16x128xbf16> to vector<16x128xbf16>
    %3 = arith.extf %2 : vector<16x128xbf16> to vector<16x128xf32>
    %c0_2 = arith.constant 0 : index
    %c0_3 = arith.constant 0 : index
    %c0_4 = arith.constant 0 : index
    %4 = vector.load %arg2[%c0_2, %c0_3, %c0_4] : memref<9x1x128xf32, #tpu.memory_space<vmem>>, vector<1x1x128xf32>
    %5 = vector.shape_cast %4 : vector<1x1x128xf32> to vector<1x128xf32>
    %6 = vector.broadcast %5 : vector<1x128xf32> to vector<16x128xf32>
    %7 = arith.mulf %3, %6 : vector<16x128xf32>
    %8 = arith.addf %0, %7 : vector<16x128xf32>
    %c1 = arith.constant 1 : index
    %c0_5 = arith.constant 0 : index
    %c0_6 = arith.constant 0 : index
    %9 = vector.load %arg1[%c1, %c0_5, %c0_6] : memref<9x16x128xbf16, #tpu.memory_space<vmem>>, vector<1x16x128xbf16>
    %10 = vector.shape_cast %9 : vector<1x16x128xbf16> to vector<16x128xbf16>
    %11 = arith.extf %10 : vector<16x128xbf16> to vector<16x128xf32>
    %c1_7 = arith.constant 1 : index
    %c0_8 = arith.constant 0 : index
    %c0_9 = arith.constant 0 : index
    %12 = vector.load %arg2[%c1_7, %c0_8, %c0_9] : memref<9x1x128xf32, #tpu.memory_space<vmem>>, vector<1x1x128xf32>
    %13 = vector.shape_cast %12 : vector<1x1x128xf32> to vector<1x128xf32>
    %14 = vector.broadcast %13 : vector<1x128xf32> to vector<16x128xf32>
    %15 = arith.mulf %11, %14 : vector<16x128xf32>
    %16 = arith.addf %8, %15 : vector<16x128xf32>
    %c2 = arith.constant 2 : index
    %c0_10 = arith.constant 0 : index
    %c0_11 = arith.constant 0 : index
    %17 = vector.load %arg1[%c2, %c0_10, %c0_11] : memref<9x16x128xbf16, #tpu.memory_space<vmem>>, vector<1x16x128xbf16>
    %18 = vector.shape_cast %17 : vector<1x16x128xbf16> to vector<16x128xbf16>
    %19 = arith.extf %18 : vector<16x128xbf16> to vector<16x128xf32>
    %c2_12 = arith.constant 2 : index
    %c0_13 = arith.constant 0 : index
    %c0_14 = arith.constant 0 : index
    %20 = vector.load %arg2[%c2_12, %c0_13, %c0_14] : memref<9x1x128xf32, #tpu.memory_space<vmem>>, vector<1x1x128xf32>
    %21 = vector.shape_cast %20 : vector<1x1x128xf32> to vector<1x128xf32>
    %22 = vector.broadcast %21 : vector<1x128xf32> to vector<16x128xf32>
    %23 = arith.mulf %19, %22 : vector<16x128xf32>
    %24 = arith.addf %16, %23 : vector<16x128xf32>
    %c3 = arith.constant 3 : index
    %c0_15 = arith.constant 0 : index
    %c0_16 = arith.constant 0 : index
    %25 = vector.load %arg1[%c3, %c0_15, %c0_16] : memref<9x16x128xbf16, #tpu.memory_space<vmem>>, vector<1x16x128xbf16>
    %26 = vector.shape_cast %25 : vector<1x16x128xbf16> to vector<16x128xbf16>
    %27 = arith.extf %26 : vector<16x128xbf16> to vector<16x128xf32>
    %c3_17 = arith.constant 3 : index
    %c0_18 = arith.constant 0 : index
    %c0_19 = arith.constant 0 : index
    %28 = vector.load %arg2[%c3_17, %c0_18, %c0_19] : memref<9x1x128xf32, #tpu.memory_space<vmem>>, vector<1x1x128xf32>
    %29 = vector.shape_cast %28 : vector<1x1x128xf32> to vector<1x128xf32>
    %30 = vector.broadcast %29 : vector<1x128xf32> to vector<16x128xf32>
    %31 = arith.mulf %27, %30 : vector<16x128xf32>
    %32 = arith.addf %24, %31 : vector<16x128xf32>
    %c4 = arith.constant 4 : index
    %c0_20 = arith.constant 0 : index
    %c0_21 = arith.constant 0 : index
    %33 = vector.load %arg1[%c4, %c0_20, %c0_21] : memref<9x16x128xbf16, #tpu.memory_space<vmem>>, vector<1x16x128xbf16>
    %34 = vector.shape_cast %33 : vector<1x16x128xbf16> to vector<16x128xbf16>
    %35 = arith.extf %34 : vector<16x128xbf16> to vector<16x128xf32>
    %c4_22 = arith.constant 4 : index
    %c0_23 = arith.constant 0 : index
    %c0_24 = arith.constant 0 : index
    %36 = vector.load %arg2[%c4_22, %c0_23, %c0_24] : memref<9x1x128xf32, #tpu.memory_space<vmem>>, vector<1x1x128xf32>
    %37 = vector.shape_cast %36 : vector<1x1x128xf32> to vector<1x128xf32>
    %38 = vector.broadcast %37 : vector<1x128xf32> to vector<16x128xf32>
    %39 = arith.mulf %35, %38 : vector<16x128xf32>
    %40 = arith.addf %32, %39 : vector<16x128xf32>
    %c5 = arith.constant 5 : index
    %c0_25 = arith.constant 0 : index
    %c0_26 = arith.constant 0 : index
    %41 = vector.load %arg1[%c5, %c0_25, %c0_26] : memref<9x16x128xbf16, #tpu.memory_space<vmem>>, vector<1x16x128xbf16>
    %42 = vector.shape_cast %41 : vector<1x16x128xbf16> to vector<16x128xbf16>
    %43 = arith.extf %42 : vector<16x128xbf16> to vector<16x128xf32>
    %c5_27 = arith.constant 5 : index
    %c0_28 = arith.constant 0 : index
    %c0_29 = arith.constant 0 : index
    %44 = vector.load %arg2[%c5_27, %c0_28, %c0_29] : memref<9x1x128xf32, #tpu.memory_space<vmem>>, vector<1x1x128xf32>
    %45 = vector.shape_cast %44 : vector<1x1x128xf32> to vector<1x128xf32>
    %46 = vector.broadcast %45 : vector<1x128xf32> to vector<16x128xf32>
    %47 = arith.mulf %43, %46 : vector<16x128xf32>
    %48 = arith.addf %40, %47 : vector<16x128xf32>
    %c6 = arith.constant 6 : index
    %c0_30 = arith.constant 0 : index
    %c0_31 = arith.constant 0 : index
    %49 = vector.load %arg1[%c6, %c0_30, %c0_31] : memref<9x16x128xbf16, #tpu.memory_space<vmem>>, vector<1x16x128xbf16>
    %50 = vector.shape_cast %49 : vector<1x16x128xbf16> to vector<16x128xbf16>
    %51 = arith.extf %50 : vector<16x128xbf16> to vector<16x128xf32>
    %c6_32 = arith.constant 6 : index
    %c0_33 = arith.constant 0 : index
    %c0_34 = arith.constant 0 : index
    %52 = vector.load %arg2[%c6_32, %c0_33, %c0_34] : memref<9x1x128xf32, #tpu.memory_space<vmem>>, vector<1x1x128xf32>
    %53 = vector.shape_cast %52 : vector<1x1x128xf32> to vector<1x128xf32>
    %54 = vector.broadcast %53 : vector<1x128xf32> to vector<16x128xf32>
    %55 = arith.mulf %51, %54 : vector<16x128xf32>
    %56 = arith.addf %48, %55 : vector<16x128xf32>
    %c7 = arith.constant 7 : index
    %c0_35 = arith.constant 0 : index
    %c0_36 = arith.constant 0 : index
    %57 = vector.load %arg1[%c7, %c0_35, %c0_36] : memref<9x16x128xbf16, #tpu.memory_space<vmem>>, vector<1x16x128xbf16>
    %58 = vector.shape_cast %57 : vector<1x16x128xbf16> to vector<16x128xbf16>
    %59 = arith.extf %58 : vector<16x128xbf16> to vector<16x128xf32>
    %c7_37 = arith.constant 7 : index
    %c0_38 = arith.constant 0 : index
    %c0_39 = arith.constant 0 : index
    %60 = vector.load %arg2[%c7_37, %c0_38, %c0_39] : memref<9x1x128xf32, #tpu.memory_space<vmem>>, vector<1x1x128xf32>
    %61 = vector.shape_cast %60 : vector<1x1x128xf32> to vector<1x128xf32>
    %62 = vector.broadcast %61 : vector<1x128xf32> to vector<16x128xf32>
    %63 = arith.mulf %59, %62 : vector<16x128xf32>
    %64 = arith.addf %56, %63 : vector<16x128xf32>
    %c8 = arith.constant 8 : index
    %c0_40 = arith.constant 0 : index
    %c0_41 = arith.constant 0 : index
    %65 = vector.load %arg1[%c8, %c0_40, %c0_41] : memref<9x16x128xbf16, #tpu.memory_space<vmem>>, vector<1x16x128xbf16>
    %66 = vector.shape_cast %65 : vector<1x16x128xbf16> to vector<16x128xbf16>
    %67 = arith.extf %66 : vector<16x128xbf16> to vector<16x128xf32>
    %c8_42 = arith.constant 8 : index
    %c0_43 = arith.constant 0 : index
    %c0_44 = arith.constant 0 : index
    %68 = vector.load %arg2[%c8_42, %c0_43, %c0_44] : memref<9x1x128xf32, #tpu.memory_space<vmem>>, vector<1x1x128xf32>
    %69 = vector.shape_cast %68 : vector<1x1x128xf32> to vector<1x128xf32>
    %70 = vector.broadcast %69 : vector<1x128xf32> to vector<16x128xf32>
    %71 = arith.mulf %67, %70 : vector<16x128xf32>
    %72 = arith.addf %64, %71 : vector<16x128xf32>
    %c0_45 = arith.constant 0 : index
    %c0_46 = arith.constant 0 : index
    %73 = vector.load %arg3[%c0_45, %c0_46] : memref<1x128xf32, #tpu.memory_space<vmem>>, vector<1x128xf32>
    %74 = vector.broadcast %73 : vector<1x128xf32> to vector<16x128xf32>
    %75 = arith.addf %72, %74 : vector<16x128xf32>
    %cst_47 = arith.constant 0.000000e+00 : f32
    %cst_48 = arith.constant 6.000000e+00 : f32
    %76 = vector.broadcast %cst_47 : f32 to vector<16x128xf32>
    %77 = arith.maximumf %76, %75 : vector<16x128xf32>
    %78 = vector.broadcast %cst_48 : f32 to vector<16x128xf32>
    %79 = arith.minimumf %78, %77 : vector<16x128xf32>
    %80 = arith.truncf %79 : vector<16x128xf32> to vector<16x128xbf16>
    %c0_49 = arith.constant 0 : index
    %c0_50 = arith.constant 0 : index
    %81 = vector.load %arg4[%c0_49, %c0_50] : memref<128x256xbf16, #tpu.memory_space<vmem>>, vector<128x256xbf16>
    %cst_51 = arith.constant dense<0.000000e+00> : vector<16x256xf32>
    %82 = tpu.matmul %80, %81, %cst_51 {dimension_numbers = #tpu.dot_dimension_numbers<[1], [0], [0], [1], [0, 0, 1, 1], [], []>} : vector<16x128xbf16>, vector<128x256xbf16>, vector<16x256xf32> -> vector<16x256xf32>
    %c0_52 = arith.constant 0 : index
    %c0_53 = arith.constant 0 : index
    %83 = vector.load %arg5[%c0_52, %c0_53] : memref<1x256xf32, #tpu.memory_space<vmem>>, vector<1x256xf32>
    %84 = vector.broadcast %83 : vector<1x256xf32> to vector<16x256xf32>
    %85 = arith.addf %82, %84 : vector<16x256xf32>
    %cst_54 = arith.constant 0.000000e+00 : f32
    %cst_55 = arith.constant 6.000000e+00 : f32
    %86 = vector.broadcast %cst_54 : f32 to vector<16x256xf32>
    %87 = arith.maximumf %86, %85 : vector<16x256xf32>
    %88 = vector.broadcast %cst_55 : f32 to vector<16x256xf32>
    %89 = arith.minimumf %88, %87 : vector<16x256xf32>
    %90 = arith.truncf %89 : vector<16x256xf32> to vector<16x256xbf16>
    %c0_56 = arith.constant 0 : index
    %c0_57 = arith.constant 0 : index
    %91 = vector.load %arg6[%c0_56, %c0_57] : memref<16x256xbf16, #tpu.memory_space<vmem>>, vector<16x256xbf16>
    tpu.vector_store %arg6[%c0_56, %c0_57], %90 {strides = array<i32>} : memref<16x256xbf16, #tpu.memory_space<vmem>>, vector<16x256xbf16>,
    return
  }
  func.func @transform_0(%arg0: i32) -> (i32, i32, i32) {
    %c0_i32 = arith.constant 0 : i32
    %c0_i32_0 = arith.constant 0 : i32
    %c0_i32_1 = arith.constant 0 : i32
    return %c0_i32, %arg0, %c0_i32_0 : i32, i32, i32
  }
  func.func @transform_1(%arg0: i32) -> (i32, i32, i32) {
    %c0_i32 = arith.constant 0 : i32
    %c0_i32_0 = arith.constant 0 : i32
    %c0_i32_1 = arith.constant 0 : i32
    %c0_i32_2 = arith.constant 0 : i32
    return %c0_i32, %c0_i32_0, %c0_i32_1 : i32, i32, i32
  }
  func.func @transform_2(%arg0: i32) -> (i32, i32) {
    %c0_i32 = arith.constant 0 : i32
    %c0_i32_0 = arith.constant 0 : i32
    %c0_i32_1 = arith.constant 0 : i32
    return %c0_i32, %c0_i32_0 : i32, i32
  }
  func.func @transform_3(%arg0: i32) -> (i32, i32) {
    %c0_i32 = arith.constant 0 : i32
    %c0_i32_0 = arith.constant 0 : i32
    %c0_i32_1 = arith.constant 0 : i32
    return %c0_i32, %c0_i32_0 : i32, i32
  }
  func.func @transform_4(%arg0: i32) -> (i32, i32) {
    %c0_i32 = arith.constant 0 : i32
    %c0_i32_0 = arith.constant 0 : i32
    %c0_i32_1 = arith.constant 0 : i32
    return %c0_i32, %c0_i32_0 : i32, i32
  }
  func.func @transform_5(%arg0: i32) -> (i32, i32) {
    %c0_i32 = arith.constant 0 : i32
    %c0_i32_0 = arith.constant 0 : i32
    return %arg0, %c0_i32 : i32, i32
  }
}

module attributes {stable_mosaic.version = 11 : i64} {
  func.func @dwsep_fused_kernel(%arg0: i32, %arg1: memref<9x32x128xbf16, #tpu.memory_space<vmem>>, %arg2: memref<9x1x128xf32, #tpu.memory_space<vmem>>, %arg3: memref<1x128xf32, #tpu.memory_space<vmem>>, %arg4: memref<128x128xbf16, #tpu.memory_space<vmem>>, %arg5: memref<1x128xf32, #tpu.memory_space<vmem>>, %arg6: memref<32x128xbf16, #tpu.memory_space<vmem>>) attributes {dimension_semantics = [#tpu.dimension_semantics<parallel>], iteration_bounds = array<i64: 1>, scalar_prefetch = 0 : i64, scratch_operands = 0 : i64, tpu.core_type = #tpu.core_type<tc>, window_params = [{transform_indices = @transform_0, window_bounds = array<i64: 9, 32, 128>}, {pipeline_mode = #tpu.pipeline_mode<synchronous>, transform_indices = @transform_1, window_bounds = array<i64: 9, 1, 128>}, {pipeline_mode = #tpu.pipeline_mode<synchronous>, transform_indices = @transform_2, window_bounds = array<i64: 1, 128>}, {pipeline_mode = #tpu.pipeline_mode<synchronous>, transform_indices = @transform_3, window_bounds = array<i64: 128, 128>}, {pipeline_mode = #tpu.pipeline_mode<synchronous>, transform_indices = @transform_4, window_bounds = array<i64: 1, 128>}, {transform_indices = @transform_5, window_bounds = array<i64: 32, 128>}]} {
    %cst = arith.constant 0.000000e+00 : f32
    %0 = vector.broadcast %cst : f32 to vector<32x128xf32>
    %c0 = arith.constant 0 : index
    %c0_0 = arith.constant 0 : index
    %c0_1 = arith.constant 0 : index
    %1 = vector.load %arg1[%c0, %c0_0, %c0_1] : memref<9x32x128xbf16, #tpu.memory_space<vmem>>, vector<1x32x128xbf16>
    %2 = vector.shape_cast %1 : vector<1x32x128xbf16> to vector<32x128xbf16>
    %3 = arith.extf %2 : vector<32x128xbf16> to vector<32x128xf32>
    %c0_2 = arith.constant 0 : index
    %c0_3 = arith.constant 0 : index
    %c0_4 = arith.constant 0 : index
    %4 = vector.load %arg2[%c0_2, %c0_3, %c0_4] : memref<9x1x128xf32, #tpu.memory_space<vmem>>, vector<1x1x128xf32>
    %5 = vector.shape_cast %4 : vector<1x1x128xf32> to vector<1x128xf32>
    %6 = vector.broadcast %5 : vector<1x128xf32> to vector<32x128xf32>
    %7 = arith.mulf %3, %6 : vector<32x128xf32>
    %8 = arith.addf %0, %7 : vector<32x128xf32>
    %c1 = arith.constant 1 : index
    %c0_5 = arith.constant 0 : index
    %c0_6 = arith.constant 0 : index
    %9 = vector.load %arg1[%c1, %c0_5, %c0_6] : memref<9x32x128xbf16, #tpu.memory_space<vmem>>, vector<1x32x128xbf16>
    %10 = vector.shape_cast %9 : vector<1x32x128xbf16> to vector<32x128xbf16>
    %11 = arith.extf %10 : vector<32x128xbf16> to vector<32x128xf32>
    %c1_7 = arith.constant 1 : index
    %c0_8 = arith.constant 0 : index
    %c0_9 = arith.constant 0 : index
    %12 = vector.load %arg2[%c1_7, %c0_8, %c0_9] : memref<9x1x128xf32, #tpu.memory_space<vmem>>, vector<1x1x128xf32>
    %13 = vector.shape_cast %12 : vector<1x1x128xf32> to vector<1x128xf32>
    %14 = vector.broadcast %13 : vector<1x128xf32> to vector<32x128xf32>
    %15 = arith.mulf %11, %14 : vector<32x128xf32>
    %16 = arith.addf %8, %15 : vector<32x128xf32>
    %c2 = arith.constant 2 : index
    %c0_10 = arith.constant 0 : index
    %c0_11 = arith.constant 0 : index
    %17 = vector.load %arg1[%c2, %c0_10, %c0_11] : memref<9x32x128xbf16, #tpu.memory_space<vmem>>, vector<1x32x128xbf16>
    %18 = vector.shape_cast %17 : vector<1x32x128xbf16> to vector<32x128xbf16>
    %19 = arith.extf %18 : vector<32x128xbf16> to vector<32x128xf32>
    %c2_12 = arith.constant 2 : index
    %c0_13 = arith.constant 0 : index
    %c0_14 = arith.constant 0 : index
    %20 = vector.load %arg2[%c2_12, %c0_13, %c0_14] : memref<9x1x128xf32, #tpu.memory_space<vmem>>, vector<1x1x128xf32>
    %21 = vector.shape_cast %20 : vector<1x1x128xf32> to vector<1x128xf32>
    %22 = vector.broadcast %21 : vector<1x128xf32> to vector<32x128xf32>
    %23 = arith.mulf %19, %22 : vector<32x128xf32>
    %24 = arith.addf %16, %23 : vector<32x128xf32>
    %c3 = arith.constant 3 : index
    %c0_15 = arith.constant 0 : index
    %c0_16 = arith.constant 0 : index
    %25 = vector.load %arg1[%c3, %c0_15, %c0_16] : memref<9x32x128xbf16, #tpu.memory_space<vmem>>, vector<1x32x128xbf16>
    %26 = vector.shape_cast %25 : vector<1x32x128xbf16> to vector<32x128xbf16>
    %27 = arith.extf %26 : vector<32x128xbf16> to vector<32x128xf32>
    %c3_17 = arith.constant 3 : index
    %c0_18 = arith.constant 0 : index
    %c0_19 = arith.constant 0 : index
    %28 = vector.load %arg2[%c3_17, %c0_18, %c0_19] : memref<9x1x128xf32, #tpu.memory_space<vmem>>, vector<1x1x128xf32>
    %29 = vector.shape_cast %28 : vector<1x1x128xf32> to vector<1x128xf32>
    %30 = vector.broadcast %29 : vector<1x128xf32> to vector<32x128xf32>
    %31 = arith.mulf %27, %30 : vector<32x128xf32>
    %32 = arith.addf %24, %31 : vector<32x128xf32>
    %c4 = arith.constant 4 : index
    %c0_20 = arith.constant 0 : index
    %c0_21 = arith.constant 0 : index
    %33 = vector.load %arg1[%c4, %c0_20, %c0_21] : memref<9x32x128xbf16, #tpu.memory_space<vmem>>, vector<1x32x128xbf16>
    %34 = vector.shape_cast %33 : vector<1x32x128xbf16> to vector<32x128xbf16>
    %35 = arith.extf %34 : vector<32x128xbf16> to vector<32x128xf32>
    %c4_22 = arith.constant 4 : index
    %c0_23 = arith.constant 0 : index
    %c0_24 = arith.constant 0 : index
    %36 = vector.load %arg2[%c4_22, %c0_23, %c0_24] : memref<9x1x128xf32, #tpu.memory_space<vmem>>, vector<1x1x128xf32>
    %37 = vector.shape_cast %36 : vector<1x1x128xf32> to vector<1x128xf32>
    %38 = vector.broadcast %37 : vector<1x128xf32> to vector<32x128xf32>
    %39 = arith.mulf %35, %38 : vector<32x128xf32>
    %40 = arith.addf %32, %39 : vector<32x128xf32>
    %c5 = arith.constant 5 : index
    %c0_25 = arith.constant 0 : index
    %c0_26 = arith.constant 0 : index
    %41 = vector.load %arg1[%c5, %c0_25, %c0_26] : memref<9x32x128xbf16, #tpu.memory_space<vmem>>, vector<1x32x128xbf16>
    %42 = vector.shape_cast %41 : vector<1x32x128xbf16> to vector<32x128xbf16>
    %43 = arith.extf %42 : vector<32x128xbf16> to vector<32x128xf32>
    %c5_27 = arith.constant 5 : index
    %c0_28 = arith.constant 0 : index
    %c0_29 = arith.constant 0 : index
    %44 = vector.load %arg2[%c5_27, %c0_28, %c0_29] : memref<9x1x128xf32, #tpu.memory_space<vmem>>, vector<1x1x128xf32>
    %45 = vector.shape_cast %44 : vector<1x1x128xf32> to vector<1x128xf32>
    %46 = vector.broadcast %45 : vector<1x128xf32> to vector<32x128xf32>
    %47 = arith.mulf %43, %46 : vector<32x128xf32>
    %48 = arith.addf %40, %47 : vector<32x128xf32>
    %c6 = arith.constant 6 : index
    %c0_30 = arith.constant 0 : index
    %c0_31 = arith.constant 0 : index
    %49 = vector.load %arg1[%c6, %c0_30, %c0_31] : memref<9x32x128xbf16, #tpu.memory_space<vmem>>, vector<1x32x128xbf16>
    %50 = vector.shape_cast %49 : vector<1x32x128xbf16> to vector<32x128xbf16>
    %51 = arith.extf %50 : vector<32x128xbf16> to vector<32x128xf32>
    %c6_32 = arith.constant 6 : index
    %c0_33 = arith.constant 0 : index
    %c0_34 = arith.constant 0 : index
    %52 = vector.load %arg2[%c6_32, %c0_33, %c0_34] : memref<9x1x128xf32, #tpu.memory_space<vmem>>, vector<1x1x128xf32>
    %53 = vector.shape_cast %52 : vector<1x1x128xf32> to vector<1x128xf32>
    %54 = vector.broadcast %53 : vector<1x128xf32> to vector<32x128xf32>
    %55 = arith.mulf %51, %54 : vector<32x128xf32>
    %56 = arith.addf %48, %55 : vector<32x128xf32>
    %c7 = arith.constant 7 : index
    %c0_35 = arith.constant 0 : index
    %c0_36 = arith.constant 0 : index
    %57 = vector.load %arg1[%c7, %c0_35, %c0_36] : memref<9x32x128xbf16, #tpu.memory_space<vmem>>, vector<1x32x128xbf16>
    %58 = vector.shape_cast %57 : vector<1x32x128xbf16> to vector<32x128xbf16>
    %59 = arith.extf %58 : vector<32x128xbf16> to vector<32x128xf32>
    %c7_37 = arith.constant 7 : index
    %c0_38 = arith.constant 0 : index
    %c0_39 = arith.constant 0 : index
    %60 = vector.load %arg2[%c7_37, %c0_38, %c0_39] : memref<9x1x128xf32, #tpu.memory_space<vmem>>, vector<1x1x128xf32>
    %61 = vector.shape_cast %60 : vector<1x1x128xf32> to vector<1x128xf32>
    %62 = vector.broadcast %61 : vector<1x128xf32> to vector<32x128xf32>
    %63 = arith.mulf %59, %62 : vector<32x128xf32>
    %64 = arith.addf %56, %63 : vector<32x128xf32>
    %c8 = arith.constant 8 : index
    %c0_40 = arith.constant 0 : index
    %c0_41 = arith.constant 0 : index
    %65 = vector.load %arg1[%c8, %c0_40, %c0_41] : memref<9x32x128xbf16, #tpu.memory_space<vmem>>, vector<1x32x128xbf16>
    %66 = vector.shape_cast %65 : vector<1x32x128xbf16> to vector<32x128xbf16>
    %67 = arith.extf %66 : vector<32x128xbf16> to vector<32x128xf32>
    %c8_42 = arith.constant 8 : index
    %c0_43 = arith.constant 0 : index
    %c0_44 = arith.constant 0 : index
    %68 = vector.load %arg2[%c8_42, %c0_43, %c0_44] : memref<9x1x128xf32, #tpu.memory_space<vmem>>, vector<1x1x128xf32>
    %69 = vector.shape_cast %68 : vector<1x1x128xf32> to vector<1x128xf32>
    %70 = vector.broadcast %69 : vector<1x128xf32> to vector<32x128xf32>
    %71 = arith.mulf %67, %70 : vector<32x128xf32>
    %72 = arith.addf %64, %71 : vector<32x128xf32>
    %c0_45 = arith.constant 0 : index
    %c0_46 = arith.constant 0 : index
    %73 = vector.load %arg3[%c0_45, %c0_46] : memref<1x128xf32, #tpu.memory_space<vmem>>, vector<1x128xf32>
    %74 = vector.broadcast %73 : vector<1x128xf32> to vector<32x128xf32>
    %75 = arith.addf %72, %74 : vector<32x128xf32>
    %cst_47 = arith.constant 0.000000e+00 : f32
    %cst_48 = arith.constant 6.000000e+00 : f32
    %76 = vector.broadcast %cst_47 : f32 to vector<32x128xf32>
    %77 = arith.maximumf %76, %75 : vector<32x128xf32>
    %78 = vector.broadcast %cst_48 : f32 to vector<32x128xf32>
    %79 = arith.minimumf %78, %77 : vector<32x128xf32>
    %80 = arith.truncf %79 : vector<32x128xf32> to vector<32x128xbf16>
    %c0_49 = arith.constant 0 : index
    %c0_50 = arith.constant 0 : index
    %81 = vector.load %arg4[%c0_49, %c0_50] : memref<128x128xbf16, #tpu.memory_space<vmem>>, vector<128x128xbf16>
    %cst_51 = arith.constant dense<0.000000e+00> : vector<32x128xf32>
    %82 = tpu.matmul %80, %81, %cst_51 {dimension_numbers = #tpu.dot_dimension_numbers<[1], [0], [0], [1], [0, 0, 1, 1], [], []>} : vector<32x128xbf16>, vector<128x128xbf16>, vector<32x128xf32> -> vector<32x128xf32>
    %c0_52 = arith.constant 0 : index
    %c0_53 = arith.constant 0 : index
    %83 = vector.load %arg5[%c0_52, %c0_53] : memref<1x128xf32, #tpu.memory_space<vmem>>, vector<1x128xf32>
    %84 = vector.broadcast %83 : vector<1x128xf32> to vector<32x128xf32>
    %85 = arith.addf %82, %84 : vector<32x128xf32>
    %cst_54 = arith.constant 0.000000e+00 : f32
    %cst_55 = arith.constant 6.000000e+00 : f32
    %86 = vector.broadcast %cst_54 : f32 to vector<32x128xf32>
    %87 = arith.maximumf %86, %85 : vector<32x128xf32>
    %88 = vector.broadcast %cst_55 : f32 to vector<32x128xf32>
    %89 = arith.minimumf %88, %87 : vector<32x128xf32>
    %90 = arith.truncf %89 : vector<32x128xf32> to vector<32x128xbf16>
    %c0_56 = arith.constant 0 : index
    %c0_57 = arith.constant 0 : index
    %91 = vector.load %arg6[%c0_56, %c0_57] : memref<32x128xbf16, #tpu.memory_space<vmem>>, vector<32x128xbf16>
    tpu.vector_store %arg6[%c0_56, %c0_57], %90 {strides = array<i32>} : memref<32x128xbf16, #tpu.memory_space<vmem>>, vector<32x128xbf16>,
    return
  }
  func.func @transform_0(%arg0: i32) -> (i32, i32, i32) {
    %c0_i32 = arith.constant 0 : i32
    %c0_i32_0 = arith.constant 0 : i32
    %c0_i32_1 = arith.constant 0 : i32
    return %c0_i32, %arg0, %c0_i32_0 : i32, i32, i32
  }
  func.func @transform_1(%arg0: i32) -> (i32, i32, i32) {
    %c0_i32 = arith.constant 0 : i32
    %c0_i32_0 = arith.constant 0 : i32
    %c0_i32_1 = arith.constant 0 : i32
    %c0_i32_2 = arith.constant 0 : i32
    return %c0_i32, %c0_i32_0, %c0_i32_1 : i32, i32, i32
  }
  func.func @transform_2(%arg0: i32) -> (i32, i32) {
    %c0_i32 = arith.constant 0 : i32
    %c0_i32_0 = arith.constant 0 : i32
    %c0_i32_1 = arith.constant 0 : i32
    return %c0_i32, %c0_i32_0 : i32, i32
  }
  func.func @transform_3(%arg0: i32) -> (i32, i32) {
    %c0_i32 = arith.constant 0 : i32
    %c0_i32_0 = arith.constant 0 : i32
    %c0_i32_1 = arith.constant 0 : i32
    return %c0_i32, %c0_i32_0 : i32, i32
  }
  func.func @transform_4(%arg0: i32) -> (i32, i32) {
    %c0_i32 = arith.constant 0 : i32
    %c0_i32_0 = arith.constant 0 : i32
    %c0_i32_1 = arith.constant 0 : i32
    return %c0_i32, %c0_i32_0 : i32, i32
  }
  func.func @transform_5(%arg0: i32) -> (i32, i32) {
    %c0_i32 = arith.constant 0 : i32
    %c0_i32_0 = arith.constant 0 : i32
    return %arg0, %c0_i32 : i32, i32
  }
}

module attributes {stable_mosaic.version = 11 : i64} {
  func.func @dwsep_fused_kernel(%arg0: i32, %arg1: memref<9x8x128xbf16, #tpu.memory_space<vmem>>, %arg2: memref<9x1x128xf32, #tpu.memory_space<vmem>>, %arg3: memref<1x128xf32, #tpu.memory_space<vmem>>, %arg4: memref<128x256xbf16, #tpu.memory_space<vmem>>, %arg5: memref<1x256xf32, #tpu.memory_space<vmem>>, %arg6: memref<8x256xbf16, #tpu.memory_space<vmem>>) attributes {dimension_semantics = [#tpu.dimension_semantics<parallel>], iteration_bounds = array<i64: 1>, scalar_prefetch = 0 : i64, scratch_operands = 0 : i64, tpu.core_type = #tpu.core_type<tc>, window_params = [{transform_indices = @transform_0, window_bounds = array<i64: 9, 8, 128>}, {pipeline_mode = #tpu.pipeline_mode<synchronous>, transform_indices = @transform_1, window_bounds = array<i64: 9, 1, 128>}, {pipeline_mode = #tpu.pipeline_mode<synchronous>, transform_indices = @transform_2, window_bounds = array<i64: 1, 128>}, {pipeline_mode = #tpu.pipeline_mode<synchronous>, transform_indices = @transform_3, window_bounds = array<i64: 128, 256>}, {pipeline_mode = #tpu.pipeline_mode<synchronous>, transform_indices = @transform_4, window_bounds = array<i64: 1, 256>}, {transform_indices = @transform_5, window_bounds = array<i64: 8, 256>}]} {
    %cst = arith.constant 0.000000e+00 : f32
    %0 = vector.broadcast %cst : f32 to vector<8x128xf32>
    %c0 = arith.constant 0 : index
    %c0_0 = arith.constant 0 : index
    %c0_1 = arith.constant 0 : index
    %1 = vector.load %arg1[%c0, %c0_0, %c0_1] : memref<9x8x128xbf16, #tpu.memory_space<vmem>>, vector<1x8x128xbf16>
    %2 = vector.shape_cast %1 : vector<1x8x128xbf16> to vector<8x128xbf16>
    %3 = arith.extf %2 : vector<8x128xbf16> to vector<8x128xf32>
    %c0_2 = arith.constant 0 : index
    %c0_3 = arith.constant 0 : index
    %c0_4 = arith.constant 0 : index
    %4 = vector.load %arg2[%c0_2, %c0_3, %c0_4] : memref<9x1x128xf32, #tpu.memory_space<vmem>>, vector<1x1x128xf32>
    %5 = vector.shape_cast %4 : vector<1x1x128xf32> to vector<1x128xf32>
    %6 = vector.broadcast %5 : vector<1x128xf32> to vector<8x128xf32>
    %7 = arith.mulf %3, %6 : vector<8x128xf32>
    %8 = arith.addf %0, %7 : vector<8x128xf32>
    %c1 = arith.constant 1 : index
    %c0_5 = arith.constant 0 : index
    %c0_6 = arith.constant 0 : index
    %9 = vector.load %arg1[%c1, %c0_5, %c0_6] : memref<9x8x128xbf16, #tpu.memory_space<vmem>>, vector<1x8x128xbf16>
    %10 = vector.shape_cast %9 : vector<1x8x128xbf16> to vector<8x128xbf16>
    %11 = arith.extf %10 : vector<8x128xbf16> to vector<8x128xf32>
    %c1_7 = arith.constant 1 : index
    %c0_8 = arith.constant 0 : index
    %c0_9 = arith.constant 0 : index
    %12 = vector.load %arg2[%c1_7, %c0_8, %c0_9] : memref<9x1x128xf32, #tpu.memory_space<vmem>>, vector<1x1x128xf32>
    %13 = vector.shape_cast %12 : vector<1x1x128xf32> to vector<1x128xf32>
    %14 = vector.broadcast %13 : vector<1x128xf32> to vector<8x128xf32>
    %15 = arith.mulf %11, %14 : vector<8x128xf32>
    %16 = arith.addf %8, %15 : vector<8x128xf32>
    %c2 = arith.constant 2 : index
    %c0_10 = arith.constant 0 : index
    %c0_11 = arith.constant 0 : index
    %17 = vector.load %arg1[%c2, %c0_10, %c0_11] : memref<9x8x128xbf16, #tpu.memory_space<vmem>>, vector<1x8x128xbf16>
    %18 = vector.shape_cast %17 : vector<1x8x128xbf16> to vector<8x128xbf16>
    %19 = arith.extf %18 : vector<8x128xbf16> to vector<8x128xf32>
    %c2_12 = arith.constant 2 : index
    %c0_13 = arith.constant 0 : index
    %c0_14 = arith.constant 0 : index
    %20 = vector.load %arg2[%c2_12, %c0_13, %c0_14] : memref<9x1x128xf32, #tpu.memory_space<vmem>>, vector<1x1x128xf32>
    %21 = vector.shape_cast %20 : vector<1x1x128xf32> to vector<1x128xf32>
    %22 = vector.broadcast %21 : vector<1x128xf32> to vector<8x128xf32>
    %23 = arith.mulf %19, %22 : vector<8x128xf32>
    %24 = arith.addf %16, %23 : vector<8x128xf32>
    %c3 = arith.constant 3 : index
    %c0_15 = arith.constant 0 : index
    %c0_16 = arith.constant 0 : index
    %25 = vector.load %arg1[%c3, %c0_15, %c0_16] : memref<9x8x128xbf16, #tpu.memory_space<vmem>>, vector<1x8x128xbf16>
    %26 = vector.shape_cast %25 : vector<1x8x128xbf16> to vector<8x128xbf16>
    %27 = arith.extf %26 : vector<8x128xbf16> to vector<8x128xf32>
    %c3_17 = arith.constant 3 : index
    %c0_18 = arith.constant 0 : index
    %c0_19 = arith.constant 0 : index
    %28 = vector.load %arg2[%c3_17, %c0_18, %c0_19] : memref<9x1x128xf32, #tpu.memory_space<vmem>>, vector<1x1x128xf32>
    %29 = vector.shape_cast %28 : vector<1x1x128xf32> to vector<1x128xf32>
    %30 = vector.broadcast %29 : vector<1x128xf32> to vector<8x128xf32>
    %31 = arith.mulf %27, %30 : vector<8x128xf32>
    %32 = arith.addf %24, %31 : vector<8x128xf32>
    %c4 = arith.constant 4 : index
    %c0_20 = arith.constant 0 : index
    %c0_21 = arith.constant 0 : index
    %33 = vector.load %arg1[%c4, %c0_20, %c0_21] : memref<9x8x128xbf16, #tpu.memory_space<vmem>>, vector<1x8x128xbf16>
    %34 = vector.shape_cast %33 : vector<1x8x128xbf16> to vector<8x128xbf16>
    %35 = arith.extf %34 : vector<8x128xbf16> to vector<8x128xf32>
    %c4_22 = arith.constant 4 : index
    %c0_23 = arith.constant 0 : index
    %c0_24 = arith.constant 0 : index
    %36 = vector.load %arg2[%c4_22, %c0_23, %c0_24] : memref<9x1x128xf32, #tpu.memory_space<vmem>>, vector<1x1x128xf32>
    %37 = vector.shape_cast %36 : vector<1x1x128xf32> to vector<1x128xf32>
    %38 = vector.broadcast %37 : vector<1x128xf32> to vector<8x128xf32>
    %39 = arith.mulf %35, %38 : vector<8x128xf32>
    %40 = arith.addf %32, %39 : vector<8x128xf32>
    %c5 = arith.constant 5 : index
    %c0_25 = arith.constant 0 : index
    %c0_26 = arith.constant 0 : index
    %41 = vector.load %arg1[%c5, %c0_25, %c0_26] : memref<9x8x128xbf16, #tpu.memory_space<vmem>>, vector<1x8x128xbf16>
    %42 = vector.shape_cast %41 : vector<1x8x128xbf16> to vector<8x128xbf16>
    %43 = arith.extf %42 : vector<8x128xbf16> to vector<8x128xf32>
    %c5_27 = arith.constant 5 : index
    %c0_28 = arith.constant 0 : index
    %c0_29 = arith.constant 0 : index
    %44 = vector.load %arg2[%c5_27, %c0_28, %c0_29] : memref<9x1x128xf32, #tpu.memory_space<vmem>>, vector<1x1x128xf32>
    %45 = vector.shape_cast %44 : vector<1x1x128xf32> to vector<1x128xf32>
    %46 = vector.broadcast %45 : vector<1x128xf32> to vector<8x128xf32>
    %47 = arith.mulf %43, %46 : vector<8x128xf32>
    %48 = arith.addf %40, %47 : vector<8x128xf32>
    %c6 = arith.constant 6 : index
    %c0_30 = arith.constant 0 : index
    %c0_31 = arith.constant 0 : index
    %49 = vector.load %arg1[%c6, %c0_30, %c0_31] : memref<9x8x128xbf16, #tpu.memory_space<vmem>>, vector<1x8x128xbf16>
    %50 = vector.shape_cast %49 : vector<1x8x128xbf16> to vector<8x128xbf16>
    %51 = arith.extf %50 : vector<8x128xbf16> to vector<8x128xf32>
    %c6_32 = arith.constant 6 : index
    %c0_33 = arith.constant 0 : index
    %c0_34 = arith.constant 0 : index
    %52 = vector.load %arg2[%c6_32, %c0_33, %c0_34] : memref<9x1x128xf32, #tpu.memory_space<vmem>>, vector<1x1x128xf32>
    %53 = vector.shape_cast %52 : vector<1x1x128xf32> to vector<1x128xf32>
    %54 = vector.broadcast %53 : vector<1x128xf32> to vector<8x128xf32>
    %55 = arith.mulf %51, %54 : vector<8x128xf32>
    %56 = arith.addf %48, %55 : vector<8x128xf32>
    %c7 = arith.constant 7 : index
    %c0_35 = arith.constant 0 : index
    %c0_36 = arith.constant 0 : index
    %57 = vector.load %arg1[%c7, %c0_35, %c0_36] : memref<9x8x128xbf16, #tpu.memory_space<vmem>>, vector<1x8x128xbf16>
    %58 = vector.shape_cast %57 : vector<1x8x128xbf16> to vector<8x128xbf16>
    %59 = arith.extf %58 : vector<8x128xbf16> to vector<8x128xf32>
    %c7_37 = arith.constant 7 : index
    %c0_38 = arith.constant 0 : index
    %c0_39 = arith.constant 0 : index
    %60 = vector.load %arg2[%c7_37, %c0_38, %c0_39] : memref<9x1x128xf32, #tpu.memory_space<vmem>>, vector<1x1x128xf32>
    %61 = vector.shape_cast %60 : vector<1x1x128xf32> to vector<1x128xf32>
    %62 = vector.broadcast %61 : vector<1x128xf32> to vector<8x128xf32>
    %63 = arith.mulf %59, %62 : vector<8x128xf32>
    %64 = arith.addf %56, %63 : vector<8x128xf32>
    %c8 = arith.constant 8 : index
    %c0_40 = arith.constant 0 : index
    %c0_41 = arith.constant 0 : index
    %65 = vector.load %arg1[%c8, %c0_40, %c0_41] : memref<9x8x128xbf16, #tpu.memory_space<vmem>>, vector<1x8x128xbf16>
    %66 = vector.shape_cast %65 : vector<1x8x128xbf16> to vector<8x128xbf16>
    %67 = arith.extf %66 : vector<8x128xbf16> to vector<8x128xf32>
    %c8_42 = arith.constant 8 : index
    %c0_43 = arith.constant 0 : index
    %c0_44 = arith.constant 0 : index
    %68 = vector.load %arg2[%c8_42, %c0_43, %c0_44] : memref<9x1x128xf32, #tpu.memory_space<vmem>>, vector<1x1x128xf32>
    %69 = vector.shape_cast %68 : vector<1x1x128xf32> to vector<1x128xf32>
    %70 = vector.broadcast %69 : vector<1x128xf32> to vector<8x128xf32>
    %71 = arith.mulf %67, %70 : vector<8x128xf32>
    %72 = arith.addf %64, %71 : vector<8x128xf32>
    %c0_45 = arith.constant 0 : index
    %c0_46 = arith.constant 0 : index
    %73 = vector.load %arg3[%c0_45, %c0_46] : memref<1x128xf32, #tpu.memory_space<vmem>>, vector<1x128xf32>
    %74 = vector.broadcast %73 : vector<1x128xf32> to vector<8x128xf32>
    %75 = arith.addf %72, %74 : vector<8x128xf32>
    %cst_47 = arith.constant 0.000000e+00 : f32
    %cst_48 = arith.constant 6.000000e+00 : f32
    %76 = vector.broadcast %cst_47 : f32 to vector<8x128xf32>
    %77 = arith.maximumf %76, %75 : vector<8x128xf32>
    %78 = vector.broadcast %cst_48 : f32 to vector<8x128xf32>
    %79 = arith.minimumf %78, %77 : vector<8x128xf32>
    %80 = arith.truncf %79 : vector<8x128xf32> to vector<8x128xbf16>
    %c0_49 = arith.constant 0 : index
    %c0_50 = arith.constant 0 : index
    %81 = vector.load %arg4[%c0_49, %c0_50] : memref<128x256xbf16, #tpu.memory_space<vmem>>, vector<128x256xbf16>
    %cst_51 = arith.constant dense<0.000000e+00> : vector<8x256xf32>
    %82 = tpu.matmul %80, %81, %cst_51 {dimension_numbers = #tpu.dot_dimension_numbers<[1], [0], [0], [1], [0, 0, 1, 1], [], []>} : vector<8x128xbf16>, vector<128x256xbf16>, vector<8x256xf32> -> vector<8x256xf32>
    %c0_52 = arith.constant 0 : index
    %c0_53 = arith.constant 0 : index
    %83 = vector.load %arg5[%c0_52, %c0_53] : memref<1x256xf32, #tpu.memory_space<vmem>>, vector<1x256xf32>
    %84 = vector.broadcast %83 : vector<1x256xf32> to vector<8x256xf32>
    %85 = arith.addf %82, %84 : vector<8x256xf32>
    %cst_54 = arith.constant 0.000000e+00 : f32
    %cst_55 = arith.constant 6.000000e+00 : f32
    %86 = vector.broadcast %cst_54 : f32 to vector<8x256xf32>
    %87 = arith.maximumf %86, %85 : vector<8x256xf32>
    %88 = vector.broadcast %cst_55 : f32 to vector<8x256xf32>
    %89 = arith.minimumf %88, %87 : vector<8x256xf32>
    %90 = arith.truncf %89 : vector<8x256xf32> to vector<8x256xbf16>
    %c0_56 = arith.constant 0 : index
    %c0_57 = arith.constant 0 : index
    %91 = vector.load %arg6[%c0_56, %c0_57] : memref<8x256xbf16, #tpu.memory_space<vmem>>, vector<8x256xbf16>
    tpu.vector_store %arg6[%c0_56, %c0_57], %90 {strides = array<i32>} : memref<8x256xbf16, #tpu.memory_space<vmem>>, vector<8x256xbf16>,
    return
  }
  func.func @transform_0(%arg0: i32) -> (i32, i32, i32) {
    %c0_i32 = arith.constant 0 : i32
    %c0_i32_0 = arith.constant 0 : i32
    %c0_i32_1 = arith.constant 0 : i32
    return %c0_i32, %arg0, %c0_i32_0 : i32, i32, i32
  }
  func.func @transform_1(%arg0: i32) -> (i32, i32, i32) {
    %c0_i32 = arith.constant 0 : i32
    %c0_i32_0 = arith.constant 0 : i32
    %c0_i32_1 = arith.constant 0 : i32
    %c0_i32_2 = arith.constant 0 : i32
    return %c0_i32, %c0_i32_0, %c0_i32_1 : i32, i32, i32
  }
  func.func @transform_2(%arg0: i32) -> (i32, i32) {
    %c0_i32 = arith.constant 0 : i32
    %c0_i32_0 = arith.constant 0 : i32
    %c0_i32_1 = arith.constant 0 : i32
    return %c0_i32, %c0_i32_0 : i32, i32
  }
  func.func @transform_3(%arg0: i32) -> (i32, i32) {
    %c0_i32 = arith.constant 0 : i32
    %c0_i32_0 = arith.constant 0 : i32
    %c0_i32_1 = arith.constant 0 : i32
    return %c0_i32, %c0_i32_0 : i32, i32
  }
  func.func @transform_4(%arg0: i32) -> (i32, i32) {
    %c0_i32 = arith.constant 0 : i32
    %c0_i32_0 = arith.constant 0 : i32
    %c0_i32_1 = arith.constant 0 : i32
    return %c0_i32, %c0_i32_0 : i32, i32
  }
  func.func @transform_5(%arg0: i32) -> (i32, i32) {
    %c0_i32 = arith.constant 0 : i32
    %c0_i32_0 = arith.constant 0 : i32
    return %arg0, %c0_i32 : i32, i32
  }
}

module attributes {stable_mosaic.version = 11 : i64} {
  func.func @dwsep_fused_kernel(%arg0: i32, %arg1: memref<9x8x256xbf16, #tpu.memory_space<vmem>>, %arg2: memref<9x1x256xf32, #tpu.memory_space<vmem>>, %arg3: memref<1x256xf32, #tpu.memory_space<vmem>>, %arg4: memref<256x256xbf16, #tpu.memory_space<vmem>>, %arg5: memref<1x256xf32, #tpu.memory_space<vmem>>, %arg6: memref<8x256xbf16, #tpu.memory_space<vmem>>) attributes {dimension_semantics = [#tpu.dimension_semantics<parallel>], iteration_bounds = array<i64: 1>, scalar_prefetch = 0 : i64, scratch_operands = 0 : i64, tpu.core_type = #tpu.core_type<tc>, window_params = [{transform_indices = @transform_0, window_bounds = array<i64: 9, 8, 256>}, {pipeline_mode = #tpu.pipeline_mode<synchronous>, transform_indices = @transform_1, window_bounds = array<i64: 9, 1, 256>}, {pipeline_mode = #tpu.pipeline_mode<synchronous>, transform_indices = @transform_2, window_bounds = array<i64: 1, 256>}, {pipeline_mode = #tpu.pipeline_mode<synchronous>, transform_indices = @transform_3, window_bounds = array<i64: 256, 256>}, {pipeline_mode = #tpu.pipeline_mode<synchronous>, transform_indices = @transform_4, window_bounds = array<i64: 1, 256>}, {transform_indices = @transform_5, window_bounds = array<i64: 8, 256>}]} {
    %cst = arith.constant 0.000000e+00 : f32
    %0 = vector.broadcast %cst : f32 to vector<8x256xf32>
    %c0 = arith.constant 0 : index
    %c0_0 = arith.constant 0 : index
    %c0_1 = arith.constant 0 : index
    %1 = vector.load %arg1[%c0, %c0_0, %c0_1] : memref<9x8x256xbf16, #tpu.memory_space<vmem>>, vector<1x8x256xbf16>
    %2 = vector.shape_cast %1 : vector<1x8x256xbf16> to vector<8x256xbf16>
    %3 = arith.extf %2 : vector<8x256xbf16> to vector<8x256xf32>
    %c0_2 = arith.constant 0 : index
    %c0_3 = arith.constant 0 : index
    %c0_4 = arith.constant 0 : index
    %4 = vector.load %arg2[%c0_2, %c0_3, %c0_4] : memref<9x1x256xf32, #tpu.memory_space<vmem>>, vector<1x1x256xf32>
    %5 = vector.shape_cast %4 : vector<1x1x256xf32> to vector<1x256xf32>
    %6 = vector.broadcast %5 : vector<1x256xf32> to vector<8x256xf32>
    %7 = arith.mulf %3, %6 : vector<8x256xf32>
    %8 = arith.addf %0, %7 : vector<8x256xf32>
    %c1 = arith.constant 1 : index
    %c0_5 = arith.constant 0 : index
    %c0_6 = arith.constant 0 : index
    %9 = vector.load %arg1[%c1, %c0_5, %c0_6] : memref<9x8x256xbf16, #tpu.memory_space<vmem>>, vector<1x8x256xbf16>
    %10 = vector.shape_cast %9 : vector<1x8x256xbf16> to vector<8x256xbf16>
    %11 = arith.extf %10 : vector<8x256xbf16> to vector<8x256xf32>
    %c1_7 = arith.constant 1 : index
    %c0_8 = arith.constant 0 : index
    %c0_9 = arith.constant 0 : index
    %12 = vector.load %arg2[%c1_7, %c0_8, %c0_9] : memref<9x1x256xf32, #tpu.memory_space<vmem>>, vector<1x1x256xf32>
    %13 = vector.shape_cast %12 : vector<1x1x256xf32> to vector<1x256xf32>
    %14 = vector.broadcast %13 : vector<1x256xf32> to vector<8x256xf32>
    %15 = arith.mulf %11, %14 : vector<8x256xf32>
    %16 = arith.addf %8, %15 : vector<8x256xf32>
    %c2 = arith.constant 2 : index
    %c0_10 = arith.constant 0 : index
    %c0_11 = arith.constant 0 : index
    %17 = vector.load %arg1[%c2, %c0_10, %c0_11] : memref<9x8x256xbf16, #tpu.memory_space<vmem>>, vector<1x8x256xbf16>
    %18 = vector.shape_cast %17 : vector<1x8x256xbf16> to vector<8x256xbf16>
    %19 = arith.extf %18 : vector<8x256xbf16> to vector<8x256xf32>
    %c2_12 = arith.constant 2 : index
    %c0_13 = arith.constant 0 : index
    %c0_14 = arith.constant 0 : index
    %20 = vector.load %arg2[%c2_12, %c0_13, %c0_14] : memref<9x1x256xf32, #tpu.memory_space<vmem>>, vector<1x1x256xf32>
    %21 = vector.shape_cast %20 : vector<1x1x256xf32> to vector<1x256xf32>
    %22 = vector.broadcast %21 : vector<1x256xf32> to vector<8x256xf32>
    %23 = arith.mulf %19, %22 : vector<8x256xf32>
    %24 = arith.addf %16, %23 : vector<8x256xf32>
    %c3 = arith.constant 3 : index
    %c0_15 = arith.constant 0 : index
    %c0_16 = arith.constant 0 : index
    %25 = vector.load %arg1[%c3, %c0_15, %c0_16] : memref<9x8x256xbf16, #tpu.memory_space<vmem>>, vector<1x8x256xbf16>
    %26 = vector.shape_cast %25 : vector<1x8x256xbf16> to vector<8x256xbf16>
    %27 = arith.extf %26 : vector<8x256xbf16> to vector<8x256xf32>
    %c3_17 = arith.constant 3 : index
    %c0_18 = arith.constant 0 : index
    %c0_19 = arith.constant 0 : index
    %28 = vector.load %arg2[%c3_17, %c0_18, %c0_19] : memref<9x1x256xf32, #tpu.memory_space<vmem>>, vector<1x1x256xf32>
    %29 = vector.shape_cast %28 : vector<1x1x256xf32> to vector<1x256xf32>
    %30 = vector.broadcast %29 : vector<1x256xf32> to vector<8x256xf32>
    %31 = arith.mulf %27, %30 : vector<8x256xf32>
    %32 = arith.addf %24, %31 : vector<8x256xf32>
    %c4 = arith.constant 4 : index
    %c0_20 = arith.constant 0 : index
    %c0_21 = arith.constant 0 : index
    %33 = vector.load %arg1[%c4, %c0_20, %c0_21] : memref<9x8x256xbf16, #tpu.memory_space<vmem>>, vector<1x8x256xbf16>
    %34 = vector.shape_cast %33 : vector<1x8x256xbf16> to vector<8x256xbf16>
    %35 = arith.extf %34 : vector<8x256xbf16> to vector<8x256xf32>
    %c4_22 = arith.constant 4 : index
    %c0_23 = arith.constant 0 : index
    %c0_24 = arith.constant 0 : index
    %36 = vector.load %arg2[%c4_22, %c0_23, %c0_24] : memref<9x1x256xf32, #tpu.memory_space<vmem>>, vector<1x1x256xf32>
    %37 = vector.shape_cast %36 : vector<1x1x256xf32> to vector<1x256xf32>
    %38 = vector.broadcast %37 : vector<1x256xf32> to vector<8x256xf32>
    %39 = arith.mulf %35, %38 : vector<8x256xf32>
    %40 = arith.addf %32, %39 : vector<8x256xf32>
    %c5 = arith.constant 5 : index
    %c0_25 = arith.constant 0 : index
    %c0_26 = arith.constant 0 : index
    %41 = vector.load %arg1[%c5, %c0_25, %c0_26] : memref<9x8x256xbf16, #tpu.memory_space<vmem>>, vector<1x8x256xbf16>
    %42 = vector.shape_cast %41 : vector<1x8x256xbf16> to vector<8x256xbf16>
    %43 = arith.extf %42 : vector<8x256xbf16> to vector<8x256xf32>
    %c5_27 = arith.constant 5 : index
    %c0_28 = arith.constant 0 : index
    %c0_29 = arith.constant 0 : index
    %44 = vector.load %arg2[%c5_27, %c0_28, %c0_29] : memref<9x1x256xf32, #tpu.memory_space<vmem>>, vector<1x1x256xf32>
    %45 = vector.shape_cast %44 : vector<1x1x256xf32> to vector<1x256xf32>
    %46 = vector.broadcast %45 : vector<1x256xf32> to vector<8x256xf32>
    %47 = arith.mulf %43, %46 : vector<8x256xf32>
    %48 = arith.addf %40, %47 : vector<8x256xf32>
    %c6 = arith.constant 6 : index
    %c0_30 = arith.constant 0 : index
    %c0_31 = arith.constant 0 : index
    %49 = vector.load %arg1[%c6, %c0_30, %c0_31] : memref<9x8x256xbf16, #tpu.memory_space<vmem>>, vector<1x8x256xbf16>
    %50 = vector.shape_cast %49 : vector<1x8x256xbf16> to vector<8x256xbf16>
    %51 = arith.extf %50 : vector<8x256xbf16> to vector<8x256xf32>
    %c6_32 = arith.constant 6 : index
    %c0_33 = arith.constant 0 : index
    %c0_34 = arith.constant 0 : index
    %52 = vector.load %arg2[%c6_32, %c0_33, %c0_34] : memref<9x1x256xf32, #tpu.memory_space<vmem>>, vector<1x1x256xf32>
    %53 = vector.shape_cast %52 : vector<1x1x256xf32> to vector<1x256xf32>
    %54 = vector.broadcast %53 : vector<1x256xf32> to vector<8x256xf32>
    %55 = arith.mulf %51, %54 : vector<8x256xf32>
    %56 = arith.addf %48, %55 : vector<8x256xf32>
    %c7 = arith.constant 7 : index
    %c0_35 = arith.constant 0 : index
    %c0_36 = arith.constant 0 : index
    %57 = vector.load %arg1[%c7, %c0_35, %c0_36] : memref<9x8x256xbf16, #tpu.memory_space<vmem>>, vector<1x8x256xbf16>
    %58 = vector.shape_cast %57 : vector<1x8x256xbf16> to vector<8x256xbf16>
    %59 = arith.extf %58 : vector<8x256xbf16> to vector<8x256xf32>
    %c7_37 = arith.constant 7 : index
    %c0_38 = arith.constant 0 : index
    %c0_39 = arith.constant 0 : index
    %60 = vector.load %arg2[%c7_37, %c0_38, %c0_39] : memref<9x1x256xf32, #tpu.memory_space<vmem>>, vector<1x1x256xf32>
    %61 = vector.shape_cast %60 : vector<1x1x256xf32> to vector<1x256xf32>
    %62 = vector.broadcast %61 : vector<1x256xf32> to vector<8x256xf32>
    %63 = arith.mulf %59, %62 : vector<8x256xf32>
    %64 = arith.addf %56, %63 : vector<8x256xf32>
    %c8 = arith.constant 8 : index
    %c0_40 = arith.constant 0 : index
    %c0_41 = arith.constant 0 : index
    %65 = vector.load %arg1[%c8, %c0_40, %c0_41] : memref<9x8x256xbf16, #tpu.memory_space<vmem>>, vector<1x8x256xbf16>
    %66 = vector.shape_cast %65 : vector<1x8x256xbf16> to vector<8x256xbf16>
    %67 = arith.extf %66 : vector<8x256xbf16> to vector<8x256xf32>
    %c8_42 = arith.constant 8 : index
    %c0_43 = arith.constant 0 : index
    %c0_44 = arith.constant 0 : index
    %68 = vector.load %arg2[%c8_42, %c0_43, %c0_44] : memref<9x1x256xf32, #tpu.memory_space<vmem>>, vector<1x1x256xf32>
    %69 = vector.shape_cast %68 : vector<1x1x256xf32> to vector<1x256xf32>
    %70 = vector.broadcast %69 : vector<1x256xf32> to vector<8x256xf32>
    %71 = arith.mulf %67, %70 : vector<8x256xf32>
    %72 = arith.addf %64, %71 : vector<8x256xf32>
    %c0_45 = arith.constant 0 : index
    %c0_46 = arith.constant 0 : index
    %73 = vector.load %arg3[%c0_45, %c0_46] : memref<1x256xf32, #tpu.memory_space<vmem>>, vector<1x256xf32>
    %74 = vector.broadcast %73 : vector<1x256xf32> to vector<8x256xf32>
    %75 = arith.addf %72, %74 : vector<8x256xf32>
    %cst_47 = arith.constant 0.000000e+00 : f32
    %cst_48 = arith.constant 6.000000e+00 : f32
    %76 = vector.broadcast %cst_47 : f32 to vector<8x256xf32>
    %77 = arith.maximumf %76, %75 : vector<8x256xf32>
    %78 = vector.broadcast %cst_48 : f32 to vector<8x256xf32>
    %79 = arith.minimumf %78, %77 : vector<8x256xf32>
    %80 = arith.truncf %79 : vector<8x256xf32> to vector<8x256xbf16>
    %c0_49 = arith.constant 0 : index
    %c0_50 = arith.constant 0 : index
    %81 = vector.load %arg4[%c0_49, %c0_50] : memref<256x256xbf16, #tpu.memory_space<vmem>>, vector<256x256xbf16>
    %cst_51 = arith.constant dense<0.000000e+00> : vector<8x256xf32>
    %82 = tpu.matmul %80, %81, %cst_51 {dimension_numbers = #tpu.dot_dimension_numbers<[1], [0], [0], [1], [0, 0, 1, 1], [], []>} : vector<8x256xbf16>, vector<256x256xbf16>, vector<8x256xf32> -> vector<8x256xf32>
    %c0_52 = arith.constant 0 : index
    %c0_53 = arith.constant 0 : index
    %83 = vector.load %arg5[%c0_52, %c0_53] : memref<1x256xf32, #tpu.memory_space<vmem>>, vector<1x256xf32>
    %84 = vector.broadcast %83 : vector<1x256xf32> to vector<8x256xf32>
    %85 = arith.addf %82, %84 : vector<8x256xf32>
    %cst_54 = arith.constant 0.000000e+00 : f32
    %cst_55 = arith.constant 6.000000e+00 : f32
    %86 = vector.broadcast %cst_54 : f32 to vector<8x256xf32>
    %87 = arith.maximumf %86, %85 : vector<8x256xf32>
    %88 = vector.broadcast %cst_55 : f32 to vector<8x256xf32>
    %89 = arith.minimumf %88, %87 : vector<8x256xf32>
    %90 = arith.truncf %89 : vector<8x256xf32> to vector<8x256xbf16>
    %c0_56 = arith.constant 0 : index
    %c0_57 = arith.constant 0 : index
    %91 = vector.load %arg6[%c0_56, %c0_57] : memref<8x256xbf16, #tpu.memory_space<vmem>>, vector<8x256xbf16>
    tpu.vector_store %arg6[%c0_56, %c0_57], %90 {strides = array<i32>} : memref<8x256xbf16, #tpu.memory_space<vmem>>, vector<8x256xbf16>,
    return
  }
  func.func @transform_0(%arg0: i32) -> (i32, i32, i32) {
    %c0_i32 = arith.constant 0 : i32
    %c0_i32_0 = arith.constant 0 : i32
    %c0_i32_1 = arith.constant 0 : i32
    return %c0_i32, %arg0, %c0_i32_0 : i32, i32, i32
  }
  func.func @transform_1(%arg0: i32) -> (i32, i32, i32) {
    %c0_i32 = arith.constant 0 : i32
    %c0_i32_0 = arith.constant 0 : i32
    %c0_i32_1 = arith.constant 0 : i32
    %c0_i32_2 = arith.constant 0 : i32
    return %c0_i32, %c0_i32_0, %c0_i32_1 : i32, i32, i32
  }
  func.func @transform_2(%arg0: i32) -> (i32, i32) {
    %c0_i32 = arith.constant 0 : i32
    %c0_i32_0 = arith.constant 0 : i32
    %c0_i32_1 = arith.constant 0 : i32
    return %c0_i32, %c0_i32_0 : i32, i32
  }
  func.func @transform_3(%arg0: i32) -> (i32, i32) {
    %c0_i32 = arith.constant 0 : i32
    %c0_i32_0 = arith.constant 0 : i32
    %c0_i32_1 = arith.constant 0 : i32
    return %c0_i32, %c0_i32_0 : i32, i32
  }
  func.func @transform_4(%arg0: i32) -> (i32, i32) {
    %c0_i32 = arith.constant 0 : i32
    %c0_i32_0 = arith.constant 0 : i32
    %c0_i32_1 = arith.constant 0 : i32
    return %c0_i32, %c0_i32_0 : i32, i32
  }
  func.func @transform_5(%arg0: i32) -> (i32, i32) {
    %c0_i32 = arith.constant 0 : i32
    %c0_i32_0 = arith.constant 0 : i32
    return %arg0, %c0_i32 : i32, i32
  }
}

module attributes {stable_mosaic.version = 11 : i64} {
  func.func @pool_fc_kernel(%arg0: i32, %arg1: memref<2x4x256xbf16, #tpu.memory_space<vmem>>, %arg2: memref<256x16xf32, #tpu.memory_space<vmem>>, %arg3: memref<1x16xf32, #tpu.memory_space<vmem>>, %arg4: memref<2x16xf32, #tpu.memory_space<vmem>>) attributes {dimension_semantics = [#tpu.dimension_semantics<arbitrary>], iteration_bounds = array<i64: 1>, scalar_prefetch = 0 : i64, scratch_operands = 0 : i64, tpu.core_type = #tpu.core_type<tc>, window_params = [{pipeline_mode = #tpu.pipeline_mode<synchronous>, transform_indices = @transform_0, window_bounds = array<i64: 2, 4, 256>}, {pipeline_mode = #tpu.pipeline_mode<synchronous>, transform_indices = @transform_1, window_bounds = array<i64: 256, 16>}, {pipeline_mode = #tpu.pipeline_mode<synchronous>, transform_indices = @transform_2, window_bounds = array<i64: 1, 16>}, {pipeline_mode = #tpu.pipeline_mode<synchronous>, transform_indices = @transform_3, window_bounds = array<i64: 2, 16>}]} {
    %c0 = arith.constant 0 : index
    %c0_0 = arith.constant 0 : index
    %c0_1 = arith.constant 0 : index
    %0 = vector.load %arg1[%c0, %c0_0, %c0_1] : memref<2x4x256xbf16, #tpu.memory_space<vmem>>, vector<2x4x256xbf16>
    %1 = arith.extf %0 : vector<2x4x256xbf16> to vector<2x4x256xf32>
    %cst = arith.constant dense<0.000000e+00> : vector<2x256xf32>
    %2 = vector.multi_reduction <add>, %1, %cst [1] : vector<2x4x256xf32> to vector<2x256xf32>
    %cst_2 = arith.constant 4.000000e+00 : f32
    %3 = vector.broadcast %cst_2 : f32 to vector<2x256xf32>
    %4 = arith.divf %2, %3 : vector<2x256xf32>
    %c0_3 = arith.constant 0 : index
    %c0_4 = arith.constant 0 : index
    %5 = vector.load %arg2[%c0_3, %c0_4] : memref<256x16xf32, #tpu.memory_space<vmem>>, vector<256x16xf32>
    %cst_5 = arith.constant dense<0.000000e+00> : vector<2x16xf32>
    %6 = tpu.matmul %4, %5, %cst_5 {dimension_numbers = #tpu.dot_dimension_numbers<[1], [0], [0], [1], [0, 0, 1, 1], [], []>} : vector<2x256xf32>, vector<256x16xf32>, vector<2x16xf32> -> vector<2x16xf32>
    %c0_6 = arith.constant 0 : index
    %c0_7 = arith.constant 0 : index
    %7 = vector.load %arg3[%c0_6, %c0_7] : memref<1x16xf32, #tpu.memory_space<vmem>>, vector<1x16xf32>
    %8 = vector.broadcast %7 : vector<1x16xf32> to vector<2x16xf32>
    %9 = arith.addf %6, %8 : vector<2x16xf32>
    %c0_8 = arith.constant 0 : index
    %c0_9 = arith.constant 0 : index
    %10 = vector.load %arg4[%c0_8, %c0_9] : memref<2x16xf32, #tpu.memory_space<vmem>>, vector<2x16xf32>
    tpu.vector_store %arg4[%c0_8, %c0_9], %9 {strides = array<i32>} : memref<2x16xf32, #tpu.memory_space<vmem>>, vector<2x16xf32>,
    return
  }
  func.func @transform_0(%arg0: i32) -> (i32, i32, i32) {
    %c0_i32 = arith.constant 0 : i32
    %c0_i32_0 = arith.constant 0 : i32
    %c0_i32_1 = arith.constant 0 : i32
    %c0_i32_2 = arith.constant 0 : i32
    return %c0_i32, %c0_i32_0, %c0_i32_1 : i32, i32, i32
  }
  func.func @transform_1(%arg0: i32) -> (i32, i32) {
    %c0_i32 = arith.constant 0 : i32
    %c0_i32_0 = arith.constant 0 : i32
    %c0_i32_1 = arith.constant 0 : i32
    return %c0_i32, %c0_i32_0 : i32, i32
  }
  func.func @transform_2(%arg0: i32) -> (i32, i32) {
    %c0_i32 = arith.constant 0 : i32
    %c0_i32_0 = arith.constant 0 : i32
    %c0_i32_1 = arith.constant 0 : i32
    return %c0_i32, %c0_i32_0 : i32, i32
  }
  func.func @transform_3(%arg0: i32) -> (i32, i32) {
    %c0_i32 = arith.constant 0 : i32
    %c0_i32_0 = arith.constant 0 : i32
    %c0_i32_1 = arith.constant 0 : i32
    return %c0_i32, %c0_i32_0 : i32, i32
  }
}

</mosaic_0001>

<llo_original>
// kernel: model_forward.15
$region0: #{model_forward.15}
  #allocation0 [shape = 'u32[]', space=smem, size = 0x4, offset = 0x4, fixed_abs, tag = 'smem constant byte address 0x4 - core index']
  #allocation1 [shape = 'u32[144,128]{1,0:T(1,128)}', space=vmem, size = 0x12000, scoped, tag = 'internal scratch']
  %s0 = inlined_call_operand.vmem [shape: bf16[128,512], index: 0, kind: input, shape index: {}]
  %s1 = inlined_call_operand.vmem [shape: bf16[512,128], index: 1, kind: input, shape index: {}]
  %s2 = inlined_call_operand.vmem [shape: f32[1,128], index: 2, kind: input, shape index: {}]
  %s3 = inlined_call_operand.vmem [shape: bf16[128,128], index: 3, kind: output, shape index: {}]
  %s4 = sld [smem:[#allocation0]]
  $region22: #{model_forward.15} parent=0
    _
  %s6 = ssub.s32 1, %s4
  %s7 = scalar_select 0, %s6, %s4
  // Predicated region
  $region2: #{model_forward.15} parent=0 // pred_check
    _
  $region3: #{model_forward.15} parent=0 // pred_check_branch
    %9 = sbr.rel (0) target = $region5
  $region4: #{model_forward.15} parent=0 // pred_region
    _
  $region5: #{model_forward.15} parent=0 // pred_fallthru
    _
  // Predicated region
  $region6: #{model_forward.15} parent=0 // pred_check
    _
  $region7: #{model_forward.15} parent=0 // pred_check_branch
    %11 = sbr.rel (0) target = $region9
  $region8: #{model_forward.15} parent=0 // pred_region
    _
  $region9: #{model_forward.15} parent=0 // pred_fallthru
    _
  // Predicated region
  $region10: #{model_forward.15} parent=0 // pred_check
    _
  $region11: #{model_forward.15} parent=0 // pred_check_branch
    %13 = sbr.rel (0) target = $region13
  $region12: #{model_forward.15} parent=0 // pred_region
    _
  $region13: #{model_forward.15} parent=0 // pred_fallthru
    _
  %v15 = vld [vmem:[%s0] sm:$0xff]
  %v16 = vld [vmem:[%s0 + $0x8] sm:$0xff]
  %v17 = vld [vmem:[%s0 + $0x10] sm:$0xff]
  %v18 = vld [vmem:[%s0 + $0x18] sm:$0xff]
  %v19 = vld [vmem:[%s0 + $0x20] sm:$0xff]
  %v20 = vld [vmem:[%s0 + $0x28] sm:$0xff]
  %v21 = vld [vmem:[%s0 + $0x30] sm:$0xff]
  %v22 = vld [vmem:[%s0 + $0x38] sm:$0xff]
  %v23 = vld [vmem:[%s0 + $0x40] sm:$0xff]
  %v24 = vld [vmem:[%s0 + $0x48] sm:$0xff]
  %v25 = vld [vmem:[%s0 + $0x50] sm:$0xff]
  %v26 = vld [vmem:[%s0 + $0x58] sm:$0xff]
  %v27 = vld [vmem:[%s0 + $0x60] sm:$0xff]
  %v28 = vld [vmem:[%s0 + $0x68] sm:$0xff]
  %v29 = vld [vmem:[%s0 + $0x70] sm:$0xff]
  %v30 = vld [vmem:[%s0 + $0x78] sm:$0xff]
  %v31 = vld [vmem:[%s0 + $0x80] sm:$0xff]
  %v32 = vld [vmem:[%s0 + $0x88] sm:$0xff]
  %v33 = vld [vmem:[%s0 + $0x90] sm:$0xff]
  %v34 = vld [vmem:[%s0 + $0x98] sm:$0xff]
  %v35 = vld [vmem:[%s0 + $0xa0] sm:$0xff]
  %v36 = vld [vmem:[%s0 + $0xa8] sm:$0xff]
  %v37 = vld [vmem:[%s0 + $0xb0] sm:$0xff]
  %v38 = vld [vmem:[%s0 + $0xb8] sm:$0xff]
  %v39 = vld [vmem:[%s0 + $0xc0] sm:$0xff]
  %v40 = vld [vmem:[%s0 + $0xc8] sm:$0xff]
  %v41 = vld [vmem:[%s0 + $0xd0] sm:$0xff]
  %v42 = vld [vmem:[%s0 + $0xd8] sm:$0xff]
  %v43 = vld [vmem:[%s0 + $0xe0] sm:$0xff]
  %v44 = vld [vmem:[%s0 + $0xe8] sm:$0xff]
  %v45 = vld [vmem:[%s0 + $0xf0] sm:$0xff]
  %v46 = vld [vmem:[%s0 + $0xf8] sm:$0xff]
  %v47 = vld [vmem:[%s1] sm:$0xf]
  %v48 = vld [vmem:[%s1 + $0x4] sm:$0xf]
  %v49 = vld [vmem:[%s1 + $0x8] sm:$0xf]
  %v50 = vld [vmem:[%s1 + $0xc] sm:$0xf]
  %v51 = vld [vmem:[%s1 + $0x10] sm:$0xf]
  %v52 = vld [vmem:[%s1 + $0x14] sm:$0xf]
  %v53 = vld [vmem:[%s1 + $0x18] sm:$0xf]
  %v54 = vld [vmem:[%s1 + $0x1c] sm:$0xf]
  %v55 = vld [vmem:[%s1 + $0x20] sm:$0xf]
  %v56 = vld [vmem:[%s1 + $0x24] sm:$0xf]
  %v57 = vld [vmem:[%s1 + $0x28] sm:$0xf]
  %v58 = vld [vmem:[%s1 + $0x2c] sm:$0xf]
  %v59 = vld [vmem:[%s1 + $0x30] sm:$0xf]
  %v60 = vld [vmem:[%s1 + $0x34] sm:$0xf]
  %v61 = vld [vmem:[%s1 + $0x38] sm:$0xf]
  %v62 = vld [vmem:[%s1 + $0x3c] sm:$0xf]
  %v63 = vld [vmem:[%s1 + $0x40] sm:$0xf]
  %v64 = vld [vmem:[%s1 + $0x44] sm:$0xf]
  %v65 = vld [vmem:[%s1 + $0x48] sm:$0xf]
  %v66 = vld [vmem:[%s1 + $0x4c] sm:$0xf]
  %v67 = vld [vmem:[%s1 + $0x50] sm:$0xf]
  %v68 = vld [vmem:[%s1 + $0x54] sm:$0xf]
  %v69 = vld [vmem:[%s1 + $0x58] sm:$0xf]
  %v70 = vld [vmem:[%s1 + $0x5c] sm:$0xf]
  %v71 = vld [vmem:[%s1 + $0x60] sm:$0xf]
  %v72 = vld [vmem:[%s1 + $0x64] sm:$0xf]
  %v73 = vld [vmem:[%s1 + $0x68] sm:$0xf]
  %v74 = vld [vmem:[%s1 + $0x6c] sm:$0xf]
  %v75 = vld [vmem:[%s1 + $0x70] sm:$0xf]
  %v76 = vld [vmem:[%s1 + $0x74] sm:$0xf]
  %v77 = vld [vmem:[%s1 + $0x78] sm:$0xf]
  %v78 = vld [vmem:[%s1 + $0x7c] sm:$0xf]
  %v79 = vld [vmem:[%s1 + $0x80] sm:$0xf]
  %v80 = vld [vmem:[%s1 + $0x84] sm:$0xf]
  %v81 = vld [vmem:[%s1 + $0x88] sm:$0xf]
  %v82 = vld [vmem:[%s1 + $0x8c] sm:$0xf]
  %v83 = vld [vmem:[%s1 + $0x90] sm:$0xf]
  %v84 = vld [vmem:[%s1 + $0x94] sm:$0xf]
  %v85 = vld [vmem:[%s1 + $0x98] sm:$0xf]
  %v86 = vld [vmem:[%s1 + $0x9c] sm:$0xf]
  %v87 = vld [vmem:[%s1 + $0xa0] sm:$0xf]
  %v88 = vld [vmem:[%s1 + $0xa4] sm:$0xf]
  %v89 = vld [vmem:[%s1 + $0xa8] sm:$0xf]
  %v90 = vld [vmem:[%s1 + $0xac] sm:$0xf]
  %v91 = vld [vmem:[%s1 + $0xb0] sm:$0xf]
  %v92 = vld [vmem:[%s1 + $0xb4] sm:$0xf]
  %v93 = vld [vmem:[%s1 + $0xb8] sm:$0xf]
  %v94 = vld [vmem:[%s1 + $0xbc] sm:$0xf]
  %v95 = vld [vmem:[%s1 + $0xc0] sm:$0xf]
  %v96 = vld [vmem:[%s1 + $0xc4] sm:$0xf]
  %v97 = vld [vmem:[%s1 + $0xc8] sm:$0xf]
  %v98 = vld [vmem:[%s1 + $0xcc] sm:$0xf]
  %v99 = vld [vmem:[%s1 + $0xd0] sm:$0xf]
  %v100 = vld [vmem:[%s1 + $0xd4] sm:$0xf]
  %v101 = vld [vmem:[%s1 + $0xd8] sm:$0xf]
  %v102 = vld [vmem:[%s1 + $0xdc] sm:$0xf]
  %v103 = vld [vmem:[%s1 + $0xe0] sm:$0xf]
  %v104 = vld [vmem:[%s1 + $0xe4] sm:$0xf]
  %v105 = vld [vmem:[%s1 + $0xe8] sm:$0xf]
  %v106 = vld [vmem:[%s1 + $0xec] sm:$0xf]
  %v107 = vld [vmem:[%s1 + $0xf0] sm:$0xf]
  %v108 = vld [vmem:[%s1 + $0xf4] sm:$0xf]
  %v109 = vld [vmem:[%s1 + $0xf8] sm:$0xf]
  %v110 = vld [vmem:[%s1 + $0xfc] sm:$0xf]
  %v111 = vld [vmem:[%s2] sm:$0x1]
  %v113 = vlaneseq
  %v114 = vshrl.u32 %v113, 7
  %v115 = vsub.s32 0, %v114
  %v116 = vrot.slane %v111, %v115
  %v150 = vunpack.c.l.b16 %v15
  %v151 = vunpack.c.h.b16 %v15
  %v152 = vunpack.c.l.b16 %v16
  %v153 = vunpack.c.h.b16 %v16
  %v154 = vunpack.c.l.b16 %v17
  %v155 = vunpack.c.h.b16 %v17
  %v156 = vunpack.c.l.b16 %v18
  %v157 = vunpack.c.h.b16 %v18
  %v158 = vunpack.c.l.b16 %v19
  %v159 = vunpack.c.h.b16 %v19
  %v160 = vunpack.c.l.b16 %v20
  %v161 = vunpack.c.h.b16 %v20
  %v162 = vunpack.c.l.b16 %v21
  %v163 = vunpack.c.h.b16 %v21
  %v164 = vunpack.c.l.b16 %v22
  %v165 = vunpack.c.h.b16 %v22
  %v166 = vunpack.c.l.b16 %v23
  %v167 = vunpack.c.h.b16 %v23
  %v168 = vunpack.c.l.b16 %v24
  %v169 = vunpack.c.h.b16 %v24
  %v170 = vunpack.c.l.b16 %v25
  %v171 = vunpack.c.h.b16 %v25
  %v172 = vunpack.c.l.b16 %v26
  %v173 = vunpack.c.h.b16 %v26
  %v174 = vunpack.c.l.b16 %v27
  %v175 = vunpack.c.h.b16 %v27
  %v176 = vunpack.c.l.b16 %v28
  %v177 = vunpack.c.h.b16 %v28
  %v178 = vunpack.c.l.b16 %v29
  %v179 = vunpack.c.h.b16 %v29
  %v180 = vunpack.c.l.b16 %v30
  %v181 = vunpack.c.h.b16 %v30
  %v182 = vunpack.c.l.b16 %v31
  %v183 = vunpack.c.h.b16 %v31
  %v184 = vunpack.c.l.b16 %v32
  %v185 = vunpack.c.h.b16 %v32
  %v186 = vunpack.c.l.b16 %v33
  %v187 = vunpack.c.h.b16 %v33
  %v188 = vunpack.c.l.b16 %v34
  %v189 = vunpack.c.h.b16 %v34
  %v190 = vunpack.c.l.b16 %v35
  %v191 = vunpack.c.h.b16 %v35
  %v192 = vunpack.c.l.b16 %v36
  %v193 = vunpack.c.h.b16 %v36
  %v194 = vunpack.c.l.b16 %v37
  %v195 = vunpack.c.h.b16 %v37
  %v196 = vunpack.c.l.b16 %v38
  %v197 = vunpack.c.h.b16 %v38
  %v198 = vunpack.c.l.b16 %v39
  %v199 = vunpack.c.h.b16 %v39
  %v200 = vunpack.c.l.b16 %v40
  %v201 = vunpack.c.h.b16 %v40
  %v202 = vunpack.c.l.b16 %v41
  %v203 = vunpack.c.h.b16 %v41
  %v204 = vunpack.c.l.b16 %v42
  %v205 = vunpack.c.h.b16 %v42
  %v206 = vunpack.c.l.b16 %v43
  %v207 = vunpack.c.h.b16 %v43
  %v208 = vunpack.c.l.b16 %v44
  %v209 = vunpack.c.h.b16 %v44
  %v210 = vunpack.c.l.b16 %v45
  %v211 = vunpack.c.h.b16 %v45
  %v212 = vunpack.c.l.b16 %v46
  %v213 = vunpack.c.h.b16 %v46
  %v214 = vpack.c.b16 %v154, %v150
  %v215 = vpack.c.b16 %v155, %v151
  %v216 = vpack.c.b16 %v156, %v152
  %v217 = vpack.c.b16 %v157, %v153
  %v218 = vpack.c.b16 %v162, %v158
  %v219 = vpack.c.b16 %v163, %v159
  %v220 = vpack.c.b16 %v164, %v160
  %v221 = vpack.c.b16 %v165, %v161
  %v222 = vpack.c.b16 %v170, %v166
  %v223 = vpack.c.b16 %v171, %v167
  %v224 = vpack.c.b16 %v172, %v168
  %v225 = vpack.c.b16 %v173, %v169
  %v226 = vpack.c.b16 %v178, %v174
  %v227 = vpack.c.b16 %v179, %v175
  %v228 = vpack.c.b16 %v180, %v176
  %v229 = vpack.c.b16 %v181, %v177
  %v230 = vpack.c.b16 %v186, %v182
  %v231 = vpack.c.b16 %v187, %v183
  %v232 = vpack.c.b16 %v188, %v184
  %v233 = vpack.c.b16 %v189, %v185
  %v234 = vpack.c.b16 %v194, %v190
  %v235 = vpack.c.b16 %v195, %v191
  %v236 = vpack.c.b16 %v196, %v192
  %v237 = vpack.c.b16 %v197, %v193
  %v238 = vpack.c.b16 %v202, %v198
  %v239 = vpack.c.b16 %v203, %v199
  %v240 = vpack.c.b16 %v204, %v200
  %v241 = vpack.c.b16 %v205, %v201
  %v242 = vpack.c.b16 %v210, %v206
  %v243 = vpack.c.b16 %v211, %v207
  %v244 = vpack.c.b16 %v212, %v208
  %v245 = vpack.c.b16 %v213, %v209
  %v342 = vunpack.c.l.b16 %v47
  %v343 = vunpack.c.l.b16 %v48
  %v344 = vunpack.c.l.b16 %v49
  %v345 = vunpack.c.l.b16 %v50
  %v346 = vunpack.c.l.b16 %v51
  %v347 = vunpack.c.l.b16 %v52
  %v348 = vunpack.c.l.b16 %v53
  %v349 = vunpack.c.l.b16 %v54
  %v350 = vunpack.c.l.b16 %v55
  %v351 = vunpack.c.l.b16 %v56
  %v352 = vunpack.c.l.b16 %v57
  %v353 = vunpack.c.l.b16 %v58
  %v354 = vunpack.c.l.b16 %v59
  %v355 = vunpack.c.l.b16 %v60
  %v356 = vunpack.c.l.b16 %v61
  %v357 = vunpack.c.l.b16 %v62
  %v358 = vunpack.c.l.b16 %v63
  %v359 = vunpack.c.l.b16 %v64
  %v360 = vunpack.c.l.b16 %v65
  %v361 = vunpack.c.l.b16 %v66
  %v362 = vunpack.c.l.b16 %v67
  %v363 = vunpack.c.l.b16 %v68
  %v364 = vunpack.c.l.b16 %v69
  %v365 = vunpack.c.l.b16 %v70
  %v366 = vunpack.c.l.b16 %v71
  %v367 = vunpack.c.l.b16 %v72
  %v368 = vunpack.c.l.b16 %v73
  %v369 = vunpack.c.l.b16 %v74
  %v370 = vunpack.c.l.b16 %v75
  %v371 = vunpack.c.l.b16 %v76
  %v372 = vunpack.c.l.b16 %v77
  %v373 = vunpack.c.l.b16 %v78
  %v374 = vunpack.c.l.b16 %v79
  %v375 = vunpack.c.l.b16 %v80
  %v376 = vunpack.c.l.b16 %v81
  %v377 = vunpack.c.l.b16 %v82
  %v378 = vunpack.c.l.b16 %v83
  %v379 = vunpack.c.l.b16 %v84
  %v380 = vunpack.c.l.b16 %v85
  %v381 = vunpack.c.l.b16 %v86
  %v382 = vunpack.c.l.b16 %v87
  %v383 = vunpack.c.l.b16 %v88
  %v384 = vunpack.c.l.b16 %v89
  %v385 = vunpack.c.l.b16 %v90
  %v386 = vunpack.c.l.b16 %v91
  %v387 = vunpack.c.l.b16 %v92
  %v388 = vunpack.c.l.b16 %v93
  %v389 = vunpack.c.l.b16 %v94
  %v390 = vunpack.c.l.b16 %v95
  %v391 = vunpack.c.l.b16 %v96
  %v392 = vunpack.c.l.b16 %v97
  %v393 = vunpack.c.l.b16 %v98
  %v394 = vunpack.c.l.b16 %v99
  %v395 = vunpack.c.l.b16 %v100
  %v396 = vunpack.c.l.b16 %v101
  %v397 = vunpack.c.l.b16 %v102
  %v398 = vunpack.c.l.b16 %v103
  %v399 = vunpack.c.l.b16 %v104
  %v400 = vunpack.c.l.b16 %v105
  %v401 = vunpack.c.l.b16 %v106
  %v402 = vunpack.c.l.b16 %v107
  %v403 = vunpack.c.l.b16 %v108
  %v404 = vunpack.c.l.b16 %v109
  %v405 = vunpack.c.l.b16 %v110
  %v406 = vpack.c.b16 %v343, %v342
  %v407 = vpack.c.b16 %v345, %v344
  %v408 = vpack.c.b16 %v347, %v346
  %v409 = vpack.c.b16 %v349, %v348
  %v410 = vpack.c.b16 %v351, %v350
  %v411 = vpack.c.b16 %v353, %v352
  %v412 = vpack.c.b16 %v355, %v354
  %v413 = vpack.c.b16 %v357, %v356
  %v414 = vpack.c.b16 %v359, %v358
  %v415 = vpack.c.b16 %v361, %v360
  %v416 = vpack.c.b16 %v363, %v362
  %v417 = vpack.c.b16 %v365, %v364
  %v418 = vpack.c.b16 %v367, %v366
  %v419 = vpack.c.b16 %v369, %v368
  %v420 = vpack.c.b16 %v371, %v370
  %v421 = vpack.c.b16 %v373, %v372
  %v422 = vpack.c.b16 %v375, %v374
  %v423 = vpack.c.b16 %v377, %v376
  %v424 = vpack.c.b16 %v379, %v378
  %v425 = vpack.c.b16 %v381, %v380
  %v426 = vpack.c.b16 %v383, %v382
  %v427 = vpack.c.b16 %v385, %v384
  %v428 = vpack.c.b16 %v387, %v386
  %v429 = vpack.c.b16 %v389, %v388
  %v430 = vpack.c.b16 %v391, %v390
  %v431 = vpack.c.b16 %v393, %v392
  %v432 = vpack.c.b16 %v395, %v394
  %v433 = vpack.c.b16 %v397, %v396
  %v434 = vpack.c.b16 %v399, %v398
  %v435 = vpack.c.b16 %v401, %v400
  %v436 = vpack.c.b16 %v403, %v402
  %v437 = vpack.c.b16 %v405, %v404
  %470 = vmatprep.subr.bf16.mxu0 0
  %471 = vmatpush1.bf16.msra.mxu0 %v413
  %472 = vmatprep.subr.bf16.mxu0 0
  %473 = vmatpush1.bf16.msra.mxu0 %v412
  %474 = vmatprep.subr.bf16.mxu0 0
  %475 = vmatpush1.bf16.msra.mxu0 %v411
  %476 = vmatprep.subr.bf16.mxu0 0
  %477 = vmatpush1.bf16.msra.mxu0 %v410
  %478 = vmatprep.subr.bf16.mxu0 0
  %479 = vmatpush1.bf16.msra.mxu0 %v409
  %480 = vmatprep.subr.bf16.mxu0 0
  %481 = vmatpush1.bf16.msra.mxu0 %v408
  %482 = vmatprep.subr.bf16.mxu0 0
  %483 = vmatpush1.bf16.msra.mxu0 %v407
  %484 = vmatprep.subr.bf16.mxu0 0
  %485 = vmatpush1.bf16.msra.mxu0 %v406
  %486 = vmatprep.subr.bf16.mxu0 0
  %487 = vmatpush2.bf16.msra.mxu0 %v421
  %488 = vmatprep.subr.bf16.mxu0 0
  %489 = vmatpush2.bf16.msra.mxu0 %v420
  %490 = vmatprep.subr.bf16.mxu0 0
  %491 = vmatpush2.bf16.msra.mxu0 %v419
  %492 = vmatprep.subr.bf16.mxu0 0
  %493 = vmatpush2.bf16.msra.mxu0 %v418
  %494 = vmatprep.subr.bf16.mxu0 0
  %495 = vmatpush2.bf16.msra.mxu0 %v417
  %496 = vmatprep.subr.bf16.mxu0 0
  %497 = vmatpush2.bf16.msra.mxu0 %v416
  %498 = vmatprep.subr.bf16.mxu0 0
  %499 = vmatpush2.bf16.msra.mxu0 %v415
  %500 = vmatprep.subr.bf16.mxu0 0
  %501 = vmatpush2.bf16.msra.mxu0 %v414
  %502 = vmatprep.mubr.bf16.mxu0 %v215
  %503 = vmatmul.mubr.bf16.gmra.mxu0 %v214
  %v504 = vpop.f32.mrf.mxu0
  %v505 = vadd.f32 %v116, %v504
  %v506 = vpop.f32.mrf.mxu0
  %v507 = vpop.f32.mrf.mxu0
  %v508 = vadd.f32 %v116, %v507
  %v509 = vpop.f32.mrf.mxu0
  %510 = vmatprep.mubr.bf16.mxu0 %v219
  %511 = vmatmul.mubr.bf16.gmra.mxu0 %v218
  %v512 = vpop.f32.mrf.mxu0
  %v513 = vadd.f32 %v116, %v512
  %v514 = vpop.f32.mrf.mxu0
  %v515 = vpop.f32.mrf.mxu0
  %v516 = vadd.f32 %v116, %v515
  %v517 = vpop.f32.mrf.mxu0
  %518 = vmatprep.mubr.bf16.mxu0 %v223
  %519 = vmatmul.mubr.bf16.gmra.mxu0 %v222
  %v520 = vpop.f32.mrf.mxu0
  %v521 = vadd.f32 %v116, %v520
  %v522 = vpop.f32.mrf.mxu0
  %v523 = vpop.f32.mrf.mxu0
  %v524 = vadd.f32 %v116, %v523
  %v525 = vpop.f32.mrf.mxu0
  %526 = vmatprep.mubr.bf16.mxu0 %v227
  %527 = vmatmul.mubr.bf16.gmra.mxu0 %v226
  %v528 = vpop.f32.mrf.mxu0
  %v529 = vadd.f32 %v116, %v528
  %v530 = vpop.f32.mrf.mxu0
  %v531 = vpop.f32.mrf.mxu0
  %v532 = vadd.f32 %v116, %v531
  %v533 = vpop.f32.mrf.mxu0
  %534 = vmatprep.mubr.bf16.mxu0 %v231
  %535 = vmatmul.mubr.bf16.gmra.mxu0 %v230
  %v536 = vpop.f32.mrf.mxu0
  %v537 = vadd.f32 %v116, %v536
  %v538 = vpop.f32.mrf.mxu0
  %v539 = vpop.f32.mrf.mxu0
  %v540 = vadd.f32 %v116, %v539
  %v541 = vpop.f32.mrf.mxu0
  %542 = vmatprep.mubr.bf16.mxu0 %v235
  %543 = vmatmul.mubr.bf16.gmra.mxu0 %v234
  %v544 = vpop.f32.mrf.mxu0
  %v545 = vadd.f32 %v116, %v544
  %v546 = vpop.f32.mrf.mxu0
  %v547 = vpop.f32.mrf.mxu0
  %v548 = vadd.f32 %v116, %v547
  %v549 = vpop.f32.mrf.mxu0
  %550 = vmatprep.mubr.bf16.mxu0 %v239
  %551 = vmatmul.mubr.bf16.gmra.mxu0 %v238
  %v552 = vpop.f32.mrf.mxu0
  %v553 = vadd.f32 %v116, %v552
  %v554 = vpop.f32.mrf.mxu0
  %v555 = vpop.f32.mrf.mxu0
  %v556 = vadd.f32 %v116, %v555
  %v557 = vpop.f32.mrf.mxu0
  %558 = vmatprep.mubr.bf16.mxu0 %v243
  %559 = vmatmul.mubr.bf16.gmra.mxu0 %v242
  %v560 = vpop.f32.mrf.mxu0
  %v561 = vadd.f32 %v116, %v560
  %v562 = vpop.f32.mrf.mxu0
  %v563 = vpop.f32.mrf.mxu0
  %v564 = vadd.f32 %v116, %v563
  %v565 = vpop.f32.mrf.mxu0
  %566 = vdwg.mxu0
  %567 = vmatprep.subr.bf16.mxu0 0
  %568 = vmatpush1.bf16.msra.mxu0 %v429
  %569 = vmatprep.subr.bf16.mxu0 0
  %570 = vmatpush1.bf16.msra.mxu0 %v428
  %571 = vmatprep.subr.bf16.mxu0 0
  %572 = vmatpush1.bf16.msra.mxu0 %v427
  %573 = vmatprep.subr.bf16.mxu0 0
  %574 = vmatpush1.bf16.msra.mxu0 %v426
  %575 = vmatprep.subr.bf16.mxu0 0
  %576 = vmatpush1.bf16.msra.mxu0 %v425
  %577 = vmatprep.subr.bf16.mxu0 0
  %578 = vmatpush1.bf16.msra.mxu0 %v424
  %579 = vmatprep.subr.bf16.mxu0 0
  %580 = vmatpush1.bf16.msra.mxu0 %v423
  %581 = vmatprep.subr.bf16.mxu0 0
  %582 = vmatpush1.bf16.msra.mxu0 %v422
  %583 = vmatprep.subr.bf16.mxu0 0
  %584 = vmatpush2.bf16.msra.mxu0 %v437
  %585 = vmatprep.subr.bf16.mxu0 0
  %586 = vmatpush2.bf16.msra.mxu0 %v436
  %587 = vmatprep.subr.bf16.mxu0 0
  %588 = vmatpush2.bf16.msra.mxu0 %v435
  %589 = vmatprep.subr.bf16.mxu0 0
  %590 = vmatpush2.bf16.msra.mxu0 %v434
  %591 = vmatprep.subr.bf16.mxu0 0
  %592 = vmatpush2.bf16.msra.mxu0 %v433
  %593 = vmatprep.subr.bf16.mxu0 0
  %594 = vmatpush2.bf16.msra.mxu0 %v432
  %595 = vmatprep.subr.bf16.mxu0 0
  %596 = vmatpush2.bf16.msra.mxu0 %v431
  %597 = vmatprep.subr.bf16.mxu0 0
  %598 = vmatpush2.bf16.msra.mxu0 %v430
  %599 = vmatprep.mubr.bf16.mxu0 %v217
  %600 = vmatmul.mubr.bf16.gmra.mxu0 %v216
  %v601 = vpop.f32.mrf.mxu0
  %v602 = vadd.f32 %v505, %v601
  %v603 = vpop.f32.mrf.mxu0
  %v604 = vpop.f32.mrf.mxu0
  %v605 = vadd.f32 %v508, %v604
  %v606 = vpop.f32.mrf.mxu0
  %607 = vmatprep.mubr.bf16.mxu0 %v221
  %608 = vmatmul.mubr.bf16.gmra.mxu0 %v220
  %v609 = vpop.f32.mrf.mxu0
  %v610 = vadd.f32 %v513, %v609
  %v611 = vpop.f32.mrf.mxu0
  %v612 = vpop.f32.mrf.mxu0
  %v613 = vadd.f32 %v516, %v612
  %v614 = vpop.f32.mrf.mxu0
  %615 = vmatprep.mubr.bf16.mxu0 %v225
  %616 = vmatmul.mubr.bf16.gmra.mxu0 %v224
  %v617 = vpop.f32.mrf.mxu0
  %v618 = vadd.f32 %v521, %v617
  %v619 = vpop.f32.mrf.mxu0
  %v620 = vpop.f32.mrf.mxu0
  %v621 = vadd.f32 %v524, %v620
  %v622 = vpop.f32.mrf.mxu0
  %623 = vmatprep.mubr.bf16.mxu0 %v229
  %624 = vmatmul.mubr.bf16.gmra.mxu0 %v228
  %v625 = vpop.f32.mrf.mxu0
  %v626 = vadd.f32 %v529, %v625
  %v627 = vpop.f32.mrf.mxu0
  %v628 = vpop.f32.mrf.mxu0
  %v629 = vadd.f32 %v532, %v628
  %v630 = vpop.f32.mrf.mxu0
  %631 = vmatprep.mubr.bf16.mxu0 %v233
  %632 = vmatmul.mubr.bf16.gmra.mxu0 %v232
  %v633 = vpop.f32.mrf.mxu0
  %v634 = vadd.f32 %v537, %v633
  %v635 = vpop.f32.mrf.mxu0
  %v636 = vpop.f32.mrf.mxu0
  %v637 = vadd.f32 %v540, %v636
  %v638 = vpop.f32.mrf.mxu0
  %639 = vmatprep.mubr.bf16.mxu0 %v237
  %640 = vmatmul.mubr.bf16.gmra.mxu0 %v236
  %v641 = vpop.f32.mrf.mxu0
  %v642 = vadd.f32 %v545, %v641
  %v643 = vpop.f32.mrf.mxu0
  %v644 = vpop.f32.mrf.mxu0
  %v645 = vadd.f32 %v548, %v644
  %v646 = vpop.f32.mrf.mxu0
  %647 = vmatprep.mubr.bf16.mxu0 %v241
  %648 = vmatmul.mubr.bf16.gmra.mxu0 %v240
  %v649 = vpop.f32.mrf.mxu0
  %v650 = vadd.f32 %v553, %v649
  %v651 = vpop.f32.mrf.mxu0
  %v652 = vpop.f32.mrf.mxu0
  %v653 = vadd.f32 %v556, %v652
  %v654 = vpop.f32.mrf.mxu0
  %655 = vmatprep.mubr.bf16.mxu0 %v245
  %656 = vmatmul.mubr.bf16.gmra.mxu0 %v244
  %v657 = vpop.f32.mrf.mxu0
  %v658 = vadd.f32 %v561, %v657
  %v659 = vpop.f32.mrf.mxu0
  %v660 = vpop.f32.mrf.mxu0
  %v661 = vadd.f32 %v564, %v660
  %v662 = vpop.f32.mrf.mxu0
  %663 = vdwg.mxu0
  %v664 = vmax.f32 %v602, 0.0
  %v665 = vmax.f32 %v605, 0.0
  %v666 = vmax.f32 %v610, 0.0
  %v667 = vmax.f32 %v613, 0.0
  %v668 = vmax.f32 %v618, 0.0
  %v669 = vmax.f32 %v621, 0.0
  %v670 = vmax.f32 %v626, 0.0
  %v671 = vmax.f32 %v629, 0.0
  %v672 = vmax.f32 %v634, 0.0
  %v673 = vmax.f32 %v637, 0.0
  %v674 = vmax.f32 %v642, 0.0
  %v675 = vmax.f32 %v645, 0.0
  %v676 = vmax.f32 %v650, 0.0
  %v677 = vmax.f32 %v653, 0.0
  %v678 = vmax.f32 %v658, 0.0
  %v679 = vmax.f32 %v661, 0.0
  %v680 = vmin.f32 %v664, 6.0
  %v681 = vmin.f32 %v665, 6.0
  %v682 = vmin.f32 %v666, 6.0
  %v683 = vmin.f32 %v667, 6.0
  %v684 = vmin.f32 %v668, 6.0
  %v685 = vmin.f32 %v669, 6.0
  %v686 = vmin.f32 %v670, 6.0
  %v687 = vmin.f32 %v671, 6.0
  %v688 = vmin.f32 %v672, 6.0
  %v689 = vmin.f32 %v673, 6.0
  %v690 = vmin.f32 %v674, 6.0
  %v691 = vmin.f32 %v675, 6.0
  %v692 = vmin.f32 %v676, 6.0
  %v693 = vmin.f32 %v677, 6.0
  %v694 = vmin.f32 %v678, 6.0
  %v695 = vmin.f32 %v679, 6.0
  %v696 = vpack.c.bf16 %v681, %v680
  %v697 = vpack.c.bf16 %v683, %v682
  %v698 = vpack.c.bf16 %v685, %v684
  %v699 = vpack.c.bf16 %v687, %v686
  %v700 = vpack.c.bf16 %v689, %v688
  %v701 = vpack.c.bf16 %v691, %v690
  %v702 = vpack.c.bf16 %v693, %v692
  %v703 = vpack.c.bf16 %v695, %v694
  %v712 = vunpack.c.l.b16 %v696
  %v713 = vunpack.c.h.b16 %v696
  %v714 = vunpack.c.l.b16 %v697
  %v715 = vunpack.c.h.b16 %v697
  %v716 = vunpack.c.l.b16 %v698
  %v717 = vunpack.c.h.b16 %v698
  %v718 = vunpack.c.l.b16 %v699
  %v719 = vunpack.c.h.b16 %v699
  %v720 = vunpack.c.l.b16 %v700
  %v721 = vunpack.c.h.b16 %v700
  %v722 = vunpack.c.l.b16 %v701
  %v723 = vunpack.c.h.b16 %v701
  %v724 = vunpack.c.l.b16 %v702
  %v725 = vunpack.c.h.b16 %v702
  %v726 = vunpack.c.l.b16 %v703
  %v727 = vunpack.c.h.b16 %v703
  %v728 = vpack.c.b16 %v712, %v712
  %v729 = vpack.c.b16 %v713, %v713
  %v730 = vpack.c.b16 %v714, %v714
  %v731 = vpack.c.b16 %v715, %v715
  %v732 = vpack.c.b16 %v716, %v716
  %v733 = vpack.c.b16 %v717, %v717
  %v734 = vpack.c.b16 %v718, %v718
  %v735 = vpack.c.b16 %v719, %v719
  %v736 = vpack.c.b16 %v720, %v720
  %v737 = vpack.c.b16 %v721, %v721
  %v738 = vpack.c.b16 %v722, %v722
  %v739 = vpack.c.b16 %v723, %v723
  %v740 = vpack.c.b16 %v724, %v724
  %v741 = vpack.c.b16 %v725, %v725
  %v742 = vpack.c.b16 %v726, %v726
  %v743 = vpack.c.b16 %v727, %v727
  %760 = vst [vmem:[%s3] sm:$0xf] %v728
  %761 = vst [vmem:[%s3 + $0x4] sm:$0xf] %v729
  %762 = vst [vmem:[%s3 + $0x8] sm:$0xf] %v730
  %763 = vst [vmem:[%s3 + $0xc] sm:$0xf] %v731
  %764 = vst [vmem:[%s3 + $0x10] sm:$0xf] %v732
  %765 = vst [vmem:[%s3 + $0x14] sm:$0xf] %v733
  %766 = vst [vmem:[%s3 + $0x18] sm:$0xf] %v734
  %767 = vst [vmem:[%s3 + $0x1c] sm:$0xf] %v735
  %768 = vst [vmem:[%s3 + $0x20] sm:$0xf] %v736
  %769 = vst [vmem:[%s3 + $0x24] sm:$0xf] %v737
  %770 = vst [vmem:[%s3 + $0x28] sm:$0xf] %v738
  %771 = vst [vmem:[%s3 + $0x2c] sm:$0xf] %v739
  %772 = vst [vmem:[%s3 + $0x30] sm:$0xf] %v740
  %773 = vst [vmem:[%s3 + $0x34] sm:$0xf] %v741
  %774 = vst [vmem:[%s3 + $0x38] sm:$0xf] %v742
  %775 = vst [vmem:[%s3 + $0x3c] sm:$0xf] %v743
  // Predicated region
  $region14: #{model_forward.15} parent=0 // pred_check
    _
  $region15: #{model_forward.15} parent=0 // pred_check_branch
    %777 = sbr.rel (0) target = $region17
  $region16: #{model_forward.15} parent=0 // pred_region
    _
  $region17: #{model_forward.15} parent=0 // pred_fallthru
    _
  // Predicated region
  $region18: #{model_forward.15} parent=0 // pred_check
    _
  $region19: #{model_forward.15} parent=0 // pred_check_branch
    %779 = sbr.rel (0) target = $region21
  $region20: #{model_forward.15} parent=0 // pred_region
    _
  $region21: #{model_forward.15} parent=0 // pred_fallthru
    _

// kernel: model_forward.16
$region0: #{model_forward.16}
  #allocation0 [shape = 'u32[]', space=smem, size = 0x4, offset = 0x4, fixed_abs, tag = 'smem constant byte address 0x4 - core index']
  #allocation1 [shape = 'u32[144,128]{1,0:T(1,128)}', space=vmem, size = 0x12000, scoped, tag = 'internal scratch']
  %s0 = inlined_call_operand.vmem [shape: bf16[9,128,128], index: 0, kind: input, shape index: {}]
  %s1 = inlined_call_operand.vmem [shape: f32[9,1,128], index: 1, kind: input, shape index: {}]
  %s2 = inlined_call_operand.vmem [shape: f32[1,128], index: 2, kind: input, shape index: {}]
  %s3 = inlined_call_operand.vmem [shape: bf16[128,256], index: 3, kind: input, shape index: {}]
  %s4 = inlined_call_operand.vmem [shape: f32[1,256], index: 4, kind: input, shape index: {}]
  %s5 = inlined_call_operand.vmem [shape: bf16[128,256], index: 5, kind: output, shape index: {}]
  %s6 = sld [smem:[#allocation0]]
  $region30: #{model_forward.16} parent=0
    _
  %s8 = ssub.s32 1, %s6
  %s9 = scalar_select 0, %s8, %s6
  // Predicated region
  $region2: #{model_forward.16} parent=0 // pred_check
    _
  $region3: #{model_forward.16} parent=0 // pred_check_branch
    %11 = sbr.rel (0) target = $region5
  $region4: #{model_forward.16} parent=0 // pred_region
    _
  $region5: #{model_forward.16} parent=0 // pred_fallthru
    _
  // Predicated region
  $region6: #{model_forward.16} parent=0 // pred_check
    _
  $region7: #{model_forward.16} parent=0 // pred_check_branch
    %13 = sbr.rel (0) target = $region9
  $region8: #{model_forward.16} parent=0 // pred_region
    _
  $region9: #{model_forward.16} parent=0 // pred_fallthru
    _
  // Predicated region
  $region10: #{model_forward.16} parent=0 // pred_check
    _
  $region11: #{model_forward.16} parent=0 // pred_check_branch
    %15 = sbr.rel (0) target = $region13
  $region12: #{model_forward.16} parent=0 // pred_region
    _
  $region13: #{model_forward.16} parent=0 // pred_fallthru
    _
  // Predicated region
  $region14: #{model_forward.16} parent=0 // pred_check
    _
  $region15: #{model_forward.16} parent=0 // pred_check_branch
    %17 = sbr.rel (0) target = $region17
  $region16: #{model_forward.16} parent=0 // pred_region
    _
  $region17: #{model_forward.16} parent=0 // pred_fallthru
    _
  // Predicated region
  $region18: #{model_forward.16} parent=0 // pred_check
    _
  $region19: #{model_forward.16} parent=0 // pred_check_branch
    %19 = sbr.rel (0) target = $region21
  $region20: #{model_forward.16} parent=0 // pred_region
    _
  $region21: #{model_forward.16} parent=0 // pred_fallthru
    _
  %v21 = vld [vmem:[%s0] sm:$0xf]
  %v22 = vld [vmem:[%s0 + $0x4] sm:$0xf]
  %v23 = vld [vmem:[%s0 + $0x8] sm:$0xf]
  %v24 = vld [vmem:[%s0 + $0xc] sm:$0xf]
  %v25 = vld [vmem:[%s0 + $0x10] sm:$0xf]
  %v26 = vld [vmem:[%s0 + $0x14] sm:$0xf]
  %v27 = vld [vmem:[%s0 + $0x18] sm:$0xf]
  %v28 = vld [vmem:[%s0 + $0x1c] sm:$0xf]
  %v29 = vld [vmem:[%s0 + $0x20] sm:$0xf]
  %v30 = vld [vmem:[%s0 + $0x24] sm:$0xf]
  %v31 = vld [vmem:[%s0 + $0x28] sm:$0xf]
  %v32 = vld [vmem:[%s0 + $0x2c] sm:$0xf]
  %v33 = vld [vmem:[%s0 + $0x30] sm:$0xf]
  %v34 = vld [vmem:[%s0 + $0x34] sm:$0xf]
  %v35 = vld [vmem:[%s0 + $0x38] sm:$0xf]
  %v36 = vld [vmem:[%s0 + $0x3c] sm:$0xf]
  %v37 = vunpack.c.l.bf16 %v21
  %v38 = vunpack.c.l.bf16 %v22
  %v39 = vunpack.c.l.bf16 %v23
  %v40 = vunpack.c.l.bf16 %v24
  %v41 = vunpack.c.l.bf16 %v25
  %v42 = vunpack.c.l.bf16 %v26
  %v43 = vunpack.c.l.bf16 %v27
  %v44 = vunpack.c.l.bf16 %v28
  %v45 = vunpack.c.l.bf16 %v29
  %v46 = vunpack.c.l.bf16 %v30
  %v47 = vunpack.c.l.bf16 %v31
  %v48 = vunpack.c.l.bf16 %v32
  %v49 = vunpack.c.l.bf16 %v33
  %v50 = vunpack.c.l.bf16 %v34
  %v51 = vunpack.c.l.bf16 %v35
  %v52 = vunpack.c.l.bf16 %v36
  %v53 = vld [vmem:[%s1] sm:$0x1]
  %v55 = vlaneseq
  %v56 = vshrl.u32 %v55, 7
  %v57 = vsub.s32 0, %v56
  %v58 = vrot.slane %v53, %v57
  %v60 = vmul.f32 %v37, %v58
  %v61 = vmul.f32 %v38, %v58
  %v62 = vmul.f32 %v39, %v58
  %v63 = vmul.f32 %v40, %v58
  %v64 = vmul.f32 %v41, %v58
  %v65 = vmul.f32 %v42, %v58
  %v66 = vmul.f32 %v43, %v58
  %v67 = vmul.f32 %v44, %v58
  %v68 = vmul.f32 %v45, %v58
  %v69 = vmul.f32 %v46, %v58
  %v70 = vmul.f32 %v47, %v58
  %v71 = vmul.f32 %v48, %v58
  %v72 = vmul.f32 %v49, %v58
  %v73 = vmul.f32 %v50, %v58
  %v74 = vmul.f32 %v51, %v58
  %v75 = vmul.f32 %v52, %v58
  %v76 = vadd.f32 %v60, 0.0
  %v77 = vadd.f32 %v61, 0.0
  %v78 = vadd.f32 %v62, 0.0
  %v79 = vadd.f32 %v63, 0.0
  %v80 = vadd.f32 %v64, 0.0
  %v81 = vadd.f32 %v65, 0.0
  %v82 = vadd.f32 %v66, 0.0
  %v83 = vadd.f32 %v67, 0.0
  %v84 = vadd.f32 %v68, 0.0
  %v85 = vadd.f32 %v69, 0.0
  %v86 = vadd.f32 %v70, 0.0
  %v87 = vadd.f32 %v71, 0.0
  %v88 = vadd.f32 %v72, 0.0
  %v89 = vadd.f32 %v73, 0.0
  %v90 = vadd.f32 %v74, 0.0
  %v91 = vadd.f32 %v75, 0.0
  %s92 = scalar_lea.vmem %s0, 64
  %v93 = vld [vmem:[%s92] sm:$0xf]
  %v94 = vld [vmem:[%s92 + $0x4] sm:$0xf]
  %v95 = vld [vmem:[%s92 + $0x8] sm:$0xf]
  %v96 = vld [vmem:[%s92 + $0xc] sm:$0xf]
  %v97 = vld [vmem:[%s92 + $0x10] sm:$0xf]
  %v98 = vld [vmem:[%s92 + $0x14] sm:$0xf]
  %v99 = vld [vmem:[%s92 + $0x18] sm:$0xf]
  %v100 = vld [vmem:[%s92 + $0x1c] sm:$0xf]
  %v101 = vld [vmem:[%s92 + $0x20] sm:$0xf]
  %v102 = vld [vmem:[%s92 + $0x24] sm:$0xf]
  %v103 = vld [vmem:[%s92 + $0x28] sm:$0xf]
  %v104 = vld [vmem:[%s92 + $0x2c] sm:$0xf]
  %v105 = vld [vmem:[%s92 + $0x30] sm:$0xf]
  %v106 = vld [vmem:[%s92 + $0x34] sm:$0xf]
  %v107 = vld [vmem:[%s92 + $0x38] sm:$0xf]
  %v108 = vld [vmem:[%s92 + $0x3c] sm:$0xf]
  %v109 = vunpack.c.l.bf16 %v93
  %v110 = vunpack.c.l.bf16 %v94
  %v111 = vunpack.c.l.bf16 %v95
  %v112 = vunpack.c.l.bf16 %v96
  %v113 = vunpack.c.l.bf16 %v97
  %v114 = vunpack.c.l.bf16 %v98
  %v115 = vunpack.c.l.bf16 %v99
  %v116 = vunpack.c.l.bf16 %v100
  %v117 = vunpack.c.l.bf16 %v101
  %v118 = vunpack.c.l.bf16 %v102
  %v119 = vunpack.c.l.bf16 %v103
  %v120 = vunpack.c.l.bf16 %v104
  %v121 = vunpack.c.l.bf16 %v105
  %v122 = vunpack.c.l.bf16 %v106
  %v123 = vunpack.c.l.bf16 %v107
  %v124 = vunpack.c.l.bf16 %v108
  %s125 = scalar_lea.vmem %s1, 1
  %v126 = vld [vmem:[%s125] sm:$0x1]
  %v128 = vlaneseq
  %v129 = vshrl.u32 %v128, 7
  %v130 = vsub.s32 0, %v129
  %v131 = vrot.slane %v126, %v130
  %v133 = vmul.f32 %v109, %v131
  %v134 = vmul.f32 %v110, %v131
  %v135 = vmul.f32 %v111, %v131
  %v136 = vmul.f32 %v112, %v131
  %v137 = vmul.f32 %v113, %v131
  %v138 = vmul.f32 %v114, %v131
  %v139 = vmul.f32 %v115, %v131
  %v140 = vmul.f32 %v116, %v131
  %v141 = vmul.f32 %v117, %v131
  %v142 = vmul.f32 %v118, %v131
  %v143 = vmul.f32 %v119, %v131
  %v144 = vmul.f32 %v120, %v131
  %v145 = vmul.f32 %v121, %v131
  %v146 = vmul.f32 %v122, %v131
  %v147 = vmul.f32 %v123, %v131
  %v148 = vmul.f32 %v124, %v131
  %v149 = vadd.f32 %v76, %v133
  %v150 = vadd.f32 %v77, %v134
  %v151 = vadd.f32 %v78, %v135
  %v152 = vadd.f32 %v79, %v136
  %v153 = vadd.f32 %v80, %v137
  %v154 = vadd.f32 %v81, %v138
  %v155 = vadd.f32 %v82, %v139
  %v156 = vadd.f32 %v83, %v140
  %v157 = vadd.f32 %v84, %v141
  %v158 = vadd.f32 %v85, %v142
  %v159 = vadd.f32 %v86, %v143
  %v160 = vadd.f32 %v87, %v144
  %v161 = vadd.f32 %v88, %v145
  %v162 = vadd.f32 %v89, %v146
  %v163 = vadd.f32 %v90, %v147
  %v164 = vadd.f32 %v91, %v148
  %s165 = scalar_lea.vmem %s0, 128
  %v166 = vld [vmem:[%s165] sm:$0xf]
  %v167 = vld [vmem:[%s165 + $0x4] sm:$0xf]
  %v168 = vld [vmem:[%s165 + $0x8] sm:$0xf]
  %v169 = vld [vmem:[%s165 + $0xc] sm:$0xf]
  %v170 = vld [vmem:[%s165 + $0x10] sm:$0xf]
  %v171 = vld [vmem:[%s165 + $0x14] sm:$0xf]
  %v172 = vld [vmem:[%s165 + $0x18] sm:$0xf]
  %v173 = vld [vmem:[%s165 + $0x1c] sm:$0xf]
  %v174 = vld [vmem:[%s165 + $0x20] sm:$0xf]
  %v175 = vld [vmem:[%s165 + $0x24] sm:$0xf]
  %v176 = vld [vmem:[%s165 + $0x28] sm:$0xf]
  %v177 = vld [vmem:[%s165 + $0x2c] sm:$0xf]
  %v178 = vld [vmem:[%s165 + $0x30] sm:$0xf]
  %v179 = vld [vmem:[%s165 + $0x34] sm:$0xf]
  %v180 = vld [vmem:[%s165 + $0x38] sm:$0xf]
  %v181 = vld [vmem:[%s165 + $0x3c] sm:$0xf]
  %v182 = vunpack.c.l.bf16 %v166
  %v183 = vunpack.c.l.bf16 %v167
  %v184 = vunpack.c.l.bf16 %v168
  %v185 = vunpack.c.l.bf16 %v169
  %v186 = vunpack.c.l.bf16 %v170
  %v187 = vunpack.c.l.bf16 %v171
  %v188 = vunpack.c.l.bf16 %v172
  %v189 = vunpack.c.l.bf16 %v173
  %v190 = vunpack.c.l.bf16 %v174
  %v191 = vunpack.c.l.bf16 %v175
  %v192 = vunpack.c.l.bf16 %v176
  %v193 = vunpack.c.l.bf16 %v177
  %v194 = vunpack.c.l.bf16 %v178
  %v195 = vunpack.c.l.bf16 %v179
  %v196 = vunpack.c.l.bf16 %v180
  %v197 = vunpack.c.l.bf16 %v181
  %s198 = scalar_lea.vmem %s1, 2
  %v199 = vld [vmem:[%s198] sm:$0x1]
  %v201 = vlaneseq
  %v202 = vshrl.u32 %v201, 7
  %v203 = vsub.s32 0, %v202
  %v204 = vrot.slane %v199, %v203
  %v206 = vmul.f32 %v182, %v204
  %v207 = vmul.f32 %v183, %v204
  %v208 = vmul.f32 %v184, %v204
  %v209 = vmul.f32 %v185, %v204
  %v210 = vmul.f32 %v186, %v204
  %v211 = vmul.f32 %v187, %v204
  %v212 = vmul.f32 %v188, %v204
  %v213 = vmul.f32 %v189, %v204
  %v214 = vmul.f32 %v190, %v204
  %v215 = vmul.f32 %v191, %v204
  %v216 = vmul.f32 %v192, %v204
  %v217 = vmul.f32 %v193, %v204
  %v218 = vmul.f32 %v194, %v204
  %v219 = vmul.f32 %v195, %v204
  %v220 = vmul.f32 %v196, %v204
  %v221 = vmul.f32 %v197, %v204
  %v222 = vadd.f32 %v149, %v206
  %v223 = vadd.f32 %v150, %v207
  %v224 = vadd.f32 %v151, %v208
  %v225 = vadd.f32 %v152, %v209
  %v226 = vadd.f32 %v153, %v210
  %v227 = vadd.f32 %v154, %v211
  %v228 = vadd.f32 %v155, %v212
  %v229 = vadd.f32 %v156, %v213
  %v230 = vadd.f32 %v157, %v214
  %v231 = vadd.f32 %v158, %v215
  %v232 = vadd.f32 %v159, %v216
  %v233 = vadd.f32 %v160, %v217
  %v234 = vadd.f32 %v161, %v218
  %v235 = vadd.f32 %v162, %v219
  %v236 = vadd.f32 %v163, %v220
  %v237 = vadd.f32 %v164, %v221
  %s238 = scalar_lea.vmem %s0, 192
  %v239 = vld [vmem:[%s238] sm:$0xf]
  %v240 = vld [vmem:[%s238 + $0x4] sm:$0xf]
  %v241 = vld [vmem:[%s238 + $0x8] sm:$0xf]
  %v242 = vld [vmem:[%s238 + $0xc] sm:$0xf]
  %v243 = vld [vmem:[%s238 + $0x10] sm:$0xf]
  %v244 = vld [vmem:[%s238 + $0x14] sm:$0xf]
  %v245 = vld [vmem:[%s238 + $0x18] sm:$0xf]
  %v246 = vld [vmem:[%s238 + $0x1c] sm:$0xf]
  %v247 = vld [vmem:[%s238 + $0x20] sm:$0xf]
  %v248 = vld [vmem:[%s238 + $0x24] sm:$0xf]
  %v249 = vld [vmem:[%s238 + $0x28] sm:$0xf]
  %v250 = vld [vmem:[%s238 + $0x2c] sm:$0xf]
  %v251 = vld [vmem:[%s238 + $0x30] sm:$0xf]
  %v252 = vld [vmem:[%s238 + $0x34] sm:$0xf]
  %v253 = vld [vmem:[%s238 + $0x38] sm:$0xf]
  %v254 = vld [vmem:[%s238 + $0x3c] sm:$0xf]
  %v255 = vunpack.c.l.bf16 %v239
  %v256 = vunpack.c.l.bf16 %v240
  %v257 = vunpack.c.l.bf16 %v241
  %v258 = vunpack.c.l.bf16 %v242
  %v259 = vunpack.c.l.bf16 %v243
  %v260 = vunpack.c.l.bf16 %v244
  %v261 = vunpack.c.l.bf16 %v245
  %v262 = vunpack.c.l.bf16 %v246
  %v263 = vunpack.c.l.bf16 %v247
  %v264 = vunpack.c.l.bf16 %v248
  %v265 = vunpack.c.l.bf16 %v249
  %v266 = vunpack.c.l.bf16 %v250
  %v267 = vunpack.c.l.bf16 %v251
  %v268 = vunpack.c.l.bf16 %v252
  %v269 = vunpack.c.l.bf16 %v253
  %v270 = vunpack.c.l.bf16 %v254
  %s271 = scalar_lea.vmem %s1, 3
  %v272 = vld [vmem:[%s271] sm:$0x1]
  %v274 = vlaneseq
  %v275 = vshrl.u32 %v274, 7
  %v276 = vsub.s32 0, %v275
  %v277 = vrot.slane %v272, %v276
  %v279 = vmul.f32 %v255, %v277
  %v280 = vmul.f32 %v256, %v277
  %v281 = vmul.f32 %v257, %v277
  %v282 = vmul.f32 %v258, %v277
  %v283 = vmul.f32 %v259, %v277
  %v284 = vmul.f32 %v260, %v277
  %v285 = vmul.f32 %v261, %v277
  %v286 = vmul.f32 %v262, %v277
  %v287 = vmul.f32 %v263, %v277
  %v288 = vmul.f32 %v264, %v277
  %v289 = vmul.f32 %v265, %v277
  %v290 = vmul.f32 %v266, %v277
  %v291 = vmul.f32 %v267, %v277
  %v292 = vmul.f32 %v268, %v277
  %v293 = vmul.f32 %v269, %v277
  %v294 = vmul.f32 %v270, %v277
  %v295 = vadd.f32 %v222, %v279
  %v296 = vadd.f32 %v223, %v280
  %v297 = vadd.f32 %v224, %v281
  %v298 = vadd.f32 %v225, %v282
  %v299 = vadd.f32 %v226, %v283
  %v300 = vadd.f32 %v227, %v284
  %v301 = vadd.f32 %v228, %v285
  %v302 = vadd.f32 %v229, %v286
  %v303 = vadd.f32 %v230, %v287
  %v304 = vadd.f32 %v231, %v288
  %v305 = vadd.f32 %v232, %v289
  %v306 = vadd.f32 %v233, %v290
  %v307 = vadd.f32 %v234, %v291
  %v308 = vadd.f32 %v235, %v292
  %v309 = vadd.f32 %v236, %v293
  %v310 = vadd.f32 %v237, %v294
  %s311 = scalar_lea.vmem %s0, 256
  %v312 = vld [vmem:[%s311] sm:$0xf]
  %v313 = vld [vmem:[%s311 + $0x4] sm:$0xf]
  %v314 = vld [vmem:[%s311 + $0x8] sm:$0xf]
  %v315 = vld [vmem:[%s311 + $0xc] sm:$0xf]
  %v316 = vld [vmem:[%s311 + $0x10] sm:$0xf]
  %v317 = vld [vmem:[%s311 + $0x14] sm:$0xf]
  %v318 = vld [vmem:[%s311 + $0x18] sm:$0xf]
  %v319 = vld [vmem:[%s311 + $0x1c] sm:$0xf]
  %v320 = vld [vmem:[%s311 + $0x20] sm:$0xf]
  %v321 = vld [vmem:[%s311 + $0x24] sm:$0xf]
  %v322 = vld [vmem:[%s311 + $0x28] sm:$0xf]
  %v323 = vld [vmem:[%s311 + $0x2c] sm:$0xf]
  %v324 = vld [vmem:[%s311 + $0x30] sm:$0xf]
  %v325 = vld [vmem:[%s311 + $0x34] sm:$0xf]
  %v326 = vld [vmem:[%s311 + $0x38] sm:$0xf]
  %v327 = vld [vmem:[%s311 + $0x3c] sm:$0xf]
  %v328 = vunpack.c.l.bf16 %v312
  %v329 = vunpack.c.l.bf16 %v313
  %v330 = vunpack.c.l.bf16 %v314
  %v331 = vunpack.c.l.bf16 %v315
  %v332 = vunpack.c.l.bf16 %v316
  %v333 = vunpack.c.l.bf16 %v317
  %v334 = vunpack.c.l.bf16 %v318
  %v335 = vunpack.c.l.bf16 %v319
  %v336 = vunpack.c.l.bf16 %v320
  %v337 = vunpack.c.l.bf16 %v321
  %v338 = vunpack.c.l.bf16 %v322
  %v339 = vunpack.c.l.bf16 %v323
  %v340 = vunpack.c.l.bf16 %v324
  %v341 = vunpack.c.l.bf16 %v325
  %v342 = vunpack.c.l.bf16 %v326
  %v343 = vunpack.c.l.bf16 %v327
  %s344 = scalar_lea.vmem %s1, 4
  %v345 = vld [vmem:[%s344] sm:$0x1]
  %v347 = vlaneseq
  %v348 = vshrl.u32 %v347, 7
  %v349 = vsub.s32 0, %v348
  %v350 = vrot.slane %v345, %v349
  %v352 = vmul.f32 %v328, %v350
  %v353 = vmul.f32 %v329, %v350
  %v354 = vmul.f32 %v330, %v350
  %v355 = vmul.f32 %v331, %v350
  %v356 = vmul.f32 %v332, %v350
  %v357 = vmul.f32 %v333, %v350
  %v358 = vmul.f32 %v334, %v350
  %v359 = vmul.f32 %v335, %v350
  %v360 = vmul.f32 %v336, %v350
  %v361 = vmul.f32 %v337, %v350
  %v362 = vmul.f32 %v338, %v350
  %v363 = vmul.f32 %v339, %v350
  %v364 = vmul.f32 %v340, %v350
  %v365 = vmul.f32 %v341, %v350
  %v366 = vmul.f32 %v342, %v350
  %v367 = vmul.f32 %v343, %v350
  %v368 = vadd.f32 %v295, %v352
  %v369 = vadd.f32 %v296, %v353
  %v370 = vadd.f32 %v297, %v354
  %v371 = vadd.f32 %v298, %v355
  %v372 = vadd.f32 %v299, %v356
  %v373 = vadd.f32 %v300, %v357
  %v374 = vadd.f32 %v301, %v358
  %v375 = vadd.f32 %v302, %v359
  %v376 = vadd.f32 %v303, %v360
  %v377 = vadd.f32 %v304, %v361
  %v378 = vadd.f32 %v305, %v362
  %v379 = vadd.f32 %v306, %v363
  %v380 = vadd.f32 %v307, %v364
  %v381 = vadd.f32 %v308, %v365
  %v382 = vadd.f32 %v309, %v366
  %v383 = vadd.f32 %v310, %v367
  %s384 = scalar_lea.vmem %s0, 320
  %v385 = vld [vmem:[%s384] sm:$0xf]
  %v386 = vld [vmem:[%s384 + $0x4] sm:$0xf]
  %v387 = vld [vmem:[%s384 + $0x8] sm:$0xf]
  %v388 = vld [vmem:[%s384 + $0xc] sm:$0xf]
  %v389 = vld [vmem:[%s384 + $0x10] sm:$0xf]
  %v390 = vld [vmem:[%s384 + $0x14] sm:$0xf]
  %v391 = vld [vmem:[%s384 + $0x18] sm:$0xf]
  %v392 = vld [vmem:[%s384 + $0x1c] sm:$0xf]
  %v393 = vld [vmem:[%s384 + $0x20] sm:$0xf]
  %v394 = vld [vmem:[%s384 + $0x24] sm:$0xf]
  %v395 = vld [vmem:[%s384 + $0x28] sm:$0xf]
  %v396 = vld [vmem:[%s384 + $0x2c] sm:$0xf]
  %v397 = vld [vmem:[%s384 + $0x30] sm:$0xf]
  %v398 = vld [vmem:[%s384 + $0x34] sm:$0xf]
  %v399 = vld [vmem:[%s384 + $0x38] sm:$0xf]
  %v400 = vld [vmem:[%s384 + $0x3c] sm:$0xf]
  %v401 = vunpack.c.l.bf16 %v385
  %v402 = vunpack.c.l.bf16 %v386
  %v403 = vunpack.c.l.bf16 %v387
  %v404 = vunpack.c.l.bf16 %v388
  %v405 = vunpack.c.l.bf16 %v389
  %v406 = vunpack.c.l.bf16 %v390
  %v407 = vunpack.c.l.bf16 %v391
  %v408 = vunpack.c.l.bf16 %v392
  %v409 = vunpack.c.l.bf16 %v393
  %v410 = vunpack.c.l.bf16 %v394
  %v411 = vunpack.c.l.bf16 %v395
  %v412 = vunpack.c.l.bf16 %v396
  %v413 = vunpack.c.l.bf16 %v397
  %v414 = vunpack.c.l.bf16 %v398
  %v415 = vunpack.c.l.bf16 %v399
  %v416 = vunpack.c.l.bf16 %v400
  %s417 = scalar_lea.vmem %s1, 5
  %v418 = vld [vmem:[%s417] sm:$0x1]
  %v420 = vlaneseq
  %v421 = vshrl.u32 %v420, 7
  %v422 = vsub.s32 0, %v421
  %v423 = vrot.slane %v418, %v422
  %v425 = vmul.f32 %v401, %v423
  %v426 = vmul.f32 %v402, %v423
  %v427 = vmul.f32 %v403, %v423
  %v428 = vmul.f32 %v404, %v423
  %v429 = vmul.f32 %v405, %v423
  %v430 = vmul.f32 %v406, %v423
  %v431 = vmul.f32 %v407, %v423
  %v432 = vmul.f32 %v408, %v423
  %v433 = vmul.f32 %v409, %v423
  %v434 = vmul.f32 %v410, %v423
  %v435 = vmul.f32 %v411, %v423
  %v436 = vmul.f32 %v412, %v423
  %v437 = vmul.f32 %v413, %v423
  %v438 = vmul.f32 %v414, %v423
  %v439 = vmul.f32 %v415, %v423
  %v440 = vmul.f32 %v416, %v423
  %v441 = vadd.f32 %v368, %v425
  %v442 = vadd.f32 %v369, %v426
  %v443 = vadd.f32 %v370, %v427
  %v444 = vadd.f32 %v371, %v428
  %v445 = vadd.f32 %v372, %v429
  %v446 = vadd.f32 %v373, %v430
  %v447 = vadd.f32 %v374, %v431
  %v448 = vadd.f32 %v375, %v432
  %v449 = vadd.f32 %v376, %v433
  %v450 = vadd.f32 %v377, %v434
  %v451 = vadd.f32 %v378, %v435
  %v452 = vadd.f32 %v379, %v436
  %v453 = vadd.f32 %v380, %v437
  %v454 = vadd.f32 %v381, %v438
  %v455 = vadd.f32 %v382, %v439
  %v456 = vadd.f32 %v383, %v440
  %s457 = scalar_lea.vmem %s0, 384
  %v458 = vld [vmem:[%s457] sm:$0xf]
  %v459 = vld [vmem:[%s457 + $0x4] sm:$0xf]
  %v460 = vld [vmem:[%s457 + $0x8] sm:$0xf]
  %v461 = vld [vmem:[%s457 + $0xc] sm:$0xf]
  %v462 = vld [vmem:[%s457 + $0x10] sm:$0xf]
  %v463 = vld [vmem:[%s457 + $0x14] sm:$0xf]
  %v464 = vld [vmem:[%s457 + $0x18] sm:$0xf]
  %v465 = vld [vmem:[%s457 + $0x1c] sm:$0xf]
  %v466 = vld [vmem:[%s457 + $0x20] sm:$0xf]
  %v467 = vld [vmem:[%s457 + $0x24] sm:$0xf]
  %v468 = vld [vmem:[%s457 + $0x28] sm:$0xf]
  %v469 = vld [vmem:[%s457 + $0x2c] sm:$0xf]
  %v470 = vld [vmem:[%s457 + $0x30] sm:$0xf]
  %v471 = vld [vmem:[%s457 + $0x34] sm:$0xf]
  %v472 = vld [vmem:[%s457 + $0x38] sm:$0xf]
  %v473 = vld [vmem:[%s457 + $0x3c] sm:$0xf]
  %v474 = vunpack.c.l.bf16 %v458
  %v475 = vunpack.c.l.bf16 %v459
  %v476 = vunpack.c.l.bf16 %v460
  %v477 = vunpack.c.l.bf16 %v461
  %v478 = vunpack.c.l.bf16 %v462
  %v479 = vunpack.c.l.bf16 %v463
  %v480 = vunpack.c.l.bf16 %v464
  %v481 = vunpack.c.l.bf16 %v465
  %v482 = vunpack.c.l.bf16 %v466
  %v483 = vunpack.c.l.bf16 %v467
  %v484 = vunpack.c.l.bf16 %v468
  %v485 = vunpack.c.l.bf16 %v469
  %v486 = vunpack.c.l.bf16 %v470
  %v487 = vunpack.c.l.bf16 %v471
  %v488 = vunpack.c.l.bf16 %v472
  %v489 = vunpack.c.l.bf16 %v473
  %s490 = scalar_lea.vmem %s1, 6
  %v491 = vld [vmem:[%s490] sm:$0x1]
  %v493 = vlaneseq
  %v494 = vshrl.u32 %v493, 7
  %v495 = vsub.s32 0, %v494
  %v496 = vrot.slane %v491, %v495
  %v498 = vmul.f32 %v474, %v496
  %v499 = vmul.f32 %v475, %v496
  %v500 = vmul.f32 %v476, %v496
  %v501 = vmul.f32 %v477, %v496
  %v502 = vmul.f32 %v478, %v496
  %v503 = vmul.f32 %v479, %v496
  %v504 = vmul.f32 %v480, %v496
  %v505 = vmul.f32 %v481, %v496
  %v506 = vmul.f32 %v482, %v496
  %v507 = vmul.f32 %v483, %v496
  %v508 = vmul.f32 %v484, %v496
  %v509 = vmul.f32 %v485, %v496
  %v510 = vmul.f32 %v486, %v496
  %v511 = vmul.f32 %v487, %v496
  %v512 = vmul.f32 %v488, %v496
  %v513 = vmul.f32 %v489, %v496
  %v514 = vadd.f32 %v441, %v498
  %v515 = vadd.f32 %v442, %v499
  %v516 = vadd.f32 %v443, %v500
  %v517 = vadd.f32 %v444, %v501
  %v518 = vadd.f32 %v445, %v502
  %v519 = vadd.f32 %v446, %v503
  %v520 = vadd.f32 %v447, %v504
  %v521 = vadd.f32 %v448, %v505
  %v522 = vadd.f32 %v449, %v506
  %v523 = vadd.f32 %v450, %v507
  %v524 = vadd.f32 %v451, %v508
  %v525 = vadd.f32 %v452, %v509
  %v526 = vadd.f32 %v453, %v510
  %v527 = vadd.f32 %v454, %v511
  %v528 = vadd.f32 %v455, %v512
  %v529 = vadd.f32 %v456, %v513
  %s530 = scalar_lea.vmem %s0, 448
  %v531 = vld [vmem:[%s530] sm:$0xf]
  %v532 = vld [vmem:[%s530 + $0x4] sm:$0xf]
  %v533 = vld [vmem:[%s530 + $0x8] sm:$0xf]
  %v534 = vld [vmem:[%s530 + $0xc] sm:$0xf]
  %v535 = vld [vmem:[%s530 + $0x10] sm:$0xf]
  %v536 = vld [vmem:[%s530 + $0x14] sm:$0xf]
  %v537 = vld [vmem:[%s530 + $0x18] sm:$0xf]
  %v538 = vld [vmem:[%s530 + $0x1c] sm:$0xf]
  %v539 = vld [vmem:[%s530 + $0x20] sm:$0xf]
  %v540 = vld [vmem:[%s530 + $0x24] sm:$0xf]
  %v541 = vld [vmem:[%s530 + $0x28] sm:$0xf]
  %v542 = vld [vmem:[%s530 + $0x2c] sm:$0xf]
  %v543 = vld [vmem:[%s530 + $0x30] sm:$0xf]
  %v544 = vld [vmem:[%s530 + $0x34] sm:$0xf]
  %v545 = vld [vmem:[%s530 + $0x38] sm:$0xf]
  %v546 = vld [vmem:[%s530 + $0x3c] sm:$0xf]
  %v547 = vunpack.c.l.bf16 %v531
  %v548 = vunpack.c.l.bf16 %v532
  %v549 = vunpack.c.l.bf16 %v533
  %v550 = vunpack.c.l.bf16 %v534
  %v551 = vunpack.c.l.bf16 %v535
  %v552 = vunpack.c.l.bf16 %v536
  %v553 = vunpack.c.l.bf16 %v537
  %v554 = vunpack.c.l.bf16 %v538
  %v555 = vunpack.c.l.bf16 %v539
  %v556 = vunpack.c.l.bf16 %v540
  %v557 = vunpack.c.l.bf16 %v541
  %v558 = vunpack.c.l.bf16 %v542
  %v559 = vunpack.c.l.bf16 %v543
  %v560 = vunpack.c.l.bf16 %v544
  %v561 = vunpack.c.l.bf16 %v545
  %v562 = vunpack.c.l.bf16 %v546
  %s563 = scalar_lea.vmem %s1, 7
  %v564 = vld [vmem:[%s563] sm:$0x1]
  %v566 = vlaneseq
  %v567 = vshrl.u32 %v566, 7
  %v568 = vsub.s32 0, %v567
  %v569 = vrot.slane %v564, %v568
  %v571 = vmul.f32 %v547, %v569
  %v572 = vmul.f32 %v548, %v569
  %v573 = vmul.f32 %v549, %v569
  %v574 = vmul.f32 %v550, %v569
  %v575 = vmul.f32 %v551, %v569
  %v576 = vmul.f32 %v552, %v569
  %v577 = vmul.f32 %v553, %v569
  %v578 = vmul.f32 %v554, %v569
  %v579 = vmul.f32 %v555, %v569
  %v580 = vmul.f32 %v556, %v569
  %v581 = vmul.f32 %v557, %v569
  %v582 = vmul.f32 %v558, %v569
  %v583 = vmul.f32 %v559, %v569
  %v584 = vmul.f32 %v560, %v569
  %v585 = vmul.f32 %v561, %v569
  %v586 = vmul.f32 %v562, %v569
  %v587 = vadd.f32 %v514, %v571
  %v588 = vadd.f32 %v515, %v572
  %v589 = vadd.f32 %v516, %v573
  %v590 = vadd.f32 %v517, %v574
  %v591 = vadd.f32 %v518, %v575
  %v592 = vadd.f32 %v519, %v576
  %v593 = vadd.f32 %v520, %v577
  %v594 = vadd.f32 %v521, %v578
  %v595 = vadd.f32 %v522, %v579
  %v596 = vadd.f32 %v523, %v580
  %v597 = vadd.f32 %v524, %v581
  %v598 = vadd.f32 %v525, %v582
  %v599 = vadd.f32 %v526, %v583
  %v600 = vadd.f32 %v527, %v584
  %v601 = vadd.f32 %v528, %v585
  %v602 = vadd.f32 %v529, %v586
  %s603 = scalar_lea.vmem %s0, 512
  %v604 = vld [vmem:[%s603] sm:$0xf]
  %v605 = vld [vmem:[%s603 + $0x4] sm:$0xf]
  %v606 = vld [vmem:[%s603 + $0x8] sm:$0xf]
  %v607 = vld [vmem:[%s603 + $0xc] sm:$0xf]
  %v608 = vld [vmem:[%s603 + $0x10] sm:$0xf]
  %v609 = vld [vmem:[%s603 + $0x14] sm:$0xf]
  %v610 = vld [vmem:[%s603 + $0x18] sm:$0xf]
  %v611 = vld [vmem:[%s603 + $0x1c] sm:$0xf]
  %v612 = vld [vmem:[%s603 + $0x20] sm:$0xf]
  %v613 = vld [vmem:[%s603 + $0x24] sm:$0xf]
  %v614 = vld [vmem:[%s603 + $0x28] sm:$0xf]
  %v615 = vld [vmem:[%s603 + $0x2c] sm:$0xf]
  %v616 = vld [vmem:[%s603 + $0x30] sm:$0xf]
  %v617 = vld [vmem:[%s603 + $0x34] sm:$0xf]
  %v618 = vld [vmem:[%s603 + $0x38] sm:$0xf]
  %v619 = vld [vmem:[%s603 + $0x3c] sm:$0xf]
  %v620 = vunpack.c.l.bf16 %v604
  %v621 = vunpack.c.l.bf16 %v605
  %v622 = vunpack.c.l.bf16 %v606
  %v623 = vunpack.c.l.bf16 %v607
  %v624 = vunpack.c.l.bf16 %v608
  %v625 = vunpack.c.l.bf16 %v609
  %v626 = vunpack.c.l.bf16 %v610
  %v627 = vunpack.c.l.bf16 %v611
  %v628 = vunpack.c.l.bf16 %v612
  %v629 = vunpack.c.l.bf16 %v613
  %v630 = vunpack.c.l.bf16 %v614
  %v631 = vunpack.c.l.bf16 %v615
  %v632 = vunpack.c.l.bf16 %v616
  %v633 = vunpack.c.l.bf16 %v617
  %v634 = vunpack.c.l.bf16 %v618
  %v635 = vunpack.c.l.bf16 %v619
  %s636 = scalar_lea.vmem %s1, 8
  %v637 = vld [vmem:[%s636] sm:$0x1]
  %v639 = vlaneseq
  %v640 = vshrl.u32 %v639, 7
  %v641 = vsub.s32 0, %v640
  %v642 = vrot.slane %v637, %v641
  %v644 = vmul.f32 %v620, %v642
  %v645 = vmul.f32 %v621, %v642
  %v646 = vmul.f32 %v622, %v642
  %v647 = vmul.f32 %v623, %v642
  %v648 = vmul.f32 %v624, %v642
  %v649 = vmul.f32 %v625, %v642
  %v650 = vmul.f32 %v626, %v642
  %v651 = vmul.f32 %v627, %v642
  %v652 = vmul.f32 %v628, %v642
  %v653 = vmul.f32 %v629, %v642
  %v654 = vmul.f32 %v630, %v642
  %v655 = vmul.f32 %v631, %v642
  %v656 = vmul.f32 %v632, %v642
  %v657 = vmul.f32 %v633, %v642
  %v658 = vmul.f32 %v634, %v642
  %v659 = vmul.f32 %v635, %v642
  %v660 = vadd.f32 %v587, %v644
  %v661 = vadd.f32 %v588, %v645
  %v662 = vadd.f32 %v589, %v646
  %v663 = vadd.f32 %v590, %v647
  %v664 = vadd.f32 %v591, %v648
  %v665 = vadd.f32 %v592, %v649
  %v666 = vadd.f32 %v593, %v650
  %v667 = vadd.f32 %v594, %v651
  %v668 = vadd.f32 %v595, %v652
  %v669 = vadd.f32 %v596, %v653
  %v670 = vadd.f32 %v597, %v654
  %v671 = vadd.f32 %v598, %v655
  %v672 = vadd.f32 %v599, %v656
  %v673 = vadd.f32 %v600, %v657
  %v674 = vadd.f32 %v601, %v658
  %v675 = vadd.f32 %v602, %v659
  %v676 = vld [vmem:[%s2] sm:$0x1]
  %v678 = vlaneseq
  %v679 = vshrl.u32 %v678, 7
  %v680 = vsub.s32 0, %v679
  %v681 = vrot.slane %v676, %v680
  %v683 = vadd.f32 %v660, %v681
  %v684 = vadd.f32 %v661, %v681
  %v685 = vadd.f32 %v662, %v681
  %v686 = vadd.f32 %v663, %v681
  %v687 = vadd.f32 %v664, %v681
  %v688 = vadd.f32 %v665, %v681
  %v689 = vadd.f32 %v666, %v681
  %v690 = vadd.f32 %v667, %v681
  %v691 = vadd.f32 %v668, %v681
  %v692 = vadd.f32 %v669, %v681
  %v693 = vadd.f32 %v670, %v681
  %v694 = vadd.f32 %v671, %v681
  %v695 = vadd.f32 %v672, %v681
  %v696 = vadd.f32 %v673, %v681
  %v697 = vadd.f32 %v674, %v681
  %v698 = vadd.f32 %v675, %v681
  %v699 = vmax.f32 %v683, 0.0
  %v700 = vmax.f32 %v684, 0.0
  %v701 = vmax.f32 %v685, 0.0
  %v702 = vmax.f32 %v686, 0.0
  %v703 = vmax.f32 %v687, 0.0
  %v704 = vmax.f32 %v688, 0.0
  %v705 = vmax.f32 %v689, 0.0
  %v706 = vmax.f32 %v690, 0.0
  %v707 = vmax.f32 %v691, 0.0
  %v708 = vmax.f32 %v692, 0.0
  %v709 = vmax.f32 %v693, 0.0
  %v710 = vmax.f32 %v694, 0.0
  %v711 = vmax.f32 %v695, 0.0
  %v712 = vmax.f32 %v696, 0.0
  %v713 = vmax.f32 %v697, 0.0
  %v714 = vmax.f32 %v698, 0.0
  %v715 = vmin.f32 %v699, 6.0
  %v716 = vmin.f32 %v700, 6.0
  %v717 = vmin.f32 %v701, 6.0
  %v718 = vmin.f32 %v702, 6.0
  %v719 = vmin.f32 %v703, 6.0
  %v720 = vmin.f32 %v704, 6.0
  %v721 = vmin.f32 %v705, 6.0
  %v722 = vmin.f32 %v706, 6.0
  %v723 = vmin.f32 %v707, 6.0
  %v724 = vmin.f32 %v708, 6.0
  %v725 = vmin.f32 %v709, 6.0
  %v726 = vmin.f32 %v710, 6.0
  %v727 = vmin.f32 %v711, 6.0
  %v728 = vmin.f32 %v712, 6.0
  %v729 = vmin.f32 %v713, 6.0
  %v730 = vmin.f32 %v714, 6.0
  %v731 = vpack.c.bf16 %v716, %v715
  %v732 = vpack.c.bf16 %v718, %v717
  %v733 = vpack.c.bf16 %v720, %v719
  %v734 = vpack.c.bf16 %v722, %v721
  %v735 = vpack.c.bf16 %v724, %v723
  %v736 = vpack.c.bf16 %v726, %v725
  %v737 = vpack.c.bf16 %v728, %v727
  %v738 = vpack.c.bf16 %v730, %v729
  %v739 = vld [vmem:[%s3] sm:$0xff]
  %v740 = vld [vmem:[%s3 + $0x8] sm:$0xff]
  %v741 = vld [vmem:[%s3 + $0x10] sm:$0xff]
  %v742 = vld [vmem:[%s3 + $0x18] sm:$0xff]
  %v743 = vld [vmem:[%s3 + $0x20] sm:$0xff]
  %v744 = vld [vmem:[%s3 + $0x28] sm:$0xff]
  %v745 = vld [vmem:[%s3 + $0x30] sm:$0xff]
  %v746 = vld [vmem:[%s3 + $0x38] sm:$0xff]
  %v747 = vld [vmem:[%s3 + $0x40] sm:$0xff]
  %v748 = vld [vmem:[%s3 + $0x48] sm:$0xff]
  %v749 = vld [vmem:[%s3 + $0x50] sm:$0xff]
  %v750 = vld [vmem:[%s3 + $0x58] sm:$0xff]
  %v751 = vld [vmem:[%s3 + $0x60] sm:$0xff]
  %v752 = vld [vmem:[%s3 + $0x68] sm:$0xff]
  %v753 = vld [vmem:[%s3 + $0x70] sm:$0xff]
  %v754 = vld [vmem:[%s3 + $0x78] sm:$0xff]
  %v755 = vld [vmem:[%s4] sm:$0x3]
  %v757 = vlaneseq
  %v758 = vshrl.u32 %v757, 7
  %v759 = vsub.s32 0, %v758
  %v760 = vrot.slane %v755, %v759
  %v761 = vlaneseq
  %v762 = vshrl.u32 %v761, 7
  %v763 = vsub.s32 1, %v762
  %v764 = vrot.slane %v755, %v763
  %v783 = vunpack.c.l.b16 %v739
  %v784 = vunpack.c.h.b16 %v739
  %v785 = vunpack.c.l.b16 %v740
  %v786 = vunpack.c.h.b16 %v740
  %v787 = vunpack.c.l.b16 %v741
  %v788 = vunpack.c.h.b16 %v741
  %v789 = vunpack.c.l.b16 %v742
  %v790 = vunpack.c.h.b16 %v742
  %v791 = vunpack.c.l.b16 %v743
  %v792 = vunpack.c.h.b16 %v743
  %v793 = vunpack.c.l.b16 %v744
  %v794 = vunpack.c.h.b16 %v744
  %v795 = vunpack.c.l.b16 %v745
  %v796 = vunpack.c.h.b16 %v745
  %v797 = vunpack.c.l.b16 %v746
  %v798 = vunpack.c.h.b16 %v746
  %v799 = vunpack.c.l.b16 %v747
  %v800 = vunpack.c.h.b16 %v747
  %v801 = vunpack.c.l.b16 %v748
  %v802 = vunpack.c.h.b16 %v748
  %v803 = vunpack.c.l.b16 %v749
  %v804 = vunpack.c.h.b16 %v749
  %v805 = vunpack.c.l.b16 %v750
  %v806 = vunpack.c.h.b16 %v750
  %v807 = vunpack.c.l.b16 %v751
  %v808 = vunpack.c.h.b16 %v751
  %v809 = vunpack.c.l.b16 %v752
  %v810 = vunpack.c.h.b16 %v752
  %v811 = vunpack.c.l.b16 %v753
  %v812 = vunpack.c.h.b16 %v753
  %v813 = vunpack.c.l.b16 %v754
  %v814 = vunpack.c.h.b16 %v754
  %v815 = vpack.c.b16 %v785, %v783
  %v816 = vpack.c.b16 %v786, %v784
  %v817 = vpack.c.b16 %v789, %v787
  %v818 = vpack.c.b16 %v790, %v788
  %v819 = vpack.c.b16 %v793, %v791
  %v820 = vpack.c.b16 %v794, %v792
  %v821 = vpack.c.b16 %v797, %v795
  %v822 = vpack.c.b16 %v798, %v796
  %v823 = vpack.c.b16 %v801, %v799
  %v824 = vpack.c.b16 %v802, %v800
  %v825 = vpack.c.b16 %v805, %v803
  %v826 = vpack.c.b16 %v806, %v804
  %v827 = vpack.c.b16 %v809, %v807
  %v828 = vpack.c.b16 %v810, %v808
  %v829 = vpack.c.b16 %v813, %v811
  %v830 = vpack.c.b16 %v814, %v812
  %847 = vmatprep.subr.bf16.mxu0 %v830
  %848 = vmatpush1.bf16.msra.mxu0 %v829
  %849 = vmatprep.subr.bf16.mxu0 %v828
  %850 = vmatpush1.bf16.msra.mxu0 %v827
  %851 = vmatprep.subr.bf16.mxu0 %v826
  %852 = vmatpush1.bf16.msra.mxu0 %v825
  %853 = vmatprep.subr.bf16.mxu0 %v824
  %854 = vmatpush1.bf16.msra.mxu0 %v823
  %855 = vmatprep.subr.bf16.mxu0 %v822
  %856 = vmatpush1.bf16.msra.mxu0 %v821
  %857 = vmatprep.subr.bf16.mxu0 %v820
  %858 = vmatpush1.bf16.msra.mxu0 %v819
  %859 = vmatprep.subr.bf16.mxu0 %v818
  %860 = vmatpush1.bf16.msra.mxu0 %v817
  %861 = vmatprep.subr.bf16.mxu0 %v816
  %862 = vmatpush1.bf16.msra.mxu0 %v815
  %863 = vmatprep.subr.bf16.mxu0 0
  %864 = vmatpush2.bf16.msra.mxu0 0
  %865 = vmatprep.subr.bf16.mxu0 0
  %866 = vmatpush2.bf16.msra.mxu0 0
  %867 = vmatprep.subr.bf16.mxu0 0
  %868 = vmatpush2.bf16.msra.mxu0 0
  %869 = vmatprep.subr.bf16.mxu0 0
  %870 = vmatpush2.bf16.msra.mxu0 0
  %871 = vmatprep.subr.bf16.mxu0 0
  %872 = vmatpush2.bf16.msra.mxu0 0
  %873 = vmatprep.subr.bf16.mxu0 0
  %874 = vmatpush2.bf16.msra.mxu0 0
  %875 = vmatprep.subr.bf16.mxu0 0
  %876 = vmatpush2.bf16.msra.mxu0 0
  %877 = vmatprep.subr.bf16.mxu0 0
  %878 = vmatpush2.bf16.msra.mxu0 0
  %879 = vmatprep.mubr.bf16.mxu0 0
  %880 = vmatmul.mubr.bf16.gmra.mxu0 %v731
  %v881 = vpop.f32.mrf.mxu0
  %v882 = vadd.f32 %v760, %v881
  %v883 = vpop.f32.mrf.mxu0
  %v884 = vadd.f32 %v764, %v883
  %v885 = vpop.f32.mrf.mxu0
  %v886 = vadd.f32 %v760, %v885
  %v887 = vpop.f32.mrf.mxu0
  %v888 = vadd.f32 %v764, %v887
  %889 = vmatprep.mubr.bf16.mxu0 0
  %890 = vmatmul.mubr.bf16.gmra.mxu0 %v732
  %v891 = vpop.f32.mrf.mxu0
  %v892 = vadd.f32 %v760, %v891
  %v893 = vpop.f32.mrf.mxu0
  %v894 = vadd.f32 %v764, %v893
  %v895 = vpop.f32.mrf.mxu0
  %v896 = vadd.f32 %v760, %v895
  %v897 = vpop.f32.mrf.mxu0
  %v898 = vadd.f32 %v764, %v897
  %899 = vmatprep.mubr.bf16.mxu0 0
  %900 = vmatmul.mubr.bf16.gmra.mxu0 %v733
  %v901 = vpop.f32.mrf.mxu0
  %v902 = vadd.f32 %v760, %v901
  %v903 = vpop.f32.mrf.mxu0
  %v904 = vadd.f32 %v764, %v903
  %v905 = vpop.f32.mrf.mxu0
  %v906 = vadd.f32 %v760, %v905
  %v907 = vpop.f32.mrf.mxu0
  %v908 = vadd.f32 %v764, %v907
  %909 = vmatprep.mubr.bf16.mxu0 0
  %910 = vmatmul.mubr.bf16.gmra.mxu0 %v734
  %v911 = vpop.f32.mrf.mxu0
  %v912 = vadd.f32 %v760, %v911
  %v913 = vpop.f32.mrf.mxu0
  %v914 = vadd.f32 %v764, %v913
  %v915 = vpop.f32.mrf.mxu0
  %v916 = vadd.f32 %v760, %v915
  %v917 = vpop.f32.mrf.mxu0
  %v918 = vadd.f32 %v764, %v917
  %919 = vmatprep.mubr.bf16.mxu0 0
  %920 = vmatmul.mubr.bf16.gmra.mxu0 %v735
  %v921 = vpop.f32.mrf.mxu0
  %v922 = vadd.f32 %v760, %v921
  %v923 = vpop.f32.mrf.mxu0
  %v924 = vadd.f32 %v764, %v923
  %v925 = vpop.f32.mrf.mxu0
  %v926 = vadd.f32 %v760, %v925
  %v927 = vpop.f32.mrf.mxu0
  %v928 = vadd.f32 %v764, %v927
  %929 = vmatprep.mubr.bf16.mxu0 0
  %930 = vmatmul.mubr.bf16.gmra.mxu0 %v736
  %v931 = vpop.f32.mrf.mxu0
  %v932 = vadd.f32 %v760, %v931
  %v933 = vpop.f32.mrf.mxu0
  %v934 = vadd.f32 %v764, %v933
  %v935 = vpop.f32.mrf.mxu0
  %v936 = vadd.f32 %v760, %v935
  %v937 = vpop.f32.mrf.mxu0
  %v938 = vadd.f32 %v764, %v937
  %939 = vmatprep.mubr.bf16.mxu0 0
  %940 = vmatmul.mubr.bf16.gmra.mxu0 %v737
  %v941 = vpop.f32.mrf.mxu0
  %v942 = vadd.f32 %v760, %v941
  %v943 = vpop.f32.mrf.mxu0
  %v944 = vadd.f32 %v764, %v943
  %v945 = vpop.f32.mrf.mxu0
  %v946 = vadd.f32 %v760, %v945
  %v947 = vpop.f32.mrf.mxu0
  %v948 = vadd.f32 %v764, %v947
  %949 = vmatprep.mubr.bf16.mxu0 0
  %950 = vmatmul.mubr.bf16.gmra.mxu0 %v738
  %v951 = vpop.f32.mrf.mxu0
  %v952 = vadd.f32 %v760, %v951
  %v953 = vpop.f32.mrf.mxu0
  %v954 = vadd.f32 %v764, %v953
  %v955 = vpop.f32.mrf.mxu0
  %v956 = vadd.f32 %v760, %v955
  %v957 = vpop.f32.mrf.mxu0
  %v958 = vadd.f32 %v764, %v957
  %959 = vdwg.mxu0
  %v960 = vmax.f32 %v882, 0.0
  %v961 = vmax.f32 %v884, 0.0
  %v962 = vmax.f32 %v886, 0.0
  %v963 = vmax.f32 %v888, 0.0
  %v964 = vmax.f32 %v892, 0.0
  %v965 = vmax.f32 %v894, 0.0
  %v966 = vmax.f32 %v896, 0.0
  %v967 = vmax.f32 %v898, 0.0
  %v968 = vmax.f32 %v902, 0.0
  %v969 = vmax.f32 %v904, 0.0
  %v970 = vmax.f32 %v906, 0.0
  %v971 = vmax.f32 %v908, 0.0
  %v972 = vmax.f32 %v912, 0.0
  %v973 = vmax.f32 %v914, 0.0
  %v974 = vmax.f32 %v916, 0.0
  %v975 = vmax.f32 %v918, 0.0
  %v976 = vmax.f32 %v922, 0.0
  %v977 = vmax.f32 %v924, 0.0
  %v978 = vmax.f32 %v926, 0.0
  %v979 = vmax.f32 %v928, 0.0
  %v980 = vmax.f32 %v932, 0.0
  %v981 = vmax.f32 %v934, 0.0
  %v982 = vmax.f32 %v936, 0.0
  %v983 = vmax.f32 %v938, 0.0
  %v984 = vmax.f32 %v942, 0.0
  %v985 = vmax.f32 %v944, 0.0
  %v986 = vmax.f32 %v946, 0.0
  %v987 = vmax.f32 %v948, 0.0
  %v988 = vmax.f32 %v952, 0.0
  %v989 = vmax.f32 %v954, 0.0
  %v990 = vmax.f32 %v956, 0.0
  %v991 = vmax.f32 %v958, 0.0
  %v992 = vmin.f32 %v960, 6.0
  %v993 = vmin.f32 %v961, 6.0
  %v994 = vmin.f32 %v962, 6.0
  %v995 = vmin.f32 %v963, 6.0
  %v996 = vmin.f32 %v964, 6.0
  %v997 = vmin.f32 %v965, 6.0
  %v998 = vmin.f32 %v966, 6.0
  %v999 = vmin.f32 %v967, 6.0
  %v1000 = vmin.f32 %v968, 6.0
  %v1001 = vmin.f32 %v969, 6.0
  %v1002 = vmin.f32 %v970, 6.0
  %v1003 = vmin.f32 %v971, 6.0
  %v1004 = vmin.f32 %v972, 6.0
  %v1005 = vmin.f32 %v973, 6.0
  %v1006 = vmin.f32 %v974, 6.0
  %v1007 = vmin.f32 %v975, 6.0
  %v1008 = vmin.f32 %v976, 6.0
  %v1009 = vmin.f32 %v977, 6.0
  %v1010 = vmin.f32 %v978, 6.0
  %v1011 = vmin.f32 %v979, 6.0
  %v1012 = vmin.f32 %v980, 6.0
  %v1013 = vmin.f32 %v981, 6.0
  %v1014 = vmin.f32 %v982, 6.0
  %v1015 = vmin.f32 %v983, 6.0
  %v1016 = vmin.f32 %v984, 6.0
  %v1017 = vmin.f32 %v985, 6.0
  %v1018 = vmin.f32 %v986, 6.0
  %v1019 = vmin.f32 %v987, 6.0
  %v1020 = vmin.f32 %v988, 6.0
  %v1021 = vmin.f32 %v989, 6.0
  %v1022 = vmin.f32 %v990, 6.0
  %v1023 = vmin.f32 %v991, 6.0
  %v1024 = vpack.c.bf16 %v994, %v992
  %v1025 = vpack.c.bf16 %v995, %v993
  %v1026 = vpack.c.bf16 %v998, %v996
  %v1027 = vpack.c.bf16 %v999, %v997
  %v1028 = vpack.c.bf16 %v1002, %v1000
  %v1029 = vpack.c.bf16 %v1003, %v1001
  %v1030 = vpack.c.bf16 %v1006, %v1004
  %v1031 = vpack.c.bf16 %v1007, %v1005
  %v1032 = vpack.c.bf16 %v1010, %v1008
  %v1033 = vpack.c.bf16 %v1011, %v1009
  %v1034 = vpack.c.bf16 %v1014, %v1012
  %v1035 = vpack.c.bf16 %v1015, %v1013
  %v1036 = vpack.c.bf16 %v1018, %v1016
  %v1037 = vpack.c.bf16 %v1019, %v1017
  %v1038 = vpack.c.bf16 %v1022, %v1020
  %v1039 = vpack.c.bf16 %v1023, %v1021
  %v1056 = vunpack.c.l.b16 %v1024
  %v1057 = vunpack.c.l.b16 %v1025
  %v1058 = vunpack.c.h.b16 %v1024
  %v1059 = vunpack.c.h.b16 %v1025
  %v1060 = vunpack.c.l.b16 %v1026
  %v1061 = vunpack.c.l.b16 %v1027
  %v1062 = vunpack.c.h.b16 %v1026
  %v1063 = vunpack.c.h.b16 %v1027
  %v1064 = vunpack.c.l.b16 %v1028
  %v1065 = vunpack.c.l.b16 %v1029
  %v1066 = vunpack.c.h.b16 %v1028
  %v1067 = vunpack.c.h.b16 %v1029
  %v1068 = vunpack.c.l.b16 %v1030
  %v1069 = vunpack.c.l.b16 %v1031
  %v1070 = vunpack.c.h.b16 %v1030
  %v1071 = vunpack.c.h.b16 %v1031
  %v1072 = vunpack.c.l.b16 %v1032
  %v1073 = vunpack.c.l.b16 %v1033
  %v1074 = vunpack.c.h.b16 %v1032
  %v1075 = vunpack.c.h.b16 %v1033
  %v1076 = vunpack.c.l.b16 %v1034
  %v1077 = vunpack.c.l.b16 %v1035
  %v1078 = vunpack.c.h.b16 %v1034
  %v1079 = vunpack.c.h.b16 %v1035
  %v1080 = vunpack.c.l.b16 %v1036
  %v1081 = vunpack.c.l.b16 %v1037
  %v1082 = vunpack.c.h.b16 %v1036
  %v1083 = vunpack.c.h.b16 %v1037
  %v1084 = vunpack.c.l.b16 %v1038
  %v1085 = vunpack.c.l.b16 %v1039
  %v1086 = vunpack.c.h.b16 %v1038
  %v1087 = vunpack.c.h.b16 %v1039
  %v1088 = vpack.c.b16 %v1057, %v1056
  %v1089 = vpack.c.b16 %v1059, %v1058
  %v1090 = vpack.c.b16 %v1061, %v1060
  %v1091 = vpack.c.b16 %v1063, %v1062
  %v1092 = vpack.c.b16 %v1065, %v1064
  %v1093 = vpack.c.b16 %v1067, %v1066
  %v1094 = vpack.c.b16 %v1069, %v1068
  %v1095 = vpack.c.b16 %v1071, %v1070
  %v1096 = vpack.c.b16 %v1073, %v1072
  %v1097 = vpack.c.b16 %v1075, %v1074
  %v1098 = vpack.c.b16 %v1077, %v1076
  %v1099 = vpack.c.b16 %v1079, %v1078
  %v1100 = vpack.c.b16 %v1081, %v1080
  %v1101 = vpack.c.b16 %v1083, %v1082
  %v1102 = vpack.c.b16 %v1085, %v1084
  %v1103 = vpack.c.b16 %v1087, %v1086
  %1120 = vst [vmem:[%s5] sm:$0xff] %v1088
  %1121 = vst [vmem:[%s5 + $0x8] sm:$0xff] %v1089
  %1122 = vst [vmem:[%s5 + $0x10] sm:$0xff] %v1090
  %1123 = vst [vmem:[%s5 + $0x18] sm:$0xff] %v1091
  %1124 = vst [vmem:[%s5 + $0x20] sm:$0xff] %v1092
  %1125 = vst [vmem:[%s5 + $0x28] sm:$0xff] %v1093
  %1126 = vst [vmem:[%s5 + $0x30] sm:$0xff] %v1094
  %1127 = vst [vmem:[%s5 + $0x38] sm:$0xff] %v1095
  %1128 = vst [vmem:[%s5 + $0x40] sm:$0xff] %v1096
  %1129 = vst [vmem:[%s5 + $0x48] sm:$0xff] %v1097
  %1130 = vst [vmem:[%s5 + $0x50] sm:$0xff] %v1098
  %1131 = vst [vmem:[%s5 + $0x58] sm:$0xff] %v1099
  %1132 = vst [vmem:[%s5 + $0x60] sm:$0xff] %v1100
  %1133 = vst [vmem:[%s5 + $0x68] sm:$0xff] %v1101
  %1134 = vst [vmem:[%s5 + $0x70] sm:$0xff] %v1102
  %1135 = vst [vmem:[%s5 + $0x78] sm:$0xff] %v1103
  // Predicated region
  $region22: #{model_forward.16} parent=0 // pred_check
    _
  $region23: #{model_forward.16} parent=0 // pred_check_branch
    %1137 = sbr.rel (0) target = $region25
  $region24: #{model_forward.16} parent=0 // pred_region
    _
  $region25: #{model_forward.16} parent=0 // pred_fallthru
    _
  // Predicated region
  $region26: #{model_forward.16} parent=0 // pred_check
    _
  $region27: #{model_forward.16} parent=0 // pred_check_branch
    %1139 = sbr.rel (0) target = $region29
  $region28: #{model_forward.16} parent=0 // pred_region
    _
  $region29: #{model_forward.16} parent=0 // pred_fallthru
    _

// kernel: model_forward.17
$region0: #{model_forward.17}
  #allocation0 [shape = 'u32[]', space=smem, size = 0x4, offset = 0x4, fixed_abs, tag = 'smem constant byte address 0x4 - core index']
  #allocation1 [shape = 'u32[144,128]{1,0:T(1,128)}', space=vmem, size = 0x12000, scoped, tag = 'internal scratch']
  %s0 = inlined_call_operand.vmem [shape: bf16[9,64,128], index: 0, kind: input, shape index: {}]
  %s1 = inlined_call_operand.vmem [shape: f32[9,1,128], index: 1, kind: input, shape index: {}]
  %s2 = inlined_call_operand.vmem [shape: f32[1,128], index: 2, kind: input, shape index: {}]
  %s3 = inlined_call_operand.vmem [shape: bf16[128,256], index: 3, kind: input, shape index: {}]
  %s4 = inlined_call_operand.vmem [shape: f32[1,256], index: 4, kind: input, shape index: {}]
  %s5 = inlined_call_operand.vmem [shape: bf16[64,256], index: 5, kind: output, shape index: {}]
  %s6 = sld [smem:[#allocation0]]
  $region30: #{model_forward.17} parent=0
    _
  %s8 = ssub.s32 1, %s6
  %s9 = scalar_select 0, %s8, %s6
  // Predicated region
  $region2: #{model_forward.17} parent=0 // pred_check
    _
  $region3: #{model_forward.17} parent=0 // pred_check_branch
    %11 = sbr.rel (0) target = $region5
  $region4: #{model_forward.17} parent=0 // pred_region
    _
  $region5: #{model_forward.17} parent=0 // pred_fallthru
    _
  // Predicated region
  $region6: #{model_forward.17} parent=0 // pred_check
    _
  $region7: #{model_forward.17} parent=0 // pred_check_branch
    %13 = sbr.rel (0) target = $region9
  $region8: #{model_forward.17} parent=0 // pred_region
    _
  $region9: #{model_forward.17} parent=0 // pred_fallthru
    _
  // Predicated region
  $region10: #{model_forward.17} parent=0 // pred_check
    _
  $region11: #{model_forward.17} parent=0 // pred_check_branch
    %15 = sbr.rel (0) target = $region13
  $region12: #{model_forward.17} parent=0 // pred_region
    _
  $region13: #{model_forward.17} parent=0 // pred_fallthru
    _
  // Predicated region
  $region14: #{model_forward.17} parent=0 // pred_check
    _
  $region15: #{model_forward.17} parent=0 // pred_check_branch
    %17 = sbr.rel (0) target = $region17
  $region16: #{model_forward.17} parent=0 // pred_region
    _
  $region17: #{model_forward.17} parent=0 // pred_fallthru
    _
  // Predicated region
  $region18: #{model_forward.17} parent=0 // pred_check
    _
  $region19: #{model_forward.17} parent=0 // pred_check_branch
    %19 = sbr.rel (0) target = $region21
  $region20: #{model_forward.17} parent=0 // pred_region
    _
  $region21: #{model_forward.17} parent=0 // pred_fallthru
    _
  %v21 = vld [vmem:[%s0] sm:$0xf]
  %v22 = vld [vmem:[%s0 + $0x4] sm:$0xf]
  %v23 = vld [vmem:[%s0 + $0x8] sm:$0xf]
  %v24 = vld [vmem:[%s0 + $0xc] sm:$0xf]
  %v25 = vld [vmem:[%s0 + $0x10] sm:$0xf]
  %v26 = vld [vmem:[%s0 + $0x14] sm:$0xf]
  %v27 = vld [vmem:[%s0 + $0x18] sm:$0xf]
  %v28 = vld [vmem:[%s0 + $0x1c] sm:$0xf]
  %v29 = vunpack.c.l.bf16 %v21
  %v30 = vunpack.c.l.bf16 %v22
  %v31 = vunpack.c.l.bf16 %v23
  %v32 = vunpack.c.l.bf16 %v24
  %v33 = vunpack.c.l.bf16 %v25
  %v34 = vunpack.c.l.bf16 %v26
  %v35 = vunpack.c.l.bf16 %v27
  %v36 = vunpack.c.l.bf16 %v28
  %v37 = vld [vmem:[%s1] sm:$0x1]
  %v39 = vlaneseq
  %v40 = vshrl.u32 %v39, 7
  %v41 = vsub.s32 0, %v40
  %v42 = vrot.slane %v37, %v41
  %v44 = vmul.f32 %v29, %v42
  %v45 = vmul.f32 %v30, %v42
  %v46 = vmul.f32 %v31, %v42
  %v47 = vmul.f32 %v32, %v42
  %v48 = vmul.f32 %v33, %v42
  %v49 = vmul.f32 %v34, %v42
  %v50 = vmul.f32 %v35, %v42
  %v51 = vmul.f32 %v36, %v42
  %v52 = vadd.f32 %v44, 0.0
  %v53 = vadd.f32 %v45, 0.0
  %v54 = vadd.f32 %v46, 0.0
  %v55 = vadd.f32 %v47, 0.0
  %v56 = vadd.f32 %v48, 0.0
  %v57 = vadd.f32 %v49, 0.0
  %v58 = vadd.f32 %v50, 0.0
  %v59 = vadd.f32 %v51, 0.0
  %s60 = scalar_lea.vmem %s0, 32
  %v61 = vld [vmem:[%s60] sm:$0xf]
  %v62 = vld [vmem:[%s60 + $0x4] sm:$0xf]
  %v63 = vld [vmem:[%s60 + $0x8] sm:$0xf]
  %v64 = vld [vmem:[%s60 + $0xc] sm:$0xf]
  %v65 = vld [vmem:[%s60 + $0x10] sm:$0xf]
  %v66 = vld [vmem:[%s60 + $0x14] sm:$0xf]
  %v67 = vld [vmem:[%s60 + $0x18] sm:$0xf]
  %v68 = vld [vmem:[%s60 + $0x1c] sm:$0xf]
  %v69 = vunpack.c.l.bf16 %v61
  %v70 = vunpack.c.l.bf16 %v62
  %v71 = vunpack.c.l.bf16 %v63
  %v72 = vunpack.c.l.bf16 %v64
  %v73 = vunpack.c.l.bf16 %v65
  %v74 = vunpack.c.l.bf16 %v66
  %v75 = vunpack.c.l.bf16 %v67
  %v76 = vunpack.c.l.bf16 %v68
  %s77 = scalar_lea.vmem %s1, 1
  %v78 = vld [vmem:[%s77] sm:$0x1]
  %v80 = vlaneseq
  %v81 = vshrl.u32 %v80, 7
  %v82 = vsub.s32 0, %v81
  %v83 = vrot.slane %v78, %v82
  %v85 = vmul.f32 %v69, %v83
  %v86 = vmul.f32 %v70, %v83
  %v87 = vmul.f32 %v71, %v83
  %v88 = vmul.f32 %v72, %v83
  %v89 = vmul.f32 %v73, %v83
  %v90 = vmul.f32 %v74, %v83
  %v91 = vmul.f32 %v75, %v83
  %v92 = vmul.f32 %v76, %v83
  %v93 = vadd.f32 %v52, %v85
  %v94 = vadd.f32 %v53, %v86
  %v95 = vadd.f32 %v54, %v87
  %v96 = vadd.f32 %v55, %v88
  %v97 = vadd.f32 %v56, %v89
  %v98 = vadd.f32 %v57, %v90
  %v99 = vadd.f32 %v58, %v91
  %v100 = vadd.f32 %v59, %v92
  %s101 = scalar_lea.vmem %s0, 64
  %v102 = vld [vmem:[%s101] sm:$0xf]
  %v103 = vld [vmem:[%s101 + $0x4] sm:$0xf]
  %v104 = vld [vmem:[%s101 + $0x8] sm:$0xf]
  %v105 = vld [vmem:[%s101 + $0xc] sm:$0xf]
  %v106 = vld [vmem:[%s101 + $0x10] sm:$0xf]
  %v107 = vld [vmem:[%s101 + $0x14] sm:$0xf]
  %v108 = vld [vmem:[%s101 + $0x18] sm:$0xf]
  %v109 = vld [vmem:[%s101 + $0x1c] sm:$0xf]
  %v110 = vunpack.c.l.bf16 %v102
  %v111 = vunpack.c.l.bf16 %v103
  %v112 = vunpack.c.l.bf16 %v104
  %v113 = vunpack.c.l.bf16 %v105
  %v114 = vunpack.c.l.bf16 %v106
  %v115 = vunpack.c.l.bf16 %v107
  %v116 = vunpack.c.l.bf16 %v108
  %v117 = vunpack.c.l.bf16 %v109
  %s118 = scalar_lea.vmem %s1, 2
  %v119 = vld [vmem:[%s118] sm:$0x1]
  %v121 = vlaneseq
  %v122 = vshrl.u32 %v121, 7
  %v123 = vsub.s32 0, %v122
  %v124 = vrot.slane %v119, %v123
  %v126 = vmul.f32 %v110, %v124
  %v127 = vmul.f32 %v111, %v124
  %v128 = vmul.f32 %v112, %v124
  %v129 = vmul.f32 %v113, %v124
  %v130 = vmul.f32 %v114, %v124
  %v131 = vmul.f32 %v115, %v124
  %v132 = vmul.f32 %v116, %v124
  %v133 = vmul.f32 %v117, %v124
  %v134 = vadd.f32 %v93, %v126
  %v135 = vadd.f32 %v94, %v127
  %v136 = vadd.f32 %v95, %v128
  %v137 = vadd.f32 %v96, %v129
  %v138 = vadd.f32 %v97, %v130
  %v139 = vadd.f32 %v98, %v131
  %v140 = vadd.f32 %v99, %v132
  %v141 = vadd.f32 %v100, %v133
  %s142 = scalar_lea.vmem %s0, 96
  %v143 = vld [vmem:[%s142] sm:$0xf]
  %v144 = vld [vmem:[%s142 + $0x4] sm:$0xf]
  %v145 = vld [vmem:[%s142 + $0x8] sm:$0xf]
  %v146 = vld [vmem:[%s142 + $0xc] sm:$0xf]
  %v147 = vld [vmem:[%s142 + $0x10] sm:$0xf]
  %v148 = vld [vmem:[%s142 + $0x14] sm:$0xf]
  %v149 = vld [vmem:[%s142 + $0x18] sm:$0xf]
  %v150 = vld [vmem:[%s142 + $0x1c] sm:$0xf]
  %v151 = vunpack.c.l.bf16 %v143
  %v152 = vunpack.c.l.bf16 %v144
  %v153 = vunpack.c.l.bf16 %v145
  %v154 = vunpack.c.l.bf16 %v146
  %v155 = vunpack.c.l.bf16 %v147
  %v156 = vunpack.c.l.bf16 %v148
  %v157 = vunpack.c.l.bf16 %v149
  %v158 = vunpack.c.l.bf16 %v150
  %s159 = scalar_lea.vmem %s1, 3
  %v160 = vld [vmem:[%s159] sm:$0x1]
  %v162 = vlaneseq
  %v163 = vshrl.u32 %v162, 7
  %v164 = vsub.s32 0, %v163
  %v165 = vrot.slane %v160, %v164
  %v167 = vmul.f32 %v151, %v165
  %v168 = vmul.f32 %v152, %v165
  %v169 = vmul.f32 %v153, %v165
  %v170 = vmul.f32 %v154, %v165
  %v171 = vmul.f32 %v155, %v165
  %v172 = vmul.f32 %v156, %v165
  %v173 = vmul.f32 %v157, %v165
  %v174 = vmul.f32 %v158, %v165
  %v175 = vadd.f32 %v134, %v167
  %v176 = vadd.f32 %v135, %v168
  %v177 = vadd.f32 %v136, %v169
  %v178 = vadd.f32 %v137, %v170
  %v179 = vadd.f32 %v138, %v171
  %v180 = vadd.f32 %v139, %v172
  %v181 = vadd.f32 %v140, %v173
  %v182 = vadd.f32 %v141, %v174
  %s183 = scalar_lea.vmem %s0, 128
  %v184 = vld [vmem:[%s183] sm:$0xf]
  %v185 = vld [vmem:[%s183 + $0x4] sm:$0xf]
  %v186 = vld [vmem:[%s183 + $0x8] sm:$0xf]
  %v187 = vld [vmem:[%s183 + $0xc] sm:$0xf]
  %v188 = vld [vmem:[%s183 + $0x10] sm:$0xf]
  %v189 = vld [vmem:[%s183 + $0x14] sm:$0xf]
  %v190 = vld [vmem:[%s183 + $0x18] sm:$0xf]
  %v191 = vld [vmem:[%s183 + $0x1c] sm:$0xf]
  %v192 = vunpack.c.l.bf16 %v184
  %v193 = vunpack.c.l.bf16 %v185
  %v194 = vunpack.c.l.bf16 %v186
  %v195 = vunpack.c.l.bf16 %v187
  %v196 = vunpack.c.l.bf16 %v188
  %v197 = vunpack.c.l.bf16 %v189
  %v198 = vunpack.c.l.bf16 %v190
  %v199 = vunpack.c.l.bf16 %v191
  %s200 = scalar_lea.vmem %s1, 4
  %v201 = vld [vmem:[%s200] sm:$0x1]
  %v203 = vlaneseq
  %v204 = vshrl.u32 %v203, 7
  %v205 = vsub.s32 0, %v204
  %v206 = vrot.slane %v201, %v205
  %v208 = vmul.f32 %v192, %v206
  %v209 = vmul.f32 %v193, %v206
  %v210 = vmul.f32 %v194, %v206
  %v211 = vmul.f32 %v195, %v206
  %v212 = vmul.f32 %v196, %v206
  %v213 = vmul.f32 %v197, %v206
  %v214 = vmul.f32 %v198, %v206
  %v215 = vmul.f32 %v199, %v206
  %v216 = vadd.f32 %v175, %v208
  %v217 = vadd.f32 %v176, %v209
  %v218 = vadd.f32 %v177, %v210
  %v219 = vadd.f32 %v178, %v211
  %v220 = vadd.f32 %v179, %v212
  %v221 = vadd.f32 %v180, %v213
  %v222 = vadd.f32 %v181, %v214
  %v223 = vadd.f32 %v182, %v215
  %s224 = scalar_lea.vmem %s0, 160
  %v225 = vld [vmem:[%s224] sm:$0xf]
  %v226 = vld [vmem:[%s224 + $0x4] sm:$0xf]
  %v227 = vld [vmem:[%s224 + $0x8] sm:$0xf]
  %v228 = vld [vmem:[%s224 + $0xc] sm:$0xf]
  %v229 = vld [vmem:[%s224 + $0x10] sm:$0xf]
  %v230 = vld [vmem:[%s224 + $0x14] sm:$0xf]
  %v231 = vld [vmem:[%s224 + $0x18] sm:$0xf]
  %v232 = vld [vmem:[%s224 + $0x1c] sm:$0xf]
  %v233 = vunpack.c.l.bf16 %v225
  %v234 = vunpack.c.l.bf16 %v226
  %v235 = vunpack.c.l.bf16 %v227
  %v236 = vunpack.c.l.bf16 %v228
  %v237 = vunpack.c.l.bf16 %v229
  %v238 = vunpack.c.l.bf16 %v230
  %v239 = vunpack.c.l.bf16 %v231
  %v240 = vunpack.c.l.bf16 %v232
  %s241 = scalar_lea.vmem %s1, 5
  %v242 = vld [vmem:[%s241] sm:$0x1]
  %v244 = vlaneseq
  %v245 = vshrl.u32 %v244, 7
  %v246 = vsub.s32 0, %v245
  %v247 = vrot.slane %v242, %v246
  %v249 = vmul.f32 %v233, %v247
  %v250 = vmul.f32 %v234, %v247
  %v251 = vmul.f32 %v235, %v247
  %v252 = vmul.f32 %v236, %v247
  %v253 = vmul.f32 %v237, %v247
  %v254 = vmul.f32 %v238, %v247
  %v255 = vmul.f32 %v239, %v247
  %v256 = vmul.f32 %v240, %v247
  %v257 = vadd.f32 %v216, %v249
  %v258 = vadd.f32 %v217, %v250
  %v259 = vadd.f32 %v218, %v251
  %v260 = vadd.f32 %v219, %v252
  %v261 = vadd.f32 %v220, %v253
  %v262 = vadd.f32 %v221, %v254
  %v263 = vadd.f32 %v222, %v255
  %v264 = vadd.f32 %v223, %v256
  %s265 = scalar_lea.vmem %s0, 192
  %v266 = vld [vmem:[%s265] sm:$0xf]
  %v267 = vld [vmem:[%s265 + $0x4] sm:$0xf]
  %v268 = vld [vmem:[%s265 + $0x8] sm:$0xf]
  %v269 = vld [vmem:[%s265 + $0xc] sm:$0xf]
  %v270 = vld [vmem:[%s265 + $0x10] sm:$0xf]
  %v271 = vld [vmem:[%s265 + $0x14] sm:$0xf]
  %v272 = vld [vmem:[%s265 + $0x18] sm:$0xf]
  %v273 = vld [vmem:[%s265 + $0x1c] sm:$0xf]
  %v274 = vunpack.c.l.bf16 %v266
  %v275 = vunpack.c.l.bf16 %v267
  %v276 = vunpack.c.l.bf16 %v268
  %v277 = vunpack.c.l.bf16 %v269
  %v278 = vunpack.c.l.bf16 %v270
  %v279 = vunpack.c.l.bf16 %v271
  %v280 = vunpack.c.l.bf16 %v272
  %v281 = vunpack.c.l.bf16 %v273
  %s282 = scalar_lea.vmem %s1, 6
  %v283 = vld [vmem:[%s282] sm:$0x1]
  %v285 = vlaneseq
  %v286 = vshrl.u32 %v285, 7
  %v287 = vsub.s32 0, %v286
  %v288 = vrot.slane %v283, %v287
  %v290 = vmul.f32 %v274, %v288
  %v291 = vmul.f32 %v275, %v288
  %v292 = vmul.f32 %v276, %v288
  %v293 = vmul.f32 %v277, %v288
  %v294 = vmul.f32 %v278, %v288
  %v295 = vmul.f32 %v279, %v288
  %v296 = vmul.f32 %v280, %v288
  %v297 = vmul.f32 %v281, %v288
  %v298 = vadd.f32 %v257, %v290
  %v299 = vadd.f32 %v258, %v291
  %v300 = vadd.f32 %v259, %v292
  %v301 = vadd.f32 %v260, %v293
  %v302 = vadd.f32 %v261, %v294
  %v303 = vadd.f32 %v262, %v295
  %v304 = vadd.f32 %v263, %v296
  %v305 = vadd.f32 %v264, %v297
  %s306 = scalar_lea.vmem %s0, 224
  %v307 = vld [vmem:[%s306] sm:$0xf]
  %v308 = vld [vmem:[%s306 + $0x4] sm:$0xf]
  %v309 = vld [vmem:[%s306 + $0x8] sm:$0xf]
  %v310 = vld [vmem:[%s306 + $0xc] sm:$0xf]
  %v311 = vld [vmem:[%s306 + $0x10] sm:$0xf]
  %v312 = vld [vmem:[%s306 + $0x14] sm:$0xf]
  %v313 = vld [vmem:[%s306 + $0x18] sm:$0xf]
  %v314 = vld [vmem:[%s306 + $0x1c] sm:$0xf]
  %v315 = vunpack.c.l.bf16 %v307
  %v316 = vunpack.c.l.bf16 %v308
  %v317 = vunpack.c.l.bf16 %v309
  %v318 = vunpack.c.l.bf16 %v310
  %v319 = vunpack.c.l.bf16 %v311
  %v320 = vunpack.c.l.bf16 %v312
  %v321 = vunpack.c.l.bf16 %v313
  %v322 = vunpack.c.l.bf16 %v314
  %s323 = scalar_lea.vmem %s1, 7
  %v324 = vld [vmem:[%s323] sm:$0x1]
  %v326 = vlaneseq
  %v327 = vshrl.u32 %v326, 7
  %v328 = vsub.s32 0, %v327
  %v329 = vrot.slane %v324, %v328
  %v331 = vmul.f32 %v315, %v329
  %v332 = vmul.f32 %v316, %v329
  %v333 = vmul.f32 %v317, %v329
  %v334 = vmul.f32 %v318, %v329
  %v335 = vmul.f32 %v319, %v329
  %v336 = vmul.f32 %v320, %v329
  %v337 = vmul.f32 %v321, %v329
  %v338 = vmul.f32 %v322, %v329
  %v339 = vadd.f32 %v298, %v331
  %v340 = vadd.f32 %v299, %v332
  %v341 = vadd.f32 %v300, %v333
  %v342 = vadd.f32 %v301, %v334
  %v343 = vadd.f32 %v302, %v335
  %v344 = vadd.f32 %v303, %v336
  %v345 = vadd.f32 %v304, %v337
  %v346 = vadd.f32 %v305, %v338
  %s347 = scalar_lea.vmem %s0, 256
  %v348 = vld [vmem:[%s347] sm:$0xf]
  %v349 = vld [vmem:[%s347 + $0x4] sm:$0xf]
  %v350 = vld [vmem:[%s347 + $0x8] sm:$0xf]
  %v351 = vld [vmem:[%s347 + $0xc] sm:$0xf]
  %v352 = vld [vmem:[%s347 + $0x10] sm:$0xf]
  %v353 = vld [vmem:[%s347 + $0x14] sm:$0xf]
  %v354 = vld [vmem:[%s347 + $0x18] sm:$0xf]
  %v355 = vld [vmem:[%s347 + $0x1c] sm:$0xf]
  %v356 = vunpack.c.l.bf16 %v348
  %v357 = vunpack.c.l.bf16 %v349
  %v358 = vunpack.c.l.bf16 %v350
  %v359 = vunpack.c.l.bf16 %v351
  %v360 = vunpack.c.l.bf16 %v352
  %v361 = vunpack.c.l.bf16 %v353
  %v362 = vunpack.c.l.bf16 %v354
  %v363 = vunpack.c.l.bf16 %v355
  %s364 = scalar_lea.vmem %s1, 8
  %v365 = vld [vmem:[%s364] sm:$0x1]
  %v367 = vlaneseq
  %v368 = vshrl.u32 %v367, 7
  %v369 = vsub.s32 0, %v368
  %v370 = vrot.slane %v365, %v369
  %v372 = vmul.f32 %v356, %v370
  %v373 = vmul.f32 %v357, %v370
  %v374 = vmul.f32 %v358, %v370
  %v375 = vmul.f32 %v359, %v370
  %v376 = vmul.f32 %v360, %v370
  %v377 = vmul.f32 %v361, %v370
  %v378 = vmul.f32 %v362, %v370
  %v379 = vmul.f32 %v363, %v370
  %v380 = vadd.f32 %v339, %v372
  %v381 = vadd.f32 %v340, %v373
  %v382 = vadd.f32 %v341, %v374
  %v383 = vadd.f32 %v342, %v375
  %v384 = vadd.f32 %v343, %v376
  %v385 = vadd.f32 %v344, %v377
  %v386 = vadd.f32 %v345, %v378
  %v387 = vadd.f32 %v346, %v379
  %v388 = vld [vmem:[%s2] sm:$0x1]
  %v390 = vlaneseq
  %v391 = vshrl.u32 %v390, 7
  %v392 = vsub.s32 0, %v391
  %v393 = vrot.slane %v388, %v392
  %v395 = vadd.f32 %v380, %v393
  %v396 = vadd.f32 %v381, %v393
  %v397 = vadd.f32 %v382, %v393
  %v398 = vadd.f32 %v383, %v393
  %v399 = vadd.f32 %v384, %v393
  %v400 = vadd.f32 %v385, %v393
  %v401 = vadd.f32 %v386, %v393
  %v402 = vadd.f32 %v387, %v393
  %v403 = vmax.f32 %v395, 0.0
  %v404 = vmax.f32 %v396, 0.0
  %v405 = vmax.f32 %v397, 0.0
  %v406 = vmax.f32 %v398, 0.0
  %v407 = vmax.f32 %v399, 0.0
  %v408 = vmax.f32 %v400, 0.0
  %v409 = vmax.f32 %v401, 0.0
  %v410 = vmax.f32 %v402, 0.0
  %v411 = vmin.f32 %v403, 6.0
  %v412 = vmin.f32 %v404, 6.0
  %v413 = vmin.f32 %v405, 6.0
  %v414 = vmin.f32 %v406, 6.0
  %v415 = vmin.f32 %v407, 6.0
  %v416 = vmin.f32 %v408, 6.0
  %v417 = vmin.f32 %v409, 6.0
  %v418 = vmin.f32 %v410, 6.0
  %v419 = vpack.c.bf16 %v412, %v411
  %v420 = vpack.c.bf16 %v414, %v413
  %v421 = vpack.c.bf16 %v416, %v415
  %v422 = vpack.c.bf16 %v418, %v417
  %v423 = vld [vmem:[%s3] sm:$0xff]
  %v424 = vld [vmem:[%s3 + $0x8] sm:$0xff]
  %v425 = vld [vmem:[%s3 + $0x10] sm:$0xff]
  %v426 = vld [vmem:[%s3 + $0x18] sm:$0xff]
  %v427 = vld [vmem:[%s3 + $0x20] sm:$0xff]
  %v428 = vld [vmem:[%s3 + $0x28] sm:$0xff]
  %v429 = vld [vmem:[%s3 + $0x30] sm:$0xff]
  %v430 = vld [vmem:[%s3 + $0x38] sm:$0xff]
  %v431 = vld [vmem:[%s3 + $0x40] sm:$0xff]
  %v432 = vld [vmem:[%s3 + $0x48] sm:$0xff]
  %v433 = vld [vmem:[%s3 + $0x50] sm:$0xff]
  %v434 = vld [vmem:[%s3 + $0x58] sm:$0xff]
  %v435 = vld [vmem:[%s3 + $0x60] sm:$0xff]
  %v436 = vld [vmem:[%s3 + $0x68] sm:$0xff]
  %v437 = vld [vmem:[%s3 + $0x70] sm:$0xff]
  %v438 = vld [vmem:[%s3 + $0x78] sm:$0xff]
  %v439 = vld [vmem:[%s4] sm:$0x3]
  %v441 = vlaneseq
  %v442 = vshrl.u32 %v441, 7
  %v443 = vsub.s32 0, %v442
  %v444 = vrot.slane %v439, %v443
  %v445 = vlaneseq
  %v446 = vshrl.u32 %v445, 7
  %v447 = vsub.s32 1, %v446
  %v448 = vrot.slane %v439, %v447
  %v467 = vunpack.c.l.b16 %v423
  %v468 = vunpack.c.h.b16 %v423
  %v469 = vunpack.c.l.b16 %v424
  %v470 = vunpack.c.h.b16 %v424
  %v471 = vunpack.c.l.b16 %v425
  %v472 = vunpack.c.h.b16 %v425
  %v473 = vunpack.c.l.b16 %v426
  %v474 = vunpack.c.h.b16 %v426
  %v475 = vunpack.c.l.b16 %v427
  %v476 = vunpack.c.h.b16 %v427
  %v477 = vunpack.c.l.b16 %v428
  %v478 = vunpack.c.h.b16 %v428
  %v479 = vunpack.c.l.b16 %v429
  %v480 = vunpack.c.h.b16 %v429
  %v481 = vunpack.c.l.b16 %v430
  %v482 = vunpack.c.h.b16 %v430
  %v483 = vunpack.c.l.b16 %v431
  %v484 = vunpack.c.h.b16 %v431
  %v485 = vunpack.c.l.b16 %v432
  %v486 = vunpack.c.h.b16 %v432
  %v487 = vunpack.c.l.b16 %v433
  %v488 = vunpack.c.h.b16 %v433
  %v489 = vunpack.c.l.b16 %v434
  %v490 = vunpack.c.h.b16 %v434
  %v491 = vunpack.c.l.b16 %v435
  %v492 = vunpack.c.h.b16 %v435
  %v493 = vunpack.c.l.b16 %v436
  %v494 = vunpack.c.h.b16 %v436
  %v495 = vunpack.c.l.b16 %v437
  %v496 = vunpack.c.h.b16 %v437
  %v497 = vunpack.c.l.b16 %v438
  %v498 = vunpack.c.h.b16 %v438
  %v499 = vpack.c.b16 %v469, %v467
  %v500 = vpack.c.b16 %v470, %v468
  %v501 = vpack.c.b16 %v473, %v471
  %v502 = vpack.c.b16 %v474, %v472
  %v503 = vpack.c.b16 %v477, %v475
  %v504 = vpack.c.b16 %v478, %v476
  %v505 = vpack.c.b16 %v481, %v479
  %v506 = vpack.c.b16 %v482, %v480
  %v507 = vpack.c.b16 %v485, %v483
  %v508 = vpack.c.b16 %v486, %v484
  %v509 = vpack.c.b16 %v489, %v487
  %v510 = vpack.c.b16 %v490, %v488
  %v511 = vpack.c.b16 %v493, %v491
  %v512 = vpack.c.b16 %v494, %v492
  %v513 = vpack.c.b16 %v497, %v495
  %v514 = vpack.c.b16 %v498, %v496
  %531 = vmatprep.subr.bf16.mxu0 %v514
  %532 = vmatpush1.bf16.msra.mxu0 %v513
  %533 = vmatprep.subr.bf16.mxu0 %v512
  %534 = vmatpush1.bf16.msra.mxu0 %v511
  %535 = vmatprep.subr.bf16.mxu0 %v510
  %536 = vmatpush1.bf16.msra.mxu0 %v509
  %537 = vmatprep.subr.bf16.mxu0 %v508
  %538 = vmatpush1.bf16.msra.mxu0 %v507
  %539 = vmatprep.subr.bf16.mxu0 %v506
  %540 = vmatpush1.bf16.msra.mxu0 %v505
  %541 = vmatprep.subr.bf16.mxu0 %v504
  %542 = vmatpush1.bf16.msra.mxu0 %v503
  %543 = vmatprep.subr.bf16.mxu0 %v502
  %544 = vmatpush1.bf16.msra.mxu0 %v501
  %545 = vmatprep.subr.bf16.mxu0 %v500
  %546 = vmatpush1.bf16.msra.mxu0 %v499
  %547 = vmatprep.subr.bf16.mxu0 0
  %548 = vmatpush2.bf16.msra.mxu0 0
  %549 = vmatprep.subr.bf16.mxu0 0
  %550 = vmatpush2.bf16.msra.mxu0 0
  %551 = vmatprep.subr.bf16.mxu0 0
  %552 = vmatpush2.bf16.msra.mxu0 0
  %553 = vmatprep.subr.bf16.mxu0 0
  %554 = vmatpush2.bf16.msra.mxu0 0
  %555 = vmatprep.subr.bf16.mxu0 0
  %556 = vmatpush2.bf16.msra.mxu0 0
  %557 = vmatprep.subr.bf16.mxu0 0
  %558 = vmatpush2.bf16.msra.mxu0 0
  %559 = vmatprep.subr.bf16.mxu0 0
  %560 = vmatpush2.bf16.msra.mxu0 0
  %561 = vmatprep.subr.bf16.mxu0 0
  %562 = vmatpush2.bf16.msra.mxu0 0
  %563 = vmatprep.mubr.bf16.mxu0 0
  %564 = vmatmul.mubr.bf16.gmra.mxu0 %v419
  %v565 = vpop.f32.mrf.mxu0
  %v566 = vadd.f32 %v444, %v565
  %v567 = vpop.f32.mrf.mxu0
  %v568 = vadd.f32 %v448, %v567
  %v569 = vpop.f32.mrf.mxu0
  %v570 = vadd.f32 %v444, %v569
  %v571 = vpop.f32.mrf.mxu0
  %v572 = vadd.f32 %v448, %v571
  %573 = vmatprep.mubr.bf16.mxu0 0
  %574 = vmatmul.mubr.bf16.gmra.mxu0 %v420
  %v575 = vpop.f32.mrf.mxu0
  %v576 = vadd.f32 %v444, %v575
  %v577 = vpop.f32.mrf.mxu0
  %v578 = vadd.f32 %v448, %v577
  %v579 = vpop.f32.mrf.mxu0
  %v580 = vadd.f32 %v444, %v579
  %v581 = vpop.f32.mrf.mxu0
  %v582 = vadd.f32 %v448, %v581
  %583 = vmatprep.mubr.bf16.mxu0 0
  %584 = vmatmul.mubr.bf16.gmra.mxu0 %v421
  %v585 = vpop.f32.mrf.mxu0
  %v586 = vadd.f32 %v444, %v585
  %v587 = vpop.f32.mrf.mxu0
  %v588 = vadd.f32 %v448, %v587
  %v589 = vpop.f32.mrf.mxu0
  %v590 = vadd.f32 %v444, %v589
  %v591 = vpop.f32.mrf.mxu0
  %v592 = vadd.f32 %v448, %v591
  %593 = vmatprep.mubr.bf16.mxu0 0
  %594 = vmatmul.mubr.bf16.gmra.mxu0 %v422
  %v595 = vpop.f32.mrf.mxu0
  %v596 = vadd.f32 %v444, %v595
  %v597 = vpop.f32.mrf.mxu0
  %v598 = vadd.f32 %v448, %v597
  %v599 = vpop.f32.mrf.mxu0
  %v600 = vadd.f32 %v444, %v599
  %v601 = vpop.f32.mrf.mxu0
  %v602 = vadd.f32 %v448, %v601
  %603 = vdwg.mxu0
  %v604 = vmax.f32 %v566, 0.0
  %v605 = vmax.f32 %v568, 0.0
  %v606 = vmax.f32 %v570, 0.0
  %v607 = vmax.f32 %v572, 0.0
  %v608 = vmax.f32 %v576, 0.0
  %v609 = vmax.f32 %v578, 0.0
  %v610 = vmax.f32 %v580, 0.0
  %v611 = vmax.f32 %v582, 0.0
  %v612 = vmax.f32 %v586, 0.0
  %v613 = vmax.f32 %v588, 0.0
  %v614 = vmax.f32 %v590, 0.0
  %v615 = vmax.f32 %v592, 0.0
  %v616 = vmax.f32 %v596, 0.0
  %v617 = vmax.f32 %v598, 0.0
  %v618 = vmax.f32 %v600, 0.0
  %v619 = vmax.f32 %v602, 0.0
  %v620 = vmin.f32 %v604, 6.0
  %v621 = vmin.f32 %v605, 6.0
  %v622 = vmin.f32 %v606, 6.0
  %v623 = vmin.f32 %v607, 6.0
  %v624 = vmin.f32 %v608, 6.0
  %v625 = vmin.f32 %v609, 6.0
  %v626 = vmin.f32 %v610, 6.0
  %v627 = vmin.f32 %v611, 6.0
  %v628 = vmin.f32 %v612, 6.0
  %v629 = vmin.f32 %v613, 6.0
  %v630 = vmin.f32 %v614, 6.0
  %v631 = vmin.f32 %v615, 6.0
  %v632 = vmin.f32 %v616, 6.0
  %v633 = vmin.f32 %v617, 6.0
  %v634 = vmin.f32 %v618, 6.0
  %v635 = vmin.f32 %v619, 6.0
  %v636 = vpack.c.bf16 %v622, %v620
  %v637 = vpack.c.bf16 %v623, %v621
  %v638 = vpack.c.bf16 %v626, %v624
  %v639 = vpack.c.bf16 %v627, %v625
  %v640 = vpack.c.bf16 %v630, %v628
  %v641 = vpack.c.bf16 %v631, %v629
  %v642 = vpack.c.bf16 %v634, %v632
  %v643 = vpack.c.bf16 %v635, %v633
  %v652 = vunpack.c.l.b16 %v636
  %v653 = vunpack.c.l.b16 %v637
  %v654 = vunpack.c.h.b16 %v636
  %v655 = vunpack.c.h.b16 %v637
  %v656 = vunpack.c.l.b16 %v638
  %v657 = vunpack.c.l.b16 %v639
  %v658 = vunpack.c.h.b16 %v638
  %v659 = vunpack.c.h.b16 %v639
  %v660 = vunpack.c.l.b16 %v640
  %v661 = vunpack.c.l.b16 %v641
  %v662 = vunpack.c.h.b16 %v640
  %v663 = vunpack.c.h.b16 %v641
  %v664 = vunpack.c.l.b16 %v642
  %v665 = vunpack.c.l.b16 %v643
  %v666 = vunpack.c.h.b16 %v642
  %v667 = vunpack.c.h.b16 %v643
  %v668 = vpack.c.b16 %v653, %v652
  %v669 = vpack.c.b16 %v655, %v654
  %v670 = vpack.c.b16 %v657, %v656
  %v671 = vpack.c.b16 %v659, %v658
  %v672 = vpack.c.b16 %v661, %v660
  %v673 = vpack.c.b16 %v663, %v662
  %v674 = vpack.c.b16 %v665, %v664
  %v675 = vpack.c.b16 %v667, %v666
  %684 = vst [vmem:[%s5] sm:$0xff] %v668
  %685 = vst [vmem:[%s5 + $0x8] sm:$0xff] %v669
  %686 = vst [vmem:[%s5 + $0x10] sm:$0xff] %v670
  %687 = vst [vmem:[%s5 + $0x18] sm:$0xff] %v671
  %688 = vst [vmem:[%s5 + $0x20] sm:$0xff] %v672
  %689 = vst [vmem:[%s5 + $0x28] sm:$0xff] %v673
  %690 = vst [vmem:[%s5 + $0x30] sm:$0xff] %v674
  %691 = vst [vmem:[%s5 + $0x38] sm:$0xff] %v675
  // Predicated region
  $region22: #{model_forward.17} parent=0 // pred_check
    _
  $region23: #{model_forward.17} parent=0 // pred_check_branch
    %693 = sbr.rel (0) target = $region25
  $region24: #{model_forward.17} parent=0 // pred_region
    _
  $region25: #{model_forward.17} parent=0 // pred_fallthru
    _
  // Predicated region
  $region26: #{model_forward.17} parent=0 // pred_check
    _
  $region27: #{model_forward.17} parent=0 // pred_check_branch
    %695 = sbr.rel (0) target = $region29
  $region28: #{model_forward.17} parent=0 // pred_region
    _
  $region29: #{model_forward.17} parent=0 // pred_fallthru
    _

// kernel: model_forward.18
$region0: #{model_forward.18}
  #allocation0 [shape = 'u32[]', space=smem, size = 0x4, offset = 0x4, fixed_abs, tag = 'smem constant byte address 0x4 - core index']
  #allocation1 [shape = 'u32[144,128]{1,0:T(1,128)}', space=vmem, size = 0x12000, scoped, tag = 'internal scratch']
  %s0 = inlined_call_operand.vmem [shape: bf16[9,128,128], index: 0, kind: input, shape index: {}]
  %s1 = inlined_call_operand.vmem [shape: f32[9,1,128], index: 1, kind: input, shape index: {}]
  %s2 = inlined_call_operand.vmem [shape: f32[1,128], index: 2, kind: input, shape index: {}]
  %s3 = inlined_call_operand.vmem [shape: bf16[128,128], index: 3, kind: input, shape index: {}]
  %s4 = inlined_call_operand.vmem [shape: f32[1,128], index: 4, kind: input, shape index: {}]
  %s5 = inlined_call_operand.vmem [shape: bf16[128,128], index: 5, kind: output, shape index: {}]
  %s6 = sld [smem:[#allocation0]]
  $region30: #{model_forward.18} parent=0
    _
  %s8 = ssub.s32 1, %s6
  %s9 = scalar_select 0, %s8, %s6
  // Predicated region
  $region2: #{model_forward.18} parent=0 // pred_check
    _
  $region3: #{model_forward.18} parent=0 // pred_check_branch
    %11 = sbr.rel (0) target = $region5
  $region4: #{model_forward.18} parent=0 // pred_region
    _
  $region5: #{model_forward.18} parent=0 // pred_fallthru
    _
  // Predicated region
  $region6: #{model_forward.18} parent=0 // pred_check
    _
  $region7: #{model_forward.18} parent=0 // pred_check_branch
    %13 = sbr.rel (0) target = $region9
  $region8: #{model_forward.18} parent=0 // pred_region
    _
  $region9: #{model_forward.18} parent=0 // pred_fallthru
    _
  // Predicated region
  $region10: #{model_forward.18} parent=0 // pred_check
    _
  $region11: #{model_forward.18} parent=0 // pred_check_branch
    %15 = sbr.rel (0) target = $region13
  $region12: #{model_forward.18} parent=0 // pred_region
    _
  $region13: #{model_forward.18} parent=0 // pred_fallthru
    _
  // Predicated region
  $region14: #{model_forward.18} parent=0 // pred_check
    _
  $region15: #{model_forward.18} parent=0 // pred_check_branch
    %17 = sbr.rel (0) target = $region17
  $region16: #{model_forward.18} parent=0 // pred_region
    _
  $region17: #{model_forward.18} parent=0 // pred_fallthru
    _
  // Predicated region
  $region18: #{model_forward.18} parent=0 // pred_check
    _
  $region19: #{model_forward.18} parent=0 // pred_check_branch
    %19 = sbr.rel (0) target = $region21
  $region20: #{model_forward.18} parent=0 // pred_region
    _
  $region21: #{model_forward.18} parent=0 // pred_fallthru
    _
  %v21 = vld [vmem:[%s0] sm:$0xf]
  %v22 = vld [vmem:[%s0 + $0x4] sm:$0xf]
  %v23 = vld [vmem:[%s0 + $0x8] sm:$0xf]
  %v24 = vld [vmem:[%s0 + $0xc] sm:$0xf]
  %v25 = vld [vmem:[%s0 + $0x10] sm:$0xf]
  %v26 = vld [vmem:[%s0 + $0x14] sm:$0xf]
  %v27 = vld [vmem:[%s0 + $0x18] sm:$0xf]
  %v28 = vld [vmem:[%s0 + $0x1c] sm:$0xf]
  %v29 = vld [vmem:[%s0 + $0x20] sm:$0xf]
  %v30 = vld [vmem:[%s0 + $0x24] sm:$0xf]
  %v31 = vld [vmem:[%s0 + $0x28] sm:$0xf]
  %v32 = vld [vmem:[%s0 + $0x2c] sm:$0xf]
  %v33 = vld [vmem:[%s0 + $0x30] sm:$0xf]
  %v34 = vld [vmem:[%s0 + $0x34] sm:$0xf]
  %v35 = vld [vmem:[%s0 + $0x38] sm:$0xf]
  %v36 = vld [vmem:[%s0 + $0x3c] sm:$0xf]
  %v37 = vunpack.c.l.bf16 %v21
  %v38 = vunpack.c.l.bf16 %v22
  %v39 = vunpack.c.l.bf16 %v23
  %v40 = vunpack.c.l.bf16 %v24
  %v41 = vunpack.c.l.bf16 %v25
  %v42 = vunpack.c.l.bf16 %v26
  %v43 = vunpack.c.l.bf16 %v27
  %v44 = vunpack.c.l.bf16 %v28
  %v45 = vunpack.c.l.bf16 %v29
  %v46 = vunpack.c.l.bf16 %v30
  %v47 = vunpack.c.l.bf16 %v31
  %v48 = vunpack.c.l.bf16 %v32
  %v49 = vunpack.c.l.bf16 %v33
  %v50 = vunpack.c.l.bf16 %v34
  %v51 = vunpack.c.l.bf16 %v35
  %v52 = vunpack.c.l.bf16 %v36
  %v53 = vld [vmem:[%s1] sm:$0x1]
  %v55 = vlaneseq
  %v56 = vshrl.u32 %v55, 7
  %v57 = vsub.s32 0, %v56
  %v58 = vrot.slane %v53, %v57
  %v60 = vmul.f32 %v37, %v58
  %v61 = vmul.f32 %v38, %v58
  %v62 = vmul.f32 %v39, %v58
  %v63 = vmul.f32 %v40, %v58
  %v64 = vmul.f32 %v41, %v58
  %v65 = vmul.f32 %v42, %v58
  %v66 = vmul.f32 %v43, %v58
  %v67 = vmul.f32 %v44, %v58
  %v68 = vmul.f32 %v45, %v58
  %v69 = vmul.f32 %v46, %v58
  %v70 = vmul.f32 %v47, %v58
  %v71 = vmul.f32 %v48, %v58
  %v72 = vmul.f32 %v49, %v58
  %v73 = vmul.f32 %v50, %v58
  %v74 = vmul.f32 %v51, %v58
  %v75 = vmul.f32 %v52, %v58
  %v76 = vadd.f32 %v60, 0.0
  %v77 = vadd.f32 %v61, 0.0
  %v78 = vadd.f32 %v62, 0.0
  %v79 = vadd.f32 %v63, 0.0
  %v80 = vadd.f32 %v64, 0.0
  %v81 = vadd.f32 %v65, 0.0
  %v82 = vadd.f32 %v66, 0.0
  %v83 = vadd.f32 %v67, 0.0
  %v84 = vadd.f32 %v68, 0.0
  %v85 = vadd.f32 %v69, 0.0
  %v86 = vadd.f32 %v70, 0.0
  %v87 = vadd.f32 %v71, 0.0
  %v88 = vadd.f32 %v72, 0.0
  %v89 = vadd.f32 %v73, 0.0
  %v90 = vadd.f32 %v74, 0.0
  %v91 = vadd.f32 %v75, 0.0
  %s92 = scalar_lea.vmem %s0, 64
  %v93 = vld [vmem:[%s92] sm:$0xf]
  %v94 = vld [vmem:[%s92 + $0x4] sm:$0xf]
  %v95 = vld [vmem:[%s92 + $0x8] sm:$0xf]
  %v96 = vld [vmem:[%s92 + $0xc] sm:$0xf]
  %v97 = vld [vmem:[%s92 + $0x10] sm:$0xf]
  %v98 = vld [vmem:[%s92 + $0x14] sm:$0xf]
  %v99 = vld [vmem:[%s92 + $0x18] sm:$0xf]
  %v100 = vld [vmem:[%s92 + $0x1c] sm:$0xf]
  %v101 = vld [vmem:[%s92 + $0x20] sm:$0xf]
  %v102 = vld [vmem:[%s92 + $0x24] sm:$0xf]
  %v103 = vld [vmem:[%s92 + $0x28] sm:$0xf]
  %v104 = vld [vmem:[%s92 + $0x2c] sm:$0xf]
  %v105 = vld [vmem:[%s92 + $0x30] sm:$0xf]
  %v106 = vld [vmem:[%s92 + $0x34] sm:$0xf]
  %v107 = vld [vmem:[%s92 + $0x38] sm:$0xf]
  %v108 = vld [vmem:[%s92 + $0x3c] sm:$0xf]
  %v109 = vunpack.c.l.bf16 %v93
  %v110 = vunpack.c.l.bf16 %v94
  %v111 = vunpack.c.l.bf16 %v95
  %v112 = vunpack.c.l.bf16 %v96
  %v113 = vunpack.c.l.bf16 %v97
  %v114 = vunpack.c.l.bf16 %v98
  %v115 = vunpack.c.l.bf16 %v99
  %v116 = vunpack.c.l.bf16 %v100
  %v117 = vunpack.c.l.bf16 %v101
  %v118 = vunpack.c.l.bf16 %v102
  %v119 = vunpack.c.l.bf16 %v103
  %v120 = vunpack.c.l.bf16 %v104
  %v121 = vunpack.c.l.bf16 %v105
  %v122 = vunpack.c.l.bf16 %v106
  %v123 = vunpack.c.l.bf16 %v107
  %v124 = vunpack.c.l.bf16 %v108
  %s125 = scalar_lea.vmem %s1, 1
  %v126 = vld [vmem:[%s125] sm:$0x1]
  %v128 = vlaneseq
  %v129 = vshrl.u32 %v128, 7
  %v130 = vsub.s32 0, %v129
  %v131 = vrot.slane %v126, %v130
  %v133 = vmul.f32 %v109, %v131
  %v134 = vmul.f32 %v110, %v131
  %v135 = vmul.f32 %v111, %v131
  %v136 = vmul.f32 %v112, %v131
  %v137 = vmul.f32 %v113, %v131
  %v138 = vmul.f32 %v114, %v131
  %v139 = vmul.f32 %v115, %v131
  %v140 = vmul.f32 %v116, %v131
  %v141 = vmul.f32 %v117, %v131
  %v142 = vmul.f32 %v118, %v131
  %v143 = vmul.f32 %v119, %v131
  %v144 = vmul.f32 %v120, %v131
  %v145 = vmul.f32 %v121, %v131
  %v146 = vmul.f32 %v122, %v131
  %v147 = vmul.f32 %v123, %v131
  %v148 = vmul.f32 %v124, %v131
  %v149 = vadd.f32 %v76, %v133
  %v150 = vadd.f32 %v77, %v134
  %v151 = vadd.f32 %v78, %v135
  %v152 = vadd.f32 %v79, %v136
  %v153 = vadd.f32 %v80, %v137
  %v154 = vadd.f32 %v81, %v138
  %v155 = vadd.f32 %v82, %v139
  %v156 = vadd.f32 %v83, %v140
  %v157 = vadd.f32 %v84, %v141
  %v158 = vadd.f32 %v85, %v142
  %v159 = vadd.f32 %v86, %v143
  %v160 = vadd.f32 %v87, %v144
  %v161 = vadd.f32 %v88, %v145
  %v162 = vadd.f32 %v89, %v146
  %v163 = vadd.f32 %v90, %v147
  %v164 = vadd.f32 %v91, %v148
  %s165 = scalar_lea.vmem %s0, 128
  %v166 = vld [vmem:[%s165] sm:$0xf]
  %v167 = vld [vmem:[%s165 + $0x4] sm:$0xf]
  %v168 = vld [vmem:[%s165 + $0x8] sm:$0xf]
  %v169 = vld [vmem:[%s165 + $0xc] sm:$0xf]
  %v170 = vld [vmem:[%s165 + $0x10] sm:$0xf]
  %v171 = vld [vmem:[%s165 + $0x14] sm:$0xf]
  %v172 = vld [vmem:[%s165 + $0x18] sm:$0xf]
  %v173 = vld [vmem:[%s165 + $0x1c] sm:$0xf]
  %v174 = vld [vmem:[%s165 + $0x20] sm:$0xf]
  %v175 = vld [vmem:[%s165 + $0x24] sm:$0xf]
  %v176 = vld [vmem:[%s165 + $0x28] sm:$0xf]
  %v177 = vld [vmem:[%s165 + $0x2c] sm:$0xf]
  %v178 = vld [vmem:[%s165 + $0x30] sm:$0xf]
  %v179 = vld [vmem:[%s165 + $0x34] sm:$0xf]
  %v180 = vld [vmem:[%s165 + $0x38] sm:$0xf]
  %v181 = vld [vmem:[%s165 + $0x3c] sm:$0xf]
  %v182 = vunpack.c.l.bf16 %v166
  %v183 = vunpack.c.l.bf16 %v167
  %v184 = vunpack.c.l.bf16 %v168
  %v185 = vunpack.c.l.bf16 %v169
  %v186 = vunpack.c.l.bf16 %v170
  %v187 = vunpack.c.l.bf16 %v171
  %v188 = vunpack.c.l.bf16 %v172
  %v189 = vunpack.c.l.bf16 %v173
  %v190 = vunpack.c.l.bf16 %v174
  %v191 = vunpack.c.l.bf16 %v175
  %v192 = vunpack.c.l.bf16 %v176
  %v193 = vunpack.c.l.bf16 %v177
  %v194 = vunpack.c.l.bf16 %v178
  %v195 = vunpack.c.l.bf16 %v179
  %v196 = vunpack.c.l.bf16 %v180
  %v197 = vunpack.c.l.bf16 %v181
  %s198 = scalar_lea.vmem %s1, 2
  %v199 = vld [vmem:[%s198] sm:$0x1]
  %v201 = vlaneseq
  %v202 = vshrl.u32 %v201, 7
  %v203 = vsub.s32 0, %v202
  %v204 = vrot.slane %v199, %v203
  %v206 = vmul.f32 %v182, %v204
  %v207 = vmul.f32 %v183, %v204
  %v208 = vmul.f32 %v184, %v204
  %v209 = vmul.f32 %v185, %v204
  %v210 = vmul.f32 %v186, %v204
  %v211 = vmul.f32 %v187, %v204
  %v212 = vmul.f32 %v188, %v204
  %v213 = vmul.f32 %v189, %v204
  %v214 = vmul.f32 %v190, %v204
  %v215 = vmul.f32 %v191, %v204
  %v216 = vmul.f32 %v192, %v204
  %v217 = vmul.f32 %v193, %v204
  %v218 = vmul.f32 %v194, %v204
  %v219 = vmul.f32 %v195, %v204
  %v220 = vmul.f32 %v196, %v204
  %v221 = vmul.f32 %v197, %v204
  %v222 = vadd.f32 %v149, %v206
  %v223 = vadd.f32 %v150, %v207
  %v224 = vadd.f32 %v151, %v208
  %v225 = vadd.f32 %v152, %v209
  %v226 = vadd.f32 %v153, %v210
  %v227 = vadd.f32 %v154, %v211
  %v228 = vadd.f32 %v155, %v212
  %v229 = vadd.f32 %v156, %v213
  %v230 = vadd.f32 %v157, %v214
  %v231 = vadd.f32 %v158, %v215
  %v232 = vadd.f32 %v159, %v216
  %v233 = vadd.f32 %v160, %v217
  %v234 = vadd.f32 %v161, %v218
  %v235 = vadd.f32 %v162, %v219
  %v236 = vadd.f32 %v163, %v220
  %v237 = vadd.f32 %v164, %v221
  %s238 = scalar_lea.vmem %s0, 192
  %v239 = vld [vmem:[%s238] sm:$0xf]
  %v240 = vld [vmem:[%s238 + $0x4] sm:$0xf]
  %v241 = vld [vmem:[%s238 + $0x8] sm:$0xf]
  %v242 = vld [vmem:[%s238 + $0xc] sm:$0xf]
  %v243 = vld [vmem:[%s238 + $0x10] sm:$0xf]
  %v244 = vld [vmem:[%s238 + $0x14] sm:$0xf]
  %v245 = vld [vmem:[%s238 + $0x18] sm:$0xf]
  %v246 = vld [vmem:[%s238 + $0x1c] sm:$0xf]
  %v247 = vld [vmem:[%s238 + $0x20] sm:$0xf]
  %v248 = vld [vmem:[%s238 + $0x24] sm:$0xf]
  %v249 = vld [vmem:[%s238 + $0x28] sm:$0xf]
  %v250 = vld [vmem:[%s238 + $0x2c] sm:$0xf]
  %v251 = vld [vmem:[%s238 + $0x30] sm:$0xf]
  %v252 = vld [vmem:[%s238 + $0x34] sm:$0xf]
  %v253 = vld [vmem:[%s238 + $0x38] sm:$0xf]
  %v254 = vld [vmem:[%s238 + $0x3c] sm:$0xf]
  %v255 = vunpack.c.l.bf16 %v239
  %v256 = vunpack.c.l.bf16 %v240
  %v257 = vunpack.c.l.bf16 %v241
  %v258 = vunpack.c.l.bf16 %v242
  %v259 = vunpack.c.l.bf16 %v243
  %v260 = vunpack.c.l.bf16 %v244
  %v261 = vunpack.c.l.bf16 %v245
  %v262 = vunpack.c.l.bf16 %v246
  %v263 = vunpack.c.l.bf16 %v247
  %v264 = vunpack.c.l.bf16 %v248
  %v265 = vunpack.c.l.bf16 %v249
  %v266 = vunpack.c.l.bf16 %v250
  %v267 = vunpack.c.l.bf16 %v251
  %v268 = vunpack.c.l.bf16 %v252
  %v269 = vunpack.c.l.bf16 %v253
  %v270 = vunpack.c.l.bf16 %v254
  %s271 = scalar_lea.vmem %s1, 3
  %v272 = vld [vmem:[%s271] sm:$0x1]
  %v274 = vlaneseq
  %v275 = vshrl.u32 %v274, 7
  %v276 = vsub.s32 0, %v275
  %v277 = vrot.slane %v272, %v276
  %v279 = vmul.f32 %v255, %v277
  %v280 = vmul.f32 %v256, %v277
  %v281 = vmul.f32 %v257, %v277
  %v282 = vmul.f32 %v258, %v277
  %v283 = vmul.f32 %v259, %v277
  %v284 = vmul.f32 %v260, %v277
  %v285 = vmul.f32 %v261, %v277
  %v286 = vmul.f32 %v262, %v277
  %v287 = vmul.f32 %v263, %v277
  %v288 = vmul.f32 %v264, %v277
  %v289 = vmul.f32 %v265, %v277
  %v290 = vmul.f32 %v266, %v277
  %v291 = vmul.f32 %v267, %v277
  %v292 = vmul.f32 %v268, %v277
  %v293 = vmul.f32 %v269, %v277
  %v294 = vmul.f32 %v270, %v277
  %v295 = vadd.f32 %v222, %v279
  %v296 = vadd.f32 %v223, %v280
  %v297 = vadd.f32 %v224, %v281
  %v298 = vadd.f32 %v225, %v282
  %v299 = vadd.f32 %v226, %v283
  %v300 = vadd.f32 %v227, %v284
  %v301 = vadd.f32 %v228, %v285
  %v302 = vadd.f32 %v229, %v286
  %v303 = vadd.f32 %v230, %v287
  %v304 = vadd.f32 %v231, %v288
  %v305 = vadd.f32 %v232, %v289
  %v306 = vadd.f32 %v233, %v290
  %v307 = vadd.f32 %v234, %v291
  %v308 = vadd.f32 %v235, %v292
  %v309 = vadd.f32 %v236, %v293
  %v310 = vadd.f32 %v237, %v294
  %s311 = scalar_lea.vmem %s0, 256
  %v312 = vld [vmem:[%s311] sm:$0xf]
  %v313 = vld [vmem:[%s311 + $0x4] sm:$0xf]
  %v314 = vld [vmem:[%s311 + $0x8] sm:$0xf]
  %v315 = vld [vmem:[%s311 + $0xc] sm:$0xf]
  %v316 = vld [vmem:[%s311 + $0x10] sm:$0xf]
  %v317 = vld [vmem:[%s311 + $0x14] sm:$0xf]
  %v318 = vld [vmem:[%s311 + $0x18] sm:$0xf]
  %v319 = vld [vmem:[%s311 + $0x1c] sm:$0xf]
  %v320 = vld [vmem:[%s311 + $0x20] sm:$0xf]
  %v321 = vld [vmem:[%s311 + $0x24] sm:$0xf]
  %v322 = vld [vmem:[%s311 + $0x28] sm:$0xf]
  %v323 = vld [vmem:[%s311 + $0x2c] sm:$0xf]
  %v324 = vld [vmem:[%s311 + $0x30] sm:$0xf]
  %v325 = vld [vmem:[%s311 + $0x34] sm:$0xf]
  %v326 = vld [vmem:[%s311 + $0x38] sm:$0xf]
  %v327 = vld [vmem:[%s311 + $0x3c] sm:$0xf]
  %v328 = vunpack.c.l.bf16 %v312
  %v329 = vunpack.c.l.bf16 %v313
  %v330 = vunpack.c.l.bf16 %v314
  %v331 = vunpack.c.l.bf16 %v315
  %v332 = vunpack.c.l.bf16 %v316
  %v333 = vunpack.c.l.bf16 %v317
  %v334 = vunpack.c.l.bf16 %v318
  %v335 = vunpack.c.l.bf16 %v319
  %v336 = vunpack.c.l.bf16 %v320
  %v337 = vunpack.c.l.bf16 %v321
  %v338 = vunpack.c.l.bf16 %v322
  %v339 = vunpack.c.l.bf16 %v323
  %v340 = vunpack.c.l.bf16 %v324
  %v341 = vunpack.c.l.bf16 %v325
  %v342 = vunpack.c.l.bf16 %v326
  %v343 = vunpack.c.l.bf16 %v327
  %s344 = scalar_lea.vmem %s1, 4
  %v345 = vld [vmem:[%s344] sm:$0x1]
  %v347 = vlaneseq
  %v348 = vshrl.u32 %v347, 7
  %v349 = vsub.s32 0, %v348
  %v350 = vrot.slane %v345, %v349
  %v352 = vmul.f32 %v328, %v350
  %v353 = vmul.f32 %v329, %v350
  %v354 = vmul.f32 %v330, %v350
  %v355 = vmul.f32 %v331, %v350
  %v356 = vmul.f32 %v332, %v350
  %v357 = vmul.f32 %v333, %v350
  %v358 = vmul.f32 %v334, %v350
  %v359 = vmul.f32 %v335, %v350
  %v360 = vmul.f32 %v336, %v350
  %v361 = vmul.f32 %v337, %v350
  %v362 = vmul.f32 %v338, %v350
  %v363 = vmul.f32 %v339, %v350
  %v364 = vmul.f32 %v340, %v350
  %v365 = vmul.f32 %v341, %v350
  %v366 = vmul.f32 %v342, %v350
  %v367 = vmul.f32 %v343, %v350
  %v368 = vadd.f32 %v295, %v352
  %v369 = vadd.f32 %v296, %v353
  %v370 = vadd.f32 %v297, %v354
  %v371 = vadd.f32 %v298, %v355
  %v372 = vadd.f32 %v299, %v356
  %v373 = vadd.f32 %v300, %v357
  %v374 = vadd.f32 %v301, %v358
  %v375 = vadd.f32 %v302, %v359
  %v376 = vadd.f32 %v303, %v360
  %v377 = vadd.f32 %v304, %v361
  %v378 = vadd.f32 %v305, %v362
  %v379 = vadd.f32 %v306, %v363
  %v380 = vadd.f32 %v307, %v364
  %v381 = vadd.f32 %v308, %v365
  %v382 = vadd.f32 %v309, %v366
  %v383 = vadd.f32 %v310, %v367
  %s384 = scalar_lea.vmem %s0, 320
  %v385 = vld [vmem:[%s384] sm:$0xf]
  %v386 = vld [vmem:[%s384 + $0x4] sm:$0xf]
  %v387 = vld [vmem:[%s384 + $0x8] sm:$0xf]
  %v388 = vld [vmem:[%s384 + $0xc] sm:$0xf]
  %v389 = vld [vmem:[%s384 + $0x10] sm:$0xf]
  %v390 = vld [vmem:[%s384 + $0x14] sm:$0xf]
  %v391 = vld [vmem:[%s384 + $0x18] sm:$0xf]
  %v392 = vld [vmem:[%s384 + $0x1c] sm:$0xf]
  %v393 = vld [vmem:[%s384 + $0x20] sm:$0xf]
  %v394 = vld [vmem:[%s384 + $0x24] sm:$0xf]
  %v395 = vld [vmem:[%s384 + $0x28] sm:$0xf]
  %v396 = vld [vmem:[%s384 + $0x2c] sm:$0xf]
  %v397 = vld [vmem:[%s384 + $0x30] sm:$0xf]
  %v398 = vld [vmem:[%s384 + $0x34] sm:$0xf]
  %v399 = vld [vmem:[%s384 + $0x38] sm:$0xf]
  %v400 = vld [vmem:[%s384 + $0x3c] sm:$0xf]
  %v401 = vunpack.c.l.bf16 %v385
  %v402 = vunpack.c.l.bf16 %v386
  %v403 = vunpack.c.l.bf16 %v387
  %v404 = vunpack.c.l.bf16 %v388
  %v405 = vunpack.c.l.bf16 %v389
  %v406 = vunpack.c.l.bf16 %v390
  %v407 = vunpack.c.l.bf16 %v391
  %v408 = vunpack.c.l.bf16 %v392
  %v409 = vunpack.c.l.bf16 %v393
  %v410 = vunpack.c.l.bf16 %v394
  %v411 = vunpack.c.l.bf16 %v395
  %v412 = vunpack.c.l.bf16 %v396
  %v413 = vunpack.c.l.bf16 %v397
  %v414 = vunpack.c.l.bf16 %v398
  %v415 = vunpack.c.l.bf16 %v399
  %v416 = vunpack.c.l.bf16 %v400
  %s417 = scalar_lea.vmem %s1, 5
  %v418 = vld [vmem:[%s417] sm:$0x1]
  %v420 = vlaneseq
  %v421 = vshrl.u32 %v420, 7
  %v422 = vsub.s32 0, %v421
  %v423 = vrot.slane %v418, %v422
  %v425 = vmul.f32 %v401, %v423
  %v426 = vmul.f32 %v402, %v423
  %v427 = vmul.f32 %v403, %v423
  %v428 = vmul.f32 %v404, %v423
  %v429 = vmul.f32 %v405, %v423
  %v430 = vmul.f32 %v406, %v423
  %v431 = vmul.f32 %v407, %v423
  %v432 = vmul.f32 %v408, %v423
  %v433 = vmul.f32 %v409, %v423
  %v434 = vmul.f32 %v410, %v423
  %v435 = vmul.f32 %v411, %v423
  %v436 = vmul.f32 %v412, %v423
  %v437 = vmul.f32 %v413, %v423
  %v438 = vmul.f32 %v414, %v423
  %v439 = vmul.f32 %v415, %v423
  %v440 = vmul.f32 %v416, %v423
  %v441 = vadd.f32 %v368, %v425
  %v442 = vadd.f32 %v369, %v426
  %v443 = vadd.f32 %v370, %v427
  %v444 = vadd.f32 %v371, %v428
  %v445 = vadd.f32 %v372, %v429
  %v446 = vadd.f32 %v373, %v430
  %v447 = vadd.f32 %v374, %v431
  %v448 = vadd.f32 %v375, %v432
  %v449 = vadd.f32 %v376, %v433
  %v450 = vadd.f32 %v377, %v434
  %v451 = vadd.f32 %v378, %v435
  %v452 = vadd.f32 %v379, %v436
  %v453 = vadd.f32 %v380, %v437
  %v454 = vadd.f32 %v381, %v438
  %v455 = vadd.f32 %v382, %v439
  %v456 = vadd.f32 %v383, %v440
  %s457 = scalar_lea.vmem %s0, 384
  %v458 = vld [vmem:[%s457] sm:$0xf]
  %v459 = vld [vmem:[%s457 + $0x4] sm:$0xf]
  %v460 = vld [vmem:[%s457 + $0x8] sm:$0xf]
  %v461 = vld [vmem:[%s457 + $0xc] sm:$0xf]
  %v462 = vld [vmem:[%s457 + $0x10] sm:$0xf]
  %v463 = vld [vmem:[%s457 + $0x14] sm:$0xf]
  %v464 = vld [vmem:[%s457 + $0x18] sm:$0xf]
  %v465 = vld [vmem:[%s457 + $0x1c] sm:$0xf]
  %v466 = vld [vmem:[%s457 + $0x20] sm:$0xf]
  %v467 = vld [vmem:[%s457 + $0x24] sm:$0xf]
  %v468 = vld [vmem:[%s457 + $0x28] sm:$0xf]
  %v469 = vld [vmem:[%s457 + $0x2c] sm:$0xf]
  %v470 = vld [vmem:[%s457 + $0x30] sm:$0xf]
  %v471 = vld [vmem:[%s457 + $0x34] sm:$0xf]
  %v472 = vld [vmem:[%s457 + $0x38] sm:$0xf]
  %v473 = vld [vmem:[%s457 + $0x3c] sm:$0xf]
  %v474 = vunpack.c.l.bf16 %v458
  %v475 = vunpack.c.l.bf16 %v459
  %v476 = vunpack.c.l.bf16 %v460
  %v477 = vunpack.c.l.bf16 %v461
  %v478 = vunpack.c.l.bf16 %v462
  %v479 = vunpack.c.l.bf16 %v463
  %v480 = vunpack.c.l.bf16 %v464
  %v481 = vunpack.c.l.bf16 %v465
  %v482 = vunpack.c.l.bf16 %v466
  %v483 = vunpack.c.l.bf16 %v467
  %v484 = vunpack.c.l.bf16 %v468
  %v485 = vunpack.c.l.bf16 %v469
  %v486 = vunpack.c.l.bf16 %v470
  %v487 = vunpack.c.l.bf16 %v471
  %v488 = vunpack.c.l.bf16 %v472
  %v489 = vunpack.c.l.bf16 %v473
  %s490 = scalar_lea.vmem %s1, 6
  %v491 = vld [vmem:[%s490] sm:$0x1]
  %v493 = vlaneseq
  %v494 = vshrl.u32 %v493, 7
  %v495 = vsub.s32 0, %v494
  %v496 = vrot.slane %v491, %v495
  %v498 = vmul.f32 %v474, %v496
  %v499 = vmul.f32 %v475, %v496
  %v500 = vmul.f32 %v476, %v496
  %v501 = vmul.f32 %v477, %v496
  %v502 = vmul.f32 %v478, %v496
  %v503 = vmul.f32 %v479, %v496
  %v504 = vmul.f32 %v480, %v496
  %v505 = vmul.f32 %v481, %v496
  %v506 = vmul.f32 %v482, %v496
  %v507 = vmul.f32 %v483, %v496
  %v508 = vmul.f32 %v484, %v496
  %v509 = vmul.f32 %v485, %v496
  %v510 = vmul.f32 %v486, %v496
  %v511 = vmul.f32 %v487, %v496
  %v512 = vmul.f32 %v488, %v496
  %v513 = vmul.f32 %v489, %v496
  %v514 = vadd.f32 %v441, %v498
  %v515 = vadd.f32 %v442, %v499
  %v516 = vadd.f32 %v443, %v500
  %v517 = vadd.f32 %v444, %v501
  %v518 = vadd.f32 %v445, %v502
  %v519 = vadd.f32 %v446, %v503
  %v520 = vadd.f32 %v447, %v504
  %v521 = vadd.f32 %v448, %v505
  %v522 = vadd.f32 %v449, %v506
  %v523 = vadd.f32 %v450, %v507
  %v524 = vadd.f32 %v451, %v508
  %v525 = vadd.f32 %v452, %v509
  %v526 = vadd.f32 %v453, %v510
  %v527 = vadd.f32 %v454, %v511
  %v528 = vadd.f32 %v455, %v512
  %v529 = vadd.f32 %v456, %v513
  %s530 = scalar_lea.vmem %s0, 448
  %v531 = vld [vmem:[%s530] sm:$0xf]
  %v532 = vld [vmem:[%s530 + $0x4] sm:$0xf]
  %v533 = vld [vmem:[%s530 + $0x8] sm:$0xf]
  %v534 = vld [vmem:[%s530 + $0xc] sm:$0xf]
  %v535 = vld [vmem:[%s530 + $0x10] sm:$0xf]
  %v536 = vld [vmem:[%s530 + $0x14] sm:$0xf]
  %v537 = vld [vmem:[%s530 + $0x18] sm:$0xf]
  %v538 = vld [vmem:[%s530 + $0x1c] sm:$0xf]
  %v539 = vld [vmem:[%s530 + $0x20] sm:$0xf]
  %v540 = vld [vmem:[%s530 + $0x24] sm:$0xf]
  %v541 = vld [vmem:[%s530 + $0x28] sm:$0xf]
  %v542 = vld [vmem:[%s530 + $0x2c] sm:$0xf]
  %v543 = vld [vmem:[%s530 + $0x30] sm:$0xf]
  %v544 = vld [vmem:[%s530 + $0x34] sm:$0xf]
  %v545 = vld [vmem:[%s530 + $0x38] sm:$0xf]
  %v546 = vld [vmem:[%s530 + $0x3c] sm:$0xf]
  %v547 = vunpack.c.l.bf16 %v531
  %v548 = vunpack.c.l.bf16 %v532
  %v549 = vunpack.c.l.bf16 %v533
  %v550 = vunpack.c.l.bf16 %v534
  %v551 = vunpack.c.l.bf16 %v535
  %v552 = vunpack.c.l.bf16 %v536
  %v553 = vunpack.c.l.bf16 %v537
  %v554 = vunpack.c.l.bf16 %v538
  %v555 = vunpack.c.l.bf16 %v539
  %v556 = vunpack.c.l.bf16 %v540
  %v557 = vunpack.c.l.bf16 %v541
  %v558 = vunpack.c.l.bf16 %v542
  %v559 = vunpack.c.l.bf16 %v543
  %v560 = vunpack.c.l.bf16 %v544
  %v561 = vunpack.c.l.bf16 %v545
  %v562 = vunpack.c.l.bf16 %v546
  %s563 = scalar_lea.vmem %s1, 7
  %v564 = vld [vmem:[%s563] sm:$0x1]
  %v566 = vlaneseq
  %v567 = vshrl.u32 %v566, 7
  %v568 = vsub.s32 0, %v567
  %v569 = vrot.slane %v564, %v568
  %v571 = vmul.f32 %v547, %v569
  %v572 = vmul.f32 %v548, %v569
  %v573 = vmul.f32 %v549, %v569
  %v574 = vmul.f32 %v550, %v569
  %v575 = vmul.f32 %v551, %v569
  %v576 = vmul.f32 %v552, %v569
  %v577 = vmul.f32 %v553, %v569
  %v578 = vmul.f32 %v554, %v569
  %v579 = vmul.f32 %v555, %v569
  %v580 = vmul.f32 %v556, %v569
  %v581 = vmul.f32 %v557, %v569
  %v582 = vmul.f32 %v558, %v569
  %v583 = vmul.f32 %v559, %v569
  %v584 = vmul.f32 %v560, %v569
  %v585 = vmul.f32 %v561, %v569
  %v586 = vmul.f32 %v562, %v569
  %v587 = vadd.f32 %v514, %v571
  %v588 = vadd.f32 %v515, %v572
  %v589 = vadd.f32 %v516, %v573
  %v590 = vadd.f32 %v517, %v574
  %v591 = vadd.f32 %v518, %v575
  %v592 = vadd.f32 %v519, %v576
  %v593 = vadd.f32 %v520, %v577
  %v594 = vadd.f32 %v521, %v578
  %v595 = vadd.f32 %v522, %v579
  %v596 = vadd.f32 %v523, %v580
  %v597 = vadd.f32 %v524, %v581
  %v598 = vadd.f32 %v525, %v582
  %v599 = vadd.f32 %v526, %v583
  %v600 = vadd.f32 %v527, %v584
  %v601 = vadd.f32 %v528, %v585
  %v602 = vadd.f32 %v529, %v586
  %s603 = scalar_lea.vmem %s0, 512
  %v604 = vld [vmem:[%s603] sm:$0xf]
  %v605 = vld [vmem:[%s603 + $0x4] sm:$0xf]
  %v606 = vld [vmem:[%s603 + $0x8] sm:$0xf]
  %v607 = vld [vmem:[%s603 + $0xc] sm:$0xf]
  %v608 = vld [vmem:[%s603 + $0x10] sm:$0xf]
  %v609 = vld [vmem:[%s603 + $0x14] sm:$0xf]
  %v610 = vld [vmem:[%s603 + $0x18] sm:$0xf]
  %v611 = vld [vmem:[%s603 + $0x1c] sm:$0xf]
  %v612 = vld [vmem:[%s603 + $0x20] sm:$0xf]
  %v613 = vld [vmem:[%s603 + $0x24] sm:$0xf]
  %v614 = vld [vmem:[%s603 + $0x28] sm:$0xf]
  %v615 = vld [vmem:[%s603 + $0x2c] sm:$0xf]
  %v616 = vld [vmem:[%s603 + $0x30] sm:$0xf]
  %v617 = vld [vmem:[%s603 + $0x34] sm:$0xf]
  %v618 = vld [vmem:[%s603 + $0x38] sm:$0xf]
  %v619 = vld [vmem:[%s603 + $0x3c] sm:$0xf]
  %v620 = vunpack.c.l.bf16 %v604
  %v621 = vunpack.c.l.bf16 %v605
  %v622 = vunpack.c.l.bf16 %v606
  %v623 = vunpack.c.l.bf16 %v607
  %v624 = vunpack.c.l.bf16 %v608
  %v625 = vunpack.c.l.bf16 %v609
  %v626 = vunpack.c.l.bf16 %v610
  %v627 = vunpack.c.l.bf16 %v611
  %v628 = vunpack.c.l.bf16 %v612
  %v629 = vunpack.c.l.bf16 %v613
  %v630 = vunpack.c.l.bf16 %v614
  %v631 = vunpack.c.l.bf16 %v615
  %v632 = vunpack.c.l.bf16 %v616
  %v633 = vunpack.c.l.bf16 %v617
  %v634 = vunpack.c.l.bf16 %v618
  %v635 = vunpack.c.l.bf16 %v619
  %s636 = scalar_lea.vmem %s1, 8
  %v637 = vld [vmem:[%s636] sm:$0x1]
  %v639 = vlaneseq
  %v640 = vshrl.u32 %v639, 7
  %v641 = vsub.s32 0, %v640
  %v642 = vrot.slane %v637, %v641
  %v644 = vmul.f32 %v620, %v642
  %v645 = vmul.f32 %v621, %v642
  %v646 = vmul.f32 %v622, %v642
  %v647 = vmul.f32 %v623, %v642
  %v648 = vmul.f32 %v624, %v642
  %v649 = vmul.f32 %v625, %v642
  %v650 = vmul.f32 %v626, %v642
  %v651 = vmul.f32 %v627, %v642
  %v652 = vmul.f32 %v628, %v642
  %v653 = vmul.f32 %v629, %v642
  %v654 = vmul.f32 %v630, %v642
  %v655 = vmul.f32 %v631, %v642
  %v656 = vmul.f32 %v632, %v642
  %v657 = vmul.f32 %v633, %v642
  %v658 = vmul.f32 %v634, %v642
  %v659 = vmul.f32 %v635, %v642
  %v660 = vadd.f32 %v587, %v644
  %v661 = vadd.f32 %v588, %v645
  %v662 = vadd.f32 %v589, %v646
  %v663 = vadd.f32 %v590, %v647
  %v664 = vadd.f32 %v591, %v648
  %v665 = vadd.f32 %v592, %v649
  %v666 = vadd.f32 %v593, %v650
  %v667 = vadd.f32 %v594, %v651
  %v668 = vadd.f32 %v595, %v652
  %v669 = vadd.f32 %v596, %v653
  %v670 = vadd.f32 %v597, %v654
  %v671 = vadd.f32 %v598, %v655
  %v672 = vadd.f32 %v599, %v656
  %v673 = vadd.f32 %v600, %v657
  %v674 = vadd.f32 %v601, %v658
  %v675 = vadd.f32 %v602, %v659
  %v676 = vld [vmem:[%s2] sm:$0x1]
  %v678 = vlaneseq
  %v679 = vshrl.u32 %v678, 7
  %v680 = vsub.s32 0, %v679
  %v681 = vrot.slane %v676, %v680
  %v683 = vadd.f32 %v660, %v681
  %v684 = vadd.f32 %v661, %v681
  %v685 = vadd.f32 %v662, %v681
  %v686 = vadd.f32 %v663, %v681
  %v687 = vadd.f32 %v664, %v681
  %v688 = vadd.f32 %v665, %v681
  %v689 = vadd.f32 %v666, %v681
  %v690 = vadd.f32 %v667, %v681
  %v691 = vadd.f32 %v668, %v681
  %v692 = vadd.f32 %v669, %v681
  %v693 = vadd.f32 %v670, %v681
  %v694 = vadd.f32 %v671, %v681
  %v695 = vadd.f32 %v672, %v681
  %v696 = vadd.f32 %v673, %v681
  %v697 = vadd.f32 %v674, %v681
  %v698 = vadd.f32 %v675, %v681
  %v699 = vmax.f32 %v683, 0.0
  %v700 = vmax.f32 %v684, 0.0
  %v701 = vmax.f32 %v685, 0.0
  %v702 = vmax.f32 %v686, 0.0
  %v703 = vmax.f32 %v687, 0.0
  %v704 = vmax.f32 %v688, 0.0
  %v705 = vmax.f32 %v689, 0.0
  %v706 = vmax.f32 %v690, 0.0
  %v707 = vmax.f32 %v691, 0.0
  %v708 = vmax.f32 %v692, 0.0
  %v709 = vmax.f32 %v693, 0.0
  %v710 = vmax.f32 %v694, 0.0
  %v711 = vmax.f32 %v695, 0.0
  %v712 = vmax.f32 %v696, 0.0
  %v713 = vmax.f32 %v697, 0.0
  %v714 = vmax.f32 %v698, 0.0
  %v715 = vmin.f32 %v699, 6.0
  %v716 = vmin.f32 %v700, 6.0
  %v717 = vmin.f32 %v701, 6.0
  %v718 = vmin.f32 %v702, 6.0
  %v719 = vmin.f32 %v703, 6.0
  %v720 = vmin.f32 %v704, 6.0
  %v721 = vmin.f32 %v705, 6.0
  %v722 = vmin.f32 %v706, 6.0
  %v723 = vmin.f32 %v707, 6.0
  %v724 = vmin.f32 %v708, 6.0
  %v725 = vmin.f32 %v709, 6.0
  %v726 = vmin.f32 %v710, 6.0
  %v727 = vmin.f32 %v711, 6.0
  %v728 = vmin.f32 %v712, 6.0
  %v729 = vmin.f32 %v713, 6.0
  %v730 = vmin.f32 %v714, 6.0
  %v731 = vpack.c.bf16 %v716, %v715
  %v732 = vpack.c.bf16 %v718, %v717
  %v733 = vpack.c.bf16 %v720, %v719
  %v734 = vpack.c.bf16 %v722, %v721
  %v735 = vpack.c.bf16 %v724, %v723
  %v736 = vpack.c.bf16 %v726, %v725
  %v737 = vpack.c.bf16 %v728, %v727
  %v738 = vpack.c.bf16 %v730, %v729
  %v739 = vld [vmem:[%s3] sm:$0xf]
  %v740 = vld [vmem:[%s3 + $0x4] sm:$0xf]
  %v741 = vld [vmem:[%s3 + $0x8] sm:$0xf]
  %v742 = vld [vmem:[%s3 + $0xc] sm:$0xf]
  %v743 = vld [vmem:[%s3 + $0x10] sm:$0xf]
  %v744 = vld [vmem:[%s3 + $0x14] sm:$0xf]
  %v745 = vld [vmem:[%s3 + $0x18] sm:$0xf]
  %v746 = vld [vmem:[%s3 + $0x1c] sm:$0xf]
  %v747 = vld [vmem:[%s3 + $0x20] sm:$0xf]
  %v748 = vld [vmem:[%s3 + $0x24] sm:$0xf]
  %v749 = vld [vmem:[%s3 + $0x28] sm:$0xf]
  %v750 = vld [vmem:[%s3 + $0x2c] sm:$0xf]
  %v751 = vld [vmem:[%s3 + $0x30] sm:$0xf]
  %v752 = vld [vmem:[%s3 + $0x34] sm:$0xf]
  %v753 = vld [vmem:[%s3 + $0x38] sm:$0xf]
  %v754 = vld [vmem:[%s3 + $0x3c] sm:$0xf]
  %v755 = vld [vmem:[%s4] sm:$0x1]
  %v757 = vlaneseq
  %v758 = vshrl.u32 %v757, 7
  %v759 = vsub.s32 0, %v758
  %v760 = vrot.slane %v755, %v759
  %v778 = vunpack.c.l.b16 %v739
  %v779 = vunpack.c.l.b16 %v740
  %v780 = vunpack.c.l.b16 %v741
  %v781 = vunpack.c.l.b16 %v742
  %v782 = vunpack.c.l.b16 %v743
  %v783 = vunpack.c.l.b16 %v744
  %v784 = vunpack.c.l.b16 %v745
  %v785 = vunpack.c.l.b16 %v746
  %v786 = vunpack.c.l.b16 %v747
  %v787 = vunpack.c.l.b16 %v748
  %v788 = vunpack.c.l.b16 %v749
  %v789 = vunpack.c.l.b16 %v750
  %v790 = vunpack.c.l.b16 %v751
  %v791 = vunpack.c.l.b16 %v752
  %v792 = vunpack.c.l.b16 %v753
  %v793 = vunpack.c.l.b16 %v754
  %v794 = vpack.c.b16 %v779, %v778
  %v795 = vpack.c.b16 %v781, %v780
  %v796 = vpack.c.b16 %v783, %v782
  %v797 = vpack.c.b16 %v785, %v784
  %v798 = vpack.c.b16 %v787, %v786
  %v799 = vpack.c.b16 %v789, %v788
  %v800 = vpack.c.b16 %v791, %v790
  %v801 = vpack.c.b16 %v793, %v792
  %810 = vmatprep.subr.bf16.mxu0 0
  %811 = vmatpush1.bf16.msra.mxu0 %v801
  %812 = vmatprep.subr.bf16.mxu0 0
  %813 = vmatpush1.bf16.msra.mxu0 %v800
  %814 = vmatprep.subr.bf16.mxu0 0
  %815 = vmatpush1.bf16.msra.mxu0 %v799
  %816 = vmatprep.subr.bf16.mxu0 0
  %817 = vmatpush1.bf16.msra.mxu0 %v798
  %818 = vmatprep.subr.bf16.mxu0 0
  %819 = vmatpush1.bf16.msra.mxu0 %v797
  %820 = vmatprep.subr.bf16.mxu0 0
  %821 = vmatpush1.bf16.msra.mxu0 %v796
  %822 = vmatprep.subr.bf16.mxu0 0
  %823 = vmatpush1.bf16.msra.mxu0 %v795
  %824 = vmatprep.subr.bf16.mxu0 0
  %825 = vmatpush1.bf16.msra.mxu0 %v794
  %826 = vmatprep.subr.bf16.mxu0 0
  %827 = vmatpush2.bf16.msra.mxu0 0
  %828 = vmatprep.subr.bf16.mxu0 0
  %829 = vmatpush2.bf16.msra.mxu0 0
  %830 = vmatprep.subr.bf16.mxu0 0
  %831 = vmatpush2.bf16.msra.mxu0 0
  %832 = vmatprep.subr.bf16.mxu0 0
  %833 = vmatpush2.bf16.msra.mxu0 0
  %834 = vmatprep.subr.bf16.mxu0 0
  %835 = vmatpush2.bf16.msra.mxu0 0
  %836 = vmatprep.subr.bf16.mxu0 0
  %837 = vmatpush2.bf16.msra.mxu0 0
  %838 = vmatprep.subr.bf16.mxu0 0
  %839 = vmatpush2.bf16.msra.mxu0 0
  %840 = vmatprep.subr.bf16.mxu0 0
  %841 = vmatpush2.bf16.msra.mxu0 0
  %842 = vmatprep.mubr.bf16.mxu0 0
  %843 = vmatmul.mubr.bf16.gmra.mxu0 %v731
  %v844 = vpop.f32.mrf.mxu0
  %v845 = vadd.f32 %v760, %v844
  %v846 = vpop.f32.mrf.mxu0
  %v847 = vpop.f32.mrf.mxu0
  %v848 = vadd.f32 %v760, %v847
  %v849 = vpop.f32.mrf.mxu0
  %850 = vmatprep.mubr.bf16.mxu0 0
  %851 = vmatmul.mubr.bf16.gmra.mxu0 %v732
  %v852 = vpop.f32.mrf.mxu0
  %v853 = vadd.f32 %v760, %v852
  %v854 = vpop.f32.mrf.mxu0
  %v855 = vpop.f32.mrf.mxu0
  %v856 = vadd.f32 %v760, %v855
  %v857 = vpop.f32.mrf.mxu0
  %858 = vmatprep.mubr.bf16.mxu0 0
  %859 = vmatmul.mubr.bf16.gmra.mxu0 %v733
  %v860 = vpop.f32.mrf.mxu0
  %v861 = vadd.f32 %v760, %v860
  %v862 = vpop.f32.mrf.mxu0
  %v863 = vpop.f32.mrf.mxu0
  %v864 = vadd.f32 %v760, %v863
  %v865 = vpop.f32.mrf.mxu0
  %866 = vmatprep.mubr.bf16.mxu0 0
  %867 = vmatmul.mubr.bf16.gmra.mxu0 %v734
  %v868 = vpop.f32.mrf.mxu0
  %v869 = vadd.f32 %v760, %v868
  %v870 = vpop.f32.mrf.mxu0
  %v871 = vpop.f32.mrf.mxu0
  %v872 = vadd.f32 %v760, %v871
  %v873 = vpop.f32.mrf.mxu0
  %874 = vmatprep.mubr.bf16.mxu0 0
  %875 = vmatmul.mubr.bf16.gmra.mxu0 %v735
  %v876 = vpop.f32.mrf.mxu0
  %v877 = vadd.f32 %v760, %v876
  %v878 = vpop.f32.mrf.mxu0
  %v879 = vpop.f32.mrf.mxu0
  %v880 = vadd.f32 %v760, %v879
  %v881 = vpop.f32.mrf.mxu0
  %882 = vmatprep.mubr.bf16.mxu0 0
  %883 = vmatmul.mubr.bf16.gmra.mxu0 %v736
  %v884 = vpop.f32.mrf.mxu0
  %v885 = vadd.f32 %v760, %v884
  %v886 = vpop.f32.mrf.mxu0
  %v887 = vpop.f32.mrf.mxu0
  %v888 = vadd.f32 %v760, %v887
  %v889 = vpop.f32.mrf.mxu0
  %890 = vmatprep.mubr.bf16.mxu0 0
  %891 = vmatmul.mubr.bf16.gmra.mxu0 %v737
  %v892 = vpop.f32.mrf.mxu0
  %v893 = vadd.f32 %v760, %v892
  %v894 = vpop.f32.mrf.mxu0
  %v895 = vpop.f32.mrf.mxu0
  %v896 = vadd.f32 %v760, %v895
  %v897 = vpop.f32.mrf.mxu0
  %898 = vmatprep.mubr.bf16.mxu0 0
  %899 = vmatmul.mubr.bf16.gmra.mxu0 %v738
  %v900 = vpop.f32.mrf.mxu0
  %v901 = vadd.f32 %v760, %v900
  %v902 = vpop.f32.mrf.mxu0
  %v903 = vpop.f32.mrf.mxu0
  %v904 = vadd.f32 %v760, %v903
  %v905 = vpop.f32.mrf.mxu0
  %906 = vdwg.mxu0
  %v907 = vmax.f32 %v845, 0.0
  %v908 = vmax.f32 %v848, 0.0
  %v909 = vmax.f32 %v853, 0.0
  %v910 = vmax.f32 %v856, 0.0
  %v911 = vmax.f32 %v861, 0.0
  %v912 = vmax.f32 %v864, 0.0
  %v913 = vmax.f32 %v869, 0.0
  %v914 = vmax.f32 %v872, 0.0
  %v915 = vmax.f32 %v877, 0.0
  %v916 = vmax.f32 %v880, 0.0
  %v917 = vmax.f32 %v885, 0.0
  %v918 = vmax.f32 %v888, 0.0
  %v919 = vmax.f32 %v893, 0.0
  %v920 = vmax.f32 %v896, 0.0
  %v921 = vmax.f32 %v901, 0.0
  %v922 = vmax.f32 %v904, 0.0
  %v923 = vmin.f32 %v907, 6.0
  %v924 = vmin.f32 %v908, 6.0
  %v925 = vmin.f32 %v909, 6.0
  %v926 = vmin.f32 %v910, 6.0
  %v927 = vmin.f32 %v911, 6.0
  %v928 = vmin.f32 %v912, 6.0
  %v929 = vmin.f32 %v913, 6.0
  %v930 = vmin.f32 %v914, 6.0
  %v931 = vmin.f32 %v915, 6.0
  %v932 = vmin.f32 %v916, 6.0
  %v933 = vmin.f32 %v917, 6.0
  %v934 = vmin.f32 %v918, 6.0
  %v935 = vmin.f32 %v919, 6.0
  %v936 = vmin.f32 %v920, 6.0
  %v937 = vmin.f32 %v921, 6.0
  %v938 = vmin.f32 %v922, 6.0
  %v939 = vpack.c.bf16 %v924, %v923
  %v940 = vpack.c.bf16 %v926, %v925
  %v941 = vpack.c.bf16 %v928, %v927
  %v942 = vpack.c.bf16 %v930, %v929
  %v943 = vpack.c.bf16 %v932, %v931
  %v944 = vpack.c.bf16 %v934, %v933
  %v945 = vpack.c.bf16 %v936, %v935
  %v946 = vpack.c.bf16 %v938, %v937
  %v955 = vunpack.c.l.b16 %v939
  %v956 = vunpack.c.h.b16 %v939
  %v957 = vunpack.c.l.b16 %v940
  %v958 = vunpack.c.h.b16 %v940
  %v959 = vunpack.c.l.b16 %v941
  %v960 = vunpack.c.h.b16 %v941
  %v961 = vunpack.c.l.b16 %v942
  %v962 = vunpack.c.h.b16 %v942
  %v963 = vunpack.c.l.b16 %v943
  %v964 = vunpack.c.h.b16 %v943
  %v965 = vunpack.c.l.b16 %v944
  %v966 = vunpack.c.h.b16 %v944
  %v967 = vunpack.c.l.b16 %v945
  %v968 = vunpack.c.h.b16 %v945
  %v969 = vunpack.c.l.b16 %v946
  %v970 = vunpack.c.h.b16 %v946
  %v971 = vpack.c.b16 %v955, %v955
  %v972 = vpack.c.b16 %v956, %v956
  %v973 = vpack.c.b16 %v957, %v957
  %v974 = vpack.c.b16 %v958, %v958
  %v975 = vpack.c.b16 %v959, %v959
  %v976 = vpack.c.b16 %v960, %v960
  %v977 = vpack.c.b16 %v961, %v961
  %v978 = vpack.c.b16 %v962, %v962
  %v979 = vpack.c.b16 %v963, %v963
  %v980 = vpack.c.b16 %v964, %v964
  %v981 = vpack.c.b16 %v965, %v965
  %v982 = vpack.c.b16 %v966, %v966
  %v983 = vpack.c.b16 %v967, %v967
  %v984 = vpack.c.b16 %v968, %v968
  %v985 = vpack.c.b16 %v969, %v969
  %v986 = vpack.c.b16 %v970, %v970
  %1003 = vst [vmem:[%s5] sm:$0xf] %v971
  %1004 = vst [vmem:[%s5 + $0x4] sm:$0xf] %v972
  %1005 = vst [vmem:[%s5 + $0x8] sm:$0xf] %v973
  %1006 = vst [vmem:[%s5 + $0xc] sm:$0xf] %v974
  %1007 = vst [vmem:[%s5 + $0x10] sm:$0xf] %v975
  %1008 = vst [vmem:[%s5 + $0x14] sm:$0xf] %v976
  %1009 = vst [vmem:[%s5 + $0x18] sm:$0xf] %v977
  %1010 = vst [vmem:[%s5 + $0x1c] sm:$0xf] %v978
  %1011 = vst [vmem:[%s5 + $0x20] sm:$0xf] %v979
  %1012 = vst [vmem:[%s5 + $0x24] sm:$0xf] %v980
  %1013 = vst [vmem:[%s5 + $0x28] sm:$0xf] %v981
  %1014 = vst [vmem:[%s5 + $0x2c] sm:$0xf] %v982
  %1015 = vst [vmem:[%s5 + $0x30] sm:$0xf] %v983
  %1016 = vst [vmem:[%s5 + $0x34] sm:$0xf] %v984
  %1017 = vst [vmem:[%s5 + $0x38] sm:$0xf] %v985
  %1018 = vst [vmem:[%s5 + $0x3c] sm:$0xf] %v986
  // Predicated region
  $region22: #{model_forward.18} parent=0 // pred_check
    _
  $region23: #{model_forward.18} parent=0 // pred_check_branch
    %1020 = sbr.rel (0) target = $region25
  $region24: #{model_forward.18} parent=0 // pred_region
    _
  $region25: #{model_forward.18} parent=0 // pred_fallthru
    _
  // Predicated region
  $region26: #{model_forward.18} parent=0 // pred_check
    _
  $region27: #{model_forward.18} parent=0 // pred_check_branch
    %1022 = sbr.rel (0) target = $region29
  $region28: #{model_forward.18} parent=0 // pred_region
    _
  $region29: #{model_forward.18} parent=0 // pred_fallthru
    _

// kernel: model_forward.19
$region0: #{model_forward.19}
  #allocation0 [shape = 'u32[]', space=smem, size = 0x4, offset = 0x4, fixed_abs, tag = 'smem constant byte address 0x4 - core index']
  #allocation1 [shape = 'u32[144,128]{1,0:T(1,128)}', space=vmem, size = 0x12000, scoped, tag = 'internal scratch']
  %s0 = inlined_call_operand.vmem [shape: bf16[9,32,128], index: 0, kind: input, shape index: {}]
  %s1 = inlined_call_operand.vmem [shape: f32[9,1,128], index: 1, kind: input, shape index: {}]
  %s2 = inlined_call_operand.vmem [shape: f32[1,128], index: 2, kind: input, shape index: {}]
  %s3 = inlined_call_operand.vmem [shape: bf16[128,256], index: 3, kind: input, shape index: {}]
  %s4 = inlined_call_operand.vmem [shape: f32[1,256], index: 4, kind: input, shape index: {}]
  %s5 = inlined_call_operand.vmem [shape: bf16[32,256], index: 5, kind: output, shape index: {}]
  %s6 = sld [smem:[#allocation0]]
  $region30: #{model_forward.19} parent=0
    _
  %s8 = ssub.s32 1, %s6
  %s9 = scalar_select 0, %s8, %s6
  // Predicated region
  $region2: #{model_forward.19} parent=0 // pred_check
    _
  $region3: #{model_forward.19} parent=0 // pred_check_branch
    %11 = sbr.rel (0) target = $region5
  $region4: #{model_forward.19} parent=0 // pred_region
    _
  $region5: #{model_forward.19} parent=0 // pred_fallthru
    _
  // Predicated region
  $region6: #{model_forward.19} parent=0 // pred_check
    _
  $region7: #{model_forward.19} parent=0 // pred_check_branch
    %13 = sbr.rel (0) target = $region9
  $region8: #{model_forward.19} parent=0 // pred_region
    _
  $region9: #{model_forward.19} parent=0 // pred_fallthru
    _
  // Predicated region
  $region10: #{model_forward.19} parent=0 // pred_check
    _
  $region11: #{model_forward.19} parent=0 // pred_check_branch
    %15 = sbr.rel (0) target = $region13
  $region12: #{model_forward.19} parent=0 // pred_region
    _
  $region13: #{model_forward.19} parent=0 // pred_fallthru
    _
  // Predicated region
  $region14: #{model_forward.19} parent=0 // pred_check
    _
  $region15: #{model_forward.19} parent=0 // pred_check_branch
    %17 = sbr.rel (0) target = $region17
  $region16: #{model_forward.19} parent=0 // pred_region
    _
  $region17: #{model_forward.19} parent=0 // pred_fallthru
    _
  // Predicated region
  $region18: #{model_forward.19} parent=0 // pred_check
    _
  $region19: #{model_forward.19} parent=0 // pred_check_branch
    %19 = sbr.rel (0) target = $region21
  $region20: #{model_forward.19} parent=0 // pred_region
    _
  $region21: #{model_forward.19} parent=0 // pred_fallthru
    _
  %v21 = vld [vmem:[%s0] sm:$0xf]
  %v22 = vld [vmem:[%s0 + $0x4] sm:$0xf]
  %v23 = vld [vmem:[%s0 + $0x8] sm:$0xf]
  %v24 = vld [vmem:[%s0 + $0xc] sm:$0xf]
  %v25 = vunpack.c.l.bf16 %v21
  %v26 = vunpack.c.l.bf16 %v22
  %v27 = vunpack.c.l.bf16 %v23
  %v28 = vunpack.c.l.bf16 %v24
  %v29 = vld [vmem:[%s1] sm:$0x1]
  %v31 = vlaneseq
  %v32 = vshrl.u32 %v31, 7
  %v33 = vsub.s32 0, %v32
  %v34 = vrot.slane %v29, %v33
  %v36 = vmul.f32 %v25, %v34
  %v37 = vmul.f32 %v26, %v34
  %v38 = vmul.f32 %v27, %v34
  %v39 = vmul.f32 %v28, %v34
  %v40 = vadd.f32 %v36, 0.0
  %v41 = vadd.f32 %v37, 0.0
  %v42 = vadd.f32 %v38, 0.0
  %v43 = vadd.f32 %v39, 0.0
  %s44 = scalar_lea.vmem %s0, 16
  %v45 = vld [vmem:[%s44] sm:$0xf]
  %v46 = vld [vmem:[%s44 + $0x4] sm:$0xf]
  %v47 = vld [vmem:[%s44 + $0x8] sm:$0xf]
  %v48 = vld [vmem:[%s44 + $0xc] sm:$0xf]
  %v49 = vunpack.c.l.bf16 %v45
  %v50 = vunpack.c.l.bf16 %v46
  %v51 = vunpack.c.l.bf16 %v47
  %v52 = vunpack.c.l.bf16 %v48
  %s53 = scalar_lea.vmem %s1, 1
  %v54 = vld [vmem:[%s53] sm:$0x1]
  %v56 = vlaneseq
  %v57 = vshrl.u32 %v56, 7
  %v58 = vsub.s32 0, %v57
  %v59 = vrot.slane %v54, %v58
  %v61 = vmul.f32 %v49, %v59
  %v62 = vmul.f32 %v50, %v59
  %v63 = vmul.f32 %v51, %v59
  %v64 = vmul.f32 %v52, %v59
  %v65 = vadd.f32 %v40, %v61
  %v66 = vadd.f32 %v41, %v62
  %v67 = vadd.f32 %v42, %v63
  %v68 = vadd.f32 %v43, %v64
  %s69 = scalar_lea.vmem %s0, 32
  %v70 = vld [vmem:[%s69] sm:$0xf]
  %v71 = vld [vmem:[%s69 + $0x4] sm:$0xf]
  %v72 = vld [vmem:[%s69 + $0x8] sm:$0xf]
  %v73 = vld [vmem:[%s69 + $0xc] sm:$0xf]
  %v74 = vunpack.c.l.bf16 %v70
  %v75 = vunpack.c.l.bf16 %v71
  %v76 = vunpack.c.l.bf16 %v72
  %v77 = vunpack.c.l.bf16 %v73
  %s78 = scalar_lea.vmem %s1, 2
  %v79 = vld [vmem:[%s78] sm:$0x1]
  %v81 = vlaneseq
  %v82 = vshrl.u32 %v81, 7
  %v83 = vsub.s32 0, %v82
  %v84 = vrot.slane %v79, %v83
  %v86 = vmul.f32 %v74, %v84
  %v87 = vmul.f32 %v75, %v84
  %v88 = vmul.f32 %v76, %v84
  %v89 = vmul.f32 %v77, %v84
  %v90 = vadd.f32 %v65, %v86
  %v91 = vadd.f32 %v66, %v87
  %v92 = vadd.f32 %v67, %v88
  %v93 = vadd.f32 %v68, %v89
  %s94 = scalar_lea.vmem %s0, 48
  %v95 = vld [vmem:[%s94] sm:$0xf]
  %v96 = vld [vmem:[%s94 + $0x4] sm:$0xf]
  %v97 = vld [vmem:[%s94 + $0x8] sm:$0xf]
  %v98 = vld [vmem:[%s94 + $0xc] sm:$0xf]
  %v99 = vunpack.c.l.bf16 %v95
  %v100 = vunpack.c.l.bf16 %v96
  %v101 = vunpack.c.l.bf16 %v97
  %v102 = vunpack.c.l.bf16 %v98
  %s103 = scalar_lea.vmem %s1, 3
  %v104 = vld [vmem:[%s103] sm:$0x1]
  %v106 = vlaneseq
  %v107 = vshrl.u32 %v106, 7
  %v108 = vsub.s32 0, %v107
  %v109 = vrot.slane %v104, %v108
  %v111 = vmul.f32 %v99, %v109
  %v112 = vmul.f32 %v100, %v109
  %v113 = vmul.f32 %v101, %v109
  %v114 = vmul.f32 %v102, %v109
  %v115 = vadd.f32 %v90, %v111
  %v116 = vadd.f32 %v91, %v112
  %v117 = vadd.f32 %v92, %v113
  %v118 = vadd.f32 %v93, %v114
  %s119 = scalar_lea.vmem %s0, 64
  %v120 = vld [vmem:[%s119] sm:$0xf]
  %v121 = vld [vmem:[%s119 + $0x4] sm:$0xf]
  %v122 = vld [vmem:[%s119 + $0x8] sm:$0xf]
  %v123 = vld [vmem:[%s119 + $0xc] sm:$0xf]
  %v124 = vunpack.c.l.bf16 %v120
  %v125 = vunpack.c.l.bf16 %v121
  %v126 = vunpack.c.l.bf16 %v122
  %v127 = vunpack.c.l.bf16 %v123
  %s128 = scalar_lea.vmem %s1, 4
  %v129 = vld [vmem:[%s128] sm:$0x1]
  %v131 = vlaneseq
  %v132 = vshrl.u32 %v131, 7
  %v133 = vsub.s32 0, %v132
  %v134 = vrot.slane %v129, %v133
  %v136 = vmul.f32 %v124, %v134
  %v137 = vmul.f32 %v125, %v134
  %v138 = vmul.f32 %v126, %v134
  %v139 = vmul.f32 %v127, %v134
  %v140 = vadd.f32 %v115, %v136
  %v141 = vadd.f32 %v116, %v137
  %v142 = vadd.f32 %v117, %v138
  %v143 = vadd.f32 %v118, %v139
  %s144 = scalar_lea.vmem %s0, 80
  %v145 = vld [vmem:[%s144] sm:$0xf]
  %v146 = vld [vmem:[%s144 + $0x4] sm:$0xf]
  %v147 = vld [vmem:[%s144 + $0x8] sm:$0xf]
  %v148 = vld [vmem:[%s144 + $0xc] sm:$0xf]
  %v149 = vunpack.c.l.bf16 %v145
  %v150 = vunpack.c.l.bf16 %v146
  %v151 = vunpack.c.l.bf16 %v147
  %v152 = vunpack.c.l.bf16 %v148
  %s153 = scalar_lea.vmem %s1, 5
  %v154 = vld [vmem:[%s153] sm:$0x1]
  %v156 = vlaneseq
  %v157 = vshrl.u32 %v156, 7
  %v158 = vsub.s32 0, %v157
  %v159 = vrot.slane %v154, %v158
  %v161 = vmul.f32 %v149, %v159
  %v162 = vmul.f32 %v150, %v159
  %v163 = vmul.f32 %v151, %v159
  %v164 = vmul.f32 %v152, %v159
  %v165 = vadd.f32 %v140, %v161
  %v166 = vadd.f32 %v141, %v162
  %v167 = vadd.f32 %v142, %v163
  %v168 = vadd.f32 %v143, %v164
  %s169 = scalar_lea.vmem %s0, 96
  %v170 = vld [vmem:[%s169] sm:$0xf]
  %v171 = vld [vmem:[%s169 + $0x4] sm:$0xf]
  %v172 = vld [vmem:[%s169 + $0x8] sm:$0xf]
  %v173 = vld [vmem:[%s169 + $0xc] sm:$0xf]
  %v174 = vunpack.c.l.bf16 %v170
  %v175 = vunpack.c.l.bf16 %v171
  %v176 = vunpack.c.l.bf16 %v172
  %v177 = vunpack.c.l.bf16 %v173
  %s178 = scalar_lea.vmem %s1, 6
  %v179 = vld [vmem:[%s178] sm:$0x1]
  %v181 = vlaneseq
  %v182 = vshrl.u32 %v181, 7
  %v183 = vsub.s32 0, %v182
  %v184 = vrot.slane %v179, %v183
  %v186 = vmul.f32 %v174, %v184
  %v187 = vmul.f32 %v175, %v184
  %v188 = vmul.f32 %v176, %v184
  %v189 = vmul.f32 %v177, %v184
  %v190 = vadd.f32 %v165, %v186
  %v191 = vadd.f32 %v166, %v187
  %v192 = vadd.f32 %v167, %v188
  %v193 = vadd.f32 %v168, %v189
  %s194 = scalar_lea.vmem %s0, 112
  %v195 = vld [vmem:[%s194] sm:$0xf]
  %v196 = vld [vmem:[%s194 + $0x4] sm:$0xf]
  %v197 = vld [vmem:[%s194 + $0x8] sm:$0xf]
  %v198 = vld [vmem:[%s194 + $0xc] sm:$0xf]
  %v199 = vunpack.c.l.bf16 %v195
  %v200 = vunpack.c.l.bf16 %v196
  %v201 = vunpack.c.l.bf16 %v197
  %v202 = vunpack.c.l.bf16 %v198
  %s203 = scalar_lea.vmem %s1, 7
  %v204 = vld [vmem:[%s203] sm:$0x1]
  %v206 = vlaneseq
  %v207 = vshrl.u32 %v206, 7
  %v208 = vsub.s32 0, %v207
  %v209 = vrot.slane %v204, %v208
  %v211 = vmul.f32 %v199, %v209
  %v212 = vmul.f32 %v200, %v209
  %v213 = vmul.f32 %v201, %v209
  %v214 = vmul.f32 %v202, %v209
  %v215 = vadd.f32 %v190, %v211
  %v216 = vadd.f32 %v191, %v212
  %v217 = vadd.f32 %v192, %v213
  %v218 = vadd.f32 %v193, %v214
  %s219 = scalar_lea.vmem %s0, 128
  %v220 = vld [vmem:[%s219] sm:$0xf]
  %v221 = vld [vmem:[%s219 + $0x4] sm:$0xf]
  %v222 = vld [vmem:[%s219 + $0x8] sm:$0xf]
  %v223 = vld [vmem:[%s219 + $0xc] sm:$0xf]
  %v224 = vunpack.c.l.bf16 %v220
  %v225 = vunpack.c.l.bf16 %v221
  %v226 = vunpack.c.l.bf16 %v222
  %v227 = vunpack.c.l.bf16 %v223
  %s228 = scalar_lea.vmem %s1, 8
  %v229 = vld [vmem:[%s228] sm:$0x1]
  %v231 = vlaneseq
  %v232 = vshrl.u32 %v231, 7
  %v233 = vsub.s32 0, %v232
  %v234 = vrot.slane %v229, %v233
  %v236 = vmul.f32 %v224, %v234
  %v237 = vmul.f32 %v225, %v234
  %v238 = vmul.f32 %v226, %v234
  %v239 = vmul.f32 %v227, %v234
  %v240 = vadd.f32 %v215, %v236
  %v241 = vadd.f32 %v216, %v237
  %v242 = vadd.f32 %v217, %v238
  %v243 = vadd.f32 %v218, %v239
  %v244 = vld [vmem:[%s2] sm:$0x1]
  %v246 = vlaneseq
  %v247 = vshrl.u32 %v246, 7
  %v248 = vsub.s32 0, %v247
  %v249 = vrot.slane %v244, %v248
  %v251 = vadd.f32 %v240, %v249
  %v252 = vadd.f32 %v241, %v249
  %v253 = vadd.f32 %v242, %v249
  %v254 = vadd.f32 %v243, %v249
  %v255 = vmax.f32 %v251, 0.0
  %v256 = vmax.f32 %v252, 0.0
  %v257 = vmax.f32 %v253, 0.0
  %v258 = vmax.f32 %v254, 0.0
  %v259 = vmin.f32 %v255, 6.0
  %v260 = vmin.f32 %v256, 6.0
  %v261 = vmin.f32 %v257, 6.0
  %v262 = vmin.f32 %v258, 6.0
  %v263 = vpack.c.bf16 %v260, %v259
  %v264 = vpack.c.bf16 %v262, %v261
  %v265 = vld [vmem:[%s3] sm:$0xff]
  %v266 = vld [vmem:[%s3 + $0x8] sm:$0xff]
  %v267 = vld [vmem:[%s3 + $0x10] sm:$0xff]
  %v268 = vld [vmem:[%s3 + $0x18] sm:$0xff]
  %v269 = vld [vmem:[%s3 + $0x20] sm:$0xff]
  %v270 = vld [vmem:[%s3 + $0x28] sm:$0xff]
  %v271 = vld [vmem:[%s3 + $0x30] sm:$0xff]
  %v272 = vld [vmem:[%s3 + $0x38] sm:$0xff]
  %v273 = vld [vmem:[%s3 + $0x40] sm:$0xff]
  %v274 = vld [vmem:[%s3 + $0x48] sm:$0xff]
  %v275 = vld [vmem:[%s3 + $0x50] sm:$0xff]
  %v276 = vld [vmem:[%s3 + $0x58] sm:$0xff]
  %v277 = vld [vmem:[%s3 + $0x60] sm:$0xff]
  %v278 = vld [vmem:[%s3 + $0x68] sm:$0xff]
  %v279 = vld [vmem:[%s3 + $0x70] sm:$0xff]
  %v280 = vld [vmem:[%s3 + $0x78] sm:$0xff]
  %v281 = vld [vmem:[%s4] sm:$0x3]
  %v283 = vlaneseq
  %v284 = vshrl.u32 %v283, 7
  %v285 = vsub.s32 0, %v284
  %v286 = vrot.slane %v281, %v285
  %v287 = vlaneseq
  %v288 = vshrl.u32 %v287, 7
  %v289 = vsub.s32 1, %v288
  %v290 = vrot.slane %v281, %v289
  %v309 = vunpack.c.l.b16 %v265
  %v310 = vunpack.c.h.b16 %v265
  %v311 = vunpack.c.l.b16 %v266
  %v312 = vunpack.c.h.b16 %v266
  %v313 = vunpack.c.l.b16 %v267
  %v314 = vunpack.c.h.b16 %v267
  %v315 = vunpack.c.l.b16 %v268
  %v316 = vunpack.c.h.b16 %v268
  %v317 = vunpack.c.l.b16 %v269
  %v318 = vunpack.c.h.b16 %v269
  %v319 = vunpack.c.l.b16 %v270
  %v320 = vunpack.c.h.b16 %v270
  %v321 = vunpack.c.l.b16 %v271
  %v322 = vunpack.c.h.b16 %v271
  %v323 = vunpack.c.l.b16 %v272
  %v324 = vunpack.c.h.b16 %v272
  %v325 = vunpack.c.l.b16 %v273
  %v326 = vunpack.c.h.b16 %v273
  %v327 = vunpack.c.l.b16 %v274
  %v328 = vunpack.c.h.b16 %v274
  %v329 = vunpack.c.l.b16 %v275
  %v330 = vunpack.c.h.b16 %v275
  %v331 = vunpack.c.l.b16 %v276
  %v332 = vunpack.c.h.b16 %v276
  %v333 = vunpack.c.l.b16 %v277
  %v334 = vunpack.c.h.b16 %v277
  %v335 = vunpack.c.l.b16 %v278
  %v336 = vunpack.c.h.b16 %v278
  %v337 = vunpack.c.l.b16 %v279
  %v338 = vunpack.c.h.b16 %v279
  %v339 = vunpack.c.l.b16 %v280
  %v340 = vunpack.c.h.b16 %v280
  %v341 = vpack.c.b16 %v311, %v309
  %v342 = vpack.c.b16 %v312, %v310
  %v343 = vpack.c.b16 %v315, %v313
  %v344 = vpack.c.b16 %v316, %v314
  %v345 = vpack.c.b16 %v319, %v317
  %v346 = vpack.c.b16 %v320, %v318
  %v347 = vpack.c.b16 %v323, %v321
  %v348 = vpack.c.b16 %v324, %v322
  %v349 = vpack.c.b16 %v327, %v325
  %v350 = vpack.c.b16 %v328, %v326
  %v351 = vpack.c.b16 %v331, %v329
  %v352 = vpack.c.b16 %v332, %v330
  %v353 = vpack.c.b16 %v335, %v333
  %v354 = vpack.c.b16 %v336, %v334
  %v355 = vpack.c.b16 %v339, %v337
  %v356 = vpack.c.b16 %v340, %v338
  %373 = vmatprep.subr.bf16.mxu0 %v356
  %374 = vmatpush1.bf16.msra.mxu0 %v355
  %375 = vmatprep.subr.bf16.mxu0 %v354
  %376 = vmatpush1.bf16.msra.mxu0 %v353
  %377 = vmatprep.subr.bf16.mxu0 %v352
  %378 = vmatpush1.bf16.msra.mxu0 %v351
  %379 = vmatprep.subr.bf16.mxu0 %v350
  %380 = vmatpush1.bf16.msra.mxu0 %v349
  %381 = vmatprep.subr.bf16.mxu0 %v348
  %382 = vmatpush1.bf16.msra.mxu0 %v347
  %383 = vmatprep.subr.bf16.mxu0 %v346
  %384 = vmatpush1.bf16.msra.mxu0 %v345
  %385 = vmatprep.subr.bf16.mxu0 %v344
  %386 = vmatpush1.bf16.msra.mxu0 %v343
  %387 = vmatprep.subr.bf16.mxu0 %v342
  %388 = vmatpush1.bf16.msra.mxu0 %v341
  %389 = vmatprep.subr.bf16.mxu0 0
  %390 = vmatpush2.bf16.msra.mxu0 0
  %391 = vmatprep.subr.bf16.mxu0 0
  %392 = vmatpush2.bf16.msra.mxu0 0
  %393 = vmatprep.subr.bf16.mxu0 0
  %394 = vmatpush2.bf16.msra.mxu0 0
  %395 = vmatprep.subr.bf16.mxu0 0
  %396 = vmatpush2.bf16.msra.mxu0 0
  %397 = vmatprep.subr.bf16.mxu0 0
  %398 = vmatpush2.bf16.msra.mxu0 0
  %399 = vmatprep.subr.bf16.mxu0 0
  %400 = vmatpush2.bf16.msra.mxu0 0
  %401 = vmatprep.subr.bf16.mxu0 0
  %402 = vmatpush2.bf16.msra.mxu0 0
  %403 = vmatprep.subr.bf16.mxu0 0
  %404 = vmatpush2.bf16.msra.mxu0 0
  %405 = vmatprep.mubr.bf16.mxu0 0
  %406 = vmatmul.mubr.bf16.gmra.mxu0 %v263
  %v407 = vpop.f32.mrf.mxu0
  %v408 = vadd.f32 %v286, %v407
  %v409 = vpop.f32.mrf.mxu0
  %v410 = vadd.f32 %v290, %v409
  %v411 = vpop.f32.mrf.mxu0
  %v412 = vadd.f32 %v286, %v411
  %v413 = vpop.f32.mrf.mxu0
  %v414 = vadd.f32 %v290, %v413
  %415 = vmatprep.mubr.bf16.mxu0 0
  %416 = vmatmul.mubr.bf16.gmra.mxu0 %v264
  %v417 = vpop.f32.mrf.mxu0
  %v418 = vadd.f32 %v286, %v417
  %v419 = vpop.f32.mrf.mxu0
  %v420 = vadd.f32 %v290, %v419
  %v421 = vpop.f32.mrf.mxu0
  %v422 = vadd.f32 %v286, %v421
  %v423 = vpop.f32.mrf.mxu0
  %v424 = vadd.f32 %v290, %v423
  %425 = vdwg.mxu0
  %v426 = vmax.f32 %v408, 0.0
  %v427 = vmax.f32 %v410, 0.0
  %v428 = vmax.f32 %v412, 0.0
  %v429 = vmax.f32 %v414, 0.0
  %v430 = vmax.f32 %v418, 0.0
  %v431 = vmax.f32 %v420, 0.0
  %v432 = vmax.f32 %v422, 0.0
  %v433 = vmax.f32 %v424, 0.0
  %v434 = vmin.f32 %v426, 6.0
  %v435 = vmin.f32 %v427, 6.0
  %v436 = vmin.f32 %v428, 6.0
  %v437 = vmin.f32 %v429, 6.0
  %v438 = vmin.f32 %v430, 6.0
  %v439 = vmin.f32 %v431, 6.0
  %v440 = vmin.f32 %v432, 6.0
  %v441 = vmin.f32 %v433, 6.0
  %v442 = vpack.c.bf16 %v436, %v434
  %v443 = vpack.c.bf16 %v437, %v435
  %v444 = vpack.c.bf16 %v440, %v438
  %v445 = vpack.c.bf16 %v441, %v439
  %v450 = vunpack.c.l.b16 %v442
  %v451 = vunpack.c.l.b16 %v443
  %v452 = vunpack.c.h.b16 %v442
  %v453 = vunpack.c.h.b16 %v443
  %v454 = vunpack.c.l.b16 %v444
  %v455 = vunpack.c.l.b16 %v445
  %v456 = vunpack.c.h.b16 %v444
  %v457 = vunpack.c.h.b16 %v445
  %v458 = vpack.c.b16 %v451, %v450
  %v459 = vpack.c.b16 %v453, %v452
  %v460 = vpack.c.b16 %v455, %v454
  %v461 = vpack.c.b16 %v457, %v456
  %466 = vst [vmem:[%s5] sm:$0xff] %v458
  %467 = vst [vmem:[%s5 + $0x8] sm:$0xff] %v459
  %468 = vst [vmem:[%s5 + $0x10] sm:$0xff] %v460
  %469 = vst [vmem:[%s5 + $0x18] sm:$0xff] %v461
  // Predicated region
  $region22: #{model_forward.19} parent=0 // pred_check
    _
  $region23: #{model_forward.19} parent=0 // pred_check_branch
    %471 = sbr.rel (0) target = $region25
  $region24: #{model_forward.19} parent=0 // pred_region
    _
  $region25: #{model_forward.19} parent=0 // pred_fallthru
    _
  // Predicated region
  $region26: #{model_forward.19} parent=0 // pred_check
    _
  $region27: #{model_forward.19} parent=0 // pred_check_branch
    %473 = sbr.rel (0) target = $region29
  $region28: #{model_forward.19} parent=0 // pred_region
    _
  $region29: #{model_forward.19} parent=0 // pred_fallthru
    _

// kernel: model_forward.20
$region0: #{model_forward.20}
  #allocation0 [shape = 'u32[]', space=smem, size = 0x4, offset = 0x4, fixed_abs, tag = 'smem constant byte address 0x4 - core index']
  #allocation1 [shape = 'u32[144,128]{1,0:T(1,128)}', space=vmem, size = 0x12000, scoped, tag = 'internal scratch']
  %s0 = inlined_call_operand.vmem [shape: bf16[9,64,128], index: 0, kind: input, shape index: {}]
  %s1 = inlined_call_operand.vmem [shape: f32[9,1,128], index: 1, kind: input, shape index: {}]
  %s2 = inlined_call_operand.vmem [shape: f32[1,128], index: 2, kind: input, shape index: {}]
  %s3 = inlined_call_operand.vmem [shape: bf16[128,128], index: 3, kind: input, shape index: {}]
  %s4 = inlined_call_operand.vmem [shape: f32[1,128], index: 4, kind: input, shape index: {}]
  %s5 = inlined_call_operand.vmem [shape: bf16[64,128], index: 5, kind: output, shape index: {}]
  %s6 = sld [smem:[#allocation0]]
  $region30: #{model_forward.20} parent=0
    _
  %s8 = ssub.s32 1, %s6
  %s9 = scalar_select 0, %s8, %s6
  // Predicated region
  $region2: #{model_forward.20} parent=0 // pred_check
    _
  $region3: #{model_forward.20} parent=0 // pred_check_branch
    %11 = sbr.rel (0) target = $region5
  $region4: #{model_forward.20} parent=0 // pred_region
    _
  $region5: #{model_forward.20} parent=0 // pred_fallthru
    _
  // Predicated region
  $region6: #{model_forward.20} parent=0 // pred_check
    _
  $region7: #{model_forward.20} parent=0 // pred_check_branch
    %13 = sbr.rel (0) target = $region9
  $region8: #{model_forward.20} parent=0 // pred_region
    _
  $region9: #{model_forward.20} parent=0 // pred_fallthru
    _
  // Predicated region
  $region10: #{model_forward.20} parent=0 // pred_check
    _
  $region11: #{model_forward.20} parent=0 // pred_check_branch
    %15 = sbr.rel (0) target = $region13
  $region12: #{model_forward.20} parent=0 // pred_region
    _
  $region13: #{model_forward.20} parent=0 // pred_fallthru
    _
  // Predicated region
  $region14: #{model_forward.20} parent=0 // pred_check
    _
  $region15: #{model_forward.20} parent=0 // pred_check_branch
    %17 = sbr.rel (0) target = $region17
  $region16: #{model_forward.20} parent=0 // pred_region
    _
  $region17: #{model_forward.20} parent=0 // pred_fallthru
    _
  // Predicated region
  $region18: #{model_forward.20} parent=0 // pred_check
    _
  $region19: #{model_forward.20} parent=0 // pred_check_branch
    %19 = sbr.rel (0) target = $region21
  $region20: #{model_forward.20} parent=0 // pred_region
    _
  $region21: #{model_forward.20} parent=0 // pred_fallthru
    _
  %v21 = vld [vmem:[%s0] sm:$0xf]
  %v22 = vld [vmem:[%s0 + $0x4] sm:$0xf]
  %v23 = vld [vmem:[%s0 + $0x8] sm:$0xf]
  %v24 = vld [vmem:[%s0 + $0xc] sm:$0xf]
  %v25 = vld [vmem:[%s0 + $0x10] sm:$0xf]
  %v26 = vld [vmem:[%s0 + $0x14] sm:$0xf]
  %v27 = vld [vmem:[%s0 + $0x18] sm:$0xf]
  %v28 = vld [vmem:[%s0 + $0x1c] sm:$0xf]
  %v29 = vunpack.c.l.bf16 %v21
  %v30 = vunpack.c.l.bf16 %v22
  %v31 = vunpack.c.l.bf16 %v23
  %v32 = vunpack.c.l.bf16 %v24
  %v33 = vunpack.c.l.bf16 %v25
  %v34 = vunpack.c.l.bf16 %v26
  %v35 = vunpack.c.l.bf16 %v27
  %v36 = vunpack.c.l.bf16 %v28
  %v37 = vld [vmem:[%s1] sm:$0x1]
  %v39 = vlaneseq
  %v40 = vshrl.u32 %v39, 7
  %v41 = vsub.s32 0, %v40
  %v42 = vrot.slane %v37, %v41
  %v44 = vmul.f32 %v29, %v42
  %v45 = vmul.f32 %v30, %v42
  %v46 = vmul.f32 %v31, %v42
  %v47 = vmul.f32 %v32, %v42
  %v48 = vmul.f32 %v33, %v42
  %v49 = vmul.f32 %v34, %v42
  %v50 = vmul.f32 %v35, %v42
  %v51 = vmul.f32 %v36, %v42
  %v52 = vadd.f32 %v44, 0.0
  %v53 = vadd.f32 %v45, 0.0
  %v54 = vadd.f32 %v46, 0.0
  %v55 = vadd.f32 %v47, 0.0
  %v56 = vadd.f32 %v48, 0.0
  %v57 = vadd.f32 %v49, 0.0
  %v58 = vadd.f32 %v50, 0.0
  %v59 = vadd.f32 %v51, 0.0
  %s60 = scalar_lea.vmem %s0, 32
  %v61 = vld [vmem:[%s60] sm:$0xf]
  %v62 = vld [vmem:[%s60 + $0x4] sm:$0xf]
  %v63 = vld [vmem:[%s60 + $0x8] sm:$0xf]
  %v64 = vld [vmem:[%s60 + $0xc] sm:$0xf]
  %v65 = vld [vmem:[%s60 + $0x10] sm:$0xf]
  %v66 = vld [vmem:[%s60 + $0x14] sm:$0xf]
  %v67 = vld [vmem:[%s60 + $0x18] sm:$0xf]
  %v68 = vld [vmem:[%s60 + $0x1c] sm:$0xf]
  %v69 = vunpack.c.l.bf16 %v61
  %v70 = vunpack.c.l.bf16 %v62
  %v71 = vunpack.c.l.bf16 %v63
  %v72 = vunpack.c.l.bf16 %v64
  %v73 = vunpack.c.l.bf16 %v65
  %v74 = vunpack.c.l.bf16 %v66
  %v75 = vunpack.c.l.bf16 %v67
  %v76 = vunpack.c.l.bf16 %v68
  %s77 = scalar_lea.vmem %s1, 1
  %v78 = vld [vmem:[%s77] sm:$0x1]
  %v80 = vlaneseq
  %v81 = vshrl.u32 %v80, 7
  %v82 = vsub.s32 0, %v81
  %v83 = vrot.slane %v78, %v82
  %v85 = vmul.f32 %v69, %v83
  %v86 = vmul.f32 %v70, %v83
  %v87 = vmul.f32 %v71, %v83
  %v88 = vmul.f32 %v72, %v83
  %v89 = vmul.f32 %v73, %v83
  %v90 = vmul.f32 %v74, %v83
  %v91 = vmul.f32 %v75, %v83
  %v92 = vmul.f32 %v76, %v83
  %v93 = vadd.f32 %v52, %v85
  %v94 = vadd.f32 %v53, %v86
  %v95 = vadd.f32 %v54, %v87
  %v96 = vadd.f32 %v55, %v88
  %v97 = vadd.f32 %v56, %v89
  %v98 = vadd.f32 %v57, %v90
  %v99 = vadd.f32 %v58, %v91
  %v100 = vadd.f32 %v59, %v92
  %s101 = scalar_lea.vmem %s0, 64
  %v102 = vld [vmem:[%s101] sm:$0xf]
  %v103 = vld [vmem:[%s101 + $0x4] sm:$0xf]
  %v104 = vld [vmem:[%s101 + $0x8] sm:$0xf]
  %v105 = vld [vmem:[%s101 + $0xc] sm:$0xf]
  %v106 = vld [vmem:[%s101 + $0x10] sm:$0xf]
  %v107 = vld [vmem:[%s101 + $0x14] sm:$0xf]
  %v108 = vld [vmem:[%s101 + $0x18] sm:$0xf]
  %v109 = vld [vmem:[%s101 + $0x1c] sm:$0xf]
  %v110 = vunpack.c.l.bf16 %v102
  %v111 = vunpack.c.l.bf16 %v103
  %v112 = vunpack.c.l.bf16 %v104
  %v113 = vunpack.c.l.bf16 %v105
  %v114 = vunpack.c.l.bf16 %v106
  %v115 = vunpack.c.l.bf16 %v107
  %v116 = vunpack.c.l.bf16 %v108
  %v117 = vunpack.c.l.bf16 %v109
  %s118 = scalar_lea.vmem %s1, 2
  %v119 = vld [vmem:[%s118] sm:$0x1]
  %v121 = vlaneseq
  %v122 = vshrl.u32 %v121, 7
  %v123 = vsub.s32 0, %v122
  %v124 = vrot.slane %v119, %v123
  %v126 = vmul.f32 %v110, %v124
  %v127 = vmul.f32 %v111, %v124
  %v128 = vmul.f32 %v112, %v124
  %v129 = vmul.f32 %v113, %v124
  %v130 = vmul.f32 %v114, %v124
  %v131 = vmul.f32 %v115, %v124
  %v132 = vmul.f32 %v116, %v124
  %v133 = vmul.f32 %v117, %v124
  %v134 = vadd.f32 %v93, %v126
  %v135 = vadd.f32 %v94, %v127
  %v136 = vadd.f32 %v95, %v128
  %v137 = vadd.f32 %v96, %v129
  %v138 = vadd.f32 %v97, %v130
  %v139 = vadd.f32 %v98, %v131
  %v140 = vadd.f32 %v99, %v132
  %v141 = vadd.f32 %v100, %v133
  %s142 = scalar_lea.vmem %s0, 96
  %v143 = vld [vmem:[%s142] sm:$0xf]
  %v144 = vld [vmem:[%s142 + $0x4] sm:$0xf]
  %v145 = vld [vmem:[%s142 + $0x8] sm:$0xf]
  %v146 = vld [vmem:[%s142 + $0xc] sm:$0xf]
  %v147 = vld [vmem:[%s142 + $0x10] sm:$0xf]
  %v148 = vld [vmem:[%s142 + $0x14] sm:$0xf]
  %v149 = vld [vmem:[%s142 + $0x18] sm:$0xf]
  %v150 = vld [vmem:[%s142 + $0x1c] sm:$0xf]
  %v151 = vunpack.c.l.bf16 %v143
  %v152 = vunpack.c.l.bf16 %v144
  %v153 = vunpack.c.l.bf16 %v145
  %v154 = vunpack.c.l.bf16 %v146
  %v155 = vunpack.c.l.bf16 %v147
  %v156 = vunpack.c.l.bf16 %v148
  %v157 = vunpack.c.l.bf16 %v149
  %v158 = vunpack.c.l.bf16 %v150
  %s159 = scalar_lea.vmem %s1, 3
  %v160 = vld [vmem:[%s159] sm:$0x1]
  %v162 = vlaneseq
  %v163 = vshrl.u32 %v162, 7
  %v164 = vsub.s32 0, %v163
  %v165 = vrot.slane %v160, %v164
  %v167 = vmul.f32 %v151, %v165
  %v168 = vmul.f32 %v152, %v165
  %v169 = vmul.f32 %v153, %v165
  %v170 = vmul.f32 %v154, %v165
  %v171 = vmul.f32 %v155, %v165
  %v172 = vmul.f32 %v156, %v165
  %v173 = vmul.f32 %v157, %v165
  %v174 = vmul.f32 %v158, %v165
  %v175 = vadd.f32 %v134, %v167
  %v176 = vadd.f32 %v135, %v168
  %v177 = vadd.f32 %v136, %v169
  %v178 = vadd.f32 %v137, %v170
  %v179 = vadd.f32 %v138, %v171
  %v180 = vadd.f32 %v139, %v172
  %v181 = vadd.f32 %v140, %v173
  %v182 = vadd.f32 %v141, %v174
  %s183 = scalar_lea.vmem %s0, 128
  %v184 = vld [vmem:[%s183] sm:$0xf]
  %v185 = vld [vmem:[%s183 + $0x4] sm:$0xf]
  %v186 = vld [vmem:[%s183 + $0x8] sm:$0xf]
  %v187 = vld [vmem:[%s183 + $0xc] sm:$0xf]
  %v188 = vld [vmem:[%s183 + $0x10] sm:$0xf]
  %v189 = vld [vmem:[%s183 + $0x14] sm:$0xf]
  %v190 = vld [vmem:[%s183 + $0x18] sm:$0xf]
  %v191 = vld [vmem:[%s183 + $0x1c] sm:$0xf]
  %v192 = vunpack.c.l.bf16 %v184
  %v193 = vunpack.c.l.bf16 %v185
  %v194 = vunpack.c.l.bf16 %v186
  %v195 = vunpack.c.l.bf16 %v187
  %v196 = vunpack.c.l.bf16 %v188
  %v197 = vunpack.c.l.bf16 %v189
  %v198 = vunpack.c.l.bf16 %v190
  %v199 = vunpack.c.l.bf16 %v191
  %s200 = scalar_lea.vmem %s1, 4
  %v201 = vld [vmem:[%s200] sm:$0x1]
  %v203 = vlaneseq
  %v204 = vshrl.u32 %v203, 7
  %v205 = vsub.s32 0, %v204
  %v206 = vrot.slane %v201, %v205
  %v208 = vmul.f32 %v192, %v206
  %v209 = vmul.f32 %v193, %v206
  %v210 = vmul.f32 %v194, %v206
  %v211 = vmul.f32 %v195, %v206
  %v212 = vmul.f32 %v196, %v206
  %v213 = vmul.f32 %v197, %v206
  %v214 = vmul.f32 %v198, %v206
  %v215 = vmul.f32 %v199, %v206
  %v216 = vadd.f32 %v175, %v208
  %v217 = vadd.f32 %v176, %v209
  %v218 = vadd.f32 %v177, %v210
  %v219 = vadd.f32 %v178, %v211
  %v220 = vadd.f32 %v179, %v212
  %v221 = vadd.f32 %v180, %v213
  %v222 = vadd.f32 %v181, %v214
  %v223 = vadd.f32 %v182, %v215
  %s224 = scalar_lea.vmem %s0, 160
  %v225 = vld [vmem:[%s224] sm:$0xf]
  %v226 = vld [vmem:[%s224 + $0x4] sm:$0xf]
  %v227 = vld [vmem:[%s224 + $0x8] sm:$0xf]
  %v228 = vld [vmem:[%s224 + $0xc] sm:$0xf]
  %v229 = vld [vmem:[%s224 + $0x10] sm:$0xf]
  %v230 = vld [vmem:[%s224 + $0x14] sm:$0xf]
  %v231 = vld [vmem:[%s224 + $0x18] sm:$0xf]
  %v232 = vld [vmem:[%s224 + $0x1c] sm:$0xf]
  %v233 = vunpack.c.l.bf16 %v225
  %v234 = vunpack.c.l.bf16 %v226
  %v235 = vunpack.c.l.bf16 %v227
  %v236 = vunpack.c.l.bf16 %v228
  %v237 = vunpack.c.l.bf16 %v229
  %v238 = vunpack.c.l.bf16 %v230
  %v239 = vunpack.c.l.bf16 %v231
  %v240 = vunpack.c.l.bf16 %v232
  %s241 = scalar_lea.vmem %s1, 5
  %v242 = vld [vmem:[%s241] sm:$0x1]
  %v244 = vlaneseq
  %v245 = vshrl.u32 %v244, 7
  %v246 = vsub.s32 0, %v245
  %v247 = vrot.slane %v242, %v246
  %v249 = vmul.f32 %v233, %v247
  %v250 = vmul.f32 %v234, %v247
  %v251 = vmul.f32 %v235, %v247
  %v252 = vmul.f32 %v236, %v247
  %v253 = vmul.f32 %v237, %v247
  %v254 = vmul.f32 %v238, %v247
  %v255 = vmul.f32 %v239, %v247
  %v256 = vmul.f32 %v240, %v247
  %v257 = vadd.f32 %v216, %v249
  %v258 = vadd.f32 %v217, %v250
  %v259 = vadd.f32 %v218, %v251
  %v260 = vadd.f32 %v219, %v252
  %v261 = vadd.f32 %v220, %v253
  %v262 = vadd.f32 %v221, %v254
  %v263 = vadd.f32 %v222, %v255
  %v264 = vadd.f32 %v223, %v256
  %s265 = scalar_lea.vmem %s0, 192
  %v266 = vld [vmem:[%s265] sm:$0xf]
  %v267 = vld [vmem:[%s265 + $0x4] sm:$0xf]
  %v268 = vld [vmem:[%s265 + $0x8] sm:$0xf]
  %v269 = vld [vmem:[%s265 + $0xc] sm:$0xf]
  %v270 = vld [vmem:[%s265 + $0x10] sm:$0xf]
  %v271 = vld [vmem:[%s265 + $0x14] sm:$0xf]
  %v272 = vld [vmem:[%s265 + $0x18] sm:$0xf]
  %v273 = vld [vmem:[%s265 + $0x1c] sm:$0xf]
  %v274 = vunpack.c.l.bf16 %v266
  %v275 = vunpack.c.l.bf16 %v267
  %v276 = vunpack.c.l.bf16 %v268
  %v277 = vunpack.c.l.bf16 %v269
  %v278 = vunpack.c.l.bf16 %v270
  %v279 = vunpack.c.l.bf16 %v271
  %v280 = vunpack.c.l.bf16 %v272
  %v281 = vunpack.c.l.bf16 %v273
  %s282 = scalar_lea.vmem %s1, 6
  %v283 = vld [vmem:[%s282] sm:$0x1]
  %v285 = vlaneseq
  %v286 = vshrl.u32 %v285, 7
  %v287 = vsub.s32 0, %v286
  %v288 = vrot.slane %v283, %v287
  %v290 = vmul.f32 %v274, %v288
  %v291 = vmul.f32 %v275, %v288
  %v292 = vmul.f32 %v276, %v288
  %v293 = vmul.f32 %v277, %v288
  %v294 = vmul.f32 %v278, %v288
  %v295 = vmul.f32 %v279, %v288
  %v296 = vmul.f32 %v280, %v288
  %v297 = vmul.f32 %v281, %v288
  %v298 = vadd.f32 %v257, %v290
  %v299 = vadd.f32 %v258, %v291
  %v300 = vadd.f32 %v259, %v292
  %v301 = vadd.f32 %v260, %v293
  %v302 = vadd.f32 %v261, %v294
  %v303 = vadd.f32 %v262, %v295
  %v304 = vadd.f32 %v263, %v296
  %v305 = vadd.f32 %v264, %v297
  %s306 = scalar_lea.vmem %s0, 224
  %v307 = vld [vmem:[%s306] sm:$0xf]
  %v308 = vld [vmem:[%s306 + $0x4] sm:$0xf]
  %v309 = vld [vmem:[%s306 + $0x8] sm:$0xf]
  %v310 = vld [vmem:[%s306 + $0xc] sm:$0xf]
  %v311 = vld [vmem:[%s306 + $0x10] sm:$0xf]
  %v312 = vld [vmem:[%s306 + $0x14] sm:$0xf]
  %v313 = vld [vmem:[%s306 + $0x18] sm:$0xf]
  %v314 = vld [vmem:[%s306 + $0x1c] sm:$0xf]
  %v315 = vunpack.c.l.bf16 %v307
  %v316 = vunpack.c.l.bf16 %v308
  %v317 = vunpack.c.l.bf16 %v309
  %v318 = vunpack.c.l.bf16 %v310
  %v319 = vunpack.c.l.bf16 %v311
  %v320 = vunpack.c.l.bf16 %v312
  %v321 = vunpack.c.l.bf16 %v313
  %v322 = vunpack.c.l.bf16 %v314
  %s323 = scalar_lea.vmem %s1, 7
  %v324 = vld [vmem:[%s323] sm:$0x1]
  %v326 = vlaneseq
  %v327 = vshrl.u32 %v326, 7
  %v328 = vsub.s32 0, %v327
  %v329 = vrot.slane %v324, %v328
  %v331 = vmul.f32 %v315, %v329
  %v332 = vmul.f32 %v316, %v329
  %v333 = vmul.f32 %v317, %v329
  %v334 = vmul.f32 %v318, %v329
  %v335 = vmul.f32 %v319, %v329
  %v336 = vmul.f32 %v320, %v329
  %v337 = vmul.f32 %v321, %v329
  %v338 = vmul.f32 %v322, %v329
  %v339 = vadd.f32 %v298, %v331
  %v340 = vadd.f32 %v299, %v332
  %v341 = vadd.f32 %v300, %v333
  %v342 = vadd.f32 %v301, %v334
  %v343 = vadd.f32 %v302, %v335
  %v344 = vadd.f32 %v303, %v336
  %v345 = vadd.f32 %v304, %v337
  %v346 = vadd.f32 %v305, %v338
  %s347 = scalar_lea.vmem %s0, 256
  %v348 = vld [vmem:[%s347] sm:$0xf]
  %v349 = vld [vmem:[%s347 + $0x4] sm:$0xf]
  %v350 = vld [vmem:[%s347 + $0x8] sm:$0xf]
  %v351 = vld [vmem:[%s347 + $0xc] sm:$0xf]
  %v352 = vld [vmem:[%s347 + $0x10] sm:$0xf]
  %v353 = vld [vmem:[%s347 + $0x14] sm:$0xf]
  %v354 = vld [vmem:[%s347 + $0x18] sm:$0xf]
  %v355 = vld [vmem:[%s347 + $0x1c] sm:$0xf]
  %v356 = vunpack.c.l.bf16 %v348
  %v357 = vunpack.c.l.bf16 %v349
  %v358 = vunpack.c.l.bf16 %v350
  %v359 = vunpack.c.l.bf16 %v351
  %v360 = vunpack.c.l.bf16 %v352
  %v361 = vunpack.c.l.bf16 %v353
  %v362 = vunpack.c.l.bf16 %v354
  %v363 = vunpack.c.l.bf16 %v355
  %s364 = scalar_lea.vmem %s1, 8
  %v365 = vld [vmem:[%s364] sm:$0x1]
  %v367 = vlaneseq
  %v368 = vshrl.u32 %v367, 7
  %v369 = vsub.s32 0, %v368
  %v370 = vrot.slane %v365, %v369
  %v372 = vmul.f32 %v356, %v370
  %v373 = vmul.f32 %v357, %v370
  %v374 = vmul.f32 %v358, %v370
  %v375 = vmul.f32 %v359, %v370
  %v376 = vmul.f32 %v360, %v370
  %v377 = vmul.f32 %v361, %v370
  %v378 = vmul.f32 %v362, %v370
  %v379 = vmul.f32 %v363, %v370
  %v380 = vadd.f32 %v339, %v372
  %v381 = vadd.f32 %v340, %v373
  %v382 = vadd.f32 %v341, %v374
  %v383 = vadd.f32 %v342, %v375
  %v384 = vadd.f32 %v343, %v376
  %v385 = vadd.f32 %v344, %v377
  %v386 = vadd.f32 %v345, %v378
  %v387 = vadd.f32 %v346, %v379
  %v388 = vld [vmem:[%s2] sm:$0x1]
  %v390 = vlaneseq
  %v391 = vshrl.u32 %v390, 7
  %v392 = vsub.s32 0, %v391
  %v393 = vrot.slane %v388, %v392
  %v395 = vadd.f32 %v380, %v393
  %v396 = vadd.f32 %v381, %v393
  %v397 = vadd.f32 %v382, %v393
  %v398 = vadd.f32 %v383, %v393
  %v399 = vadd.f32 %v384, %v393
  %v400 = vadd.f32 %v385, %v393
  %v401 = vadd.f32 %v386, %v393
  %v402 = vadd.f32 %v387, %v393
  %v403 = vmax.f32 %v395, 0.0
  %v404 = vmax.f32 %v396, 0.0
  %v405 = vmax.f32 %v397, 0.0
  %v406 = vmax.f32 %v398, 0.0
  %v407 = vmax.f32 %v399, 0.0
  %v408 = vmax.f32 %v400, 0.0
  %v409 = vmax.f32 %v401, 0.0
  %v410 = vmax.f32 %v402, 0.0
  %v411 = vmin.f32 %v403, 6.0
  %v412 = vmin.f32 %v404, 6.0
  %v413 = vmin.f32 %v405, 6.0
  %v414 = vmin.f32 %v406, 6.0
  %v415 = vmin.f32 %v407, 6.0
  %v416 = vmin.f32 %v408, 6.0
  %v417 = vmin.f32 %v409, 6.0
  %v418 = vmin.f32 %v410, 6.0
  %v419 = vpack.c.bf16 %v412, %v411
  %v420 = vpack.c.bf16 %v414, %v413
  %v421 = vpack.c.bf16 %v416, %v415
  %v422 = vpack.c.bf16 %v418, %v417
  %v423 = vld [vmem:[%s3] sm:$0xf]
  %v424 = vld [vmem:[%s3 + $0x4] sm:$0xf]
  %v425 = vld [vmem:[%s3 + $0x8] sm:$0xf]
  %v426 = vld [vmem:[%s3 + $0xc] sm:$0xf]
  %v427 = vld [vmem:[%s3 + $0x10] sm:$0xf]
  %v428 = vld [vmem:[%s3 + $0x14] sm:$0xf]
  %v429 = vld [vmem:[%s3 + $0x18] sm:$0xf]
  %v430 = vld [vmem:[%s3 + $0x1c] sm:$0xf]
  %v431 = vld [vmem:[%s3 + $0x20] sm:$0xf]
  %v432 = vld [vmem:[%s3 + $0x24] sm:$0xf]
  %v433 = vld [vmem:[%s3 + $0x28] sm:$0xf]
  %v434 = vld [vmem:[%s3 + $0x2c] sm:$0xf]
  %v435 = vld [vmem:[%s3 + $0x30] sm:$0xf]
  %v436 = vld [vmem:[%s3 + $0x34] sm:$0xf]
  %v437 = vld [vmem:[%s3 + $0x38] sm:$0xf]
  %v438 = vld [vmem:[%s3 + $0x3c] sm:$0xf]
  %v439 = vld [vmem:[%s4] sm:$0x1]
  %v441 = vlaneseq
  %v442 = vshrl.u32 %v441, 7
  %v443 = vsub.s32 0, %v442
  %v444 = vrot.slane %v439, %v443
  %v462 = vunpack.c.l.b16 %v423
  %v463 = vunpack.c.l.b16 %v424
  %v464 = vunpack.c.l.b16 %v425
  %v465 = vunpack.c.l.b16 %v426
  %v466 = vunpack.c.l.b16 %v427
  %v467 = vunpack.c.l.b16 %v428
  %v468 = vunpack.c.l.b16 %v429
  %v469 = vunpack.c.l.b16 %v430
  %v470 = vunpack.c.l.b16 %v431
  %v471 = vunpack.c.l.b16 %v432
  %v472 = vunpack.c.l.b16 %v433
  %v473 = vunpack.c.l.b16 %v434
  %v474 = vunpack.c.l.b16 %v435
  %v475 = vunpack.c.l.b16 %v436
  %v476 = vunpack.c.l.b16 %v437
  %v477 = vunpack.c.l.b16 %v438
  %v478 = vpack.c.b16 %v463, %v462
  %v479 = vpack.c.b16 %v465, %v464
  %v480 = vpack.c.b16 %v467, %v466
  %v481 = vpack.c.b16 %v469, %v468
  %v482 = vpack.c.b16 %v471, %v470
  %v483 = vpack.c.b16 %v473, %v472
  %v484 = vpack.c.b16 %v475, %v474
  %v485 = vpack.c.b16 %v477, %v476
  %494 = vmatprep.subr.bf16.mxu0 0
  %495 = vmatpush1.bf16.msra.mxu0 %v485
  %496 = vmatprep.subr.bf16.mxu0 0
  %497 = vmatpush1.bf16.msra.mxu0 %v484
  %498 = vmatprep.subr.bf16.mxu0 0
  %499 = vmatpush1.bf16.msra.mxu0 %v483
  %500 = vmatprep.subr.bf16.mxu0 0
  %501 = vmatpush1.bf16.msra.mxu0 %v482
  %502 = vmatprep.subr.bf16.mxu0 0
  %503 = vmatpush1.bf16.msra.mxu0 %v481
  %504 = vmatprep.subr.bf16.mxu0 0
  %505 = vmatpush1.bf16.msra.mxu0 %v480
  %506 = vmatprep.subr.bf16.mxu0 0
  %507 = vmatpush1.bf16.msra.mxu0 %v479
  %508 = vmatprep.subr.bf16.mxu0 0
  %509 = vmatpush1.bf16.msra.mxu0 %v478
  %510 = vmatprep.subr.bf16.mxu0 0
  %511 = vmatpush2.bf16.msra.mxu0 0
  %512 = vmatprep.subr.bf16.mxu0 0
  %513 = vmatpush2.bf16.msra.mxu0 0
  %514 = vmatprep.subr.bf16.mxu0 0
  %515 = vmatpush2.bf16.msra.mxu0 0
  %516 = vmatprep.subr.bf16.mxu0 0
  %517 = vmatpush2.bf16.msra.mxu0 0
  %518 = vmatprep.subr.bf16.mxu0 0
  %519 = vmatpush2.bf16.msra.mxu0 0
  %520 = vmatprep.subr.bf16.mxu0 0
  %521 = vmatpush2.bf16.msra.mxu0 0
  %522 = vmatprep.subr.bf16.mxu0 0
  %523 = vmatpush2.bf16.msra.mxu0 0
  %524 = vmatprep.subr.bf16.mxu0 0
  %525 = vmatpush2.bf16.msra.mxu0 0
  %526 = vmatprep.mubr.bf16.mxu0 0
  %527 = vmatmul.mubr.bf16.gmra.mxu0 %v419
  %v528 = vpop.f32.mrf.mxu0
  %v529 = vadd.f32 %v444, %v528
  %v530 = vpop.f32.mrf.mxu0
  %v531 = vpop.f32.mrf.mxu0
  %v532 = vadd.f32 %v444, %v531
  %v533 = vpop.f32.mrf.mxu0
  %534 = vmatprep.mubr.bf16.mxu0 0
  %535 = vmatmul.mubr.bf16.gmra.mxu0 %v420
  %v536 = vpop.f32.mrf.mxu0
  %v537 = vadd.f32 %v444, %v536
  %v538 = vpop.f32.mrf.mxu0
  %v539 = vpop.f32.mrf.mxu0
  %v540 = vadd.f32 %v444, %v539
  %v541 = vpop.f32.mrf.mxu0
  %542 = vmatprep.mubr.bf16.mxu0 0
  %543 = vmatmul.mubr.bf16.gmra.mxu0 %v421
  %v544 = vpop.f32.mrf.mxu0
  %v545 = vadd.f32 %v444, %v544
  %v546 = vpop.f32.mrf.mxu0
  %v547 = vpop.f32.mrf.mxu0
  %v548 = vadd.f32 %v444, %v547
  %v549 = vpop.f32.mrf.mxu0
  %550 = vmatprep.mubr.bf16.mxu0 0
  %551 = vmatmul.mubr.bf16.gmra.mxu0 %v422
  %v552 = vpop.f32.mrf.mxu0
  %v553 = vadd.f32 %v444, %v552
  %v554 = vpop.f32.mrf.mxu0
  %v555 = vpop.f32.mrf.mxu0
  %v556 = vadd.f32 %v444, %v555
  %v557 = vpop.f32.mrf.mxu0
  %558 = vdwg.mxu0
  %v559 = vmax.f32 %v529, 0.0
  %v560 = vmax.f32 %v532, 0.0
  %v561 = vmax.f32 %v537, 0.0
  %v562 = vmax.f32 %v540, 0.0
  %v563 = vmax.f32 %v545, 0.0
  %v564 = vmax.f32 %v548, 0.0
  %v565 = vmax.f32 %v553, 0.0
  %v566 = vmax.f32 %v556, 0.0
  %v567 = vmin.f32 %v559, 6.0
  %v568 = vmin.f32 %v560, 6.0
  %v569 = vmin.f32 %v561, 6.0
  %v570 = vmin.f32 %v562, 6.0
  %v571 = vmin.f32 %v563, 6.0
  %v572 = vmin.f32 %v564, 6.0
  %v573 = vmin.f32 %v565, 6.0
  %v574 = vmin.f32 %v566, 6.0
  %v575 = vpack.c.bf16 %v568, %v567
  %v576 = vpack.c.bf16 %v570, %v569
  %v577 = vpack.c.bf16 %v572, %v571
  %v578 = vpack.c.bf16 %v574, %v573
  %v583 = vunpack.c.l.b16 %v575
  %v584 = vunpack.c.h.b16 %v575
  %v585 = vunpack.c.l.b16 %v576
  %v586 = vunpack.c.h.b16 %v576
  %v587 = vunpack.c.l.b16 %v577
  %v588 = vunpack.c.h.b16 %v577
  %v589 = vunpack.c.l.b16 %v578
  %v590 = vunpack.c.h.b16 %v578
  %v591 = vpack.c.b16 %v583, %v583
  %v592 = vpack.c.b16 %v584, %v584
  %v593 = vpack.c.b16 %v585, %v585
  %v594 = vpack.c.b16 %v586, %v586
  %v595 = vpack.c.b16 %v587, %v587
  %v596 = vpack.c.b16 %v588, %v588
  %v597 = vpack.c.b16 %v589, %v589
  %v598 = vpack.c.b16 %v590, %v590
  %607 = vst [vmem:[%s5] sm:$0xf] %v591
  %608 = vst [vmem:[%s5 + $0x4] sm:$0xf] %v592
  %609 = vst [vmem:[%s5 + $0x8] sm:$0xf] %v593
  %610 = vst [vmem:[%s5 + $0xc] sm:$0xf] %v594
  %611 = vst [vmem:[%s5 + $0x10] sm:$0xf] %v595
  %612 = vst [vmem:[%s5 + $0x14] sm:$0xf] %v596
  %613 = vst [vmem:[%s5 + $0x18] sm:$0xf] %v597
  %614 = vst [vmem:[%s5 + $0x1c] sm:$0xf] %v598
  // Predicated region
  $region22: #{model_forward.20} parent=0 // pred_check
    _
  $region23: #{model_forward.20} parent=0 // pred_check_branch
    %616 = sbr.rel (0) target = $region25
  $region24: #{model_forward.20} parent=0 // pred_region
    _
  $region25: #{model_forward.20} parent=0 // pred_fallthru
    _
  // Predicated region
  $region26: #{model_forward.20} parent=0 // pred_check
    _
  $region27: #{model_forward.20} parent=0 // pred_check_branch
    %618 = sbr.rel (0) target = $region29
  $region28: #{model_forward.20} parent=0 // pred_region
    _
  $region29: #{model_forward.20} parent=0 // pred_fallthru
    _

// kernel: tile.197
$region0: #{tile.197}
  #allocation0 [shape = 's32[1]{0}', space=sflag, size = 0x4, scoped, tag = 'scoped memory for tile.197']
  %s0 = inlined_call_operand.vmem [shape: f32[9,128], index: 0, kind: input, shape index: {}]
  %s1 = inlined_call_operand.vmem [shape: f32[9,1,128], index: 1, kind: output, shape index: {}]
  // Predicated region
  $region2: #{tile.197} parent=0 // pred_check
    _
  $region3: #{tile.197} parent=0 // pred_check_branch
    %3 = sbr.rel (0) target = $region5
  $region4: #{tile.197} parent=0 // pred_region
    _
  $region5: #{tile.197} parent=0 // pred_fallthru
    _
  %v4 = vld [vmem:[%s0] ss:$0 sm:$0xff]
  %5 = vst [vmem:[%s1] sm:$0x1] %v4
  %s6 = scalar_lea.vmem %s0, 1
  %v7 = vld [vmem:[%s6] ss:$0 sm:$0xff]
  %s8 = scalar_lea.vmem %s1, 1
  %9 = vst [vmem:[%s8] sm:$0x1] %v7
  %s10 = scalar_lea.vmem %s0, 2
  %v11 = vld [vmem:[%s10] ss:$0 sm:$0xff]
  %s12 = scalar_lea.vmem %s1, 2
  %13 = vst [vmem:[%s12] sm:$0x1] %v11
  %s14 = scalar_lea.vmem %s0, 3
  %v15 = vld [vmem:[%s14] ss:$0 sm:$0xff]
  %s16 = scalar_lea.vmem %s1, 3
  %17 = vst [vmem:[%s16] sm:$0x1] %v15
  %s18 = scalar_lea.vmem %s0, 4
  %v19 = vld [vmem:[%s18] ss:$0 sm:$0xff]
  %s20 = scalar_lea.vmem %s1, 4
  %21 = vst [vmem:[%s20] sm:$0x1] %v19
  %s22 = scalar_lea.vmem %s0, 5
  %v23 = vld [vmem:[%s22] ss:$0 sm:$0xff]
  %s24 = scalar_lea.vmem %s1, 5
  %25 = vst [vmem:[%s24] sm:$0x1] %v23
  %s26 = scalar_lea.vmem %s0, 6
  %v27 = vld [vmem:[%s26] ss:$0 sm:$0xff]
  %s28 = scalar_lea.vmem %s1, 6
  %29 = vst [vmem:[%s28] sm:$0x1] %v27
  %s30 = scalar_lea.vmem %s0, 7
  %v31 = vld [vmem:[%s30] ss:$0 sm:$0xff]
  %s32 = scalar_lea.vmem %s1, 7
  %33 = vst [vmem:[%s32] sm:$0x1] %v31
  %s34 = scalar_lea.vmem %s0, 8
  %v35 = vld [vmem:[%s34] ss:$0 sm:$0xff]
  %s36 = scalar_lea.vmem %s1, 8
  %37 = vst [vmem:[%s36] sm:$0x1] %v35

// kernel: model_forward.21
$region0: #{model_forward.21}
  #allocation0 [shape = 'u32[]', space=smem, size = 0x4, offset = 0x4, fixed_abs, tag = 'smem constant byte address 0x4 - core index']
  #allocation1 [shape = 'u32[144,128]{1,0:T(1,128)}', space=vmem, size = 0x12000, scoped, tag = 'internal scratch']
  %s0 = inlined_call_operand.vmem [shape: bf16[9,16,128], index: 0, kind: input, shape index: {}]
  %s1 = inlined_call_operand.vmem [shape: f32[9,1,128], index: 1, kind: input, shape index: {}]
  %s2 = inlined_call_operand.vmem [shape: f32[1,128], index: 2, kind: input, shape index: {}]
  %s3 = inlined_call_operand.vmem [shape: bf16[128,256], index: 3, kind: input, shape index: {}]
  %s4 = inlined_call_operand.vmem [shape: f32[1,256], index: 4, kind: input, shape index: {}]
  %s5 = inlined_call_operand.vmem [shape: bf16[16,256], index: 5, kind: output, shape index: {}]
  %s6 = sld [smem:[#allocation0]]
  $region30: #{model_forward.21} parent=0
    _
  %s8 = ssub.s32 1, %s6
  %s9 = scalar_select 0, %s8, %s6
  // Predicated region
  $region2: #{model_forward.21} parent=0 // pred_check
    _
  $region3: #{model_forward.21} parent=0 // pred_check_branch
    %11 = sbr.rel (0) target = $region5
  $region4: #{model_forward.21} parent=0 // pred_region
    _
  $region5: #{model_forward.21} parent=0 // pred_fallthru
    _
  // Predicated region
  $region6: #{model_forward.21} parent=0 // pred_check
    _
  $region7: #{model_forward.21} parent=0 // pred_check_branch
    %13 = sbr.rel (0) target = $region9
  $region8: #{model_forward.21} parent=0 // pred_region
    _
  $region9: #{model_forward.21} parent=0 // pred_fallthru
    _
  // Predicated region
  $region10: #{model_forward.21} parent=0 // pred_check
    _
  $region11: #{model_forward.21} parent=0 // pred_check_branch
    %15 = sbr.rel (0) target = $region13
  $region12: #{model_forward.21} parent=0 // pred_region
    _
  $region13: #{model_forward.21} parent=0 // pred_fallthru
    _
  // Predicated region
  $region14: #{model_forward.21} parent=0 // pred_check
    _
  $region15: #{model_forward.21} parent=0 // pred_check_branch
    %17 = sbr.rel (0) target = $region17
  $region16: #{model_forward.21} parent=0 // pred_region
    _
  $region17: #{model_forward.21} parent=0 // pred_fallthru
    _
  // Predicated region
  $region18: #{model_forward.21} parent=0 // pred_check
    _
  $region19: #{model_forward.21} parent=0 // pred_check_branch
    %19 = sbr.rel (0) target = $region21
  $region20: #{model_forward.21} parent=0 // pred_region
    _
  $region21: #{model_forward.21} parent=0 // pred_fallthru
    _
  %v21 = vld [vmem:[%s0] sm:$0xf]
  %v22 = vld [vmem:[%s0 + $0x4] sm:$0xf]
  %v23 = vunpack.c.l.bf16 %v21
  %v24 = vunpack.c.l.bf16 %v22
  %v25 = vld [vmem:[%s1] sm:$0x1]
  %v27 = vlaneseq
  %v28 = vshrl.u32 %v27, 7
  %v29 = vsub.s32 0, %v28
  %v30 = vrot.slane %v25, %v29
  %v32 = vmul.f32 %v23, %v30
  %v33 = vmul.f32 %v24, %v30
  %v34 = vadd.f32 %v32, 0.0
  %v35 = vadd.f32 %v33, 0.0
  %s36 = scalar_lea.vmem %s0, 8
  %v37 = vld [vmem:[%s36] sm:$0xf]
  %v38 = vld [vmem:[%s36 + $0x4] sm:$0xf]
  %v39 = vunpack.c.l.bf16 %v37
  %v40 = vunpack.c.l.bf16 %v38
  %s41 = scalar_lea.vmem %s1, 1
  %v42 = vld [vmem:[%s41] sm:$0x1]
  %v44 = vlaneseq
  %v45 = vshrl.u32 %v44, 7
  %v46 = vsub.s32 0, %v45
  %v47 = vrot.slane %v42, %v46
  %v49 = vmul.f32 %v39, %v47
  %v50 = vmul.f32 %v40, %v47
  %v51 = vadd.f32 %v34, %v49
  %v52 = vadd.f32 %v35, %v50
  %s53 = scalar_lea.vmem %s0, 16
  %v54 = vld [vmem:[%s53] sm:$0xf]
  %v55 = vld [vmem:[%s53 + $0x4] sm:$0xf]
  %v56 = vunpack.c.l.bf16 %v54
  %v57 = vunpack.c.l.bf16 %v55
  %s58 = scalar_lea.vmem %s1, 2
  %v59 = vld [vmem:[%s58] sm:$0x1]
  %v61 = vlaneseq
  %v62 = vshrl.u32 %v61, 7
  %v63 = vsub.s32 0, %v62
  %v64 = vrot.slane %v59, %v63
  %v66 = vmul.f32 %v56, %v64
  %v67 = vmul.f32 %v57, %v64
  %v68 = vadd.f32 %v51, %v66
  %v69 = vadd.f32 %v52, %v67
  %s70 = scalar_lea.vmem %s0, 24
  %v71 = vld [vmem:[%s70] sm:$0xf]
  %v72 = vld [vmem:[%s70 + $0x4] sm:$0xf]
  %v73 = vunpack.c.l.bf16 %v71
  %v74 = vunpack.c.l.bf16 %v72
  %s75 = scalar_lea.vmem %s1, 3
  %v76 = vld [vmem:[%s75] sm:$0x1]
  %v78 = vlaneseq
  %v79 = vshrl.u32 %v78, 7
  %v80 = vsub.s32 0, %v79
  %v81 = vrot.slane %v76, %v80
  %v83 = vmul.f32 %v73, %v81
  %v84 = vmul.f32 %v74, %v81
  %v85 = vadd.f32 %v68, %v83
  %v86 = vadd.f32 %v69, %v84
  %s87 = scalar_lea.vmem %s0, 32
  %v88 = vld [vmem:[%s87] sm:$0xf]
  %v89 = vld [vmem:[%s87 + $0x4] sm:$0xf]
  %v90 = vunpack.c.l.bf16 %v88
  %v91 = vunpack.c.l.bf16 %v89
  %s92 = scalar_lea.vmem %s1, 4
  %v93 = vld [vmem:[%s92] sm:$0x1]
  %v95 = vlaneseq
  %v96 = vshrl.u32 %v95, 7
  %v97 = vsub.s32 0, %v96
  %v98 = vrot.slane %v93, %v97
  %v100 = vmul.f32 %v90, %v98
  %v101 = vmul.f32 %v91, %v98
  %v102 = vadd.f32 %v85, %v100
  %v103 = vadd.f32 %v86, %v101
  %s104 = scalar_lea.vmem %s0, 40
  %v105 = vld [vmem:[%s104] sm:$0xf]
  %v106 = vld [vmem:[%s104 + $0x4] sm:$0xf]
  %v107 = vunpack.c.l.bf16 %v105
  %v108 = vunpack.c.l.bf16 %v106
  %s109 = scalar_lea.vmem %s1, 5
  %v110 = vld [vmem:[%s109] sm:$0x1]
  %v112 = vlaneseq
  %v113 = vshrl.u32 %v112, 7
  %v114 = vsub.s32 0, %v113
  %v115 = vrot.slane %v110, %v114
  %v117 = vmul.f32 %v107, %v115
  %v118 = vmul.f32 %v108, %v115
  %v119 = vadd.f32 %v102, %v117
  %v120 = vadd.f32 %v103, %v118
  %s121 = scalar_lea.vmem %s0, 48
  %v122 = vld [vmem:[%s121] sm:$0xf]
  %v123 = vld [vmem:[%s121 + $0x4] sm:$0xf]
  %v124 = vunpack.c.l.bf16 %v122
  %v125 = vunpack.c.l.bf16 %v123
  %s126 = scalar_lea.vmem %s1, 6
  %v127 = vld [vmem:[%s126] sm:$0x1]
  %v129 = vlaneseq
  %v130 = vshrl.u32 %v129, 7
  %v131 = vsub.s32 0, %v130
  %v132 = vrot.slane %v127, %v131
  %v134 = vmul.f32 %v124, %v132
  %v135 = vmul.f32 %v125, %v132
  %v136 = vadd.f32 %v119, %v134
  %v137 = vadd.f32 %v120, %v135
  %s138 = scalar_lea.vmem %s0, 56
  %v139 = vld [vmem:[%s138] sm:$0xf]
  %v140 = vld [vmem:[%s138 + $0x4] sm:$0xf]
  %v141 = vunpack.c.l.bf16 %v139
  %v142 = vunpack.c.l.bf16 %v140
  %s143 = scalar_lea.vmem %s1, 7
  %v144 = vld [vmem:[%s143] sm:$0x1]
  %v146 = vlaneseq
  %v147 = vshrl.u32 %v146, 7
  %v148 = vsub.s32 0, %v147
  %v149 = vrot.slane %v144, %v148
  %v151 = vmul.f32 %v141, %v149
  %v152 = vmul.f32 %v142, %v149
  %v153 = vadd.f32 %v136, %v151
  %v154 = vadd.f32 %v137, %v152
  %s155 = scalar_lea.vmem %s0, 64
  %v156 = vld [vmem:[%s155] sm:$0xf]
  %v157 = vld [vmem:[%s155 + $0x4] sm:$0xf]
  %v158 = vunpack.c.l.bf16 %v156
  %v159 = vunpack.c.l.bf16 %v157
  %s160 = scalar_lea.vmem %s1, 8
  %v161 = vld [vmem:[%s160] sm:$0x1]
  %v163 = vlaneseq
  %v164 = vshrl.u32 %v163, 7
  %v165 = vsub.s32 0, %v164
  %v166 = vrot.slane %v161, %v165
  %v168 = vmul.f32 %v158, %v166
  %v169 = vmul.f32 %v159, %v166
  %v170 = vadd.f32 %v153, %v168
  %v171 = vadd.f32 %v154, %v169
  %v172 = vld [vmem:[%s2] sm:$0x1]
  %v174 = vlaneseq
  %v175 = vshrl.u32 %v174, 7
  %v176 = vsub.s32 0, %v175
  %v177 = vrot.slane %v172, %v176
  %v179 = vadd.f32 %v170, %v177
  %v180 = vadd.f32 %v171, %v177
  %v181 = vmax.f32 %v179, 0.0
  %v182 = vmax.f32 %v180, 0.0
  %v183 = vmin.f32 %v181, 6.0
  %v184 = vmin.f32 %v182, 6.0
  %v185 = vpack.c.bf16 %v184, %v183
  %v186 = vld [vmem:[%s3] sm:$0xff]
  %v187 = vld [vmem:[%s3 + $0x8] sm:$0xff]
  %v188 = vld [vmem:[%s3 + $0x10] sm:$0xff]
  %v189 = vld [vmem:[%s3 + $0x18] sm:$0xff]
  %v190 = vld [vmem:[%s3 + $0x20] sm:$0xff]
  %v191 = vld [vmem:[%s3 + $0x28] sm:$0xff]
  %v192 = vld [vmem:[%s3 + $0x30] sm:$0xff]
  %v193 = vld [vmem:[%s3 + $0x38] sm:$0xff]
  %v194 = vld [vmem:[%s3 + $0x40] sm:$0xff]
  %v195 = vld [vmem:[%s3 + $0x48] sm:$0xff]
  %v196 = vld [vmem:[%s3 + $0x50] sm:$0xff]
  %v197 = vld [vmem:[%s3 + $0x58] sm:$0xff]
  %v198 = vld [vmem:[%s3 + $0x60] sm:$0xff]
  %v199 = vld [vmem:[%s3 + $0x68] sm:$0xff]
  %v200 = vld [vmem:[%s3 + $0x70] sm:$0xff]
  %v201 = vld [vmem:[%s3 + $0x78] sm:$0xff]
  %v202 = vld [vmem:[%s4] sm:$0x3]
  %v204 = vlaneseq
  %v205 = vshrl.u32 %v204, 7
  %v206 = vsub.s32 0, %v205
  %v207 = vrot.slane %v202, %v206
  %v208 = vlaneseq
  %v209 = vshrl.u32 %v208, 7
  %v210 = vsub.s32 1, %v209
  %v211 = vrot.slane %v202, %v210
  %v230 = vunpack.c.l.b16 %v186
  %v231 = vunpack.c.h.b16 %v186
  %v232 = vunpack.c.l.b16 %v187
  %v233 = vunpack.c.h.b16 %v187
  %v234 = vunpack.c.l.b16 %v188
  %v235 = vunpack.c.h.b16 %v188
  %v236 = vunpack.c.l.b16 %v189
  %v237 = vunpack.c.h.b16 %v189
  %v238 = vunpack.c.l.b16 %v190
  %v239 = vunpack.c.h.b16 %v190
  %v240 = vunpack.c.l.b16 %v191
  %v241 = vunpack.c.h.b16 %v191
  %v242 = vunpack.c.l.b16 %v192
  %v243 = vunpack.c.h.b16 %v192
  %v244 = vunpack.c.l.b16 %v193
  %v245 = vunpack.c.h.b16 %v193
  %v246 = vunpack.c.l.b16 %v194
  %v247 = vunpack.c.h.b16 %v194
  %v248 = vunpack.c.l.b16 %v195
  %v249 = vunpack.c.h.b16 %v195
  %v250 = vunpack.c.l.b16 %v196
  %v251 = vunpack.c.h.b16 %v196
  %v252 = vunpack.c.l.b16 %v197
  %v253 = vunpack.c.h.b16 %v197
  %v254 = vunpack.c.l.b16 %v198
  %v255 = vunpack.c.h.b16 %v198
  %v256 = vunpack.c.l.b16 %v199
  %v257 = vunpack.c.h.b16 %v199
  %v258 = vunpack.c.l.b16 %v200
  %v259 = vunpack.c.h.b16 %v200
  %v260 = vunpack.c.l.b16 %v201
  %v261 = vunpack.c.h.b16 %v201
  %v262 = vpack.c.b16 %v232, %v230
  %v263 = vpack.c.b16 %v233, %v231
  %v264 = vpack.c.b16 %v236, %v234
  %v265 = vpack.c.b16 %v237, %v235
  %v266 = vpack.c.b16 %v240, %v238
  %v267 = vpack.c.b16 %v241, %v239
  %v268 = vpack.c.b16 %v244, %v242
  %v269 = vpack.c.b16 %v245, %v243
  %v270 = vpack.c.b16 %v248, %v246
  %v271 = vpack.c.b16 %v249, %v247
  %v272 = vpack.c.b16 %v252, %v250
  %v273 = vpack.c.b16 %v253, %v251
  %v274 = vpack.c.b16 %v256, %v254
  %v275 = vpack.c.b16 %v257, %v255
  %v276 = vpack.c.b16 %v260, %v258
  %v277 = vpack.c.b16 %v261, %v259
  %294 = vmatprep.subr.bf16.mxu0 %v277
  %295 = vmatpush1.bf16.msra.mxu0 %v276
  %296 = vmatprep.subr.bf16.mxu0 %v275
  %297 = vmatpush1.bf16.msra.mxu0 %v274
  %298 = vmatprep.subr.bf16.mxu0 %v273
  %299 = vmatpush1.bf16.msra.mxu0 %v272
  %300 = vmatprep.subr.bf16.mxu0 %v271
  %301 = vmatpush1.bf16.msra.mxu0 %v270
  %302 = vmatprep.subr.bf16.mxu0 %v269
  %303 = vmatpush1.bf16.msra.mxu0 %v268
  %304 = vmatprep.subr.bf16.mxu0 %v267
  %305 = vmatpush1.bf16.msra.mxu0 %v266
  %306 = vmatprep.subr.bf16.mxu0 %v265
  %307 = vmatpush1.bf16.msra.mxu0 %v264
  %308 = vmatprep.subr.bf16.mxu0 %v263
  %309 = vmatpush1.bf16.msra.mxu0 %v262
  %310 = vmatprep.subr.bf16.mxu0 0
  %311 = vmatpush2.bf16.msra.mxu0 0
  %312 = vmatprep.subr.bf16.mxu0 0
  %313 = vmatpush2.bf16.msra.mxu0 0
  %314 = vmatprep.subr.bf16.mxu0 0
  %315 = vmatpush2.bf16.msra.mxu0 0
  %316 = vmatprep.subr.bf16.mxu0 0
  %317 = vmatpush2.bf16.msra.mxu0 0
  %318 = vmatprep.subr.bf16.mxu0 0
  %319 = vmatpush2.bf16.msra.mxu0 0
  %320 = vmatprep.subr.bf16.mxu0 0
  %321 = vmatpush2.bf16.msra.mxu0 0
  %322 = vmatprep.subr.bf16.mxu0 0
  %323 = vmatpush2.bf16.msra.mxu0 0
  %324 = vmatprep.subr.bf16.mxu0 0
  %325 = vmatpush2.bf16.msra.mxu0 0
  %326 = vmatprep.mubr.bf16.mxu0 0
  %327 = vmatmul.mubr.bf16.gmra.mxu0 %v185
  %v328 = vpop.f32.mrf.mxu0
  %v329 = vadd.f32 %v207, %v328
  %v330 = vpop.f32.mrf.mxu0
  %v331 = vadd.f32 %v211, %v330
  %v332 = vpop.f32.mrf.mxu0
  %v333 = vadd.f32 %v207, %v332
  %v334 = vpop.f32.mrf.mxu0
  %v335 = vadd.f32 %v211, %v334
  %336 = vdwg.mxu0
  %v337 = vmax.f32 %v329, 0.0
  %v338 = vmax.f32 %v331, 0.0
  %v339 = vmax.f32 %v333, 0.0
  %v340 = vmax.f32 %v335, 0.0
  %v341 = vmin.f32 %v337, 6.0
  %v342 = vmin.f32 %v338, 6.0
  %v343 = vmin.f32 %v339, 6.0
  %v344 = vmin.f32 %v340, 6.0
  %v345 = vpack.c.bf16 %v343, %v341
  %v346 = vpack.c.bf16 %v344, %v342
  %v349 = vunpack.c.l.b16 %v345
  %v350 = vunpack.c.l.b16 %v346
  %v351 = vunpack.c.h.b16 %v345
  %v352 = vunpack.c.h.b16 %v346
  %v353 = vpack.c.b16 %v350, %v349
  %v354 = vpack.c.b16 %v352, %v351
  %357 = vst [vmem:[%s5] sm:$0xff] %v353
  %358 = vst [vmem:[%s5 + $0x8] sm:$0xff] %v354
  // Predicated region
  $region22: #{model_forward.21} parent=0 // pred_check
    _
  $region23: #{model_forward.21} parent=0 // pred_check_branch
    %360 = sbr.rel (0) target = $region25
  $region24: #{model_forward.21} parent=0 // pred_region
    _
  $region25: #{model_forward.21} parent=0 // pred_fallthru
    _
  // Predicated region
  $region26: #{model_forward.21} parent=0 // pred_check
    _
  $region27: #{model_forward.21} parent=0 // pred_check_branch
    %362 = sbr.rel (0) target = $region29
  $region28: #{model_forward.21} parent=0 // pred_region
    _
  $region29: #{model_forward.21} parent=0 // pred_fallthru
    _

// kernel: model_forward.22
$region0: #{model_forward.22}
  #allocation0 [shape = 'u32[]', space=smem, size = 0x4, offset = 0x4, fixed_abs, tag = 'smem constant byte address 0x4 - core index']
  #allocation1 [shape = 'u32[144,128]{1,0:T(1,128)}', space=vmem, size = 0x12000, scoped, tag = 'internal scratch']
  %s0 = inlined_call_operand.vmem [shape: bf16[9,32,128], index: 0, kind: input, shape index: {}]
  %s1 = inlined_call_operand.vmem [shape: f32[9,1,128], index: 1, kind: input, shape index: {}]
  %s2 = inlined_call_operand.vmem [shape: f32[1,128], index: 2, kind: input, shape index: {}]
  %s3 = inlined_call_operand.vmem [shape: bf16[128,128], index: 3, kind: input, shape index: {}]
  %s4 = inlined_call_operand.vmem [shape: f32[1,128], index: 4, kind: input, shape index: {}]
  %s5 = inlined_call_operand.vmem [shape: bf16[32,128], index: 5, kind: output, shape index: {}]
  %s6 = sld [smem:[#allocation0]]
  $region30: #{model_forward.22} parent=0
    _
  %s8 = ssub.s32 1, %s6
  %s9 = scalar_select 0, %s8, %s6
  // Predicated region
  $region2: #{model_forward.22} parent=0 // pred_check
    _
  $region3: #{model_forward.22} parent=0 // pred_check_branch
    %11 = sbr.rel (0) target = $region5
  $region4: #{model_forward.22} parent=0 // pred_region
    _
  $region5: #{model_forward.22} parent=0 // pred_fallthru
    _
  // Predicated region
  $region6: #{model_forward.22} parent=0 // pred_check
    _
  $region7: #{model_forward.22} parent=0 // pred_check_branch
    %13 = sbr.rel (0) target = $region9
  $region8: #{model_forward.22} parent=0 // pred_region
    _
  $region9: #{model_forward.22} parent=0 // pred_fallthru
    _
  // Predicated region
  $region10: #{model_forward.22} parent=0 // pred_check
    _
  $region11: #{model_forward.22} parent=0 // pred_check_branch
    %15 = sbr.rel (0) target = $region13
  $region12: #{model_forward.22} parent=0 // pred_region
    _
  $region13: #{model_forward.22} parent=0 // pred_fallthru
    _
  // Predicated region
  $region14: #{model_forward.22} parent=0 // pred_check
    _
  $region15: #{model_forward.22} parent=0 // pred_check_branch
    %17 = sbr.rel (0) target = $region17
  $region16: #{model_forward.22} parent=0 // pred_region
    _
  $region17: #{model_forward.22} parent=0 // pred_fallthru
    _
  // Predicated region
  $region18: #{model_forward.22} parent=0 // pred_check
    _
  $region19: #{model_forward.22} parent=0 // pred_check_branch
    %19 = sbr.rel (0) target = $region21
  $region20: #{model_forward.22} parent=0 // pred_region
    _
  $region21: #{model_forward.22} parent=0 // pred_fallthru
    _
  %v21 = vld [vmem:[%s0] sm:$0xf]
  %v22 = vld [vmem:[%s0 + $0x4] sm:$0xf]
  %v23 = vld [vmem:[%s0 + $0x8] sm:$0xf]
  %v24 = vld [vmem:[%s0 + $0xc] sm:$0xf]
  %v25 = vunpack.c.l.bf16 %v21
  %v26 = vunpack.c.l.bf16 %v22
  %v27 = vunpack.c.l.bf16 %v23
  %v28 = vunpack.c.l.bf16 %v24
  %v29 = vld [vmem:[%s1] sm:$0x1]
  %v31 = vlaneseq
  %v32 = vshrl.u32 %v31, 7
  %v33 = vsub.s32 0, %v32
  %v34 = vrot.slane %v29, %v33
  %v36 = vmul.f32 %v25, %v34
  %v37 = vmul.f32 %v26, %v34
  %v38 = vmul.f32 %v27, %v34
  %v39 = vmul.f32 %v28, %v34
  %v40 = vadd.f32 %v36, 0.0
  %v41 = vadd.f32 %v37, 0.0
  %v42 = vadd.f32 %v38, 0.0
  %v43 = vadd.f32 %v39, 0.0
  %s44 = scalar_lea.vmem %s0, 16
  %v45 = vld [vmem:[%s44] sm:$0xf]
  %v46 = vld [vmem:[%s44 + $0x4] sm:$0xf]
  %v47 = vld [vmem:[%s44 + $0x8] sm:$0xf]
  %v48 = vld [vmem:[%s44 + $0xc] sm:$0xf]
  %v49 = vunpack.c.l.bf16 %v45
  %v50 = vunpack.c.l.bf16 %v46
  %v51 = vunpack.c.l.bf16 %v47
  %v52 = vunpack.c.l.bf16 %v48
  %s53 = scalar_lea.vmem %s1, 1
  %v54 = vld [vmem:[%s53] sm:$0x1]
  %v56 = vlaneseq
  %v57 = vshrl.u32 %v56, 7
  %v58 = vsub.s32 0, %v57
  %v59 = vrot.slane %v54, %v58
  %v61 = vmul.f32 %v49, %v59
  %v62 = vmul.f32 %v50, %v59
  %v63 = vmul.f32 %v51, %v59
  %v64 = vmul.f32 %v52, %v59
  %v65 = vadd.f32 %v40, %v61
  %v66 = vadd.f32 %v41, %v62
  %v67 = vadd.f32 %v42, %v63
  %v68 = vadd.f32 %v43, %v64
  %s69 = scalar_lea.vmem %s0, 32
  %v70 = vld [vmem:[%s69] sm:$0xf]
  %v71 = vld [vmem:[%s69 + $0x4] sm:$0xf]
  %v72 = vld [vmem:[%s69 + $0x8] sm:$0xf]
  %v73 = vld [vmem:[%s69 + $0xc] sm:$0xf]
  %v74 = vunpack.c.l.bf16 %v70
  %v75 = vunpack.c.l.bf16 %v71
  %v76 = vunpack.c.l.bf16 %v72
  %v77 = vunpack.c.l.bf16 %v73
  %s78 = scalar_lea.vmem %s1, 2
  %v79 = vld [vmem:[%s78] sm:$0x1]
  %v81 = vlaneseq
  %v82 = vshrl.u32 %v81, 7
  %v83 = vsub.s32 0, %v82
  %v84 = vrot.slane %v79, %v83
  %v86 = vmul.f32 %v74, %v84
  %v87 = vmul.f32 %v75, %v84
  %v88 = vmul.f32 %v76, %v84
  %v89 = vmul.f32 %v77, %v84
  %v90 = vadd.f32 %v65, %v86
  %v91 = vadd.f32 %v66, %v87
  %v92 = vadd.f32 %v67, %v88
  %v93 = vadd.f32 %v68, %v89
  %s94 = scalar_lea.vmem %s0, 48
  %v95 = vld [vmem:[%s94] sm:$0xf]
  %v96 = vld [vmem:[%s94 + $0x4] sm:$0xf]
  %v97 = vld [vmem:[%s94 + $0x8] sm:$0xf]
  %v98 = vld [vmem:[%s94 + $0xc] sm:$0xf]
  %v99 = vunpack.c.l.bf16 %v95
  %v100 = vunpack.c.l.bf16 %v96
  %v101 = vunpack.c.l.bf16 %v97
  %v102 = vunpack.c.l.bf16 %v98
  %s103 = scalar_lea.vmem %s1, 3
  %v104 = vld [vmem:[%s103] sm:$0x1]
  %v106 = vlaneseq
  %v107 = vshrl.u32 %v106, 7
  %v108 = vsub.s32 0, %v107
  %v109 = vrot.slane %v104, %v108
  %v111 = vmul.f32 %v99, %v109
  %v112 = vmul.f32 %v100, %v109
  %v113 = vmul.f32 %v101, %v109
  %v114 = vmul.f32 %v102, %v109
  %v115 = vadd.f32 %v90, %v111
  %v116 = vadd.f32 %v91, %v112
  %v117 = vadd.f32 %v92, %v113
  %v118 = vadd.f32 %v93, %v114
  %s119 = scalar_lea.vmem %s0, 64
  %v120 = vld [vmem:[%s119] sm:$0xf]
  %v121 = vld [vmem:[%s119 + $0x4] sm:$0xf]
  %v122 = vld [vmem:[%s119 + $0x8] sm:$0xf]
  %v123 = vld [vmem:[%s119 + $0xc] sm:$0xf]
  %v124 = vunpack.c.l.bf16 %v120
  %v125 = vunpack.c.l.bf16 %v121
  %v126 = vunpack.c.l.bf16 %v122
  %v127 = vunpack.c.l.bf16 %v123
  %s128 = scalar_lea.vmem %s1, 4
  %v129 = vld [vmem:[%s128] sm:$0x1]
  %v131 = vlaneseq
  %v132 = vshrl.u32 %v131, 7
  %v133 = vsub.s32 0, %v132
  %v134 = vrot.slane %v129, %v133
  %v136 = vmul.f32 %v124, %v134
  %v137 = vmul.f32 %v125, %v134
  %v138 = vmul.f32 %v126, %v134
  %v139 = vmul.f32 %v127, %v134
  %v140 = vadd.f32 %v115, %v136
  %v141 = vadd.f32 %v116, %v137
  %v142 = vadd.f32 %v117, %v138
  %v143 = vadd.f32 %v118, %v139
  %s144 = scalar_lea.vmem %s0, 80
  %v145 = vld [vmem:[%s144] sm:$0xf]
  %v146 = vld [vmem:[%s144 + $0x4] sm:$0xf]
  %v147 = vld [vmem:[%s144 + $0x8] sm:$0xf]
  %v148 = vld [vmem:[%s144 + $0xc] sm:$0xf]
  %v149 = vunpack.c.l.bf16 %v145
  %v150 = vunpack.c.l.bf16 %v146
  %v151 = vunpack.c.l.bf16 %v147
  %v152 = vunpack.c.l.bf16 %v148
  %s153 = scalar_lea.vmem %s1, 5
  %v154 = vld [vmem:[%s153] sm:$0x1]
  %v156 = vlaneseq
  %v157 = vshrl.u32 %v156, 7
  %v158 = vsub.s32 0, %v157
  %v159 = vrot.slane %v154, %v158
  %v161 = vmul.f32 %v149, %v159
  %v162 = vmul.f32 %v150, %v159
  %v163 = vmul.f32 %v151, %v159
  %v164 = vmul.f32 %v152, %v159
  %v165 = vadd.f32 %v140, %v161
  %v166 = vadd.f32 %v141, %v162
  %v167 = vadd.f32 %v142, %v163
  %v168 = vadd.f32 %v143, %v164
  %s169 = scalar_lea.vmem %s0, 96
  %v170 = vld [vmem:[%s169] sm:$0xf]
  %v171 = vld [vmem:[%s169 + $0x4] sm:$0xf]
  %v172 = vld [vmem:[%s169 + $0x8] sm:$0xf]
  %v173 = vld [vmem:[%s169 + $0xc] sm:$0xf]
  %v174 = vunpack.c.l.bf16 %v170
  %v175 = vunpack.c.l.bf16 %v171
  %v176 = vunpack.c.l.bf16 %v172
  %v177 = vunpack.c.l.bf16 %v173
  %s178 = scalar_lea.vmem %s1, 6
  %v179 = vld [vmem:[%s178] sm:$0x1]
  %v181 = vlaneseq
  %v182 = vshrl.u32 %v181, 7
  %v183 = vsub.s32 0, %v182
  %v184 = vrot.slane %v179, %v183
  %v186 = vmul.f32 %v174, %v184
  %v187 = vmul.f32 %v175, %v184
  %v188 = vmul.f32 %v176, %v184
  %v189 = vmul.f32 %v177, %v184
  %v190 = vadd.f32 %v165, %v186
  %v191 = vadd.f32 %v166, %v187
  %v192 = vadd.f32 %v167, %v188
  %v193 = vadd.f32 %v168, %v189
  %s194 = scalar_lea.vmem %s0, 112
  %v195 = vld [vmem:[%s194] sm:$0xf]
  %v196 = vld [vmem:[%s194 + $0x4] sm:$0xf]
  %v197 = vld [vmem:[%s194 + $0x8] sm:$0xf]
  %v198 = vld [vmem:[%s194 + $0xc] sm:$0xf]
  %v199 = vunpack.c.l.bf16 %v195
  %v200 = vunpack.c.l.bf16 %v196
  %v201 = vunpack.c.l.bf16 %v197
  %v202 = vunpack.c.l.bf16 %v198
  %s203 = scalar_lea.vmem %s1, 7
  %v204 = vld [vmem:[%s203] sm:$0x1]
  %v206 = vlaneseq
  %v207 = vshrl.u32 %v206, 7
  %v208 = vsub.s32 0, %v207
  %v209 = vrot.slane %v204, %v208
  %v211 = vmul.f32 %v199, %v209
  %v212 = vmul.f32 %v200, %v209
  %v213 = vmul.f32 %v201, %v209
  %v214 = vmul.f32 %v202, %v209
  %v215 = vadd.f32 %v190, %v211
  %v216 = vadd.f32 %v191, %v212
  %v217 = vadd.f32 %v192, %v213
  %v218 = vadd.f32 %v193, %v214
  %s219 = scalar_lea.vmem %s0, 128
  %v220 = vld [vmem:[%s219] sm:$0xf]
  %v221 = vld [vmem:[%s219 + $0x4] sm:$0xf]
  %v222 = vld [vmem:[%s219 + $0x8] sm:$0xf]
  %v223 = vld [vmem:[%s219 + $0xc] sm:$0xf]
  %v224 = vunpack.c.l.bf16 %v220
  %v225 = vunpack.c.l.bf16 %v221
  %v226 = vunpack.c.l.bf16 %v222
  %v227 = vunpack.c.l.bf16 %v223
  %s228 = scalar_lea.vmem %s1, 8
  %v229 = vld [vmem:[%s228] sm:$0x1]
  %v231 = vlaneseq
  %v232 = vshrl.u32 %v231, 7
  %v233 = vsub.s32 0, %v232
  %v234 = vrot.slane %v229, %v233
  %v236 = vmul.f32 %v224, %v234
  %v237 = vmul.f32 %v225, %v234
  %v238 = vmul.f32 %v226, %v234
  %v239 = vmul.f32 %v227, %v234
  %v240 = vadd.f32 %v215, %v236
  %v241 = vadd.f32 %v216, %v237
  %v242 = vadd.f32 %v217, %v238
  %v243 = vadd.f32 %v218, %v239
  %v244 = vld [vmem:[%s2] sm:$0x1]
  %v246 = vlaneseq
  %v247 = vshrl.u32 %v246, 7
  %v248 = vsub.s32 0, %v247
  %v249 = vrot.slane %v244, %v248
  %v251 = vadd.f32 %v240, %v249
  %v252 = vadd.f32 %v241, %v249
  %v253 = vadd.f32 %v242, %v249
  %v254 = vadd.f32 %v243, %v249
  %v255 = vmax.f32 %v251, 0.0
  %v256 = vmax.f32 %v252, 0.0
  %v257 = vmax.f32 %v253, 0.0
  %v258 = vmax.f32 %v254, 0.0
  %v259 = vmin.f32 %v255, 6.0
  %v260 = vmin.f32 %v256, 6.0
  %v261 = vmin.f32 %v257, 6.0
  %v262 = vmin.f32 %v258, 6.0
  %v263 = vpack.c.bf16 %v260, %v259
  %v264 = vpack.c.bf16 %v262, %v261
  %v265 = vld [vmem:[%s3] sm:$0xf]
  %v266 = vld [vmem:[%s3 + $0x4] sm:$0xf]
  %v267 = vld [vmem:[%s3 + $0x8] sm:$0xf]
  %v268 = vld [vmem:[%s3 + $0xc] sm:$0xf]
  %v269 = vld [vmem:[%s3 + $0x10] sm:$0xf]
  %v270 = vld [vmem:[%s3 + $0x14] sm:$0xf]
  %v271 = vld [vmem:[%s3 + $0x18] sm:$0xf]
  %v272 = vld [vmem:[%s3 + $0x1c] sm:$0xf]
  %v273 = vld [vmem:[%s3 + $0x20] sm:$0xf]
  %v274 = vld [vmem:[%s3 + $0x24] sm:$0xf]
  %v275 = vld [vmem:[%s3 + $0x28] sm:$0xf]
  %v276 = vld [vmem:[%s3 + $0x2c] sm:$0xf]
  %v277 = vld [vmem:[%s3 + $0x30] sm:$0xf]
  %v278 = vld [vmem:[%s3 + $0x34] sm:$0xf]
  %v279 = vld [vmem:[%s3 + $0x38] sm:$0xf]
  %v280 = vld [vmem:[%s3 + $0x3c] sm:$0xf]
  %v281 = vld [vmem:[%s4] sm:$0x1]
  %v283 = vlaneseq
  %v284 = vshrl.u32 %v283, 7
  %v285 = vsub.s32 0, %v284
  %v286 = vrot.slane %v281, %v285
  %v304 = vunpack.c.l.b16 %v265
  %v305 = vunpack.c.l.b16 %v266
  %v306 = vunpack.c.l.b16 %v267
  %v307 = vunpack.c.l.b16 %v268
  %v308 = vunpack.c.l.b16 %v269
  %v309 = vunpack.c.l.b16 %v270
  %v310 = vunpack.c.l.b16 %v271
  %v311 = vunpack.c.l.b16 %v272
  %v312 = vunpack.c.l.b16 %v273
  %v313 = vunpack.c.l.b16 %v274
  %v314 = vunpack.c.l.b16 %v275
  %v315 = vunpack.c.l.b16 %v276
  %v316 = vunpack.c.l.b16 %v277
  %v317 = vunpack.c.l.b16 %v278
  %v318 = vunpack.c.l.b16 %v279
  %v319 = vunpack.c.l.b16 %v280
  %v320 = vpack.c.b16 %v305, %v304
  %v321 = vpack.c.b16 %v307, %v306
  %v322 = vpack.c.b16 %v309, %v308
  %v323 = vpack.c.b16 %v311, %v310
  %v324 = vpack.c.b16 %v313, %v312
  %v325 = vpack.c.b16 %v315, %v314
  %v326 = vpack.c.b16 %v317, %v316
  %v327 = vpack.c.b16 %v319, %v318
  %336 = vmatprep.subr.bf16.mxu0 0
  %337 = vmatpush1.bf16.msra.mxu0 %v327
  %338 = vmatprep.subr.bf16.mxu0 0
  %339 = vmatpush1.bf16.msra.mxu0 %v326
  %340 = vmatprep.subr.bf16.mxu0 0
  %341 = vmatpush1.bf16.msra.mxu0 %v325
  %342 = vmatprep.subr.bf16.mxu0 0
  %343 = vmatpush1.bf16.msra.mxu0 %v324
  %344 = vmatprep.subr.bf16.mxu0 0
  %345 = vmatpush1.bf16.msra.mxu0 %v323
  %346 = vmatprep.subr.bf16.mxu0 0
  %347 = vmatpush1.bf16.msra.mxu0 %v322
  %348 = vmatprep.subr.bf16.mxu0 0
  %349 = vmatpush1.bf16.msra.mxu0 %v321
  %350 = vmatprep.subr.bf16.mxu0 0
  %351 = vmatpush1.bf16.msra.mxu0 %v320
  %352 = vmatprep.subr.bf16.mxu0 0
  %353 = vmatpush2.bf16.msra.mxu0 0
  %354 = vmatprep.subr.bf16.mxu0 0
  %355 = vmatpush2.bf16.msra.mxu0 0
  %356 = vmatprep.subr.bf16.mxu0 0
  %357 = vmatpush2.bf16.msra.mxu0 0
  %358 = vmatprep.subr.bf16.mxu0 0
  %359 = vmatpush2.bf16.msra.mxu0 0
  %360 = vmatprep.subr.bf16.mxu0 0
  %361 = vmatpush2.bf16.msra.mxu0 0
  %362 = vmatprep.subr.bf16.mxu0 0
  %363 = vmatpush2.bf16.msra.mxu0 0
  %364 = vmatprep.subr.bf16.mxu0 0
  %365 = vmatpush2.bf16.msra.mxu0 0
  %366 = vmatprep.subr.bf16.mxu0 0
  %367 = vmatpush2.bf16.msra.mxu0 0
  %368 = vmatprep.mubr.bf16.mxu0 0
  %369 = vmatmul.mubr.bf16.gmra.mxu0 %v263
  %v370 = vpop.f32.mrf.mxu0
  %v371 = vadd.f32 %v286, %v370
  %v372 = vpop.f32.mrf.mxu0
  %v373 = vpop.f32.mrf.mxu0
  %v374 = vadd.f32 %v286, %v373
  %v375 = vpop.f32.mrf.mxu0
  %376 = vmatprep.mubr.bf16.mxu0 0
  %377 = vmatmul.mubr.bf16.gmra.mxu0 %v264
  %v378 = vpop.f32.mrf.mxu0
  %v379 = vadd.f32 %v286, %v378
  %v380 = vpop.f32.mrf.mxu0
  %v381 = vpop.f32.mrf.mxu0
  %v382 = vadd.f32 %v286, %v381
  %v383 = vpop.f32.mrf.mxu0
  %384 = vdwg.mxu0
  %v385 = vmax.f32 %v371, 0.0
  %v386 = vmax.f32 %v374, 0.0
  %v387 = vmax.f32 %v379, 0.0
  %v388 = vmax.f32 %v382, 0.0
  %v389 = vmin.f32 %v385, 6.0
  %v390 = vmin.f32 %v386, 6.0
  %v391 = vmin.f32 %v387, 6.0
  %v392 = vmin.f32 %v388, 6.0
  %v393 = vpack.c.bf16 %v390, %v389
  %v394 = vpack.c.bf16 %v392, %v391
  %v397 = vunpack.c.l.b16 %v393
  %v398 = vunpack.c.h.b16 %v393
  %v399 = vunpack.c.l.b16 %v394
  %v400 = vunpack.c.h.b16 %v394
  %v401 = vpack.c.b16 %v397, %v397
  %v402 = vpack.c.b16 %v398, %v398
  %v403 = vpack.c.b16 %v399, %v399
  %v404 = vpack.c.b16 %v400, %v400
  %409 = vst [vmem:[%s5] sm:$0xf] %v401
  %410 = vst [vmem:[%s5 + $0x4] sm:$0xf] %v402
  %411 = vst [vmem:[%s5 + $0x8] sm:$0xf] %v403
  %412 = vst [vmem:[%s5 + $0xc] sm:$0xf] %v404
  // Predicated region
  $region22: #{model_forward.22} parent=0 // pred_check
    _
  $region23: #{model_forward.22} parent=0 // pred_check_branch
    %414 = sbr.rel (0) target = $region25
  $region24: #{model_forward.22} parent=0 // pred_region
    _
  $region25: #{model_forward.22} parent=0 // pred_fallthru
    _
  // Predicated region
  $region26: #{model_forward.22} parent=0 // pred_check
    _
  $region27: #{model_forward.22} parent=0 // pred_check_branch
    %416 = sbr.rel (0) target = $region29
  $region28: #{model_forward.22} parent=0 // pred_region
    _
  $region29: #{model_forward.22} parent=0 // pred_fallthru
    _

// kernel: tile.203
$region0: #{tile.203}
  #allocation0 [shape = 's32[1]{0}', space=sflag, size = 0x4, scoped, tag = 'scoped memory for tile.203']
  %s0 = inlined_call_operand.vmem [shape: f32[9,256], index: 0, kind: input, shape index: {}]
  %s1 = inlined_call_operand.vmem [shape: f32[9,1,256], index: 1, kind: output, shape index: {}]
  // Predicated region
  $region2: #{tile.203} parent=0 // pred_check
    _
  $region3: #{tile.203} parent=0 // pred_check_branch
    %3 = sbr.rel (0) target = $region5
  $region4: #{tile.203} parent=0 // pred_region
    _
  $region5: #{tile.203} parent=0 // pred_fallthru
    _
  %v4 = vld [vmem:[%s0] ss:$0 sm:$0xff]
  %5 = vst [vmem:[%s1] sm:$0x1] %v4
  %s6 = scalar_lea.vmem %s0, 1
  %v7 = vld [vmem:[%s6] ss:$0 sm:$0xff]
  %s8 = scalar_lea.vmem %s1, 2
  %9 = vst [vmem:[%s8] sm:$0x1] %v7
  %s10 = scalar_lea.vmem %s0, 2
  %v11 = vld [vmem:[%s10] ss:$0 sm:$0xff]
  %s12 = scalar_lea.vmem %s1, 4
  %13 = vst [vmem:[%s12] sm:$0x1] %v11
  %s14 = scalar_lea.vmem %s0, 3
  %v15 = vld [vmem:[%s14] ss:$0 sm:$0xff]
  %s16 = scalar_lea.vmem %s1, 6
  %17 = vst [vmem:[%s16] sm:$0x1] %v15
  %s18 = scalar_lea.vmem %s0, 4
  %v19 = vld [vmem:[%s18] ss:$0 sm:$0xff]
  %s20 = scalar_lea.vmem %s1, 8
  %21 = vst [vmem:[%s20] sm:$0x1] %v19
  %s22 = scalar_lea.vmem %s0, 5
  %v23 = vld [vmem:[%s22] ss:$0 sm:$0xff]
  %s24 = scalar_lea.vmem %s1, 10
  %25 = vst [vmem:[%s24] sm:$0x1] %v23
  %s26 = scalar_lea.vmem %s0, 6
  %v27 = vld [vmem:[%s26] ss:$0 sm:$0xff]
  %s28 = scalar_lea.vmem %s1, 12
  %29 = vst [vmem:[%s28] sm:$0x1] %v27
  %s30 = scalar_lea.vmem %s0, 7
  %v31 = vld [vmem:[%s30] ss:$0 sm:$0xff]
  %s32 = scalar_lea.vmem %s1, 14
  %33 = vst [vmem:[%s32] sm:$0x1] %v31
  %s34 = scalar_lea.vmem %s0, 16
  %v35 = vld [vmem:[%s34] ss:$0 sm:$0xff]
  %s36 = scalar_lea.vmem %s1, 16
  %37 = vst [vmem:[%s36] sm:$0x1] %v35
  %s38 = scalar_lea.vmem %s0, 8
  %v39 = vld [vmem:[%s38] ss:$0 sm:$0xff]
  %s40 = scalar_lea.vmem %s1, 1
  %41 = vst [vmem:[%s40] sm:$0x1] %v39
  %s42 = scalar_lea.vmem %s0, 8
  %s43 = scalar_lea.vmem %s42, 1
  %v44 = vld [vmem:[%s43] ss:$0 sm:$0xff]
  %s45 = scalar_lea.vmem %s1, 3
  %46 = vst [vmem:[%s45] sm:$0x1] %v44
  %s47 = scalar_lea.vmem %s0, 8
  %s48 = scalar_lea.vmem %s47, 2
  %v49 = vld [vmem:[%s48] ss:$0 sm:$0xff]
  %s50 = scalar_lea.vmem %s1, 5
  %51 = vst [vmem:[%s50] sm:$0x1] %v49
  %s52 = scalar_lea.vmem %s0, 8
  %s53 = scalar_lea.vmem %s52, 3
  %v54 = vld [vmem:[%s53] ss:$0 sm:$0xff]
  %s55 = scalar_lea.vmem %s1, 7
  %56 = vst [vmem:[%s55] sm:$0x1] %v54
  %s57 = scalar_lea.vmem %s0, 8
  %s58 = scalar_lea.vmem %s57, 4
  %v59 = vld [vmem:[%s58] ss:$0 sm:$0xff]
  %s60 = scalar_lea.vmem %s1, 9
  %61 = vst [vmem:[%s60] sm:$0x1] %v59
  %s62 = scalar_lea.vmem %s0, 8
  %s63 = scalar_lea.vmem %s62, 5
  %v64 = vld [vmem:[%s63] ss:$0 sm:$0xff]
  %s65 = scalar_lea.vmem %s1, 11
  %66 = vst [vmem:[%s65] sm:$0x1] %v64
  %s67 = scalar_lea.vmem %s0, 8
  %s68 = scalar_lea.vmem %s67, 6
  %v69 = vld [vmem:[%s68] ss:$0 sm:$0xff]
  %s70 = scalar_lea.vmem %s1, 13
  %71 = vst [vmem:[%s70] sm:$0x1] %v69
  %s72 = scalar_lea.vmem %s0, 8
  %s73 = scalar_lea.vmem %s72, 7
  %v74 = vld [vmem:[%s73] ss:$0 sm:$0xff]
  %s75 = scalar_lea.vmem %s1, 15
  %76 = vst [vmem:[%s75] sm:$0x1] %v74
  %s77 = scalar_lea.vmem %s0, 24
  %v78 = vld [vmem:[%s77] ss:$0 sm:$0xff]
  %s79 = scalar_lea.vmem %s1, 17
  %80 = vst [vmem:[%s79] sm:$0x1] %v78

// kernel: model_forward.27
$region0: #{model_forward.27}
  #allocation0 [shape = 'u32[]', space=smem, size = 0x4, offset = 0x4, fixed_abs, tag = 'smem constant byte address 0x4 - core index']
  #allocation1 [shape = 'u32[144,128]{1,0:T(1,128)}', space=vmem, size = 0x12000, scoped, tag = 'internal scratch']
  %s0 = inlined_call_operand.vmem [shape: bf16[9,8,128], index: 0, kind: input, shape index: {}]
  %s1 = inlined_call_operand.vmem [shape: f32[9,1,128], index: 1, kind: input, shape index: {}]
  %s2 = inlined_call_operand.vmem [shape: f32[1,128], index: 2, kind: input, shape index: {}]
  %s3 = inlined_call_operand.vmem [shape: bf16[128,256], index: 3, kind: input, shape index: {}]
  %s4 = inlined_call_operand.vmem [shape: f32[1,256], index: 4, kind: input, shape index: {}]
  %s5 = inlined_call_operand.vmem [shape: bf16[8,256], index: 5, kind: output, shape index: {}]
  %s6 = sld [smem:[#allocation0]]
  $region30: #{model_forward.27} parent=0
    _
  %s8 = ssub.s32 1, %s6
  %s9 = scalar_select 0, %s8, %s6
  // Predicated region
  $region2: #{model_forward.27} parent=0 // pred_check
    _
  $region3: #{model_forward.27} parent=0 // pred_check_branch
    %11 = sbr.rel (0) target = $region5
  $region4: #{model_forward.27} parent=0 // pred_region
    _
  $region5: #{model_forward.27} parent=0 // pred_fallthru
    _
  // Predicated region
  $region6: #{model_forward.27} parent=0 // pred_check
    _
  $region7: #{model_forward.27} parent=0 // pred_check_branch
    %13 = sbr.rel (0) target = $region9
  $region8: #{model_forward.27} parent=0 // pred_region
    _
  $region9: #{model_forward.27} parent=0 // pred_fallthru
    _
  // Predicated region
  $region10: #{model_forward.27} parent=0 // pred_check
    _
  $region11: #{model_forward.27} parent=0 // pred_check_branch
    %15 = sbr.rel (0) target = $region13
  $region12: #{model_forward.27} parent=0 // pred_region
    _
  $region13: #{model_forward.27} parent=0 // pred_fallthru
    _
  // Predicated region
  $region14: #{model_forward.27} parent=0 // pred_check
    _
  $region15: #{model_forward.27} parent=0 // pred_check_branch
    %17 = sbr.rel (0) target = $region17
  $region16: #{model_forward.27} parent=0 // pred_region
    _
  $region17: #{model_forward.27} parent=0 // pred_fallthru
    _
  // Predicated region
  $region18: #{model_forward.27} parent=0 // pred_check
    _
  $region19: #{model_forward.27} parent=0 // pred_check_branch
    %19 = sbr.rel (0) target = $region21
  $region20: #{model_forward.27} parent=0 // pred_region
    _
  $region21: #{model_forward.27} parent=0 // pred_fallthru
    _
  %v21 = vld [vmem:[%s0] sm:$0xf]
  %v22 = vunpack.c.l.bf16 %v21
  %v23 = vld [vmem:[%s1] sm:$0x1]
  %v25 = vlaneseq
  %v26 = vshrl.u32 %v25, 7
  %v27 = vsub.s32 0, %v26
  %v28 = vrot.slane %v23, %v27
  %v30 = vmul.f32 %v22, %v28
  %v31 = vadd.f32 %v30, 0.0
  %s32 = scalar_lea.vmem %s0, 4
  %v33 = vld [vmem:[%s32] sm:$0xf]
  %v34 = vunpack.c.l.bf16 %v33
  %s35 = scalar_lea.vmem %s1, 1
  %v36 = vld [vmem:[%s35] sm:$0x1]
  %v38 = vlaneseq
  %v39 = vshrl.u32 %v38, 7
  %v40 = vsub.s32 0, %v39
  %v41 = vrot.slane %v36, %v40
  %v43 = vmul.f32 %v34, %v41
  %v44 = vadd.f32 %v31, %v43
  %s45 = scalar_lea.vmem %s0, 8
  %v46 = vld [vmem:[%s45] sm:$0xf]
  %v47 = vunpack.c.l.bf16 %v46
  %s48 = scalar_lea.vmem %s1, 2
  %v49 = vld [vmem:[%s48] sm:$0x1]
  %v51 = vlaneseq
  %v52 = vshrl.u32 %v51, 7
  %v53 = vsub.s32 0, %v52
  %v54 = vrot.slane %v49, %v53
  %v56 = vmul.f32 %v47, %v54
  %v57 = vadd.f32 %v44, %v56
  %s58 = scalar_lea.vmem %s0, 12
  %v59 = vld [vmem:[%s58] sm:$0xf]
  %v60 = vunpack.c.l.bf16 %v59
  %s61 = scalar_lea.vmem %s1, 3
  %v62 = vld [vmem:[%s61] sm:$0x1]
  %v64 = vlaneseq
  %v65 = vshrl.u32 %v64, 7
  %v66 = vsub.s32 0, %v65
  %v67 = vrot.slane %v62, %v66
  %v69 = vmul.f32 %v60, %v67
  %v70 = vadd.f32 %v57, %v69
  %s71 = scalar_lea.vmem %s0, 16
  %v72 = vld [vmem:[%s71] sm:$0xf]
  %v73 = vunpack.c.l.bf16 %v72
  %s74 = scalar_lea.vmem %s1, 4
  %v75 = vld [vmem:[%s74] sm:$0x1]
  %v77 = vlaneseq
  %v78 = vshrl.u32 %v77, 7
  %v79 = vsub.s32 0, %v78
  %v80 = vrot.slane %v75, %v79
  %v82 = vmul.f32 %v73, %v80
  %v83 = vadd.f32 %v70, %v82
  %s84 = scalar_lea.vmem %s0, 20
  %v85 = vld [vmem:[%s84] sm:$0xf]
  %v86 = vunpack.c.l.bf16 %v85
  %s87 = scalar_lea.vmem %s1, 5
  %v88 = vld [vmem:[%s87] sm:$0x1]
  %v90 = vlaneseq
  %v91 = vshrl.u32 %v90, 7
  %v92 = vsub.s32 0, %v91
  %v93 = vrot.slane %v88, %v92
  %v95 = vmul.f32 %v86, %v93
  %v96 = vadd.f32 %v83, %v95
  %s97 = scalar_lea.vmem %s0, 24
  %v98 = vld [vmem:[%s97] sm:$0xf]
  %v99 = vunpack.c.l.bf16 %v98
  %s100 = scalar_lea.vmem %s1, 6
  %v101 = vld [vmem:[%s100] sm:$0x1]
  %v103 = vlaneseq
  %v104 = vshrl.u32 %v103, 7
  %v105 = vsub.s32 0, %v104
  %v106 = vrot.slane %v101, %v105
  %v108 = vmul.f32 %v99, %v106
  %v109 = vadd.f32 %v96, %v108
  %s110 = scalar_lea.vmem %s0, 28
  %v111 = vld [vmem:[%s110] sm:$0xf]
  %v112 = vunpack.c.l.bf16 %v111
  %s113 = scalar_lea.vmem %s1, 7
  %v114 = vld [vmem:[%s113] sm:$0x1]
  %v116 = vlaneseq
  %v117 = vshrl.u32 %v116, 7
  %v118 = vsub.s32 0, %v117
  %v119 = vrot.slane %v114, %v118
  %v121 = vmul.f32 %v112, %v119
  %v122 = vadd.f32 %v109, %v121
  %s123 = scalar_lea.vmem %s0, 32
  %v124 = vld [vmem:[%s123] sm:$0xf]
  %v125 = vunpack.c.l.bf16 %v124
  %s126 = scalar_lea.vmem %s1, 8
  %v127 = vld [vmem:[%s126] sm:$0x1]
  %v129 = vlaneseq
  %v130 = vshrl.u32 %v129, 7
  %v131 = vsub.s32 0, %v130
  %v132 = vrot.slane %v127, %v131
  %v134 = vmul.f32 %v125, %v132
  %v135 = vadd.f32 %v122, %v134
  %v136 = vld [vmem:[%s2] sm:$0x1]
  %v138 = vlaneseq
  %v139 = vshrl.u32 %v138, 7
  %v140 = vsub.s32 0, %v139
  %v141 = vrot.slane %v136, %v140
  %v143 = vadd.f32 %v135, %v141
  %v144 = vmax.f32 %v143, 0.0
  %v145 = vmin.f32 %v144, 6.0
  %v146 = vpack.c.bf16 %v145, %v145
  %v147 = vld [vmem:[%s3] sm:$0xff]
  %v148 = vld [vmem:[%s3 + $0x8] sm:$0xff]
  %v149 = vld [vmem:[%s3 + $0x10] sm:$0xff]
  %v150 = vld [vmem:[%s3 + $0x18] sm:$0xff]
  %v151 = vld [vmem:[%s3 + $0x20] sm:$0xff]
  %v152 = vld [vmem:[%s3 + $0x28] sm:$0xff]
  %v153 = vld [vmem:[%s3 + $0x30] sm:$0xff]
  %v154 = vld [vmem:[%s3 + $0x38] sm:$0xff]
  %v155 = vld [vmem:[%s3 + $0x40] sm:$0xff]
  %v156 = vld [vmem:[%s3 + $0x48] sm:$0xff]
  %v157 = vld [vmem:[%s3 + $0x50] sm:$0xff]
  %v158 = vld [vmem:[%s3 + $0x58] sm:$0xff]
  %v159 = vld [vmem:[%s3 + $0x60] sm:$0xff]
  %v160 = vld [vmem:[%s3 + $0x68] sm:$0xff]
  %v161 = vld [vmem:[%s3 + $0x70] sm:$0xff]
  %v162 = vld [vmem:[%s3 + $0x78] sm:$0xff]
  %v163 = vld [vmem:[%s4] sm:$0x3]
  %v165 = vlaneseq
  %v166 = vshrl.u32 %v165, 7
  %v167 = vsub.s32 0, %v166
  %v168 = vrot.slane %v163, %v167
  %v169 = vlaneseq
  %v170 = vshrl.u32 %v169, 7
  %v171 = vsub.s32 1, %v170
  %v172 = vrot.slane %v163, %v171
  %v191 = vunpack.c.l.b16 %v147
  %v192 = vunpack.c.h.b16 %v147
  %v193 = vunpack.c.l.b16 %v148
  %v194 = vunpack.c.h.b16 %v148
  %v195 = vunpack.c.l.b16 %v149
  %v196 = vunpack.c.h.b16 %v149
  %v197 = vunpack.c.l.b16 %v150
  %v198 = vunpack.c.h.b16 %v150
  %v199 = vunpack.c.l.b16 %v151
  %v200 = vunpack.c.h.b16 %v151
  %v201 = vunpack.c.l.b16 %v152
  %v202 = vunpack.c.h.b16 %v152
  %v203 = vunpack.c.l.b16 %v153
  %v204 = vunpack.c.h.b16 %v153
  %v205 = vunpack.c.l.b16 %v154
  %v206 = vunpack.c.h.b16 %v154
  %v207 = vunpack.c.l.b16 %v155
  %v208 = vunpack.c.h.b16 %v155
  %v209 = vunpack.c.l.b16 %v156
  %v210 = vunpack.c.h.b16 %v156
  %v211 = vunpack.c.l.b16 %v157
  %v212 = vunpack.c.h.b16 %v157
  %v213 = vunpack.c.l.b16 %v158
  %v214 = vunpack.c.h.b16 %v158
  %v215 = vunpack.c.l.b16 %v159
  %v216 = vunpack.c.h.b16 %v159
  %v217 = vunpack.c.l.b16 %v160
  %v218 = vunpack.c.h.b16 %v160
  %v219 = vunpack.c.l.b16 %v161
  %v220 = vunpack.c.h.b16 %v161
  %v221 = vunpack.c.l.b16 %v162
  %v222 = vunpack.c.h.b16 %v162
  %v223 = vpack.c.b16 %v193, %v191
  %v224 = vpack.c.b16 %v194, %v192
  %v225 = vpack.c.b16 %v197, %v195
  %v226 = vpack.c.b16 %v198, %v196
  %v227 = vpack.c.b16 %v201, %v199
  %v228 = vpack.c.b16 %v202, %v200
  %v229 = vpack.c.b16 %v205, %v203
  %v230 = vpack.c.b16 %v206, %v204
  %v231 = vpack.c.b16 %v209, %v207
  %v232 = vpack.c.b16 %v210, %v208
  %v233 = vpack.c.b16 %v213, %v211
  %v234 = vpack.c.b16 %v214, %v212
  %v235 = vpack.c.b16 %v217, %v215
  %v236 = vpack.c.b16 %v218, %v216
  %v237 = vpack.c.b16 %v221, %v219
  %v238 = vpack.c.b16 %v222, %v220
  %255 = vmatprep.subr.bf16.mxu0 %v238
  %256 = vmatpush1.bf16.msra.mxu0 %v237
  %257 = vmatprep.subr.bf16.mxu0 %v236
  %258 = vmatpush1.bf16.msra.mxu0 %v235
  %259 = vmatprep.subr.bf16.mxu0 %v234
  %260 = vmatpush1.bf16.msra.mxu0 %v233
  %261 = vmatprep.subr.bf16.mxu0 %v232
  %262 = vmatpush1.bf16.msra.mxu0 %v231
  %263 = vmatprep.subr.bf16.mxu0 %v230
  %264 = vmatpush1.bf16.msra.mxu0 %v229
  %265 = vmatprep.subr.bf16.mxu0 %v228
  %266 = vmatpush1.bf16.msra.mxu0 %v227
  %267 = vmatprep.subr.bf16.mxu0 %v226
  %268 = vmatpush1.bf16.msra.mxu0 %v225
  %269 = vmatprep.subr.bf16.mxu0 %v224
  %270 = vmatpush1.bf16.msra.mxu0 %v223
  %271 = vmatprep.subr.bf16.mxu0 0
  %272 = vmatpush2.bf16.msra.mxu0 0
  %273 = vmatprep.subr.bf16.mxu0 0
  %274 = vmatpush2.bf16.msra.mxu0 0
  %275 = vmatprep.subr.bf16.mxu0 0
  %276 = vmatpush2.bf16.msra.mxu0 0
  %277 = vmatprep.subr.bf16.mxu0 0
  %278 = vmatpush2.bf16.msra.mxu0 0
  %279 = vmatprep.subr.bf16.mxu0 0
  %280 = vmatpush2.bf16.msra.mxu0 0
  %281 = vmatprep.subr.bf16.mxu0 0
  %282 = vmatpush2.bf16.msra.mxu0 0
  %283 = vmatprep.subr.bf16.mxu0 0
  %284 = vmatpush2.bf16.msra.mxu0 0
  %285 = vmatprep.subr.bf16.mxu0 0
  %286 = vmatpush2.bf16.msra.mxu0 0
  %287 = vmatprep.mubr.bf16.mxu0 0
  %288 = vmatmul.mubr.bf16.gmra.mxu0 %v146
  %v289 = vpop.f32.mrf.mxu0
  %v290 = vadd.f32 %v168, %v289
  %v291 = vpop.f32.mrf.mxu0
  %v292 = vadd.f32 %v172, %v291
  %v293 = vpop.f32.mrf.mxu0
  %v294 = vpop.f32.mrf.mxu0
  %295 = vdwg.mxu0
  %v296 = vmax.f32 %v290, 0.0
  %v297 = vmax.f32 %v292, 0.0
  %v298 = vmin.f32 %v296, 6.0
  %v299 = vmin.f32 %v297, 6.0
  %v300 = vpack.c.bf16 %v298, %v298
  %v301 = vpack.c.bf16 %v299, %v299
  %v304 = vunpack.c.l.b16 %v300
  %v305 = vunpack.c.l.b16 %v301
  %v306 = vpack.c.b16 %v305, %v304
  %308 = vst [vmem:[%s5] sm:$0xff] %v306
  // Predicated region
  $region22: #{model_forward.27} parent=0 // pred_check
    _
  $region23: #{model_forward.27} parent=0 // pred_check_branch
    %310 = sbr.rel (0) target = $region25
  $region24: #{model_forward.27} parent=0 // pred_region
    _
  $region25: #{model_forward.27} parent=0 // pred_fallthru
    _
  // Predicated region
  $region26: #{model_forward.27} parent=0 // pred_check
    _
  $region27: #{model_forward.27} parent=0 // pred_check_branch
    %312 = sbr.rel (0) target = $region29
  $region28: #{model_forward.27} parent=0 // pred_region
    _
  $region29: #{model_forward.27} parent=0 // pred_fallthru
    _

// kernel: model_forward.28
$region0: #{model_forward.28}
  #allocation0 [shape = 'u32[]', space=smem, size = 0x4, offset = 0x4, fixed_abs, tag = 'smem constant byte address 0x4 - core index']
  #allocation1 [shape = 'u32[144,128]{1,0:T(1,128)}', space=vmem, size = 0x12000, scoped, tag = 'internal scratch']
  %s0 = inlined_call_operand.vmem [shape: bf16[9,8,256], index: 0, kind: input, shape index: {}]
  %s1 = inlined_call_operand.vmem [shape: f32[9,1,256], index: 1, kind: input, shape index: {}]
  %s2 = inlined_call_operand.vmem [shape: f32[1,256], index: 2, kind: input, shape index: {}]
  %s3 = inlined_call_operand.vmem [shape: bf16[256,256], index: 3, kind: input, shape index: {}]
  %s4 = inlined_call_operand.vmem [shape: f32[1,256], index: 4, kind: input, shape index: {}]
  %s5 = inlined_call_operand.vmem [shape: bf16[8,256], index: 5, kind: output, shape index: {}]
  %s6 = sld [smem:[#allocation0]]
  $region30: #{model_forward.28} parent=0
    _
  %s8 = ssub.s32 1, %s6
  %s9 = scalar_select 0, %s8, %s6
  // Predicated region
  $region2: #{model_forward.28} parent=0 // pred_check
    _
  $region3: #{model_forward.28} parent=0 // pred_check_branch
    %11 = sbr.rel (0) target = $region5
  $region4: #{model_forward.28} parent=0 // pred_region
    _
  $region5: #{model_forward.28} parent=0 // pred_fallthru
    _
  // Predicated region
  $region6: #{model_forward.28} parent=0 // pred_check
    _
  $region7: #{model_forward.28} parent=0 // pred_check_branch
    %13 = sbr.rel (0) target = $region9
  $region8: #{model_forward.28} parent=0 // pred_region
    _
  $region9: #{model_forward.28} parent=0 // pred_fallthru
    _
  // Predicated region
  $region10: #{model_forward.28} parent=0 // pred_check
    _
  $region11: #{model_forward.28} parent=0 // pred_check_branch
    %15 = sbr.rel (0) target = $region13
  $region12: #{model_forward.28} parent=0 // pred_region
    _
  $region13: #{model_forward.28} parent=0 // pred_fallthru
    _
  // Predicated region
  $region14: #{model_forward.28} parent=0 // pred_check
    _
  $region15: #{model_forward.28} parent=0 // pred_check_branch
    %17 = sbr.rel (0) target = $region17
  $region16: #{model_forward.28} parent=0 // pred_region
    _
  $region17: #{model_forward.28} parent=0 // pred_fallthru
    _
  // Predicated region
  $region18: #{model_forward.28} parent=0 // pred_check
    _
  $region19: #{model_forward.28} parent=0 // pred_check_branch
    %19 = sbr.rel (0) target = $region21
  $region20: #{model_forward.28} parent=0 // pred_region
    _
  $region21: #{model_forward.28} parent=0 // pred_fallthru
    _
  %v20 = vld [vmem:[%s0] sm:$0xff]
  %v21 = vunpack.c.l.bf16 %v20
  %v22 = vunpack.c.h.bf16 %v20
  %v23 = vld [vmem:[%s1] sm:$0x3]
  %v25 = vlaneseq
  %v26 = vshrl.u32 %v25, 7
  %v27 = vsub.s32 0, %v26
  %v28 = vrot.slane %v23, %v27
  %v29 = vlaneseq
  %v30 = vshrl.u32 %v29, 7
  %v31 = vsub.s32 1, %v30
  %v32 = vrot.slane %v23, %v31
  %v35 = vmul.f32 %v21, %v28
  %v36 = vmul.f32 %v22, %v32
  %v37 = vadd.f32 %v35, 0.0
  %v38 = vadd.f32 %v36, 0.0
  %s39 = scalar_lea.vmem %s0, 8
  %v40 = vld [vmem:[%s39] sm:$0xff]
  %v41 = vunpack.c.l.bf16 %v40
  %v42 = vunpack.c.h.bf16 %v40
  %s43 = scalar_lea.vmem %s1, 2
  %v44 = vld [vmem:[%s43] sm:$0x3]
  %v46 = vlaneseq
  %v47 = vshrl.u32 %v46, 7
  %v48 = vsub.s32 0, %v47
  %v49 = vrot.slane %v44, %v48
  %v50 = vlaneseq
  %v51 = vshrl.u32 %v50, 7
  %v52 = vsub.s32 1, %v51
  %v53 = vrot.slane %v44, %v52
  %v56 = vmul.f32 %v41, %v49
  %v57 = vmul.f32 %v42, %v53
  %v58 = vadd.f32 %v37, %v56
  %v59 = vadd.f32 %v38, %v57
  %s60 = scalar_lea.vmem %s0, 16
  %v61 = vld [vmem:[%s60] sm:$0xff]
  %v62 = vunpack.c.l.bf16 %v61
  %v63 = vunpack.c.h.bf16 %v61
  %s64 = scalar_lea.vmem %s1, 4
  %v65 = vld [vmem:[%s64] sm:$0x3]
  %v67 = vlaneseq
  %v68 = vshrl.u32 %v67, 7
  %v69 = vsub.s32 0, %v68
  %v70 = vrot.slane %v65, %v69
  %v71 = vlaneseq
  %v72 = vshrl.u32 %v71, 7
  %v73 = vsub.s32 1, %v72
  %v74 = vrot.slane %v65, %v73
  %v77 = vmul.f32 %v62, %v70
  %v78 = vmul.f32 %v63, %v74
  %v79 = vadd.f32 %v58, %v77
  %v80 = vadd.f32 %v59, %v78
  %s81 = scalar_lea.vmem %s0, 24
  %v82 = vld [vmem:[%s81] sm:$0xff]
  %v83 = vunpack.c.l.bf16 %v82
  %v84 = vunpack.c.h.bf16 %v82
  %s85 = scalar_lea.vmem %s1, 6
  %v86 = vld [vmem:[%s85] sm:$0x3]
  %v88 = vlaneseq
  %v89 = vshrl.u32 %v88, 7
  %v90 = vsub.s32 0, %v89
  %v91 = vrot.slane %v86, %v90
  %v92 = vlaneseq
  %v93 = vshrl.u32 %v92, 7
  %v94 = vsub.s32 1, %v93
  %v95 = vrot.slane %v86, %v94
  %v98 = vmul.f32 %v83, %v91
  %v99 = vmul.f32 %v84, %v95
  %v100 = vadd.f32 %v79, %v98
  %v101 = vadd.f32 %v80, %v99
  %s102 = scalar_lea.vmem %s0, 32
  %v103 = vld [vmem:[%s102] sm:$0xff]
  %v104 = vunpack.c.l.bf16 %v103
  %v105 = vunpack.c.h.bf16 %v103
  %s106 = scalar_lea.vmem %s1, 8
  %v107 = vld [vmem:[%s106] sm:$0x3]
  %v109 = vlaneseq
  %v110 = vshrl.u32 %v109, 7
  %v111 = vsub.s32 0, %v110
  %v112 = vrot.slane %v107, %v111
  %v113 = vlaneseq
  %v114 = vshrl.u32 %v113, 7
  %v115 = vsub.s32 1, %v114
  %v116 = vrot.slane %v107, %v115
  %v119 = vmul.f32 %v104, %v112
  %v120 = vmul.f32 %v105, %v116
  %v121 = vadd.f32 %v100, %v119
  %v122 = vadd.f32 %v101, %v120
  %s123 = scalar_lea.vmem %s0, 40
  %v124 = vld [vmem:[%s123] sm:$0xff]
  %v125 = vunpack.c.l.bf16 %v124
  %v126 = vunpack.c.h.bf16 %v124
  %s127 = scalar_lea.vmem %s1, 10
  %v128 = vld [vmem:[%s127] sm:$0x3]
  %v130 = vlaneseq
  %v131 = vshrl.u32 %v130, 7
  %v132 = vsub.s32 0, %v131
  %v133 = vrot.slane %v128, %v132
  %v134 = vlaneseq
  %v135 = vshrl.u32 %v134, 7
  %v136 = vsub.s32 1, %v135
  %v137 = vrot.slane %v128, %v136
  %v140 = vmul.f32 %v125, %v133
  %v141 = vmul.f32 %v126, %v137
  %v142 = vadd.f32 %v121, %v140
  %v143 = vadd.f32 %v122, %v141
  %s144 = scalar_lea.vmem %s0, 48
  %v145 = vld [vmem:[%s144] sm:$0xff]
  %v146 = vunpack.c.l.bf16 %v145
  %v147 = vunpack.c.h.bf16 %v145
  %s148 = scalar_lea.vmem %s1, 12
  %v149 = vld [vmem:[%s148] sm:$0x3]
  %v151 = vlaneseq
  %v152 = vshrl.u32 %v151, 7
  %v153 = vsub.s32 0, %v152
  %v154 = vrot.slane %v149, %v153
  %v155 = vlaneseq
  %v156 = vshrl.u32 %v155, 7
  %v157 = vsub.s32 1, %v156
  %v158 = vrot.slane %v149, %v157
  %v161 = vmul.f32 %v146, %v154
  %v162 = vmul.f32 %v147, %v158
  %v163 = vadd.f32 %v142, %v161
  %v164 = vadd.f32 %v143, %v162
  %s165 = scalar_lea.vmem %s0, 56
  %v166 = vld [vmem:[%s165] sm:$0xff]
  %v167 = vunpack.c.l.bf16 %v166
  %v168 = vunpack.c.h.bf16 %v166
  %s169 = scalar_lea.vmem %s1, 14
  %v170 = vld [vmem:[%s169] sm:$0x3]
  %v172 = vlaneseq
  %v173 = vshrl.u32 %v172, 7
  %v174 = vsub.s32 0, %v173
  %v175 = vrot.slane %v170, %v174
  %v176 = vlaneseq
  %v177 = vshrl.u32 %v176, 7
  %v178 = vsub.s32 1, %v177
  %v179 = vrot.slane %v170, %v178
  %v182 = vmul.f32 %v167, %v175
  %v183 = vmul.f32 %v168, %v179
  %v184 = vadd.f32 %v163, %v182
  %v185 = vadd.f32 %v164, %v183
  %s186 = scalar_lea.vmem %s0, 64
  %v187 = vld [vmem:[%s186] sm:$0xff]
  %v188 = vunpack.c.l.bf16 %v187
  %v189 = vunpack.c.h.bf16 %v187
  %s190 = scalar_lea.vmem %s1, 16
  %v191 = vld [vmem:[%s190] sm:$0x3]
  %v193 = vlaneseq
  %v194 = vshrl.u32 %v193, 7
  %v195 = vsub.s32 0, %v194
  %v196 = vrot.slane %v191, %v195
  %v197 = vlaneseq
  %v198 = vshrl.u32 %v197, 7
  %v199 = vsub.s32 1, %v198
  %v200 = vrot.slane %v191, %v199
  %v203 = vmul.f32 %v188, %v196
  %v204 = vmul.f32 %v189, %v200
  %v205 = vadd.f32 %v184, %v203
  %v206 = vadd.f32 %v185, %v204
  %v207 = vld [vmem:[%s2] sm:$0x3]
  %v209 = vlaneseq
  %v210 = vshrl.u32 %v209, 7
  %v211 = vsub.s32 0, %v210
  %v212 = vrot.slane %v207, %v211
  %v213 = vlaneseq
  %v214 = vshrl.u32 %v213, 7
  %v215 = vsub.s32 1, %v214
  %v216 = vrot.slane %v207, %v215
  %v219 = vadd.f32 %v205, %v212
  %v220 = vadd.f32 %v206, %v216
  %v221 = vmax.f32 %v219, 0.0
  %v222 = vmax.f32 %v220, 0.0
  %v223 = vmin.f32 %v221, 6.0
  %v224 = vmin.f32 %v222, 6.0
  %v225 = vpack.c.bf16 %v223, %v223
  %v226 = vpack.c.bf16 %v224, %v224
  %v227 = vld [vmem:[%s3] sm:$0xff]
  %v228 = vld [vmem:[%s3 + $0x8] sm:$0xff]
  %v229 = vld [vmem:[%s3 + $0x10] sm:$0xff]
  %v230 = vld [vmem:[%s3 + $0x18] sm:$0xff]
  %v231 = vld [vmem:[%s3 + $0x20] sm:$0xff]
  %v232 = vld [vmem:[%s3 + $0x28] sm:$0xff]
  %v233 = vld [vmem:[%s3 + $0x30] sm:$0xff]
  %v234 = vld [vmem:[%s3 + $0x38] sm:$0xff]
  %v235 = vld [vmem:[%s3 + $0x40] sm:$0xff]
  %v236 = vld [vmem:[%s3 + $0x48] sm:$0xff]
  %v237 = vld [vmem:[%s3 + $0x50] sm:$0xff]
  %v238 = vld [vmem:[%s3 + $0x58] sm:$0xff]
  %v239 = vld [vmem:[%s3 + $0x60] sm:$0xff]
  %v240 = vld [vmem:[%s3 + $0x68] sm:$0xff]
  %v241 = vld [vmem:[%s3 + $0x70] sm:$0xff]
  %v242 = vld [vmem:[%s3 + $0x78] sm:$0xff]
  %v243 = vld [vmem:[%s3 + $0x80] sm:$0xff]
  %v244 = vld [vmem:[%s3 + $0x88] sm:$0xff]
  %v245 = vld [vmem:[%s3 + $0x90] sm:$0xff]
  %v246 = vld [vmem:[%s3 + $0x98] sm:$0xff]
  %v247 = vld [vmem:[%s3 + $0xa0] sm:$0xff]
  %v248 = vld [vmem:[%s3 + $0xa8] sm:$0xff]
  %v249 = vld [vmem:[%s3 + $0xb0] sm:$0xff]
  %v250 = vld [vmem:[%s3 + $0xb8] sm:$0xff]
  %v251 = vld [vmem:[%s3 + $0xc0] sm:$0xff]
  %v252 = vld [vmem:[%s3 + $0xc8] sm:$0xff]
  %v253 = vld [vmem:[%s3 + $0xd0] sm:$0xff]
  %v254 = vld [vmem:[%s3 + $0xd8] sm:$0xff]
  %v255 = vld [vmem:[%s3 + $0xe0] sm:$0xff]
  %v256 = vld [vmem:[%s3 + $0xe8] sm:$0xff]
  %v257 = vld [vmem:[%s3 + $0xf0] sm:$0xff]
  %v258 = vld [vmem:[%s3 + $0xf8] sm:$0xff]
  %v259 = vld [vmem:[%s4] sm:$0x3]
  %v261 = vlaneseq
  %v262 = vshrl.u32 %v261, 7
  %v263 = vsub.s32 0, %v262
  %v264 = vrot.slane %v259, %v263
  %v265 = vlaneseq
  %v266 = vshrl.u32 %v265, 7
  %v267 = vsub.s32 1, %v266
  %v268 = vrot.slane %v259, %v267
  %v303 = vunpack.c.l.b16 %v227
  %v304 = vunpack.c.h.b16 %v227
  %v305 = vunpack.c.l.b16 %v228
  %v306 = vunpack.c.h.b16 %v228
  %v307 = vunpack.c.l.b16 %v229
  %v308 = vunpack.c.h.b16 %v229
  %v309 = vunpack.c.l.b16 %v230
  %v310 = vunpack.c.h.b16 %v230
  %v311 = vunpack.c.l.b16 %v231
  %v312 = vunpack.c.h.b16 %v231
  %v313 = vunpack.c.l.b16 %v232
  %v314 = vunpack.c.h.b16 %v232
  %v315 = vunpack.c.l.b16 %v233
  %v316 = vunpack.c.h.b16 %v233
  %v317 = vunpack.c.l.b16 %v234
  %v318 = vunpack.c.h.b16 %v234
  %v319 = vunpack.c.l.b16 %v235
  %v320 = vunpack.c.h.b16 %v235
  %v321 = vunpack.c.l.b16 %v236
  %v322 = vunpack.c.h.b16 %v236
  %v323 = vunpack.c.l.b16 %v237
  %v324 = vunpack.c.h.b16 %v237
  %v325 = vunpack.c.l.b16 %v238
  %v326 = vunpack.c.h.b16 %v238
  %v327 = vunpack.c.l.b16 %v239
  %v328 = vunpack.c.h.b16 %v239
  %v329 = vunpack.c.l.b16 %v240
  %v330 = vunpack.c.h.b16 %v240
  %v331 = vunpack.c.l.b16 %v241
  %v332 = vunpack.c.h.b16 %v241
  %v333 = vunpack.c.l.b16 %v242
  %v334 = vunpack.c.h.b16 %v242
  %v335 = vunpack.c.l.b16 %v243
  %v336 = vunpack.c.h.b16 %v243
  %v337 = vunpack.c.l.b16 %v244
  %v338 = vunpack.c.h.b16 %v244
  %v339 = vunpack.c.l.b16 %v245
  %v340 = vunpack.c.h.b16 %v245
  %v341 = vunpack.c.l.b16 %v246
  %v342 = vunpack.c.h.b16 %v246
  %v343 = vunpack.c.l.b16 %v247
  %v344 = vunpack.c.h.b16 %v247
  %v345 = vunpack.c.l.b16 %v248
  %v346 = vunpack.c.h.b16 %v248
  %v347 = vunpack.c.l.b16 %v249
  %v348 = vunpack.c.h.b16 %v249
  %v349 = vunpack.c.l.b16 %v250
  %v350 = vunpack.c.h.b16 %v250
  %v351 = vunpack.c.l.b16 %v251
  %v352 = vunpack.c.h.b16 %v251
  %v353 = vunpack.c.l.b16 %v252
  %v354 = vunpack.c.h.b16 %v252
  %v355 = vunpack.c.l.b16 %v253
  %v356 = vunpack.c.h.b16 %v253
  %v357 = vunpack.c.l.b16 %v254
  %v358 = vunpack.c.h.b16 %v254
  %v359 = vunpack.c.l.b16 %v255
  %v360 = vunpack.c.h.b16 %v255
  %v361 = vunpack.c.l.b16 %v256
  %v362 = vunpack.c.h.b16 %v256
  %v363 = vunpack.c.l.b16 %v257
  %v364 = vunpack.c.h.b16 %v257
  %v365 = vunpack.c.l.b16 %v258
  %v366 = vunpack.c.h.b16 %v258
  %v367 = vpack.c.b16 %v305, %v303
  %v368 = vpack.c.b16 %v306, %v304
  %v369 = vpack.c.b16 %v309, %v307
  %v370 = vpack.c.b16 %v310, %v308
  %v371 = vpack.c.b16 %v313, %v311
  %v372 = vpack.c.b16 %v314, %v312
  %v373 = vpack.c.b16 %v317, %v315
  %v374 = vpack.c.b16 %v318, %v316
  %v375 = vpack.c.b16 %v321, %v319
  %v376 = vpack.c.b16 %v322, %v320
  %v377 = vpack.c.b16 %v325, %v323
  %v378 = vpack.c.b16 %v326, %v324
  %v379 = vpack.c.b16 %v329, %v327
  %v380 = vpack.c.b16 %v330, %v328
  %v381 = vpack.c.b16 %v333, %v331
  %v382 = vpack.c.b16 %v334, %v332
  %v383 = vpack.c.b16 %v337, %v335
  %v384 = vpack.c.b16 %v338, %v336
  %v385 = vpack.c.b16 %v341, %v339
  %v386 = vpack.c.b16 %v342, %v340
  %v387 = vpack.c.b16 %v345, %v343
  %v388 = vpack.c.b16 %v346, %v344
  %v389 = vpack.c.b16 %v349, %v347
  %v390 = vpack.c.b16 %v350, %v348
  %v391 = vpack.c.b16 %v353, %v351
  %v392 = vpack.c.b16 %v354, %v352
  %v393 = vpack.c.b16 %v357, %v355
  %v394 = vpack.c.b16 %v358, %v356
  %v395 = vpack.c.b16 %v361, %v359
  %v396 = vpack.c.b16 %v362, %v360
  %v397 = vpack.c.b16 %v365, %v363
  %v398 = vpack.c.b16 %v366, %v364
  %431 = vmatprep.subr.bf16.mxu0 %v382
  %432 = vmatpush1.bf16.msra.mxu0 %v381
  %433 = vmatprep.subr.bf16.mxu0 %v380
  %434 = vmatpush1.bf16.msra.mxu0 %v379
  %435 = vmatprep.subr.bf16.mxu0 %v378
  %436 = vmatpush1.bf16.msra.mxu0 %v377
  %437 = vmatprep.subr.bf16.mxu0 %v376
  %438 = vmatpush1.bf16.msra.mxu0 %v375
  %439 = vmatprep.subr.bf16.mxu0 %v374
  %440 = vmatpush1.bf16.msra.mxu0 %v373
  %441 = vmatprep.subr.bf16.mxu0 %v372
  %442 = vmatpush1.bf16.msra.mxu0 %v371
  %443 = vmatprep.subr.bf16.mxu0 %v370
  %444 = vmatpush1.bf16.msra.mxu0 %v369
  %445 = vmatprep.subr.bf16.mxu0 %v368
  %446 = vmatpush1.bf16.msra.mxu0 %v367
  %447 = vmatprep.subr.bf16.mxu0 %v398
  %448 = vmatpush2.bf16.msra.mxu0 %v397
  %449 = vmatprep.subr.bf16.mxu0 %v396
  %450 = vmatpush2.bf16.msra.mxu0 %v395
  %451 = vmatprep.subr.bf16.mxu0 %v394
  %452 = vmatpush2.bf16.msra.mxu0 %v393
  %453 = vmatprep.subr.bf16.mxu0 %v392
  %454 = vmatpush2.bf16.msra.mxu0 %v391
  %455 = vmatprep.subr.bf16.mxu0 %v390
  %456 = vmatpush2.bf16.msra.mxu0 %v389
  %457 = vmatprep.subr.bf16.mxu0 %v388
  %458 = vmatpush2.bf16.msra.mxu0 %v387
  %459 = vmatprep.subr.bf16.mxu0 %v386
  %460 = vmatpush2.bf16.msra.mxu0 %v385
  %461 = vmatprep.subr.bf16.mxu0 %v384
  %462 = vmatpush2.bf16.msra.mxu0 %v383
  %463 = vmatprep.mubr.bf16.mxu0 %v226
  %464 = vmatmul.mubr.bf16.gmra.mxu0 %v225
  %v465 = vpop.f32.mrf.mxu0
  %v466 = vadd.f32 %v264, %v465
  %v467 = vpop.f32.mrf.mxu0
  %v468 = vadd.f32 %v268, %v467
  %v469 = vpop.f32.mrf.mxu0
  %v470 = vpop.f32.mrf.mxu0
  %471 = vdwg.mxu0
  %v472 = vmax.f32 %v466, 0.0
  %v473 = vmax.f32 %v468, 0.0
  %v474 = vmin.f32 %v472, 6.0
  %v475 = vmin.f32 %v473, 6.0
  %v476 = vpack.c.bf16 %v474, %v474
  %v477 = vpack.c.bf16 %v475, %v475
  %v480 = vunpack.c.l.b16 %v476
  %v481 = vunpack.c.l.b16 %v477
  %v482 = vpack.c.b16 %v481, %v480
  %484 = vst [vmem:[%s5] sm:$0xff] %v482
  // Predicated region
  $region22: #{model_forward.28} parent=0 // pred_check
    _
  $region23: #{model_forward.28} parent=0 // pred_check_branch
    %486 = sbr.rel (0) target = $region25
  $region24: #{model_forward.28} parent=0 // pred_region
    _
  $region25: #{model_forward.28} parent=0 // pred_fallthru
    _
  // Predicated region
  $region26: #{model_forward.28} parent=0 // pred_check
    _
  $region27: #{model_forward.28} parent=0 // pred_check_branch
    %488 = sbr.rel (0) target = $region29
  $region28: #{model_forward.28} parent=0 // pred_region
    _
  $region29: #{model_forward.28} parent=0 // pred_fallthru
    _

// kernel: model_forward.29
$region0: #{model_forward.29}
  #allocation0 [shape = 'u32[]', space=smem, size = 0x4, offset = 0x4, fixed_abs, tag = 'smem constant byte address 0x4 - core index']
  #allocation1 [shape = 'u32[144,128]{1,0:T(1,128)}', space=vmem, size = 0x12000, scoped, tag = 'internal scratch']
  %s0 = inlined_call_operand.vmem [shape: bf16[2,4,256], index: 0, kind: input, shape index: {}]
  %s1 = inlined_call_operand.vmem [shape: f32[256,16], index: 1, kind: input, shape index: {}]
  %s2 = inlined_call_operand.vmem [shape: f32[1,16], index: 2, kind: input, shape index: {}]
  %s3 = inlined_call_operand.hbm [shape: f32[2,16], index: 3, kind: output, shape index: {}]
  %s4 = sld [smem:[#allocation0]]
  $region22: #{model_forward.29} parent=0
    _
  %s6 = ssub.s32 1, %s4
  %s7 = scalar_select 0, %s6, %s4
  $region1: #{model_forward.29} parent=0
    #allocation2 [shape = 'u8[1024]{0}', space=vmem, size = 0x400, scoped, tag = 'output window, operand 0, single buffered']
    #allocation3 [shape = 's32[1]{0}', space=sflag, size = 0x4, scoped, tag = 'scoped memory for model_forward.29']
    %8 = vsyncpa [#allocation3], 0
    // Predicated region
    $region2: #{model_forward.29} parent=1 // pred_check
      _
    $region3: #{model_forward.29} parent=1 // pred_check_branch
      %10 = sbr.rel (0) target = $region5
    $region4: #{model_forward.29} parent=1 // pred_region
      _
    $region5: #{model_forward.29} parent=1 // pred_fallthru
      _
    // Predicated region
    $region6: #{model_forward.29} parent=1 // pred_check
      _
    $region7: #{model_forward.29} parent=1 // pred_check_branch
      %12 = sbr.rel (0) target = $region9
    $region8: #{model_forward.29} parent=1 // pred_region
      _
    $region9: #{model_forward.29} parent=1 // pred_fallthru
      _
    // Predicated region
    $region10: #{model_forward.29} parent=1 // pred_check
      _
    $region11: #{model_forward.29} parent=1 // pred_check_branch
      %14 = sbr.rel (0) target = $region13
    $region12: #{model_forward.29} parent=1 // pred_region
      _
    $region13: #{model_forward.29} parent=1 // pred_fallthru
      _
    %v15 = vld [vmem:[%s0] sm:$0xf]
    %v16 = vld [vmem:[%s0 + $0x4] sm:$0xf]
    %v17 = vunpack.c.l.bf16 %v15
    %v18 = vunpack.c.l.bf16 %v16
    %v21 = vcombine.high %v17, %v17
    %v22 = vcombine.high %v18, %v18
    %vm25 = vcmask 1043456
    %v26 = vsel %vm25, %v17, 0.0
    %v27 = vrot.slane %v26, 4
    %v28 = vadd.f32 %v26, %v27
    %v29 = vrot.slane %v28, 2
    %v30 = vadd.f32 %v28, %v29
    %v31 = vrot.slane %v30, 1
    %v32 = vadd.f32 %v30, %v31
    %v33 = vsel %vm25, %v21, 0.0
    %v34 = vrot.slane %v33, 4
    %v35 = vadd.f32 %v33, %v34
    %v36 = vrot.slane %v35, 2
    %v37 = vadd.f32 %v35, %v36
    %v38 = vrot.slane %v37, 1
    %v39 = vadd.f32 %v37, %v38
    %v40 = vsel %vm25, %v18, 0.0
    %v41 = vrot.slane %v40, 4
    %v42 = vadd.f32 %v40, %v41
    %v43 = vrot.slane %v42, 2
    %v44 = vadd.f32 %v42, %v43
    %v45 = vrot.slane %v44, 1
    %v46 = vadd.f32 %v44, %v45
    %v47 = vsel %vm25, %v22, 0.0
    %v48 = vrot.slane %v47, 4
    %v49 = vadd.f32 %v47, %v48
    %v50 = vrot.slane %v49, 2
    %v51 = vadd.f32 %v49, %v50
    %v52 = vrot.slane %v51, 1
    %v53 = vadd.f32 %v51, %v52
    %v54 = vrcp.pop 4.0
    %v55 = vmul.f32 %v32, %v54
    %v56 = vmul.f32 %v39, %v54
    %v57 = vmul.f32 %v46, %v54
    %v58 = vmul.f32 %v53, %v54
    %v59 = vld [vmem:[%s1] sm:$0xff]
    %v60 = vld [vmem:[%s1 + $0x8] sm:$0xff]
    %v61 = vld [vmem:[%s1 + $0x10] sm:$0xff]
    %v62 = vld [vmem:[%s1 + $0x18] sm:$0xff]
    %v63 = vld [vmem:[%s1 + $0x20] sm:$0xff]
    %v64 = vld [vmem:[%s1 + $0x28] sm:$0xff]
    %v65 = vld [vmem:[%s1 + $0x30] sm:$0xff]
    %v66 = vld [vmem:[%s1 + $0x38] sm:$0xff]
    %v67 = vld [vmem:[%s1 + $0x40] sm:$0xff]
    %v68 = vld [vmem:[%s1 + $0x48] sm:$0xff]
    %v69 = vld [vmem:[%s1 + $0x50] sm:$0xff]
    %v70 = vld [vmem:[%s1 + $0x58] sm:$0xff]
    %v71 = vld [vmem:[%s1 + $0x60] sm:$0xff]
    %v72 = vld [vmem:[%s1 + $0x68] sm:$0xff]
    %v73 = vld [vmem:[%s1 + $0x70] sm:$0xff]
    %v74 = vld [vmem:[%s1 + $0x78] sm:$0xff]
    %v75 = vld [vmem:[%s1 + $0x80] sm:$0xff]
    %v76 = vld [vmem:[%s1 + $0x88] sm:$0xff]
    %v77 = vld [vmem:[%s1 + $0x90] sm:$0xff]
    %v78 = vld [vmem:[%s1 + $0x98] sm:$0xff]
    %v79 = vld [vmem:[%s1 + $0xa0] sm:$0xff]
    %v80 = vld [vmem:[%s1 + $0xa8] sm:$0xff]
    %v81 = vld [vmem:[%s1 + $0xb0] sm:$0xff]
    %v82 = vld [vmem:[%s1 + $0xb8] sm:$0xff]
    %v83 = vld [vmem:[%s1 + $0xc0] sm:$0xff]
    %v84 = vld [vmem:[%s1 + $0xc8] sm:$0xff]
    %v85 = vld [vmem:[%s1 + $0xd0] sm:$0xff]
    %v86 = vld [vmem:[%s1 + $0xd8] sm:$0xff]
    %v87 = vld [vmem:[%s1 + $0xe0] sm:$0xff]
    %v88 = vld [vmem:[%s1 + $0xe8] sm:$0xff]
    %v89 = vld [vmem:[%s1 + $0xf0] sm:$0xff]
    %v90 = vld [vmem:[%s1 + $0xf8] sm:$0xff]
    %v91 = vld [vmem:[%s2] sm:$0x1]
    %v93 = vlaneseq
    %v94 = vshrl.u32 %v93, 7
    %v95 = vsub.s32 0, %v94
    %v96 = vrot.slane %v91, %v95
    %vm102 = vcmask 1041409
    %v103 = vsel %vm102, %v57, %v55
    %v104 = vsel %vm102, %v58, %v56
    %107 = vmatprep.subr.mxu0 0.0
    %108 = vmatpush1.msra.mxu0 %v74
    %109 = vmatprep.subr.mxu0 0.0
    %110 = vmatpush1.msra.mxu0 %v73
    %111 = vmatprep.subr.mxu0 0.0
    %112 = vmatpush1.msra.mxu0 %v72
    %113 = vmatprep.subr.mxu0 0.0
    %114 = vmatpush1.msra.mxu0 %v71
    %115 = vmatprep.subr.mxu0 0.0
    %116 = vmatpush1.msra.mxu0 %v70
    %117 = vmatprep.subr.mxu0 0.0
    %118 = vmatpush1.msra.mxu0 %v69
    %119 = vmatprep.subr.mxu0 0.0
    %120 = vmatpush1.msra.mxu0 %v68
    %121 = vmatprep.subr.mxu0 0.0
    %122 = vmatpush1.msra.mxu0 %v67
    %123 = vmatprep.subr.mxu0 0.0
    %124 = vmatpush1.msra.mxu0 %v66
    %125 = vmatprep.subr.mxu0 0.0
    %126 = vmatpush1.msra.mxu0 %v65
    %127 = vmatprep.subr.mxu0 0.0
    %128 = vmatpush1.msra.mxu0 %v64
    %129 = vmatprep.subr.mxu0 0.0
    %130 = vmatpush1.msra.mxu0 %v63
    %131 = vmatprep.subr.mxu0 0.0
    %132 = vmatpush1.msra.mxu0 %v62
    %133 = vmatprep.subr.mxu0 0.0
    %134 = vmatpush1.msra.mxu0 %v61
    %135 = vmatprep.subr.mxu0 0.0
    %136 = vmatpush1.msra.mxu0 %v60
    %137 = vmatprep.subr.mxu0 0.0
    %138 = vmatpush1.msra.mxu0 %v59
    %139 = vmatprep.subr.mxu0 0.0
    %140 = vmatpush2.msra.mxu0 %v90
    %141 = vmatprep.subr.mxu0 0.0
    %142 = vmatpush2.msra.mxu0 %v89
    %143 = vmatprep.subr.mxu0 0.0
    %144 = vmatpush2.msra.mxu0 %v88
    %145 = vmatprep.subr.mxu0 0.0
    %146 = vmatpush2.msra.mxu0 %v87
    %147 = vmatprep.subr.mxu0 0.0
    %148 = vmatpush2.msra.mxu0 %v86
    %149 = vmatprep.subr.mxu0 0.0
    %150 = vmatpush2.msra.mxu0 %v85
    %151 = vmatprep.subr.mxu0 0.0
    %152 = vmatpush2.msra.mxu0 %v84
    %153 = vmatprep.subr.mxu0 0.0
    %154 = vmatpush2.msra.mxu0 %v83
    %155 = vmatprep.subr.mxu0 0.0
    %156 = vmatpush2.msra.mxu0 %v82
    %157 = vmatprep.subr.mxu0 0.0
    %158 = vmatpush2.msra.mxu0 %v81
    %159 = vmatprep.subr.mxu0 0.0
    %160 = vmatpush2.msra.mxu0 %v80
    %161 = vmatprep.subr.mxu0 0.0
    %162 = vmatpush2.msra.mxu0 %v79
    %163 = vmatprep.subr.mxu0 0.0
    %164 = vmatpush2.msra.mxu0 %v78
    %165 = vmatprep.subr.mxu0 0.0
    %166 = vmatpush2.msra.mxu0 %v77
    %167 = vmatprep.subr.mxu0 0.0
    %168 = vmatpush2.msra.mxu0 %v76
    %169 = vmatprep.subr.mxu0 0.0
    %170 = vmatpush2.msra.mxu0 %v75
    %171 = vmatprep.mubr.f32.mxu0 %v104
    %172 = vmatmul.mubr.f32.gmra.mxu0 %v103
    %v173 = vpop.f32.mrf.mxu0
    %v174 = vadd.f32 %v96, %v173
    %v175 = vpop.f32.mrf.mxu0
    %176 = vdwg.mxu0
    %vm177 = vcmask 123904
    %178 = vst.msk [vmem:[#allocation2] sm:$0x3] %vm177, %v174
    // Predicated region
    $region14: #{model_forward.29} parent=1 // pred_check
      _
    $region15: #{model_forward.29} parent=1 // pred_check_branch
      %180 = sbr.rel (0) target = $region17
    $region16: #{model_forward.29} parent=1 // pred_region
      %s182 = ssub.s32 32, 32
      %183 = vsyncadd [#allocation3], %s182
      %s185 = sshll.u32 [#allocation2], 4
      %s186 = int_to_ptr.vmem [resolvable:$true] %s185
      %188 = dma.vmem_to_hbm [thread:$0]  %s186, 32, %s3, [#allocation3]
    $region17: #{model_forward.29} parent=1 // pred_fallthru
      _
    // Predicated region
    $region18: #{model_forward.29} parent=1 // pred_check
      _
    $region19: #{model_forward.29} parent=1 // pred_check_branch
      %190 = sbr.rel (0) target = $region21
    $region20: #{model_forward.29} parent=1 // pred_region
      %191 = dma.done [#allocation3], 32
    $region21: #{model_forward.29} parent=1 // pred_fallthru
      _
    %192 = vsyncpa [#allocation3], 1

</llo_original>
